<compile_context>
chip_gen: v6e
topology: v6e:2x2x1
jax: 0.10.0
libtpu: 0.0.40
codegen_flags: <defaults>
</compile_context>

<pallas_src>
import functools

import jax
import jax.numpy as jnp
from jax.experimental import pallas as pl
from jax.experimental.pallas import tpu as pltpu

LEAK = 0.2            # LeakyReLU negative slope
EPS = 1e-5            # InstanceNorm2d eps (PyTorch default)
_VMEM_LIMIT_BYTES = 32 * 1024 * 1024


def _leaky(y):
    return jnp.where(y > 0, y, LEAK * y)


def _mosaic_params():
    return pltpu.CompilerParams(dimension_semantics=("parallel",),
                                vmem_limit_bytes=_VMEM_LIMIT_BYTES)


# ----------------------------- Pallas kernels ------------------------------

def _accumulate_taps(x_ref, w_ref, xf_ref, acc_ref, *, k, s, cin, wph, lo):
    """Sum_{taps} x_shifted @ W_tap into the f32 VMEM accumulator.

    x_ref : (s*s, Lflat, cin)  bf16/f32 per-sample flattened spatial phases
    w_ref : (k*k*cin, cout)    f32 tap-major weight matrix
    xf_ref: (s*s, Lflat, cin)  f32 scratch (unpacked copy of x_ref)
    acc_ref: (lo, cout)        f32 scratch, lo = Ho*Wph (over-wide columns)
    """
    xf_ref[...] = x_ref[...].astype(jnp.float32)      # unpack bf16 -> f32 once
    acc_ref[...] = jnp.zeros_like(acc_ref)
    t = 0
    for di in range(k):
        for dj in range(k):
            ph = (di % s) * s + (dj % s)
            start = (di // s) * wph + (dj // s)
            xt = xf_ref[ph, pl.ds(start, lo), :]       # (lo, cin) f32
            wt = w_ref[t * cin:(t + 1) * cin, :]       # (cin, cout) f32
            if cin == 1:
                # 1-channel conv: rank-1 update on the VPU, no K=1 matmul.
                acc_ref[...] += xt * wt
            else:
                acc_ref[...] += jnp.dot(xt, wt,
                                        preferred_element_type=jnp.float32)
            t += 1


def conv_lrelu_kernel(x_ref, w_ref, o_ref, xf_ref, acc_ref, *,
                      k, s, cin, wph, lo):
    # Conv2d(bias=False) + LeakyReLU(0.2); one sample per grid step.
    _accumulate_taps(x_ref, w_ref, xf_ref, acc_ref,
                     k=k, s=s, cin=cin, wph=wph, lo=lo)
    o_ref[...] = _leaky(acc_ref[...]).astype(o_ref.dtype)


def conv_inorm_lrelu_kernel(x_ref, w_ref, mask_ref, o_ref, xf_ref, acc_ref, *,
                            k, s, cin, wph, lo, n_valid):
    # Conv2d(bias=False) + InstanceNorm2d (per-sample/channel over spatial,
    # biased var, no affine, eps=1e-5) + LeakyReLU(0.2); one sample per step.
    _accumulate_taps(x_ref, w_ref, xf_ref, acc_ref,
                     k=k, s=s, cin=cin, wph=wph, lo=lo)
    y = acc_ref[...]                     # (lo, cout) f32, over-wide columns
    m = mask_ref[...]                    # (lo, 1) f32, 1.0 on valid columns
    inv_n = 1.0 / float(n_valid)
    ym = y * m
    mean = jnp.sum(ym, axis=0, keepdims=True) * inv_n          # E[x]
    ex2 = jnp.sum(ym * y, axis=0, keepdims=True) * inv_n       # E[x^2]
    var = jnp.maximum(ex2 - mean * mean, 0.0)
    yn = (y - mean) * jax.lax.rsqrt(var + EPS)
    o_ref[...] = _leaky(yn).astype(o_ref.dtype)


def out_conv_kernel(x_ref, w_ref, b_ref, o_ref, xf_ref, acc_ref, *,
                    k, s, cin, wph, lo):
    # Final Conv2d(cin -> 1, k=4, pad=1) with bias.  Cout == 1, so the channel
    # reduction is done on the VPU (tap multiply-accumulate + one lane reduce)
    # instead of an N=1 MXU matmul with a lane-sparse weight block.
    xf_ref[...] = x_ref[...].astype(jnp.float32)
    acc_ref[...] = jnp.zeros_like(acc_ref)
    t = 0
    for di in range(k):
        for dj in range(k):
            ph = (di % s) * s + (dj % s)
            start = (di // s) * wph + (dj // s)
            xt = xf_ref[ph, pl.ds(start, lo), :]       # (lo, cin) f32
            wt = w_ref[t, :]                           # (cin,) f32
            acc_ref[...] += xt * wt
            t += 1
    out = jnp.sum(acc_ref[...], axis=-1, keepdims=True) + b_ref[0]
    o_ref[...] = out.astype(o_ref.dtype)


# ----------------------------- wrapper glue --------------------------------

def _prep_phases(x_nhwc, k, s, p, dtype):
    """Pad + split into s*s spatial phases, flattened per sample.

    Returns (B, s*s, Lflat, Cin) in `dtype` plus geometry.  Conv tap (di, dj)
    then reads the contiguous slice
        phases[b, (di%s)*s + dj%s, (di//s)*Wph + dj//s : ... + Ho*Wph, :]
    so the kernel never needs strided loads or materialized im2col patches.
    """
    B, H, W, Cin = x_nhwc.shape
    Ho = (H + 2 * p - k) // s + 1
    Wo = (W + 2 * p - k) // s + 1
    q = (k - 1) // s
    Hph, Wph = Ho + q, Wo + q
    pad_b, pad_r = s * Hph - H - p, s * Wph - W - p
    assert pad_b >= 0 and pad_r >= 0
    xp = jnp.pad(x_nhwc, ((0, 0), (p, pad_b), (p, pad_r), (0, 0)))
    ph = xp.reshape(B, Hph, s, Wph, s, Cin).transpose(0, 2, 4, 1, 3, 5)
    ph = ph.reshape(B, s * s, Hph * Wph, Cin)
    if q:   # tail so the largest tap's slice of length Ho*Wph stays in bounds
        ph = jnp.pad(ph, ((0, 0), (0, 0), (0, q), (0, 0)))
    geom = dict(Ho=Ho, Wo=Wo, Wph=Wph, Lo=Ho * Wph, Lflat=Hph * Wph + q)
    return ph.astype(dtype), geom


def _crop(y, geom, cout):
    """(B, Ho*Wph, cout) -> (B, Ho, Wo, cout): drop the over-wide columns."""
    B = y.shape[0]
    y = y.reshape(B, geom['Ho'], geom['Wph'], cout)
    return y[:, :, :geom['Wo'], :]


def _w_to_tapmat(w):
    """Torch conv weight (Cout, Cin, kh, kw) -> tap-major (kh*kw*Cin, Cout)."""
    cout, cin, kh, kw = w.shape
    return jnp.transpose(w, (2, 3, 1, 0)).reshape(kh * kw * cin, cout)


def _conv_lrelu(x, w, *, k, s, p, in_dtype):
    B, _, _, Cin = x.shape
    Cout = w.shape[0]
    phases, g = _prep_phases(x, k, s, p, in_dtype)
    w_mat = _w_to_tapmat(w).astype(jnp.float32)
    Lo, Lf, Wph, ss = g['Lo'], g['Lflat'], g['Wph'], s * s
    kern = functools.partial(conv_lrelu_kernel, k=k, s=s, cin=Cin, wph=Wph, lo=Lo)
    y = pl.pallas_call(
        kern,
        out_shape=jax.ShapeDtypeStruct((B, Lo, Cout), jnp.bfloat16),
        grid=(B,),
        in_specs=[
            pl.BlockSpec((None, ss, Lf, Cin), lambda b: (b, 0, 0, 0)),
            pl.BlockSpec((k * k * Cin, Cout), lambda b: (0, 0)),
        ],
        out_specs=pl.BlockSpec((None, Lo, Cout), lambda b: (b, 0, 0)),
        scratch_shapes=[pltpu.VMEM((ss, Lf, Cin), jnp.float32),
                        pltpu.VMEM((Lo, Cout), jnp.float32)],
        compiler_params=_mosaic_params(),
    )(phases, w_mat)
    return _crop(y, g, Cout)


def _conv_inorm_lrelu(x, w, *, k, s, p):
    B, _, _, Cin = x.shape
    Cout = w.shape[0]
    phases, g = _prep_phases(x, k, s, p, jnp.bfloat16)
    w_mat = _w_to_tapmat(w).astype(jnp.float32)
    Lo, Lf, Wph, Ho, Wo, ss = g['Lo'], g['Lflat'], g['Wph'], g['Ho'], g['Wo'], s * s
    # 1.0 on valid output columns (the accumulator is Wph-wide, only Wo valid).
    mask = ((jnp.arange(Lo) % Wph) < Wo).astype(jnp.float32).reshape(Lo, 1)
    kern = functools.partial(conv_inorm_lrelu_kernel, k=k, s=s, cin=Cin,
                             wph=Wph, lo=Lo, n_valid=Ho * Wo)
    y = pl.pallas_call(
        kern,
        out_shape=jax.ShapeDtypeStruct((B, Lo, Cout), jnp.bfloat16),
        grid=(B,),
        in_specs=[
            pl.BlockSpec((None, ss, Lf, Cin), lambda b: (b, 0, 0, 0)),
            pl.BlockSpec((k * k * Cin, Cout), lambda b: (0, 0)),
            pl.BlockSpec((Lo, 1), lambda b: (0, 0)),
        ],
        out_specs=pl.BlockSpec((None, Lo, Cout), lambda b: (b, 0, 0)),
        scratch_shapes=[pltpu.VMEM((ss, Lf, Cin), jnp.float32),
                        pltpu.VMEM((Lo, Cout), jnp.float32)],
        compiler_params=_mosaic_params(),
    )(phases, w_mat, mask)
    return _crop(y, g, Cout)


def _out_conv(x, w, bias, *, k=4, s=1, p=1):
    # w: (1, Cin, k, k), bias: (1,)
    B, _, _, Cin = x.shape
    phases, g = _prep_phases(x, k, s, p, jnp.bfloat16)
    w_taps = jnp.transpose(w[0], (1, 2, 0)).reshape(k * k, Cin).astype(jnp.float32)
    Lo, Lf, Wph, ss = g['Lo'], g['Lflat'], g['Wph'], s * s
    kern = functools.partial(out_conv_kernel, k=k, s=s, cin=Cin, wph=Wph, lo=Lo)
    y = pl.pallas_call(
        kern,
        out_shape=jax.ShapeDtypeStruct((B, Lo, 1), jnp.float32),
        grid=(B,),
        in_specs=[
            pl.BlockSpec((None, ss, Lf, Cin), lambda b: (b, 0, 0, 0)),
            pl.BlockSpec((k * k, Cin), lambda b: (0, 0)),
            pl.BlockSpec(memory_space=pltpu.MemorySpace.SMEM),   # scalar bias
        ],
        out_specs=pl.BlockSpec((None, Lo, 1), lambda b: (b, 0, 0)),
        scratch_shapes=[pltpu.VMEM((ss, Lf, Cin), jnp.float32),
                        pltpu.VMEM((Lo, Cin), jnp.float32)],
        compiler_params=_mosaic_params(),
    )(phases, w_taps, bias.astype(jnp.float32))
    y = _crop(y, g, 1)                        # (B, Ho, Wo, 1)
    return jnp.transpose(y, (0, 3, 1, 2))     # back to NCHW


# ----------------------------- model ---------------------------------------

def init_params(key, base_feature, txt_input_dim, down_rate):
    nf = base_feature
    keys = jax.random.split(key, 5 + down_rate)
    params = {}
    params['conv1_w'] = jax.random.normal(keys[0], (nf, 1, 3, 3), jnp.float32) * 0.1
    down_ws = []
    for i in range(down_rate):
        nf_pre = nf
        nf = min(nf * 2, 512)
        down_ws.append(jax.random.normal(keys[1 + i], (nf, nf_pre, 3, 3), jnp.float32) * 0.1)
    params['down_ws'] = down_ws
    # textfc parameters kept for interface parity; they cannot influence the
    # output (see note in discriminator_forward).
    params['fc_w'] = jax.random.normal(keys[1 + down_rate], (128, txt_input_dim), jnp.float32) * 0.1
    params['fc_b'] = jax.random.normal(keys[2 + down_rate], (128,), jnp.float32) * 0.1
    params['out_w'] = jax.random.normal(keys[3 + down_rate], (1, nf + 128, 4, 4), jnp.float32) * 0.1
    params['out_b'] = jax.random.normal(keys[4 + down_rate], (1,), jnp.float32) * 0.1
    return params


def discriminator_forward(params, x_nchw, txt):
    # NCHW -> NHWC (channels map to TPU lanes inside the kernels).
    x = jnp.transpose(x_nchw, (0, 2, 3, 1)).astype(jnp.float32)

    # conv1: Conv2d(1 -> nf, k=3, s=1, p=1, bias=False) + LeakyReLU(0.2)
    x = _conv_lrelu(x, params['conv1_w'], k=3, s=1, p=1, in_dtype=jnp.float32)

    # downs: [Conv2d(k=3, s=2, p=1, bias=False) + InstanceNorm2d + LeakyReLU(0.2)]*
    for dw in params['down_ws']:
        x = _conv_inorm_lrelu(x, dw, k=3, s=2, p=1)

    nf = x.shape[-1]

    # Text branch of the reference module:
    #   Linear -> view(B,128,1,1) -> repeat(1,1,s,s) -> InstanceNorm2d -> LeakyReLU.
    # InstanceNorm2d of a spatially constant map is exactly zero ((x-mean)==0
    # elementwise) and LeakyReLU(0)==0, so the 128 concatenated channels are
    # identically zero and contribute nothing through the final convolution.
    # We therefore skip that kernel and the channel concat entirely and only
    # reduce over the first `nf` input-channel slices of the output weight --
    # the same forward semantics as the PyTorch module.
    del txt
    out_w = params['out_w'][:, :nf, :, :]

    # output: Conv2d(nf (+128 zero channels) -> 1, k=4, p=1) with bias.
    return _out_conv(x, out_w, params['out_b'])


if __name__ == "__main__":
    base_feature, txt_input_dim, down_rate = 8, 16, 2
    key = jax.random.PRNGKey(0)
    kx, kt, kp = jax.random.split(key, 3)

    params = init_params(kp, base_feature, txt_input_dim, down_rate)
    x = jax.random.normal(kx, (2, 1, 16, 16), jnp.float32)        # NCHW input
    txt = jax.random.normal(kt, (2, txt_input_dim), jnp.float32)  # text embedding

    out = jax.jit(discriminator_forward)(params, x, txt)
    jax.block_until_ready(out)
    # 16 -> (conv1) 16 -> (down x2) 4 ; final 4x4 conv pad 1 -> 3
    assert out.shape == (2, 1, 3, 3), out.shape
    print("KERNEL_OK")
</pallas_src>

<mosaic_0001>
module attributes {stable_mosaic.version = 11 : i64} {
  func.func @conv_lrelu_kernel(%arg0: i32, %arg1: memref<1x1x326x1xf32, #tpu.memory_space<vmem>>, %arg2: memref<9x8xf32, #tpu.memory_space<vmem>>, %arg3: memref<1x288x8xbf16, #tpu.memory_space<vmem>>, %arg4: memref<1x326x1xf32, #tpu.memory_space<vmem>>, %arg5: memref<288x8xf32, #tpu.memory_space<vmem>>) attributes {dimension_semantics = [#tpu.dimension_semantics<parallel>], iteration_bounds = array<i64: 2>, scalar_prefetch = 0 : i64, scratch_operands = 2 : i64, tpu.core_type = #tpu.core_type<tc>, window_params = [{transform_indices = @transform_0, window_bounds = array<i64: 1, 1, 326, 1>}, {pipeline_mode = #tpu.pipeline_mode<synchronous>, transform_indices = @transform_1, window_bounds = array<i64: 9, 8>}, {transform_indices = @transform_2, window_bounds = array<i64: 1, 288, 8>}]} {
    %c0 = arith.constant 0 : index
    %c0_0 = arith.constant 0 : index
    %c0_1 = arith.constant 0 : index
    %c0_2 = arith.constant 0 : index
    %0 = vector.load %arg1[%c0, %c0_0, %c0_1, %c0_2] : memref<1x1x326x1xf32, #tpu.memory_space<vmem>>, vector<1x1x326x1xf32>
    %1 = vector.shape_cast %0 : vector<1x1x326x1xf32> to vector<1x326x1xf32>
    %c0_3 = arith.constant 0 : index
    %c0_4 = arith.constant 0 : index
    %c0_5 = arith.constant 0 : index
    %2 = vector.load %arg4[%c0_3, %c0_4, %c0_5] : memref<1x326x1xf32, #tpu.memory_space<vmem>>, vector<1x326x1xf32>
    tpu.vector_store %arg4[%c0_3, %c0_4, %c0_5], %1 {strides = array<i32>} : memref<1x326x1xf32, #tpu.memory_space<vmem>>, vector<1x326x1xf32>,
    %cst = arith.constant 0.000000e+00 : f32
    %3 = vector.broadcast %cst : f32 to vector<288x8xf32>
    %c0_6 = arith.constant 0 : index
    %c0_7 = arith.constant 0 : index
    %4 = vector.load %arg5[%c0_6, %c0_7] : memref<288x8xf32, #tpu.memory_space<vmem>>, vector<288x8xf32>
    tpu.vector_store %arg5[%c0_6, %c0_7], %3 {strides = array<i32>} : memref<288x8xf32, #tpu.memory_space<vmem>>, vector<288x8xf32>,
    %c0_8 = arith.constant 0 : index
    %c0_9 = arith.constant 0 : index
    %c0_10 = arith.constant 0 : index
    %5 = vector.load %arg4[%c0_8, %c0_9, %c0_10] : memref<1x326x1xf32, #tpu.memory_space<vmem>>, vector<1x288x1xf32>
    %6 = vector.shape_cast %5 : vector<1x288x1xf32> to vector<288x1xf32>
    %c0_11 = arith.constant 0 : index
    %c0_12 = arith.constant 0 : index
    %7 = vector.load %arg2[%c0_11, %c0_12] : memref<9x8xf32, #tpu.memory_space<vmem>>, vector<1x8xf32>
    %c0_13 = arith.constant 0 : index
    %c0_14 = arith.constant 0 : index
    %8 = vector.load %arg5[%c0_13, %c0_14] : memref<288x8xf32, #tpu.memory_space<vmem>>, vector<288x8xf32>
    %9 = vector.broadcast %6 : vector<288x1xf32> to vector<288x8xf32>
    %10 = vector.broadcast %7 : vector<1x8xf32> to vector<288x8xf32>
    %11 = arith.mulf %9, %10 : vector<288x8xf32>
    %12 = arith.addf %8, %11 : vector<288x8xf32>
    %c0_15 = arith.constant 0 : index
    %c0_16 = arith.constant 0 : index
    %13 = vector.load %arg5[%c0_15, %c0_16] : memref<288x8xf32, #tpu.memory_space<vmem>>, vector<288x8xf32>
    tpu.vector_store %arg5[%c0_15, %c0_16], %12 {strides = array<i32>} : memref<288x8xf32, #tpu.memory_space<vmem>>, vector<288x8xf32>,
    %c0_17 = arith.constant 0 : index
    %c1 = arith.constant 1 : index
    %c0_18 = arith.constant 0 : index
    %14 = vector.load %arg4[%c0_17, %c1, %c0_18] : memref<1x326x1xf32, #tpu.memory_space<vmem>>, vector<1x288x1xf32>
    %15 = vector.shape_cast %14 : vector<1x288x1xf32> to vector<288x1xf32>
    %c1_19 = arith.constant 1 : index
    %c0_20 = arith.constant 0 : index
    %16 = vector.load %arg2[%c1_19, %c0_20] : memref<9x8xf32, #tpu.memory_space<vmem>>, vector<1x8xf32>
    %c0_21 = arith.constant 0 : index
    %c0_22 = arith.constant 0 : index
    %17 = vector.load %arg5[%c0_21, %c0_22] : memref<288x8xf32, #tpu.memory_space<vmem>>, vector<288x8xf32>
    %18 = vector.broadcast %15 : vector<288x1xf32> to vector<288x8xf32>
    %19 = vector.broadcast %16 : vector<1x8xf32> to vector<288x8xf32>
    %20 = arith.mulf %18, %19 : vector<288x8xf32>
    %21 = arith.addf %17, %20 : vector<288x8xf32>
    %c0_23 = arith.constant 0 : index
    %c0_24 = arith.constant 0 : index
    %22 = vector.load %arg5[%c0_23, %c0_24] : memref<288x8xf32, #tpu.memory_space<vmem>>, vector<288x8xf32>
    tpu.vector_store %arg5[%c0_23, %c0_24], %21 {strides = array<i32>} : memref<288x8xf32, #tpu.memory_space<vmem>>, vector<288x8xf32>,
    %c0_25 = arith.constant 0 : index
    %c2 = arith.constant 2 : index
    %c0_26 = arith.constant 0 : index
    %23 = vector.load %arg4[%c0_25, %c2, %c0_26] : memref<1x326x1xf32, #tpu.memory_space<vmem>>, vector<1x288x1xf32>
    %24 = vector.shape_cast %23 : vector<1x288x1xf32> to vector<288x1xf32>
    %c2_27 = arith.constant 2 : index
    %c0_28 = arith.constant 0 : index
    %25 = vector.load %arg2[%c2_27, %c0_28] : memref<9x8xf32, #tpu.memory_space<vmem>>, vector<1x8xf32>
    %c0_29 = arith.constant 0 : index
    %c0_30 = arith.constant 0 : index
    %26 = vector.load %arg5[%c0_29, %c0_30] : memref<288x8xf32, #tpu.memory_space<vmem>>, vector<288x8xf32>
    %27 = vector.broadcast %24 : vector<288x1xf32> to vector<288x8xf32>
    %28 = vector.broadcast %25 : vector<1x8xf32> to vector<288x8xf32>
    %29 = arith.mulf %27, %28 : vector<288x8xf32>
    %30 = arith.addf %26, %29 : vector<288x8xf32>
    %c0_31 = arith.constant 0 : index
    %c0_32 = arith.constant 0 : index
    %31 = vector.load %arg5[%c0_31, %c0_32] : memref<288x8xf32, #tpu.memory_space<vmem>>, vector<288x8xf32>
    tpu.vector_store %arg5[%c0_31, %c0_32], %30 {strides = array<i32>} : memref<288x8xf32, #tpu.memory_space<vmem>>, vector<288x8xf32>,
    %c0_33 = arith.constant 0 : index
    %c18 = arith.constant 18 : index
    %c0_34 = arith.constant 0 : index
    %32 = vector.load %arg4[%c0_33, %c18, %c0_34] : memref<1x326x1xf32, #tpu.memory_space<vmem>>, vector<1x288x1xf32>
    %33 = vector.shape_cast %32 : vector<1x288x1xf32> to vector<288x1xf32>
    %c3 = arith.constant 3 : index
    %c0_35 = arith.constant 0 : index
    %34 = vector.load %arg2[%c3, %c0_35] : memref<9x8xf32, #tpu.memory_space<vmem>>, vector<1x8xf32>
    %c0_36 = arith.constant 0 : index
    %c0_37 = arith.constant 0 : index
    %35 = vector.load %arg5[%c0_36, %c0_37] : memref<288x8xf32, #tpu.memory_space<vmem>>, vector<288x8xf32>
    %36 = vector.broadcast %33 : vector<288x1xf32> to vector<288x8xf32>
    %37 = vector.broadcast %34 : vector<1x8xf32> to vector<288x8xf32>
    %38 = arith.mulf %36, %37 : vector<288x8xf32>
    %39 = arith.addf %35, %38 : vector<288x8xf32>
    %c0_38 = arith.constant 0 : index
    %c0_39 = arith.constant 0 : index
    %40 = vector.load %arg5[%c0_38, %c0_39] : memref<288x8xf32, #tpu.memory_space<vmem>>, vector<288x8xf32>
    tpu.vector_store %arg5[%c0_38, %c0_39], %39 {strides = array<i32>} : memref<288x8xf32, #tpu.memory_space<vmem>>, vector<288x8xf32>,
    %c0_40 = arith.constant 0 : index
    %c19 = arith.constant 19 : index
    %c0_41 = arith.constant 0 : index
    %41 = vector.load %arg4[%c0_40, %c19, %c0_41] : memref<1x326x1xf32, #tpu.memory_space<vmem>>, vector<1x288x1xf32>
    %42 = vector.shape_cast %41 : vector<1x288x1xf32> to vector<288x1xf32>
    %c4 = arith.constant 4 : index
    %c0_42 = arith.constant 0 : index
    %43 = vector.load %arg2[%c4, %c0_42] : memref<9x8xf32, #tpu.memory_space<vmem>>, vector<1x8xf32>
    %c0_43 = arith.constant 0 : index
    %c0_44 = arith.constant 0 : index
    %44 = vector.load %arg5[%c0_43, %c0_44] : memref<288x8xf32, #tpu.memory_space<vmem>>, vector<288x8xf32>
    %45 = vector.broadcast %42 : vector<288x1xf32> to vector<288x8xf32>
    %46 = vector.broadcast %43 : vector<1x8xf32> to vector<288x8xf32>
    %47 = arith.mulf %45, %46 : vector<288x8xf32>
    %48 = arith.addf %44, %47 : vector<288x8xf32>
    %c0_45 = arith.constant 0 : index
    %c0_46 = arith.constant 0 : index
    %49 = vector.load %arg5[%c0_45, %c0_46] : memref<288x8xf32, #tpu.memory_space<vmem>>, vector<288x8xf32>
    tpu.vector_store %arg5[%c0_45, %c0_46], %48 {strides = array<i32>} : memref<288x8xf32, #tpu.memory_space<vmem>>, vector<288x8xf32>,
    %c0_47 = arith.constant 0 : index
    %c20 = arith.constant 20 : index
    %c0_48 = arith.constant 0 : index
    %50 = vector.load %arg4[%c0_47, %c20, %c0_48] : memref<1x326x1xf32, #tpu.memory_space<vmem>>, vector<1x288x1xf32>
    %51 = vector.shape_cast %50 : vector<1x288x1xf32> to vector<288x1xf32>
    %c5 = arith.constant 5 : index
    %c0_49 = arith.constant 0 : index
    %52 = vector.load %arg2[%c5, %c0_49] : memref<9x8xf32, #tpu.memory_space<vmem>>, vector<1x8xf32>
    %c0_50 = arith.constant 0 : index
    %c0_51 = arith.constant 0 : index
    %53 = vector.load %arg5[%c0_50, %c0_51] : memref<288x8xf32, #tpu.memory_space<vmem>>, vector<288x8xf32>
    %54 = vector.broadcast %51 : vector<288x1xf32> to vector<288x8xf32>
    %55 = vector.broadcast %52 : vector<1x8xf32> to vector<288x8xf32>
    %56 = arith.mulf %54, %55 : vector<288x8xf32>
    %57 = arith.addf %53, %56 : vector<288x8xf32>
    %c0_52 = arith.constant 0 : index
    %c0_53 = arith.constant 0 : index
    %58 = vector.load %arg5[%c0_52, %c0_53] : memref<288x8xf32, #tpu.memory_space<vmem>>, vector<288x8xf32>
    tpu.vector_store %arg5[%c0_52, %c0_53], %57 {strides = array<i32>} : memref<288x8xf32, #tpu.memory_space<vmem>>, vector<288x8xf32>,
    %c0_54 = arith.constant 0 : index
    %c36 = arith.constant 36 : index
    %c0_55 = arith.constant 0 : index
    %59 = vector.load %arg4[%c0_54, %c36, %c0_55] : memref<1x326x1xf32, #tpu.memory_space<vmem>>, vector<1x288x1xf32>
    %60 = vector.shape_cast %59 : vector<1x288x1xf32> to vector<288x1xf32>
    %c6 = arith.constant 6 : index
    %c0_56 = arith.constant 0 : index
    %61 = vector.load %arg2[%c6, %c0_56] : memref<9x8xf32, #tpu.memory_space<vmem>>, vector<1x8xf32>
    %c0_57 = arith.constant 0 : index
    %c0_58 = arith.constant 0 : index
    %62 = vector.load %arg5[%c0_57, %c0_58] : memref<288x8xf32, #tpu.memory_space<vmem>>, vector<288x8xf32>
    %63 = vector.broadcast %60 : vector<288x1xf32> to vector<288x8xf32>
    %64 = vector.broadcast %61 : vector<1x8xf32> to vector<288x8xf32>
    %65 = arith.mulf %63, %64 : vector<288x8xf32>
    %66 = arith.addf %62, %65 : vector<288x8xf32>
    %c0_59 = arith.constant 0 : index
    %c0_60 = arith.constant 0 : index
    %67 = vector.load %arg5[%c0_59, %c0_60] : memref<288x8xf32, #tpu.memory_space<vmem>>, vector<288x8xf32>
    tpu.vector_store %arg5[%c0_59, %c0_60], %66 {strides = array<i32>} : memref<288x8xf32, #tpu.memory_space<vmem>>, vector<288x8xf32>,
    %c0_61 = arith.constant 0 : index
    %c37 = arith.constant 37 : index
    %c0_62 = arith.constant 0 : index
    %68 = vector.load %arg4[%c0_61, %c37, %c0_62] : memref<1x326x1xf32, #tpu.memory_space<vmem>>, vector<1x288x1xf32>
    %69 = vector.shape_cast %68 : vector<1x288x1xf32> to vector<288x1xf32>
    %c7 = arith.constant 7 : index
    %c0_63 = arith.constant 0 : index
    %70 = vector.load %arg2[%c7, %c0_63] : memref<9x8xf32, #tpu.memory_space<vmem>>, vector<1x8xf32>
    %c0_64 = arith.constant 0 : index
    %c0_65 = arith.constant 0 : index
    %71 = vector.load %arg5[%c0_64, %c0_65] : memref<288x8xf32, #tpu.memory_space<vmem>>, vector<288x8xf32>
    %72 = vector.broadcast %69 : vector<288x1xf32> to vector<288x8xf32>
    %73 = vector.broadcast %70 : vector<1x8xf32> to vector<288x8xf32>
    %74 = arith.mulf %72, %73 : vector<288x8xf32>
    %75 = arith.addf %71, %74 : vector<288x8xf32>
    %c0_66 = arith.constant 0 : index
    %c0_67 = arith.constant 0 : index
    %76 = vector.load %arg5[%c0_66, %c0_67] : memref<288x8xf32, #tpu.memory_space<vmem>>, vector<288x8xf32>
    tpu.vector_store %arg5[%c0_66, %c0_67], %75 {strides = array<i32>} : memref<288x8xf32, #tpu.memory_space<vmem>>, vector<288x8xf32>,
    %c0_68 = arith.constant 0 : index
    %c38 = arith.constant 38 : index
    %c0_69 = arith.constant 0 : index
    %77 = vector.load %arg4[%c0_68, %c38, %c0_69] : memref<1x326x1xf32, #tpu.memory_space<vmem>>, vector<1x288x1xf32>
    %78 = vector.shape_cast %77 : vector<1x288x1xf32> to vector<288x1xf32>
    %c8 = arith.constant 8 : index
    %c0_70 = arith.constant 0 : index
    %79 = vector.load %arg2[%c8, %c0_70] : memref<9x8xf32, #tpu.memory_space<vmem>>, vector<1x8xf32>
    %c0_71 = arith.constant 0 : index
    %c0_72 = arith.constant 0 : index
    %80 = vector.load %arg5[%c0_71, %c0_72] : memref<288x8xf32, #tpu.memory_space<vmem>>, vector<288x8xf32>
    %81 = vector.broadcast %78 : vector<288x1xf32> to vector<288x8xf32>
    %82 = vector.broadcast %79 : vector<1x8xf32> to vector<288x8xf32>
    %83 = arith.mulf %81, %82 : vector<288x8xf32>
    %84 = arith.addf %80, %83 : vector<288x8xf32>
    %c0_73 = arith.constant 0 : index
    %c0_74 = arith.constant 0 : index
    %85 = vector.load %arg5[%c0_73, %c0_74] : memref<288x8xf32, #tpu.memory_space<vmem>>, vector<288x8xf32>
    tpu.vector_store %arg5[%c0_73, %c0_74], %84 {strides = array<i32>} : memref<288x8xf32, #tpu.memory_space<vmem>>, vector<288x8xf32>,
    %c0_75 = arith.constant 0 : index
    %c0_76 = arith.constant 0 : index
    %86 = vector.load %arg5[%c0_75, %c0_76] : memref<288x8xf32, #tpu.memory_space<vmem>>, vector<288x8xf32>
    %cst_77 = arith.constant 0.000000e+00 : f32
    %87 = vector.broadcast %cst_77 : f32 to vector<288x8xf32>
    %88 = arith.cmpf ogt, %86, %87 : vector<288x8xf32>
    %cst_78 = arith.constant 2.000000e-01 : f32
    %89 = vector.broadcast %cst_78 : f32 to vector<288x8xf32>
    %90 = arith.mulf %89, %86 : vector<288x8xf32>
    %91 = arith.select %88, %86, %90 : vector<288x8xi1>, vector<288x8xf32>
    %92 = arith.truncf %91 : vector<288x8xf32> to vector<288x8xbf16>
    %c0_79 = arith.constant 0 : index
    %c0_80 = arith.constant 0 : index
    %c0_81 = arith.constant 0 : index
    %93 = vector.load %arg3[%c0_79, %c0_80, %c0_81] : memref<1x288x8xbf16, #tpu.memory_space<vmem>>, vector<1x288x8xbf16>
    %94 = vector.shape_cast %93 : vector<1x288x8xbf16> to vector<288x8xbf16>
    %95 = vector.shape_cast %92 : vector<288x8xbf16> to vector<1x288x8xbf16>
    tpu.vector_store %arg3[%c0_79, %c0_80, %c0_81], %95 {strides = array<i32>} : memref<1x288x8xbf16, #tpu.memory_space<vmem>>, vector<1x288x8xbf16>,
    return
  }
  func.func @transform_0(%arg0: i32) -> (i32, i32, i32, i32) {
    %c0_i32 = arith.constant 0 : i32
    %c0_i32_0 = arith.constant 0 : i32
    %c0_i32_1 = arith.constant 0 : i32
    %c0_i32_2 = arith.constant 0 : i32
    return %arg0, %c0_i32, %c0_i32_0, %c0_i32_1 : i32, i32, i32, i32
  }
  func.func @transform_1(%arg0: i32) -> (i32, i32) {
    %c0_i32 = arith.constant 0 : i32
    %c0_i32_0 = arith.constant 0 : i32
    %c0_i32_1 = arith.constant 0 : i32
    return %c0_i32, %c0_i32_0 : i32, i32
  }
  func.func @transform_2(%arg0: i32) -> (i32, i32, i32) {
    %c0_i32 = arith.constant 0 : i32
    %c0_i32_0 = arith.constant 0 : i32
    %c0_i32_1 = arith.constant 0 : i32
    return %arg0, %c0_i32, %c0_i32_0 : i32, i32, i32
  }
}

module attributes {stable_mosaic.version = 11 : i64} {
  func.func @conv_inorm_lrelu_kernel(%arg0: i32, %arg1: memref<1x4x82x8xbf16, #tpu.memory_space<vmem>>, %arg2: memref<72x16xf32, #tpu.memory_space<vmem>>, %arg3: memref<72x1xf32, #tpu.memory_space<vmem>>, %arg4: memref<1x72x16xbf16, #tpu.memory_space<vmem>>, %arg5: memref<4x82x8xf32, #tpu.memory_space<vmem>>, %arg6: memref<72x16xf32, #tpu.memory_space<vmem>>) attributes {dimension_semantics = [#tpu.dimension_semantics<parallel>], iteration_bounds = array<i64: 2>, scalar_prefetch = 0 : i64, scratch_operands = 2 : i64, tpu.core_type = #tpu.core_type<tc>, window_params = [{transform_indices = @transform_0, window_bounds = array<i64: 1, 4, 82, 8>}, {pipeline_mode = #tpu.pipeline_mode<synchronous>, transform_indices = @transform_1, window_bounds = array<i64: 72, 16>}, {pipeline_mode = #tpu.pipeline_mode<synchronous>, transform_indices = @transform_2, window_bounds = array<i64: 72, 1>}, {transform_indices = @transform_3, window_bounds = array<i64: 1, 72, 16>}]} {
    %c0 = arith.constant 0 : index
    %c0_0 = arith.constant 0 : index
    %c0_1 = arith.constant 0 : index
    %c0_2 = arith.constant 0 : index
    %0 = vector.load %arg1[%c0, %c0_0, %c0_1, %c0_2] : memref<1x4x82x8xbf16, #tpu.memory_space<vmem>>, vector<1x4x82x8xbf16>
    %1 = vector.shape_cast %0 : vector<1x4x82x8xbf16> to vector<4x82x8xbf16>
    %2 = arith.extf %1 : vector<4x82x8xbf16> to vector<4x82x8xf32>
    %c0_3 = arith.constant 0 : index
    %c0_4 = arith.constant 0 : index
    %c0_5 = arith.constant 0 : index
    %3 = vector.load %arg5[%c0_3, %c0_4, %c0_5] : memref<4x82x8xf32, #tpu.memory_space<vmem>>, vector<4x82x8xf32>
    tpu.vector_store %arg5[%c0_3, %c0_4, %c0_5], %2 {strides = array<i32>} : memref<4x82x8xf32, #tpu.memory_space<vmem>>, vector<4x82x8xf32>,
    %cst = arith.constant 0.000000e+00 : f32
    %4 = vector.broadcast %cst : f32 to vector<72x16xf32>
    %c0_6 = arith.constant 0 : index
    %c0_7 = arith.constant 0 : index
    %5 = vector.load %arg6[%c0_6, %c0_7] : memref<72x16xf32, #tpu.memory_space<vmem>>, vector<72x16xf32>
    tpu.vector_store %arg6[%c0_6, %c0_7], %4 {strides = array<i32>} : memref<72x16xf32, #tpu.memory_space<vmem>>, vector<72x16xf32>,
    %c0_8 = arith.constant 0 : index
    %c0_9 = arith.constant 0 : index
    %c0_10 = arith.constant 0 : index
    %6 = vector.load %arg5[%c0_8, %c0_9, %c0_10] : memref<4x82x8xf32, #tpu.memory_space<vmem>>, vector<1x72x8xf32>
    %7 = vector.shape_cast %6 : vector<1x72x8xf32> to vector<72x8xf32>
    %c0_11 = arith.constant 0 : index
    %c0_12 = arith.constant 0 : index
    %8 = vector.load %arg2[%c0_11, %c0_12] : memref<72x16xf32, #tpu.memory_space<vmem>>, vector<8x16xf32>
    %c0_13 = arith.constant 0 : index
    %c0_14 = arith.constant 0 : index
    %9 = vector.load %arg6[%c0_13, %c0_14] : memref<72x16xf32, #tpu.memory_space<vmem>>, vector<72x16xf32>
    %cst_15 = arith.constant dense<0.000000e+00> : vector<72x16xf32>
    %10 = tpu.matmul %7, %8, %cst_15 {dimension_numbers = #tpu.dot_dimension_numbers<[1], [0], [0], [1], [0, 0, 1, 1], [], []>} : vector<72x8xf32>, vector<8x16xf32>, vector<72x16xf32> -> vector<72x16xf32>
    %11 = arith.addf %9, %10 : vector<72x16xf32>
    %c0_16 = arith.constant 0 : index
    %c0_17 = arith.constant 0 : index
    %12 = vector.load %arg6[%c0_16, %c0_17] : memref<72x16xf32, #tpu.memory_space<vmem>>, vector<72x16xf32>
    tpu.vector_store %arg6[%c0_16, %c0_17], %11 {strides = array<i32>} : memref<72x16xf32, #tpu.memory_space<vmem>>, vector<72x16xf32>,
    %c1 = arith.constant 1 : index
    %c0_18 = arith.constant 0 : index
    %c0_19 = arith.constant 0 : index
    %13 = vector.load %arg5[%c1, %c0_18, %c0_19] : memref<4x82x8xf32, #tpu.memory_space<vmem>>, vector<1x72x8xf32>
    %14 = vector.shape_cast %13 : vector<1x72x8xf32> to vector<72x8xf32>
    %c8 = arith.constant 8 : index
    %c0_20 = arith.constant 0 : index
    %15 = vector.load %arg2[%c8, %c0_20] : memref<72x16xf32, #tpu.memory_space<vmem>>, vector<8x16xf32>
    %c0_21 = arith.constant 0 : index
    %c0_22 = arith.constant 0 : index
    %16 = vector.load %arg6[%c0_21, %c0_22] : memref<72x16xf32, #tpu.memory_space<vmem>>, vector<72x16xf32>
    %cst_23 = arith.constant dense<0.000000e+00> : vector<72x16xf32>
    %17 = tpu.matmul %14, %15, %cst_23 {dimension_numbers = #tpu.dot_dimension_numbers<[1], [0], [0], [1], [0, 0, 1, 1], [], []>} : vector<72x8xf32>, vector<8x16xf32>, vector<72x16xf32> -> vector<72x16xf32>
    %18 = arith.addf %16, %17 : vector<72x16xf32>
    %c0_24 = arith.constant 0 : index
    %c0_25 = arith.constant 0 : index
    %19 = vector.load %arg6[%c0_24, %c0_25] : memref<72x16xf32, #tpu.memory_space<vmem>>, vector<72x16xf32>
    tpu.vector_store %arg6[%c0_24, %c0_25], %18 {strides = array<i32>} : memref<72x16xf32, #tpu.memory_space<vmem>>, vector<72x16xf32>,
    %c0_26 = arith.constant 0 : index
    %c1_27 = arith.constant 1 : index
    %c0_28 = arith.constant 0 : index
    %20 = vector.load %arg5[%c0_26, %c1_27, %c0_28] : memref<4x82x8xf32, #tpu.memory_space<vmem>>, vector<1x72x8xf32>
    %21 = vector.shape_cast %20 : vector<1x72x8xf32> to vector<72x8xf32>
    %c16 = arith.constant 16 : index
    %c0_29 = arith.constant 0 : index
    %22 = vector.load %arg2[%c16, %c0_29] : memref<72x16xf32, #tpu.memory_space<vmem>>, vector<8x16xf32>
    %c0_30 = arith.constant 0 : index
    %c0_31 = arith.constant 0 : index
    %23 = vector.load %arg6[%c0_30, %c0_31] : memref<72x16xf32, #tpu.memory_space<vmem>>, vector<72x16xf32>
    %cst_32 = arith.constant dense<0.000000e+00> : vector<72x16xf32>
    %24 = tpu.matmul %21, %22, %cst_32 {dimension_numbers = #tpu.dot_dimension_numbers<[1], [0], [0], [1], [0, 0, 1, 1], [], []>} : vector<72x8xf32>, vector<8x16xf32>, vector<72x16xf32> -> vector<72x16xf32>
    %25 = arith.addf %23, %24 : vector<72x16xf32>
    %c0_33 = arith.constant 0 : index
    %c0_34 = arith.constant 0 : index
    %26 = vector.load %arg6[%c0_33, %c0_34] : memref<72x16xf32, #tpu.memory_space<vmem>>, vector<72x16xf32>
    tpu.vector_store %arg6[%c0_33, %c0_34], %25 {strides = array<i32>} : memref<72x16xf32, #tpu.memory_space<vmem>>, vector<72x16xf32>,
    %c2 = arith.constant 2 : index
    %c0_35 = arith.constant 0 : index
    %c0_36 = arith.constant 0 : index
    %27 = vector.load %arg5[%c2, %c0_35, %c0_36] : memref<4x82x8xf32, #tpu.memory_space<vmem>>, vector<1x72x8xf32>
    %28 = vector.shape_cast %27 : vector<1x72x8xf32> to vector<72x8xf32>
    %c24 = arith.constant 24 : index
    %c0_37 = arith.constant 0 : index
    %29 = vector.load %arg2[%c24, %c0_37] : memref<72x16xf32, #tpu.memory_space<vmem>>, vector<8x16xf32>
    %c0_38 = arith.constant 0 : index
    %c0_39 = arith.constant 0 : index
    %30 = vector.load %arg6[%c0_38, %c0_39] : memref<72x16xf32, #tpu.memory_space<vmem>>, vector<72x16xf32>
    %cst_40 = arith.constant dense<0.000000e+00> : vector<72x16xf32>
    %31 = tpu.matmul %28, %29, %cst_40 {dimension_numbers = #tpu.dot_dimension_numbers<[1], [0], [0], [1], [0, 0, 1, 1], [], []>} : vector<72x8xf32>, vector<8x16xf32>, vector<72x16xf32> -> vector<72x16xf32>
    %32 = arith.addf %30, %31 : vector<72x16xf32>
    %c0_41 = arith.constant 0 : index
    %c0_42 = arith.constant 0 : index
    %33 = vector.load %arg6[%c0_41, %c0_42] : memref<72x16xf32, #tpu.memory_space<vmem>>, vector<72x16xf32>
    tpu.vector_store %arg6[%c0_41, %c0_42], %32 {strides = array<i32>} : memref<72x16xf32, #tpu.memory_space<vmem>>, vector<72x16xf32>,
    %c3 = arith.constant 3 : index
    %c0_43 = arith.constant 0 : index
    %c0_44 = arith.constant 0 : index
    %34 = vector.load %arg5[%c3, %c0_43, %c0_44] : memref<4x82x8xf32, #tpu.memory_space<vmem>>, vector<1x72x8xf32>
    %35 = vector.shape_cast %34 : vector<1x72x8xf32> to vector<72x8xf32>
    %c32 = arith.constant 32 : index
    %c0_45 = arith.constant 0 : index
    %36 = vector.load %arg2[%c32, %c0_45] : memref<72x16xf32, #tpu.memory_space<vmem>>, vector<8x16xf32>
    %c0_46 = arith.constant 0 : index
    %c0_47 = arith.constant 0 : index
    %37 = vector.load %arg6[%c0_46, %c0_47] : memref<72x16xf32, #tpu.memory_space<vmem>>, vector<72x16xf32>
    %cst_48 = arith.constant dense<0.000000e+00> : vector<72x16xf32>
    %38 = tpu.matmul %35, %36, %cst_48 {dimension_numbers = #tpu.dot_dimension_numbers<[1], [0], [0], [1], [0, 0, 1, 1], [], []>} : vector<72x8xf32>, vector<8x16xf32>, vector<72x16xf32> -> vector<72x16xf32>
    %39 = arith.addf %37, %38 : vector<72x16xf32>
    %c0_49 = arith.constant 0 : index
    %c0_50 = arith.constant 0 : index
    %40 = vector.load %arg6[%c0_49, %c0_50] : memref<72x16xf32, #tpu.memory_space<vmem>>, vector<72x16xf32>
    tpu.vector_store %arg6[%c0_49, %c0_50], %39 {strides = array<i32>} : memref<72x16xf32, #tpu.memory_space<vmem>>, vector<72x16xf32>,
    %c2_51 = arith.constant 2 : index
    %c1_52 = arith.constant 1 : index
    %c0_53 = arith.constant 0 : index
    %41 = vector.load %arg5[%c2_51, %c1_52, %c0_53] : memref<4x82x8xf32, #tpu.memory_space<vmem>>, vector<1x72x8xf32>
    %42 = vector.shape_cast %41 : vector<1x72x8xf32> to vector<72x8xf32>
    %c40 = arith.constant 40 : index
    %c0_54 = arith.constant 0 : index
    %43 = vector.load %arg2[%c40, %c0_54] : memref<72x16xf32, #tpu.memory_space<vmem>>, vector<8x16xf32>
    %c0_55 = arith.constant 0 : index
    %c0_56 = arith.constant 0 : index
    %44 = vector.load %arg6[%c0_55, %c0_56] : memref<72x16xf32, #tpu.memory_space<vmem>>, vector<72x16xf32>
    %cst_57 = arith.constant dense<0.000000e+00> : vector<72x16xf32>
    %45 = tpu.matmul %42, %43, %cst_57 {dimension_numbers = #tpu.dot_dimension_numbers<[1], [0], [0], [1], [0, 0, 1, 1], [], []>} : vector<72x8xf32>, vector<8x16xf32>, vector<72x16xf32> -> vector<72x16xf32>
    %46 = arith.addf %44, %45 : vector<72x16xf32>
    %c0_58 = arith.constant 0 : index
    %c0_59 = arith.constant 0 : index
    %47 = vector.load %arg6[%c0_58, %c0_59] : memref<72x16xf32, #tpu.memory_space<vmem>>, vector<72x16xf32>
    tpu.vector_store %arg6[%c0_58, %c0_59], %46 {strides = array<i32>} : memref<72x16xf32, #tpu.memory_space<vmem>>, vector<72x16xf32>,
    %c0_60 = arith.constant 0 : index
    %c9 = arith.constant 9 : index
    %c0_61 = arith.constant 0 : index
    %48 = vector.load %arg5[%c0_60, %c9, %c0_61] : memref<4x82x8xf32, #tpu.memory_space<vmem>>, vector<1x72x8xf32>
    %49 = vector.shape_cast %48 : vector<1x72x8xf32> to vector<72x8xf32>
    %c48 = arith.constant 48 : index
    %c0_62 = arith.constant 0 : index
    %50 = vector.load %arg2[%c48, %c0_62] : memref<72x16xf32, #tpu.memory_space<vmem>>, vector<8x16xf32>
    %c0_63 = arith.constant 0 : index
    %c0_64 = arith.constant 0 : index
    %51 = vector.load %arg6[%c0_63, %c0_64] : memref<72x16xf32, #tpu.memory_space<vmem>>, vector<72x16xf32>
    %cst_65 = arith.constant dense<0.000000e+00> : vector<72x16xf32>
    %52 = tpu.matmul %49, %50, %cst_65 {dimension_numbers = #tpu.dot_dimension_numbers<[1], [0], [0], [1], [0, 0, 1, 1], [], []>} : vector<72x8xf32>, vector<8x16xf32>, vector<72x16xf32> -> vector<72x16xf32>
    %53 = arith.addf %51, %52 : vector<72x16xf32>
    %c0_66 = arith.constant 0 : index
    %c0_67 = arith.constant 0 : index
    %54 = vector.load %arg6[%c0_66, %c0_67] : memref<72x16xf32, #tpu.memory_space<vmem>>, vector<72x16xf32>
    tpu.vector_store %arg6[%c0_66, %c0_67], %53 {strides = array<i32>} : memref<72x16xf32, #tpu.memory_space<vmem>>, vector<72x16xf32>,
    %c1_68 = arith.constant 1 : index
    %c9_69 = arith.constant 9 : index
    %c0_70 = arith.constant 0 : index
    %55 = vector.load %arg5[%c1_68, %c9_69, %c0_70] : memref<4x82x8xf32, #tpu.memory_space<vmem>>, vector<1x72x8xf32>
    %56 = vector.shape_cast %55 : vector<1x72x8xf32> to vector<72x8xf32>
    %c56 = arith.constant 56 : index
    %c0_71 = arith.constant 0 : index
    %57 = vector.load %arg2[%c56, %c0_71] : memref<72x16xf32, #tpu.memory_space<vmem>>, vector<8x16xf32>
    %c0_72 = arith.constant 0 : index
    %c0_73 = arith.constant 0 : index
    %58 = vector.load %arg6[%c0_72, %c0_73] : memref<72x16xf32, #tpu.memory_space<vmem>>, vector<72x16xf32>
    %cst_74 = arith.constant dense<0.000000e+00> : vector<72x16xf32>
    %59 = tpu.matmul %56, %57, %cst_74 {dimension_numbers = #tpu.dot_dimension_numbers<[1], [0], [0], [1], [0, 0, 1, 1], [], []>} : vector<72x8xf32>, vector<8x16xf32>, vector<72x16xf32> -> vector<72x16xf32>
    %60 = arith.addf %58, %59 : vector<72x16xf32>
    %c0_75 = arith.constant 0 : index
    %c0_76 = arith.constant 0 : index
    %61 = vector.load %arg6[%c0_75, %c0_76] : memref<72x16xf32, #tpu.memory_space<vmem>>, vector<72x16xf32>
    tpu.vector_store %arg6[%c0_75, %c0_76], %60 {strides = array<i32>} : memref<72x16xf32, #tpu.memory_space<vmem>>, vector<72x16xf32>,
    %c0_77 = arith.constant 0 : index
    %c10 = arith.constant 10 : index
    %c0_78 = arith.constant 0 : index
    %62 = vector.load %arg5[%c0_77, %c10, %c0_78] : memref<4x82x8xf32, #tpu.memory_space<vmem>>, vector<1x72x8xf32>
    %63 = vector.shape_cast %62 : vector<1x72x8xf32> to vector<72x8xf32>
    %c64 = arith.constant 64 : index
    %c0_79 = arith.constant 0 : index
    %64 = vector.load %arg2[%c64, %c0_79] : memref<72x16xf32, #tpu.memory_space<vmem>>, vector<8x16xf32>
    %c0_80 = arith.constant 0 : index
    %c0_81 = arith.constant 0 : index
    %65 = vector.load %arg6[%c0_80, %c0_81] : memref<72x16xf32, #tpu.memory_space<vmem>>, vector<72x16xf32>
    %cst_82 = arith.constant dense<0.000000e+00> : vector<72x16xf32>
    %66 = tpu.matmul %63, %64, %cst_82 {dimension_numbers = #tpu.dot_dimension_numbers<[1], [0], [0], [1], [0, 0, 1, 1], [], []>} : vector<72x8xf32>, vector<8x16xf32>, vector<72x16xf32> -> vector<72x16xf32>
    %67 = arith.addf %65, %66 : vector<72x16xf32>
    %c0_83 = arith.constant 0 : index
    %c0_84 = arith.constant 0 : index
    %68 = vector.load %arg6[%c0_83, %c0_84] : memref<72x16xf32, #tpu.memory_space<vmem>>, vector<72x16xf32>
    tpu.vector_store %arg6[%c0_83, %c0_84], %67 {strides = array<i32>} : memref<72x16xf32, #tpu.memory_space<vmem>>, vector<72x16xf32>,
    %c0_85 = arith.constant 0 : index
    %c0_86 = arith.constant 0 : index
    %69 = vector.load %arg6[%c0_85, %c0_86] : memref<72x16xf32, #tpu.memory_space<vmem>>, vector<72x16xf32>
    %c0_87 = arith.constant 0 : index
    %c0_88 = arith.constant 0 : index
    %70 = vector.load %arg3[%c0_87, %c0_88] : memref<72x1xf32, #tpu.memory_space<vmem>>, vector<72x1xf32>
    %71 = vector.broadcast %70 : vector<72x1xf32> to vector<72x16xf32>
    %72 = arith.mulf %69, %71 : vector<72x16xf32>
    %cst_89 = arith.constant dense<0.000000e+00> : vector<16xf32>
    %73 = vector.multi_reduction <add>, %72, %cst_89 [0] : vector<72x16xf32> to vector<16xf32>
    %74 = vector.shape_cast %73 : vector<16xf32> to vector<1x16xf32>
    %cst_90 = arith.constant 1.562500e-02 : f32
    %75 = vector.broadcast %cst_90 : f32 to vector<1x16xf32>
    %76 = arith.mulf %74, %75 : vector<1x16xf32>
    %77 = arith.mulf %72, %69 : vector<72x16xf32>
    %cst_91 = arith.constant dense<0.000000e+00> : vector<16xf32>
    %78 = vector.multi_reduction <add>, %77, %cst_91 [0] : vector<72x16xf32> to vector<16xf32>
    %79 = vector.shape_cast %78 : vector<16xf32> to vector<1x16xf32>
    %cst_92 = arith.constant 1.562500e-02 : f32
    %80 = vector.broadcast %cst_92 : f32 to vector<1x16xf32>
    %81 = arith.mulf %79, %80 : vector<1x16xf32>
    %82 = arith.mulf %76, %76 : vector<1x16xf32>
    %83 = arith.subf %81, %82 : vector<1x16xf32>
    %cst_93 = arith.constant 0.000000e+00 : f32
    %84 = vector.broadcast %cst_93 : f32 to vector<1x16xf32>
    %85 = arith.maximumf %83, %84 : vector<1x16xf32>
    %86 = vector.broadcast %76 : vector<1x16xf32> to vector<72x16xf32>
    %87 = arith.subf %69, %86 : vector<72x16xf32>
    %cst_94 = arith.constant 9.99999974E-6 : f32
    %88 = vector.broadcast %cst_94 : f32 to vector<1x16xf32>
    %89 = arith.addf %85, %88 : vector<1x16xf32>
    %90 = math.rsqrt %89 : vector<1x16xf32>
    %91 = vector.broadcast %90 : vector<1x16xf32> to vector<72x16xf32>
    %92 = arith.mulf %87, %91 : vector<72x16xf32>
    %cst_95 = arith.constant 0.000000e+00 : f32
    %93 = vector.broadcast %cst_95 : f32 to vector<72x16xf32>
    %94 = arith.cmpf ogt, %92, %93 : vector<72x16xf32>
    %cst_96 = arith.constant 2.000000e-01 : f32
    %95 = vector.broadcast %cst_96 : f32 to vector<72x16xf32>
    %96 = arith.mulf %95, %92 : vector<72x16xf32>
    %97 = arith.select %94, %92, %96 : vector<72x16xi1>, vector<72x16xf32>
    %98 = arith.truncf %97 : vector<72x16xf32> to vector<72x16xbf16>
    %c0_97 = arith.constant 0 : index
    %c0_98 = arith.constant 0 : index
    %c0_99 = arith.constant 0 : index
    %99 = vector.load %arg4[%c0_97, %c0_98, %c0_99] : memref<1x72x16xbf16, #tpu.memory_space<vmem>>, vector<1x72x16xbf16>
    %100 = vector.shape_cast %99 : vector<1x72x16xbf16> to vector<72x16xbf16>
    %101 = vector.shape_cast %98 : vector<72x16xbf16> to vector<1x72x16xbf16>
    tpu.vector_store %arg4[%c0_97, %c0_98, %c0_99], %101 {strides = array<i32>} : memref<1x72x16xbf16, #tpu.memory_space<vmem>>, vector<1x72x16xbf16>,
    return
  }
  func.func @transform_0(%arg0: i32) -> (i32, i32, i32, i32) {
    %c0_i32 = arith.constant 0 : i32
    %c0_i32_0 = arith.constant 0 : i32
    %c0_i32_1 = arith.constant 0 : i32
    %c0_i32_2 = arith.constant 0 : i32
    return %arg0, %c0_i32, %c0_i32_0, %c0_i32_1 : i32, i32, i32, i32
  }
  func.func @transform_1(%arg0: i32) -> (i32, i32) {
    %c0_i32 = arith.constant 0 : i32
    %c0_i32_0 = arith.constant 0 : i32
    %c0_i32_1 = arith.constant 0 : i32
    return %c0_i32, %c0_i32_0 : i32, i32
  }
  func.func @transform_2(%arg0: i32) -> (i32, i32) {
    %c0_i32 = arith.constant 0 : i32
    %c0_i32_0 = arith.constant 0 : i32
    %c0_i32_1 = arith.constant 0 : i32
    return %c0_i32, %c0_i32_0 : i32, i32
  }
  func.func @transform_3(%arg0: i32) -> (i32, i32, i32) {
    %c0_i32 = arith.constant 0 : i32
    %c0_i32_0 = arith.constant 0 : i32
    %c0_i32_1 = arith.constant 0 : i32
    return %arg0, %c0_i32, %c0_i32_0 : i32, i32, i32
  }
}

module attributes {stable_mosaic.version = 11 : i64} {
  func.func @conv_inorm_lrelu_kernel(%arg0: i32, %arg1: memref<1x4x26x16xbf16, #tpu.memory_space<vmem>>, %arg2: memref<144x32xf32, #tpu.memory_space<vmem>>, %arg3: memref<20x1xf32, #tpu.memory_space<vmem>>, %arg4: memref<1x20x32xbf16, #tpu.memory_space<vmem>>, %arg5: memref<4x26x16xf32, #tpu.memory_space<vmem>>, %arg6: memref<20x32xf32, #tpu.memory_space<vmem>>) attributes {dimension_semantics = [#tpu.dimension_semantics<parallel>], iteration_bounds = array<i64: 2>, scalar_prefetch = 0 : i64, scratch_operands = 2 : i64, tpu.core_type = #tpu.core_type<tc>, window_params = [{transform_indices = @transform_0, window_bounds = array<i64: 1, 4, 26, 16>}, {pipeline_mode = #tpu.pipeline_mode<synchronous>, transform_indices = @transform_1, window_bounds = array<i64: 144, 32>}, {pipeline_mode = #tpu.pipeline_mode<synchronous>, transform_indices = @transform_2, window_bounds = array<i64: 20, 1>}, {transform_indices = @transform_3, window_bounds = array<i64: 1, 20, 32>}]} {
    %c0 = arith.constant 0 : index
    %c0_0 = arith.constant 0 : index
    %c0_1 = arith.constant 0 : index
    %c0_2 = arith.constant 0 : index
    %0 = vector.load %arg1[%c0, %c0_0, %c0_1, %c0_2] : memref<1x4x26x16xbf16, #tpu.memory_space<vmem>>, vector<1x4x26x16xbf16>
    %1 = vector.shape_cast %0 : vector<1x4x26x16xbf16> to vector<4x26x16xbf16>
    %2 = arith.extf %1 : vector<4x26x16xbf16> to vector<4x26x16xf32>
    %c0_3 = arith.constant 0 : index
    %c0_4 = arith.constant 0 : index
    %c0_5 = arith.constant 0 : index
    %3 = vector.load %arg5[%c0_3, %c0_4, %c0_5] : memref<4x26x16xf32, #tpu.memory_space<vmem>>, vector<4x26x16xf32>
    tpu.vector_store %arg5[%c0_3, %c0_4, %c0_5], %2 {strides = array<i32>} : memref<4x26x16xf32, #tpu.memory_space<vmem>>, vector<4x26x16xf32>,
    %cst = arith.constant 0.000000e+00 : f32
    %4 = vector.broadcast %cst : f32 to vector<20x32xf32>
    %c0_6 = arith.constant 0 : index
    %c0_7 = arith.constant 0 : index
    %5 = vector.load %arg6[%c0_6, %c0_7] : memref<20x32xf32, #tpu.memory_space<vmem>>, vector<20x32xf32>
    tpu.vector_store %arg6[%c0_6, %c0_7], %4 {strides = array<i32>} : memref<20x32xf32, #tpu.memory_space<vmem>>, vector<20x32xf32>,
    %c0_8 = arith.constant 0 : index
    %c0_9 = arith.constant 0 : index
    %c0_10 = arith.constant 0 : index
    %6 = vector.load %arg5[%c0_8, %c0_9, %c0_10] : memref<4x26x16xf32, #tpu.memory_space<vmem>>, vector<1x20x16xf32>
    %7 = vector.shape_cast %6 : vector<1x20x16xf32> to vector<20x16xf32>
    %c0_11 = arith.constant 0 : index
    %c0_12 = arith.constant 0 : index
    %8 = vector.load %arg2[%c0_11, %c0_12] : memref<144x32xf32, #tpu.memory_space<vmem>>, vector<16x32xf32>
    %c0_13 = arith.constant 0 : index
    %c0_14 = arith.constant 0 : index
    %9 = vector.load %arg6[%c0_13, %c0_14] : memref<20x32xf32, #tpu.memory_space<vmem>>, vector<20x32xf32>
    %cst_15 = arith.constant dense<0.000000e+00> : vector<20x32xf32>
    %10 = tpu.matmul %7, %8, %cst_15 {dimension_numbers = #tpu.dot_dimension_numbers<[1], [0], [0], [1], [0, 0, 1, 1], [], []>} : vector<20x16xf32>, vector<16x32xf32>, vector<20x32xf32> -> vector<20x32xf32>
    %11 = arith.addf %9, %10 : vector<20x32xf32>
    %c0_16 = arith.constant 0 : index
    %c0_17 = arith.constant 0 : index
    %12 = vector.load %arg6[%c0_16, %c0_17] : memref<20x32xf32, #tpu.memory_space<vmem>>, vector<20x32xf32>
    tpu.vector_store %arg6[%c0_16, %c0_17], %11 {strides = array<i32>} : memref<20x32xf32, #tpu.memory_space<vmem>>, vector<20x32xf32>,
    %c1 = arith.constant 1 : index
    %c0_18 = arith.constant 0 : index
    %c0_19 = arith.constant 0 : index
    %13 = vector.load %arg5[%c1, %c0_18, %c0_19] : memref<4x26x16xf32, #tpu.memory_space<vmem>>, vector<1x20x16xf32>
    %14 = vector.shape_cast %13 : vector<1x20x16xf32> to vector<20x16xf32>
    %c16 = arith.constant 16 : index
    %c0_20 = arith.constant 0 : index
    %15 = vector.load %arg2[%c16, %c0_20] : memref<144x32xf32, #tpu.memory_space<vmem>>, vector<16x32xf32>
    %c0_21 = arith.constant 0 : index
    %c0_22 = arith.constant 0 : index
    %16 = vector.load %arg6[%c0_21, %c0_22] : memref<20x32xf32, #tpu.memory_space<vmem>>, vector<20x32xf32>
    %cst_23 = arith.constant dense<0.000000e+00> : vector<20x32xf32>
    %17 = tpu.matmul %14, %15, %cst_23 {dimension_numbers = #tpu.dot_dimension_numbers<[1], [0], [0], [1], [0, 0, 1, 1], [], []>} : vector<20x16xf32>, vector<16x32xf32>, vector<20x32xf32> -> vector<20x32xf32>
    %18 = arith.addf %16, %17 : vector<20x32xf32>
    %c0_24 = arith.constant 0 : index
    %c0_25 = arith.constant 0 : index
    %19 = vector.load %arg6[%c0_24, %c0_25] : memref<20x32xf32, #tpu.memory_space<vmem>>, vector<20x32xf32>
    tpu.vector_store %arg6[%c0_24, %c0_25], %18 {strides = array<i32>} : memref<20x32xf32, #tpu.memory_space<vmem>>, vector<20x32xf32>,
    %c0_26 = arith.constant 0 : index
    %c1_27 = arith.constant 1 : index
    %c0_28 = arith.constant 0 : index
    %20 = vector.load %arg5[%c0_26, %c1_27, %c0_28] : memref<4x26x16xf32, #tpu.memory_space<vmem>>, vector<1x20x16xf32>
    %21 = vector.shape_cast %20 : vector<1x20x16xf32> to vector<20x16xf32>
    %c32 = arith.constant 32 : index
    %c0_29 = arith.constant 0 : index
    %22 = vector.load %arg2[%c32, %c0_29] : memref<144x32xf32, #tpu.memory_space<vmem>>, vector<16x32xf32>
    %c0_30 = arith.constant 0 : index
    %c0_31 = arith.constant 0 : index
    %23 = vector.load %arg6[%c0_30, %c0_31] : memref<20x32xf32, #tpu.memory_space<vmem>>, vector<20x32xf32>
    %cst_32 = arith.constant dense<0.000000e+00> : vector<20x32xf32>
    %24 = tpu.matmul %21, %22, %cst_32 {dimension_numbers = #tpu.dot_dimension_numbers<[1], [0], [0], [1], [0, 0, 1, 1], [], []>} : vector<20x16xf32>, vector<16x32xf32>, vector<20x32xf32> -> vector<20x32xf32>
    %25 = arith.addf %23, %24 : vector<20x32xf32>
    %c0_33 = arith.constant 0 : index
    %c0_34 = arith.constant 0 : index
    %26 = vector.load %arg6[%c0_33, %c0_34] : memref<20x32xf32, #tpu.memory_space<vmem>>, vector<20x32xf32>
    tpu.vector_store %arg6[%c0_33, %c0_34], %25 {strides = array<i32>} : memref<20x32xf32, #tpu.memory_space<vmem>>, vector<20x32xf32>,
    %c2 = arith.constant 2 : index
    %c0_35 = arith.constant 0 : index
    %c0_36 = arith.constant 0 : index
    %27 = vector.load %arg5[%c2, %c0_35, %c0_36] : memref<4x26x16xf32, #tpu.memory_space<vmem>>, vector<1x20x16xf32>
    %28 = vector.shape_cast %27 : vector<1x20x16xf32> to vector<20x16xf32>
    %c48 = arith.constant 48 : index
    %c0_37 = arith.constant 0 : index
    %29 = vector.load %arg2[%c48, %c0_37] : memref<144x32xf32, #tpu.memory_space<vmem>>, vector<16x32xf32>
    %c0_38 = arith.constant 0 : index
    %c0_39 = arith.constant 0 : index
    %30 = vector.load %arg6[%c0_38, %c0_39] : memref<20x32xf32, #tpu.memory_space<vmem>>, vector<20x32xf32>
    %cst_40 = arith.constant dense<0.000000e+00> : vector<20x32xf32>
    %31 = tpu.matmul %28, %29, %cst_40 {dimension_numbers = #tpu.dot_dimension_numbers<[1], [0], [0], [1], [0, 0, 1, 1], [], []>} : vector<20x16xf32>, vector<16x32xf32>, vector<20x32xf32> -> vector<20x32xf32>
    %32 = arith.addf %30, %31 : vector<20x32xf32>
    %c0_41 = arith.constant 0 : index
    %c0_42 = arith.constant 0 : index
    %33 = vector.load %arg6[%c0_41, %c0_42] : memref<20x32xf32, #tpu.memory_space<vmem>>, vector<20x32xf32>
    tpu.vector_store %arg6[%c0_41, %c0_42], %32 {strides = array<i32>} : memref<20x32xf32, #tpu.memory_space<vmem>>, vector<20x32xf32>,
    %c3 = arith.constant 3 : index
    %c0_43 = arith.constant 0 : index
    %c0_44 = arith.constant 0 : index
    %34 = vector.load %arg5[%c3, %c0_43, %c0_44] : memref<4x26x16xf32, #tpu.memory_space<vmem>>, vector<1x20x16xf32>
    %35 = vector.shape_cast %34 : vector<1x20x16xf32> to vector<20x16xf32>
    %c64 = arith.constant 64 : index
    %c0_45 = arith.constant 0 : index
    %36 = vector.load %arg2[%c64, %c0_45] : memref<144x32xf32, #tpu.memory_space<vmem>>, vector<16x32xf32>
    %c0_46 = arith.constant 0 : index
    %c0_47 = arith.constant 0 : index
    %37 = vector.load %arg6[%c0_46, %c0_47] : memref<20x32xf32, #tpu.memory_space<vmem>>, vector<20x32xf32>
    %cst_48 = arith.constant dense<0.000000e+00> : vector<20x32xf32>
    %38 = tpu.matmul %35, %36, %cst_48 {dimension_numbers = #tpu.dot_dimension_numbers<[1], [0], [0], [1], [0, 0, 1, 1], [], []>} : vector<20x16xf32>, vector<16x32xf32>, vector<20x32xf32> -> vector<20x32xf32>
    %39 = arith.addf %37, %38 : vector<20x32xf32>
    %c0_49 = arith.constant 0 : index
    %c0_50 = arith.constant 0 : index
    %40 = vector.load %arg6[%c0_49, %c0_50] : memref<20x32xf32, #tpu.memory_space<vmem>>, vector<20x32xf32>
    tpu.vector_store %arg6[%c0_49, %c0_50], %39 {strides = array<i32>} : memref<20x32xf32, #tpu.memory_space<vmem>>, vector<20x32xf32>,
    %c2_51 = arith.constant 2 : index
    %c1_52 = arith.constant 1 : index
    %c0_53 = arith.constant 0 : index
    %41 = vector.load %arg5[%c2_51, %c1_52, %c0_53] : memref<4x26x16xf32, #tpu.memory_space<vmem>>, vector<1x20x16xf32>
    %42 = vector.shape_cast %41 : vector<1x20x16xf32> to vector<20x16xf32>
    %c80 = arith.constant 80 : index
    %c0_54 = arith.constant 0 : index
    %43 = vector.load %arg2[%c80, %c0_54] : memref<144x32xf32, #tpu.memory_space<vmem>>, vector<16x32xf32>
    %c0_55 = arith.constant 0 : index
    %c0_56 = arith.constant 0 : index
    %44 = vector.load %arg6[%c0_55, %c0_56] : memref<20x32xf32, #tpu.memory_space<vmem>>, vector<20x32xf32>
    %cst_57 = arith.constant dense<0.000000e+00> : vector<20x32xf32>
    %45 = tpu.matmul %42, %43, %cst_57 {dimension_numbers = #tpu.dot_dimension_numbers<[1], [0], [0], [1], [0, 0, 1, 1], [], []>} : vector<20x16xf32>, vector<16x32xf32>, vector<20x32xf32> -> vector<20x32xf32>
    %46 = arith.addf %44, %45 : vector<20x32xf32>
    %c0_58 = arith.constant 0 : index
    %c0_59 = arith.constant 0 : index
    %47 = vector.load %arg6[%c0_58, %c0_59] : memref<20x32xf32, #tpu.memory_space<vmem>>, vector<20x32xf32>
    tpu.vector_store %arg6[%c0_58, %c0_59], %46 {strides = array<i32>} : memref<20x32xf32, #tpu.memory_space<vmem>>, vector<20x32xf32>,
    %c0_60 = arith.constant 0 : index
    %c5 = arith.constant 5 : index
    %c0_61 = arith.constant 0 : index
    %48 = vector.load %arg5[%c0_60, %c5, %c0_61] : memref<4x26x16xf32, #tpu.memory_space<vmem>>, vector<1x20x16xf32>
    %49 = vector.shape_cast %48 : vector<1x20x16xf32> to vector<20x16xf32>
    %c96 = arith.constant 96 : index
    %c0_62 = arith.constant 0 : index
    %50 = vector.load %arg2[%c96, %c0_62] : memref<144x32xf32, #tpu.memory_space<vmem>>, vector<16x32xf32>
    %c0_63 = arith.constant 0 : index
    %c0_64 = arith.constant 0 : index
    %51 = vector.load %arg6[%c0_63, %c0_64] : memref<20x32xf32, #tpu.memory_space<vmem>>, vector<20x32xf32>
    %cst_65 = arith.constant dense<0.000000e+00> : vector<20x32xf32>
    %52 = tpu.matmul %49, %50, %cst_65 {dimension_numbers = #tpu.dot_dimension_numbers<[1], [0], [0], [1], [0, 0, 1, 1], [], []>} : vector<20x16xf32>, vector<16x32xf32>, vector<20x32xf32> -> vector<20x32xf32>
    %53 = arith.addf %51, %52 : vector<20x32xf32>
    %c0_66 = arith.constant 0 : index
    %c0_67 = arith.constant 0 : index
    %54 = vector.load %arg6[%c0_66, %c0_67] : memref<20x32xf32, #tpu.memory_space<vmem>>, vector<20x32xf32>
    tpu.vector_store %arg6[%c0_66, %c0_67], %53 {strides = array<i32>} : memref<20x32xf32, #tpu.memory_space<vmem>>, vector<20x32xf32>,
    %c1_68 = arith.constant 1 : index
    %c5_69 = arith.constant 5 : index
    %c0_70 = arith.constant 0 : index
    %55 = vector.load %arg5[%c1_68, %c5_69, %c0_70] : memref<4x26x16xf32, #tpu.memory_space<vmem>>, vector<1x20x16xf32>
    %56 = vector.shape_cast %55 : vector<1x20x16xf32> to vector<20x16xf32>
    %c112 = arith.constant 112 : index
    %c0_71 = arith.constant 0 : index
    %57 = vector.load %arg2[%c112, %c0_71] : memref<144x32xf32, #tpu.memory_space<vmem>>, vector<16x32xf32>
    %c0_72 = arith.constant 0 : index
    %c0_73 = arith.constant 0 : index
    %58 = vector.load %arg6[%c0_72, %c0_73] : memref<20x32xf32, #tpu.memory_space<vmem>>, vector<20x32xf32>
    %cst_74 = arith.constant dense<0.000000e+00> : vector<20x32xf32>
    %59 = tpu.matmul %56, %57, %cst_74 {dimension_numbers = #tpu.dot_dimension_numbers<[1], [0], [0], [1], [0, 0, 1, 1], [], []>} : vector<20x16xf32>, vector<16x32xf32>, vector<20x32xf32> -> vector<20x32xf32>
    %60 = arith.addf %58, %59 : vector<20x32xf32>
    %c0_75 = arith.constant 0 : index
    %c0_76 = arith.constant 0 : index
    %61 = vector.load %arg6[%c0_75, %c0_76] : memref<20x32xf32, #tpu.memory_space<vmem>>, vector<20x32xf32>
    tpu.vector_store %arg6[%c0_75, %c0_76], %60 {strides = array<i32>} : memref<20x32xf32, #tpu.memory_space<vmem>>, vector<20x32xf32>,
    %c0_77 = arith.constant 0 : index
    %c6 = arith.constant 6 : index
    %c0_78 = arith.constant 0 : index
    %62 = vector.load %arg5[%c0_77, %c6, %c0_78] : memref<4x26x16xf32, #tpu.memory_space<vmem>>, vector<1x20x16xf32>
    %63 = vector.shape_cast %62 : vector<1x20x16xf32> to vector<20x16xf32>
    %c128 = arith.constant 128 : index
    %c0_79 = arith.constant 0 : index
    %64 = vector.load %arg2[%c128, %c0_79] : memref<144x32xf32, #tpu.memory_space<vmem>>, vector<16x32xf32>
    %c0_80 = arith.constant 0 : index
    %c0_81 = arith.constant 0 : index
    %65 = vector.load %arg6[%c0_80, %c0_81] : memref<20x32xf32, #tpu.memory_space<vmem>>, vector<20x32xf32>
    %cst_82 = arith.constant dense<0.000000e+00> : vector<20x32xf32>
    %66 = tpu.matmul %63, %64, %cst_82 {dimension_numbers = #tpu.dot_dimension_numbers<[1], [0], [0], [1], [0, 0, 1, 1], [], []>} : vector<20x16xf32>, vector<16x32xf32>, vector<20x32xf32> -> vector<20x32xf32>
    %67 = arith.addf %65, %66 : vector<20x32xf32>
    %c0_83 = arith.constant 0 : index
    %c0_84 = arith.constant 0 : index
    %68 = vector.load %arg6[%c0_83, %c0_84] : memref<20x32xf32, #tpu.memory_space<vmem>>, vector<20x32xf32>
    tpu.vector_store %arg6[%c0_83, %c0_84], %67 {strides = array<i32>} : memref<20x32xf32, #tpu.memory_space<vmem>>, vector<20x32xf32>,
    %c0_85 = arith.constant 0 : index
    %c0_86 = arith.constant 0 : index
    %69 = vector.load %arg6[%c0_85, %c0_86] : memref<20x32xf32, #tpu.memory_space<vmem>>, vector<20x32xf32>
    %c0_87 = arith.constant 0 : index
    %c0_88 = arith.constant 0 : index
    %70 = vector.load %arg3[%c0_87, %c0_88] : memref<20x1xf32, #tpu.memory_space<vmem>>, vector<20x1xf32>
    %71 = vector.broadcast %70 : vector<20x1xf32> to vector<20x32xf32>
    %72 = arith.mulf %69, %71 : vector<20x32xf32>
    %cst_89 = arith.constant dense<0.000000e+00> : vector<32xf32>
    %73 = vector.multi_reduction <add>, %72, %cst_89 [0] : vector<20x32xf32> to vector<32xf32>
    %74 = vector.shape_cast %73 : vector<32xf32> to vector<1x32xf32>
    %cst_90 = arith.constant 6.250000e-02 : f32
    %75 = vector.broadcast %cst_90 : f32 to vector<1x32xf32>
    %76 = arith.mulf %74, %75 : vector<1x32xf32>
    %77 = arith.mulf %72, %69 : vector<20x32xf32>
    %cst_91 = arith.constant dense<0.000000e+00> : vector<32xf32>
    %78 = vector.multi_reduction <add>, %77, %cst_91 [0] : vector<20x32xf32> to vector<32xf32>
    %79 = vector.shape_cast %78 : vector<32xf32> to vector<1x32xf32>
    %cst_92 = arith.constant 6.250000e-02 : f32
    %80 = vector.broadcast %cst_92 : f32 to vector<1x32xf32>
    %81 = arith.mulf %79, %80 : vector<1x32xf32>
    %82 = arith.mulf %76, %76 : vector<1x32xf32>
    %83 = arith.subf %81, %82 : vector<1x32xf32>
    %cst_93 = arith.constant 0.000000e+00 : f32
    %84 = vector.broadcast %cst_93 : f32 to vector<1x32xf32>
    %85 = arith.maximumf %83, %84 : vector<1x32xf32>
    %86 = vector.broadcast %76 : vector<1x32xf32> to vector<20x32xf32>
    %87 = arith.subf %69, %86 : vector<20x32xf32>
    %cst_94 = arith.constant 9.99999974E-6 : f32
    %88 = vector.broadcast %cst_94 : f32 to vector<1x32xf32>
    %89 = arith.addf %85, %88 : vector<1x32xf32>
    %90 = math.rsqrt %89 : vector<1x32xf32>
    %91 = vector.broadcast %90 : vector<1x32xf32> to vector<20x32xf32>
    %92 = arith.mulf %87, %91 : vector<20x32xf32>
    %cst_95 = arith.constant 0.000000e+00 : f32
    %93 = vector.broadcast %cst_95 : f32 to vector<20x32xf32>
    %94 = arith.cmpf ogt, %92, %93 : vector<20x32xf32>
    %cst_96 = arith.constant 2.000000e-01 : f32
    %95 = vector.broadcast %cst_96 : f32 to vector<20x32xf32>
    %96 = arith.mulf %95, %92 : vector<20x32xf32>
    %97 = arith.select %94, %92, %96 : vector<20x32xi1>, vector<20x32xf32>
    %98 = arith.truncf %97 : vector<20x32xf32> to vector<20x32xbf16>
    %c0_97 = arith.constant 0 : index
    %c0_98 = arith.constant 0 : index
    %c0_99 = arith.constant 0 : index
    %99 = vector.load %arg4[%c0_97, %c0_98, %c0_99] : memref<1x20x32xbf16, #tpu.memory_space<vmem>>, vector<1x20x32xbf16>
    %100 = vector.shape_cast %99 : vector<1x20x32xbf16> to vector<20x32xbf16>
    %101 = vector.shape_cast %98 : vector<20x32xbf16> to vector<1x20x32xbf16>
    tpu.vector_store %arg4[%c0_97, %c0_98, %c0_99], %101 {strides = array<i32>} : memref<1x20x32xbf16, #tpu.memory_space<vmem>>, vector<1x20x32xbf16>,
    return
  }
  func.func @transform_0(%arg0: i32) -> (i32, i32, i32, i32) {
    %c0_i32 = arith.constant 0 : i32
    %c0_i32_0 = arith.constant 0 : i32
    %c0_i32_1 = arith.constant 0 : i32
    %c0_i32_2 = arith.constant 0 : i32
    return %arg0, %c0_i32, %c0_i32_0, %c0_i32_1 : i32, i32, i32, i32
  }
  func.func @transform_1(%arg0: i32) -> (i32, i32) {
    %c0_i32 = arith.constant 0 : i32
    %c0_i32_0 = arith.constant 0 : i32
    %c0_i32_1 = arith.constant 0 : i32
    return %c0_i32, %c0_i32_0 : i32, i32
  }
  func.func @transform_2(%arg0: i32) -> (i32, i32) {
    %c0_i32 = arith.constant 0 : i32
    %c0_i32_0 = arith.constant 0 : i32
    %c0_i32_1 = arith.constant 0 : i32
    return %c0_i32, %c0_i32_0 : i32, i32
  }
  func.func @transform_3(%arg0: i32) -> (i32, i32, i32) {
    %c0_i32 = arith.constant 0 : i32
    %c0_i32_0 = arith.constant 0 : i32
    %c0_i32_1 = arith.constant 0 : i32
    return %arg0, %c0_i32, %c0_i32_0 : i32, i32, i32
  }
}

module attributes {stable_mosaic.version = 11 : i64} {
  func.func @out_conv_kernel(%arg0: i32, %arg1: memref<1x1x39x32xbf16, #tpu.memory_space<vmem>>, %arg2: memref<16x32xf32, #tpu.memory_space<vmem>>, %arg3: memref<1xf32, #tpu.memory_space<smem>>, %arg4: memref<1x18x1xf32, #tpu.memory_space<vmem>>, %arg5: memref<1x39x32xf32, #tpu.memory_space<vmem>>, %arg6: memref<18x32xf32, #tpu.memory_space<vmem>>) attributes {dimension_semantics = [#tpu.dimension_semantics<parallel>], iteration_bounds = array<i64: 2>, scalar_prefetch = 0 : i64, scratch_operands = 2 : i64, tpu.core_type = #tpu.core_type<tc>, window_params = [{transform_indices = @transform_0, window_bounds = array<i64: 1, 1, 39, 32>}, {pipeline_mode = #tpu.pipeline_mode<synchronous>, transform_indices = @transform_1, window_bounds = array<i64: 16, 32>}, {transform_indices = @transform_2, window_bounds = array<i64: 1>}, {transform_indices = @transform_3, window_bounds = array<i64: 1, 18, 1>}]} {
    %c0 = arith.constant 0 : index
    %c0_0 = arith.constant 0 : index
    %c0_1 = arith.constant 0 : index
    %c0_2 = arith.constant 0 : index
    %0 = vector.load %arg1[%c0, %c0_0, %c0_1, %c0_2] : memref<1x1x39x32xbf16, #tpu.memory_space<vmem>>, vector<1x1x39x32xbf16>
    %1 = vector.shape_cast %0 : vector<1x1x39x32xbf16> to vector<1x39x32xbf16>
    %2 = arith.extf %1 : vector<1x39x32xbf16> to vector<1x39x32xf32>
    %c0_3 = arith.constant 0 : index
    %c0_4 = arith.constant 0 : index
    %c0_5 = arith.constant 0 : index
    %3 = vector.load %arg5[%c0_3, %c0_4, %c0_5] : memref<1x39x32xf32, #tpu.memory_space<vmem>>, vector<1x39x32xf32>
    tpu.vector_store %arg5[%c0_3, %c0_4, %c0_5], %2 {strides = array<i32>} : memref<1x39x32xf32, #tpu.memory_space<vmem>>, vector<1x39x32xf32>,
    %cst = arith.constant 0.000000e+00 : f32
    %4 = vector.broadcast %cst : f32 to vector<18x32xf32>
    %c0_6 = arith.constant 0 : index
    %c0_7 = arith.constant 0 : index
    %5 = vector.load %arg6[%c0_6, %c0_7] : memref<18x32xf32, #tpu.memory_space<vmem>>, vector<18x32xf32>
    tpu.vector_store %arg6[%c0_6, %c0_7], %4 {strides = array<i32>} : memref<18x32xf32, #tpu.memory_space<vmem>>, vector<18x32xf32>,
    %c0_8 = arith.constant 0 : index
    %c0_9 = arith.constant 0 : index
    %c0_10 = arith.constant 0 : index
    %6 = vector.load %arg5[%c0_8, %c0_9, %c0_10] : memref<1x39x32xf32, #tpu.memory_space<vmem>>, vector<1x18x32xf32>
    %7 = vector.shape_cast %6 : vector<1x18x32xf32> to vector<18x32xf32>
    %c0_11 = arith.constant 0 : index
    %c0_12 = arith.constant 0 : index
    %8 = vector.load %arg2[%c0_11, %c0_12] : memref<16x32xf32, #tpu.memory_space<vmem>>, vector<1x32xf32>
    %9 = vector.shape_cast %8 : vector<1x32xf32> to vector<32xf32>
    %c0_13 = arith.constant 0 : index
    %c0_14 = arith.constant 0 : index
    %10 = vector.load %arg6[%c0_13, %c0_14] : memref<18x32xf32, #tpu.memory_space<vmem>>, vector<18x32xf32>
    %11 = vector.shape_cast %9 : vector<32xf32> to vector<1x32xf32>
    %12 = vector.broadcast %11 : vector<1x32xf32> to vector<18x32xf32>
    %13 = arith.mulf %7, %12 : vector<18x32xf32>
    %14 = arith.addf %10, %13 : vector<18x32xf32>
    %c0_15 = arith.constant 0 : index
    %c0_16 = arith.constant 0 : index
    %15 = vector.load %arg6[%c0_15, %c0_16] : memref<18x32xf32, #tpu.memory_space<vmem>>, vector<18x32xf32>
    tpu.vector_store %arg6[%c0_15, %c0_16], %14 {strides = array<i32>} : memref<18x32xf32, #tpu.memory_space<vmem>>, vector<18x32xf32>,
    %c0_17 = arith.constant 0 : index
    %c1 = arith.constant 1 : index
    %c0_18 = arith.constant 0 : index
    %16 = vector.load %arg5[%c0_17, %c1, %c0_18] : memref<1x39x32xf32, #tpu.memory_space<vmem>>, vector<1x18x32xf32>
    %17 = vector.shape_cast %16 : vector<1x18x32xf32> to vector<18x32xf32>
    %c1_19 = arith.constant 1 : index
    %c0_20 = arith.constant 0 : index
    %18 = vector.load %arg2[%c1_19, %c0_20] : memref<16x32xf32, #tpu.memory_space<vmem>>, vector<1x32xf32>
    %19 = vector.shape_cast %18 : vector<1x32xf32> to vector<32xf32>
    %c0_21 = arith.constant 0 : index
    %c0_22 = arith.constant 0 : index
    %20 = vector.load %arg6[%c0_21, %c0_22] : memref<18x32xf32, #tpu.memory_space<vmem>>, vector<18x32xf32>
    %21 = vector.shape_cast %19 : vector<32xf32> to vector<1x32xf32>
    %22 = vector.broadcast %21 : vector<1x32xf32> to vector<18x32xf32>
    %23 = arith.mulf %17, %22 : vector<18x32xf32>
    %24 = arith.addf %20, %23 : vector<18x32xf32>
    %c0_23 = arith.constant 0 : index
    %c0_24 = arith.constant 0 : index
    %25 = vector.load %arg6[%c0_23, %c0_24] : memref<18x32xf32, #tpu.memory_space<vmem>>, vector<18x32xf32>
    tpu.vector_store %arg6[%c0_23, %c0_24], %24 {strides = array<i32>} : memref<18x32xf32, #tpu.memory_space<vmem>>, vector<18x32xf32>,
    %c0_25 = arith.constant 0 : index
    %c2 = arith.constant 2 : index
    %c0_26 = arith.constant 0 : index
    %26 = vector.load %arg5[%c0_25, %c2, %c0_26] : memref<1x39x32xf32, #tpu.memory_space<vmem>>, vector<1x18x32xf32>
    %27 = vector.shape_cast %26 : vector<1x18x32xf32> to vector<18x32xf32>
    %c2_27 = arith.constant 2 : index
    %c0_28 = arith.constant 0 : index
    %28 = vector.load %arg2[%c2_27, %c0_28] : memref<16x32xf32, #tpu.memory_space<vmem>>, vector<1x32xf32>
    %29 = vector.shape_cast %28 : vector<1x32xf32> to vector<32xf32>
    %c0_29 = arith.constant 0 : index
    %c0_30 = arith.constant 0 : index
    %30 = vector.load %arg6[%c0_29, %c0_30] : memref<18x32xf32, #tpu.memory_space<vmem>>, vector<18x32xf32>
    %31 = vector.shape_cast %29 : vector<32xf32> to vector<1x32xf32>
    %32 = vector.broadcast %31 : vector<1x32xf32> to vector<18x32xf32>
    %33 = arith.mulf %27, %32 : vector<18x32xf32>
    %34 = arith.addf %30, %33 : vector<18x32xf32>
    %c0_31 = arith.constant 0 : index
    %c0_32 = arith.constant 0 : index
    %35 = vector.load %arg6[%c0_31, %c0_32] : memref<18x32xf32, #tpu.memory_space<vmem>>, vector<18x32xf32>
    tpu.vector_store %arg6[%c0_31, %c0_32], %34 {strides = array<i32>} : memref<18x32xf32, #tpu.memory_space<vmem>>, vector<18x32xf32>,
    %c0_33 = arith.constant 0 : index
    %c3 = arith.constant 3 : index
    %c0_34 = arith.constant 0 : index
    %36 = vector.load %arg5[%c0_33, %c3, %c0_34] : memref<1x39x32xf32, #tpu.memory_space<vmem>>, vector<1x18x32xf32>
    %37 = vector.shape_cast %36 : vector<1x18x32xf32> to vector<18x32xf32>
    %c3_35 = arith.constant 3 : index
    %c0_36 = arith.constant 0 : index
    %38 = vector.load %arg2[%c3_35, %c0_36] : memref<16x32xf32, #tpu.memory_space<vmem>>, vector<1x32xf32>
    %39 = vector.shape_cast %38 : vector<1x32xf32> to vector<32xf32>
    %c0_37 = arith.constant 0 : index
    %c0_38 = arith.constant 0 : index
    %40 = vector.load %arg6[%c0_37, %c0_38] : memref<18x32xf32, #tpu.memory_space<vmem>>, vector<18x32xf32>
    %41 = vector.shape_cast %39 : vector<32xf32> to vector<1x32xf32>
    %42 = vector.broadcast %41 : vector<1x32xf32> to vector<18x32xf32>
    %43 = arith.mulf %37, %42 : vector<18x32xf32>
    %44 = arith.addf %40, %43 : vector<18x32xf32>
    %c0_39 = arith.constant 0 : index
    %c0_40 = arith.constant 0 : index
    %45 = vector.load %arg6[%c0_39, %c0_40] : memref<18x32xf32, #tpu.memory_space<vmem>>, vector<18x32xf32>
    tpu.vector_store %arg6[%c0_39, %c0_40], %44 {strides = array<i32>} : memref<18x32xf32, #tpu.memory_space<vmem>>, vector<18x32xf32>,
    %c0_41 = arith.constant 0 : index
    %c6 = arith.constant 6 : index
    %c0_42 = arith.constant 0 : index
    %46 = vector.load %arg5[%c0_41, %c6, %c0_42] : memref<1x39x32xf32, #tpu.memory_space<vmem>>, vector<1x18x32xf32>
    %47 = vector.shape_cast %46 : vector<1x18x32xf32> to vector<18x32xf32>
    %c4 = arith.constant 4 : index
    %c0_43 = arith.constant 0 : index
    %48 = vector.load %arg2[%c4, %c0_43] : memref<16x32xf32, #tpu.memory_space<vmem>>, vector<1x32xf32>
    %49 = vector.shape_cast %48 : vector<1x32xf32> to vector<32xf32>
    %c0_44 = arith.constant 0 : index
    %c0_45 = arith.constant 0 : index
    %50 = vector.load %arg6[%c0_44, %c0_45] : memref<18x32xf32, #tpu.memory_space<vmem>>, vector<18x32xf32>
    %51 = vector.shape_cast %49 : vector<32xf32> to vector<1x32xf32>
    %52 = vector.broadcast %51 : vector<1x32xf32> to vector<18x32xf32>
    %53 = arith.mulf %47, %52 : vector<18x32xf32>
    %54 = arith.addf %50, %53 : vector<18x32xf32>
    %c0_46 = arith.constant 0 : index
    %c0_47 = arith.constant 0 : index
    %55 = vector.load %arg6[%c0_46, %c0_47] : memref<18x32xf32, #tpu.memory_space<vmem>>, vector<18x32xf32>
    tpu.vector_store %arg6[%c0_46, %c0_47], %54 {strides = array<i32>} : memref<18x32xf32, #tpu.memory_space<vmem>>, vector<18x32xf32>,
    %c0_48 = arith.constant 0 : index
    %c7 = arith.constant 7 : index
    %c0_49 = arith.constant 0 : index
    %56 = vector.load %arg5[%c0_48, %c7, %c0_49] : memref<1x39x32xf32, #tpu.memory_space<vmem>>, vector<1x18x32xf32>
    %57 = vector.shape_cast %56 : vector<1x18x32xf32> to vector<18x32xf32>
    %c5 = arith.constant 5 : index
    %c0_50 = arith.constant 0 : index
    %58 = vector.load %arg2[%c5, %c0_50] : memref<16x32xf32, #tpu.memory_space<vmem>>, vector<1x32xf32>
    %59 = vector.shape_cast %58 : vector<1x32xf32> to vector<32xf32>
    %c0_51 = arith.constant 0 : index
    %c0_52 = arith.constant 0 : index
    %60 = vector.load %arg6[%c0_51, %c0_52] : memref<18x32xf32, #tpu.memory_space<vmem>>, vector<18x32xf32>
    %61 = vector.shape_cast %59 : vector<32xf32> to vector<1x32xf32>
    %62 = vector.broadcast %61 : vector<1x32xf32> to vector<18x32xf32>
    %63 = arith.mulf %57, %62 : vector<18x32xf32>
    %64 = arith.addf %60, %63 : vector<18x32xf32>
    %c0_53 = arith.constant 0 : index
    %c0_54 = arith.constant 0 : index
    %65 = vector.load %arg6[%c0_53, %c0_54] : memref<18x32xf32, #tpu.memory_space<vmem>>, vector<18x32xf32>
    tpu.vector_store %arg6[%c0_53, %c0_54], %64 {strides = array<i32>} : memref<18x32xf32, #tpu.memory_space<vmem>>, vector<18x32xf32>,
    %c0_55 = arith.constant 0 : index
    %c8 = arith.constant 8 : index
    %c0_56 = arith.constant 0 : index
    %66 = vector.load %arg5[%c0_55, %c8, %c0_56] : memref<1x39x32xf32, #tpu.memory_space<vmem>>, vector<1x18x32xf32>
    %67 = vector.shape_cast %66 : vector<1x18x32xf32> to vector<18x32xf32>
    %c6_57 = arith.constant 6 : index
    %c0_58 = arith.constant 0 : index
    %68 = vector.load %arg2[%c6_57, %c0_58] : memref<16x32xf32, #tpu.memory_space<vmem>>, vector<1x32xf32>
    %69 = vector.shape_cast %68 : vector<1x32xf32> to vector<32xf32>
    %c0_59 = arith.constant 0 : index
    %c0_60 = arith.constant 0 : index
    %70 = vector.load %arg6[%c0_59, %c0_60] : memref<18x32xf32, #tpu.memory_space<vmem>>, vector<18x32xf32>
    %71 = vector.shape_cast %69 : vector<32xf32> to vector<1x32xf32>
    %72 = vector.broadcast %71 : vector<1x32xf32> to vector<18x32xf32>
    %73 = arith.mulf %67, %72 : vector<18x32xf32>
    %74 = arith.addf %70, %73 : vector<18x32xf32>
    %c0_61 = arith.constant 0 : index
    %c0_62 = arith.constant 0 : index
    %75 = vector.load %arg6[%c0_61, %c0_62] : memref<18x32xf32, #tpu.memory_space<vmem>>, vector<18x32xf32>
    tpu.vector_store %arg6[%c0_61, %c0_62], %74 {strides = array<i32>} : memref<18x32xf32, #tpu.memory_space<vmem>>, vector<18x32xf32>,
    %c0_63 = arith.constant 0 : index
    %c9 = arith.constant 9 : index
    %c0_64 = arith.constant 0 : index
    %76 = vector.load %arg5[%c0_63, %c9, %c0_64] : memref<1x39x32xf32, #tpu.memory_space<vmem>>, vector<1x18x32xf32>
    %77 = vector.shape_cast %76 : vector<1x18x32xf32> to vector<18x32xf32>
    %c7_65 = arith.constant 7 : index
    %c0_66 = arith.constant 0 : index
    %78 = vector.load %arg2[%c7_65, %c0_66] : memref<16x32xf32, #tpu.memory_space<vmem>>, vector<1x32xf32>
    %79 = vector.shape_cast %78 : vector<1x32xf32> to vector<32xf32>
    %c0_67 = arith.constant 0 : index
    %c0_68 = arith.constant 0 : index
    %80 = vector.load %arg6[%c0_67, %c0_68] : memref<18x32xf32, #tpu.memory_space<vmem>>, vector<18x32xf32>
    %81 = vector.shape_cast %79 : vector<32xf32> to vector<1x32xf32>
    %82 = vector.broadcast %81 : vector<1x32xf32> to vector<18x32xf32>
    %83 = arith.mulf %77, %82 : vector<18x32xf32>
    %84 = arith.addf %80, %83 : vector<18x32xf32>
    %c0_69 = arith.constant 0 : index
    %c0_70 = arith.constant 0 : index
    %85 = vector.load %arg6[%c0_69, %c0_70] : memref<18x32xf32, #tpu.memory_space<vmem>>, vector<18x32xf32>
    tpu.vector_store %arg6[%c0_69, %c0_70], %84 {strides = array<i32>} : memref<18x32xf32, #tpu.memory_space<vmem>>, vector<18x32xf32>,
    %c0_71 = arith.constant 0 : index
    %c12 = arith.constant 12 : index
    %c0_72 = arith.constant 0 : index
    %86 = vector.load %arg5[%c0_71, %c12, %c0_72] : memref<1x39x32xf32, #tpu.memory_space<vmem>>, vector<1x18x32xf32>
    %87 = vector.shape_cast %86 : vector<1x18x32xf32> to vector<18x32xf32>
    %c8_73 = arith.constant 8 : index
    %c0_74 = arith.constant 0 : index
    %88 = vector.load %arg2[%c8_73, %c0_74] : memref<16x32xf32, #tpu.memory_space<vmem>>, vector<1x32xf32>
    %89 = vector.shape_cast %88 : vector<1x32xf32> to vector<32xf32>
    %c0_75 = arith.constant 0 : index
    %c0_76 = arith.constant 0 : index
    %90 = vector.load %arg6[%c0_75, %c0_76] : memref<18x32xf32, #tpu.memory_space<vmem>>, vector<18x32xf32>
    %91 = vector.shape_cast %89 : vector<32xf32> to vector<1x32xf32>
    %92 = vector.broadcast %91 : vector<1x32xf32> to vector<18x32xf32>
    %93 = arith.mulf %87, %92 : vector<18x32xf32>
    %94 = arith.addf %90, %93 : vector<18x32xf32>
    %c0_77 = arith.constant 0 : index
    %c0_78 = arith.constant 0 : index
    %95 = vector.load %arg6[%c0_77, %c0_78] : memref<18x32xf32, #tpu.memory_space<vmem>>, vector<18x32xf32>
    tpu.vector_store %arg6[%c0_77, %c0_78], %94 {strides = array<i32>} : memref<18x32xf32, #tpu.memory_space<vmem>>, vector<18x32xf32>,
    %c0_79 = arith.constant 0 : index
    %c13 = arith.constant 13 : index
    %c0_80 = arith.constant 0 : index
    %96 = vector.load %arg5[%c0_79, %c13, %c0_80] : memref<1x39x32xf32, #tpu.memory_space<vmem>>, vector<1x18x32xf32>
    %97 = vector.shape_cast %96 : vector<1x18x32xf32> to vector<18x32xf32>
    %c9_81 = arith.constant 9 : index
    %c0_82 = arith.constant 0 : index
    %98 = vector.load %arg2[%c9_81, %c0_82] : memref<16x32xf32, #tpu.memory_space<vmem>>, vector<1x32xf32>
    %99 = vector.shape_cast %98 : vector<1x32xf32> to vector<32xf32>
    %c0_83 = arith.constant 0 : index
    %c0_84 = arith.constant 0 : index
    %100 = vector.load %arg6[%c0_83, %c0_84] : memref<18x32xf32, #tpu.memory_space<vmem>>, vector<18x32xf32>
    %101 = vector.shape_cast %99 : vector<32xf32> to vector<1x32xf32>
    %102 = vector.broadcast %101 : vector<1x32xf32> to vector<18x32xf32>
    %103 = arith.mulf %97, %102 : vector<18x32xf32>
    %104 = arith.addf %100, %103 : vector<18x32xf32>
    %c0_85 = arith.constant 0 : index
    %c0_86 = arith.constant 0 : index
    %105 = vector.load %arg6[%c0_85, %c0_86] : memref<18x32xf32, #tpu.memory_space<vmem>>, vector<18x32xf32>
    tpu.vector_store %arg6[%c0_85, %c0_86], %104 {strides = array<i32>} : memref<18x32xf32, #tpu.memory_space<vmem>>, vector<18x32xf32>,
    %c0_87 = arith.constant 0 : index
    %c14 = arith.constant 14 : index
    %c0_88 = arith.constant 0 : index
    %106 = vector.load %arg5[%c0_87, %c14, %c0_88] : memref<1x39x32xf32, #tpu.memory_space<vmem>>, vector<1x18x32xf32>
    %107 = vector.shape_cast %106 : vector<1x18x32xf32> to vector<18x32xf32>
    %c10 = arith.constant 10 : index
    %c0_89 = arith.constant 0 : index
    %108 = vector.load %arg2[%c10, %c0_89] : memref<16x32xf32, #tpu.memory_space<vmem>>, vector<1x32xf32>
    %109 = vector.shape_cast %108 : vector<1x32xf32> to vector<32xf32>
    %c0_90 = arith.constant 0 : index
    %c0_91 = arith.constant 0 : index
    %110 = vector.load %arg6[%c0_90, %c0_91] : memref<18x32xf32, #tpu.memory_space<vmem>>, vector<18x32xf32>
    %111 = vector.shape_cast %109 : vector<32xf32> to vector<1x32xf32>
    %112 = vector.broadcast %111 : vector<1x32xf32> to vector<18x32xf32>
    %113 = arith.mulf %107, %112 : vector<18x32xf32>
    %114 = arith.addf %110, %113 : vector<18x32xf32>
    %c0_92 = arith.constant 0 : index
    %c0_93 = arith.constant 0 : index
    %115 = vector.load %arg6[%c0_92, %c0_93] : memref<18x32xf32, #tpu.memory_space<vmem>>, vector<18x32xf32>
    tpu.vector_store %arg6[%c0_92, %c0_93], %114 {strides = array<i32>} : memref<18x32xf32, #tpu.memory_space<vmem>>, vector<18x32xf32>,
    %c0_94 = arith.constant 0 : index
    %c15 = arith.constant 15 : index
    %c0_95 = arith.constant 0 : index
    %116 = vector.load %arg5[%c0_94, %c15, %c0_95] : memref<1x39x32xf32, #tpu.memory_space<vmem>>, vector<1x18x32xf32>
    %117 = vector.shape_cast %116 : vector<1x18x32xf32> to vector<18x32xf32>
    %c11 = arith.constant 11 : index
    %c0_96 = arith.constant 0 : index
    %118 = vector.load %arg2[%c11, %c0_96] : memref<16x32xf32, #tpu.memory_space<vmem>>, vector<1x32xf32>
    %119 = vector.shape_cast %118 : vector<1x32xf32> to vector<32xf32>
    %c0_97 = arith.constant 0 : index
    %c0_98 = arith.constant 0 : index
    %120 = vector.load %arg6[%c0_97, %c0_98] : memref<18x32xf32, #tpu.memory_space<vmem>>, vector<18x32xf32>
    %121 = vector.shape_cast %119 : vector<32xf32> to vector<1x32xf32>
    %122 = vector.broadcast %121 : vector<1x32xf32> to vector<18x32xf32>
    %123 = arith.mulf %117, %122 : vector<18x32xf32>
    %124 = arith.addf %120, %123 : vector<18x32xf32>
    %c0_99 = arith.constant 0 : index
    %c0_100 = arith.constant 0 : index
    %125 = vector.load %arg6[%c0_99, %c0_100] : memref<18x32xf32, #tpu.memory_space<vmem>>, vector<18x32xf32>
    tpu.vector_store %arg6[%c0_99, %c0_100], %124 {strides = array<i32>} : memref<18x32xf32, #tpu.memory_space<vmem>>, vector<18x32xf32>,
    %c0_101 = arith.constant 0 : index
    %c18 = arith.constant 18 : index
    %c0_102 = arith.constant 0 : index
    %126 = vector.load %arg5[%c0_101, %c18, %c0_102] : memref<1x39x32xf32, #tpu.memory_space<vmem>>, vector<1x18x32xf32>
    %127 = vector.shape_cast %126 : vector<1x18x32xf32> to vector<18x32xf32>
    %c12_103 = arith.constant 12 : index
    %c0_104 = arith.constant 0 : index
    %128 = vector.load %arg2[%c12_103, %c0_104] : memref<16x32xf32, #tpu.memory_space<vmem>>, vector<1x32xf32>
    %129 = vector.shape_cast %128 : vector<1x32xf32> to vector<32xf32>
    %c0_105 = arith.constant 0 : index
    %c0_106 = arith.constant 0 : index
    %130 = vector.load %arg6[%c0_105, %c0_106] : memref<18x32xf32, #tpu.memory_space<vmem>>, vector<18x32xf32>
    %131 = vector.shape_cast %129 : vector<32xf32> to vector<1x32xf32>
    %132 = vector.broadcast %131 : vector<1x32xf32> to vector<18x32xf32>
    %133 = arith.mulf %127, %132 : vector<18x32xf32>
    %134 = arith.addf %130, %133 : vector<18x32xf32>
    %c0_107 = arith.constant 0 : index
    %c0_108 = arith.constant 0 : index
    %135 = vector.load %arg6[%c0_107, %c0_108] : memref<18x32xf32, #tpu.memory_space<vmem>>, vector<18x32xf32>
    tpu.vector_store %arg6[%c0_107, %c0_108], %134 {strides = array<i32>} : memref<18x32xf32, #tpu.memory_space<vmem>>, vector<18x32xf32>,
    %c0_109 = arith.constant 0 : index
    %c19 = arith.constant 19 : index
    %c0_110 = arith.constant 0 : index
    %136 = vector.load %arg5[%c0_109, %c19, %c0_110] : memref<1x39x32xf32, #tpu.memory_space<vmem>>, vector<1x18x32xf32>
    %137 = vector.shape_cast %136 : vector<1x18x32xf32> to vector<18x32xf32>
    %c13_111 = arith.constant 13 : index
    %c0_112 = arith.constant 0 : index
    %138 = vector.load %arg2[%c13_111, %c0_112] : memref<16x32xf32, #tpu.memory_space<vmem>>, vector<1x32xf32>
    %139 = vector.shape_cast %138 : vector<1x32xf32> to vector<32xf32>
    %c0_113 = arith.constant 0 : index
    %c0_114 = arith.constant 0 : index
    %140 = vector.load %arg6[%c0_113, %c0_114] : memref<18x32xf32, #tpu.memory_space<vmem>>, vector<18x32xf32>
    %141 = vector.shape_cast %139 : vector<32xf32> to vector<1x32xf32>
    %142 = vector.broadcast %141 : vector<1x32xf32> to vector<18x32xf32>
    %143 = arith.mulf %137, %142 : vector<18x32xf32>
    %144 = arith.addf %140, %143 : vector<18x32xf32>
    %c0_115 = arith.constant 0 : index
    %c0_116 = arith.constant 0 : index
    %145 = vector.load %arg6[%c0_115, %c0_116] : memref<18x32xf32, #tpu.memory_space<vmem>>, vector<18x32xf32>
    tpu.vector_store %arg6[%c0_115, %c0_116], %144 {strides = array<i32>} : memref<18x32xf32, #tpu.memory_space<vmem>>, vector<18x32xf32>,
    %c0_117 = arith.constant 0 : index
    %c20 = arith.constant 20 : index
    %c0_118 = arith.constant 0 : index
    %146 = vector.load %arg5[%c0_117, %c20, %c0_118] : memref<1x39x32xf32, #tpu.memory_space<vmem>>, vector<1x18x32xf32>
    %147 = vector.shape_cast %146 : vector<1x18x32xf32> to vector<18x32xf32>
    %c14_119 = arith.constant 14 : index
    %c0_120 = arith.constant 0 : index
    %148 = vector.load %arg2[%c14_119, %c0_120] : memref<16x32xf32, #tpu.memory_space<vmem>>, vector<1x32xf32>
    %149 = vector.shape_cast %148 : vector<1x32xf32> to vector<32xf32>
    %c0_121 = arith.constant 0 : index
    %c0_122 = arith.constant 0 : index
    %150 = vector.load %arg6[%c0_121, %c0_122] : memref<18x32xf32, #tpu.memory_space<vmem>>, vector<18x32xf32>
    %151 = vector.shape_cast %149 : vector<32xf32> to vector<1x32xf32>
    %152 = vector.broadcast %151 : vector<1x32xf32> to vector<18x32xf32>
    %153 = arith.mulf %147, %152 : vector<18x32xf32>
    %154 = arith.addf %150, %153 : vector<18x32xf32>
    %c0_123 = arith.constant 0 : index
    %c0_124 = arith.constant 0 : index
    %155 = vector.load %arg6[%c0_123, %c0_124] : memref<18x32xf32, #tpu.memory_space<vmem>>, vector<18x32xf32>
    tpu.vector_store %arg6[%c0_123, %c0_124], %154 {strides = array<i32>} : memref<18x32xf32, #tpu.memory_space<vmem>>, vector<18x32xf32>,
    %c0_125 = arith.constant 0 : index
    %c21 = arith.constant 21 : index
    %c0_126 = arith.constant 0 : index
    %156 = vector.load %arg5[%c0_125, %c21, %c0_126] : memref<1x39x32xf32, #tpu.memory_space<vmem>>, vector<1x18x32xf32>
    %157 = vector.shape_cast %156 : vector<1x18x32xf32> to vector<18x32xf32>
    %c15_127 = arith.constant 15 : index
    %c0_128 = arith.constant 0 : index
    %158 = vector.load %arg2[%c15_127, %c0_128] : memref<16x32xf32, #tpu.memory_space<vmem>>, vector<1x32xf32>
    %159 = vector.shape_cast %158 : vector<1x32xf32> to vector<32xf32>
    %c0_129 = arith.constant 0 : index
    %c0_130 = arith.constant 0 : index
    %160 = vector.load %arg6[%c0_129, %c0_130] : memref<18x32xf32, #tpu.memory_space<vmem>>, vector<18x32xf32>
    %161 = vector.shape_cast %159 : vector<32xf32> to vector<1x32xf32>
    %162 = vector.broadcast %161 : vector<1x32xf32> to vector<18x32xf32>
    %163 = arith.mulf %157, %162 : vector<18x32xf32>
    %164 = arith.addf %160, %163 : vector<18x32xf32>
    %c0_131 = arith.constant 0 : index
    %c0_132 = arith.constant 0 : index
    %165 = vector.load %arg6[%c0_131, %c0_132] : memref<18x32xf32, #tpu.memory_space<vmem>>, vector<18x32xf32>
    tpu.vector_store %arg6[%c0_131, %c0_132], %164 {strides = array<i32>} : memref<18x32xf32, #tpu.memory_space<vmem>>, vector<18x32xf32>,
    %c0_133 = arith.constant 0 : index
    %c0_134 = arith.constant 0 : index
    %166 = vector.load %arg6[%c0_133, %c0_134] : memref<18x32xf32, #tpu.memory_space<vmem>>, vector<18x32xf32>
    %cst_135 = arith.constant dense<0.000000e+00> : vector<18xf32>
    %167 = vector.multi_reduction <add>, %166, %cst_135 [1] : vector<18x32xf32> to vector<18xf32>
    %168 = vector.shape_cast %167 : vector<18xf32> to vector<18x1xf32>
    %c0_136 = arith.constant 0 : index
    %169 = memref.load %arg3[%c0_136] : memref<1xf32, #tpu.memory_space<smem>>
    %170 = vector.broadcast %169 : f32 to vector<18x1xf32>
    %171 = arith.addf %168, %170 : vector<18x1xf32>
    %c0_137 = arith.constant 0 : index
    %c0_138 = arith.constant 0 : index
    %c0_139 = arith.constant 0 : index
    %172 = vector.load %arg4[%c0_137, %c0_138, %c0_139] : memref<1x18x1xf32, #tpu.memory_space<vmem>>, vector<1x18x1xf32>
    %173 = vector.shape_cast %172 : vector<1x18x1xf32> to vector<18x1xf32>
    %174 = vector.shape_cast %171 : vector<18x1xf32> to vector<1x18x1xf32>
    tpu.vector_store %arg4[%c0_137, %c0_138, %c0_139], %174 {strides = array<i32>} : memref<1x18x1xf32, #tpu.memory_space<vmem>>, vector<1x18x1xf32>,
    return
  }
  func.func @transform_0(%arg0: i32) -> (i32, i32, i32, i32) {
    %c0_i32 = arith.constant 0 : i32
    %c0_i32_0 = arith.constant 0 : i32
    %c0_i32_1 = arith.constant 0 : i32
    %c0_i32_2 = arith.constant 0 : i32
    return %arg0, %c0_i32, %c0_i32_0, %c0_i32_1 : i32, i32, i32, i32
  }
  func.func @transform_1(%arg0: i32) -> (i32, i32) {
    %c0_i32 = arith.constant 0 : i32
    %c0_i32_0 = arith.constant 0 : i32
    %c0_i32_1 = arith.constant 0 : i32
    return %c0_i32, %c0_i32_0 : i32, i32
  }
  func.func @transform_2(%arg0: i32) -> i32 {
    %c0_i32 = arith.constant 0 : i32
    %c0_i32_0 = arith.constant 0 : i32
    return %c0_i32 : i32
  }
  func.func @transform_3(%arg0: i32) -> (i32, i32, i32) {
    %c0_i32 = arith.constant 0 : i32
    %c0_i32_0 = arith.constant 0 : i32
    %c0_i32_1 = arith.constant 0 : i32
    return %arg0, %c0_i32, %c0_i32_0 : i32, i32, i32
  }
}

</mosaic_0001>

<llo_original>
// kernel: discriminator_forward.5
$region0: #{discriminator_forward.5}
  #allocation0 [shape = 'u32[]', space=smem, size = 0x4, offset = 0x4, fixed_abs, tag = 'smem constant byte address 0x4 - core index']
  #allocation1 [shape = 'u32[144,128]{1,0:T(1,128)}', space=vmem, size = 0x12000, scoped, tag = 'internal scratch']
  #allocation2 [shape = 'f32[4,82,8]{2,1,0:T(8,128)}', space=vmem, size = 0x2c000, scoped, tag = 'scratch operand']
  #allocation3 [shape = 'f32[72,16]{1,0:T(8,128)}', space=vmem, size = 0x9000, scoped, tag = 'scratch operand']
  %s0 = inlined_call_operand.vmem [shape: bf16[2,4,82,8], index: 0, kind: input, shape index: {}]
  %s1 = inlined_call_operand.vmem [shape: f32[72,16], index: 1, kind: input, shape index: {}]
  %s2 = inlined_call_operand.vmem [shape: f32[72,1], index: 2, kind: input, shape index: {}]
  %s3 = inlined_call_operand.vmem [shape: bf16[2,72,16], index: 3, kind: output, shape index: {}]
  %s4 = sld [smem:[#allocation0]]
  $region45: #{discriminator_forward.5} parent=0
    _
  %s6 = ssub.s32 1, %s4
  %s7 = scalar_select 0, %s6, %s4
  loop: start=0, step=1, limit=4
  $region2: #{discriminator_forward.5} parent=0 // loop_pre_header
    _
  $region3: #{discriminator_forward.5} parent=0 // loop_header
    %s9 = sphi 0, %s13
    %p10 = scmp.ge.s32.totalorder %s9, 4
    %s19 = sphi 0, %s21
    %s22 = sphi 0, %s19
    %s23 = sphi 0, %s22
    %s39 = sphi 0, %s23
    %s43 = sphi 0, %s43
    %s45 = sphi 0, %s43
    %s46 = sphi 0, %s45
    %s60 = sphi 0, %s46
    %s64 = sphi 0, %s64
    %s66 = sphi 0, %s64
    %s67 = sphi 0, %s66
    %s81 = sphi 0, %s67
    %s87 = sphi 0, %s89
    %s90 = sphi 0, %s87
    %s91 = sphi 0, %s90
    %s107 = sphi 0, %s91
  $region4: #{discriminator_forward.5} parent=0 // loop_header_branch
    %12 = sbr.rel (%p10) target = $region8
  $region5: #{discriminator_forward.5} parent=0 // loop_body
    %s14 = ssub.s32 %s9, 1
    %s15 = ssub.s32 %s9, 2
    %s16 = sadd.s32 %s9, 1
    %s17 = ssub.s32 %s9, %s16
    %p18 = scmp.eq.s32.totalorder %s17, 0
    %s20 = sadd.s32 %s19, 1
    %s21 = scalar_select %p18, %s19, %s20
    %p24 = pneg %p18
    %p25 = scmp.eq.s32.totalorder %s9, 1
    %p26 = por %p24, %p25
    %p27 = scmp.ne.s32.totalorder %s19, %s22
    %p28 = scmp.eq.s32.totalorder %s9, 0
    %p29 = por %p27, %p28
    %p30 = scmp.ne.s32.totalorder %s19, %s22
    %p31 = scmp.eq.s32.totalorder %s14, 1
    %p32 = por %p30, %p31
    %p33 = scmp.ne.s32.totalorder %s22, %s23
    %p34 = scmp.eq.s32.totalorder %s14, 0
    %p35 = por %p33, %p34
    %p36 = scmp.ne.s32.totalorder %s22, %s23
    %p37 = scmp.eq.s32.totalorder %s15, 1
    %p38 = por %p36, %p37
    %p40 = scmp.ne.s32.totalorder %s23, %s39
    %p41 = scmp.eq.s32.totalorder %s15, 0
    %p42 = por %p40, %p41
    %s44 = sadd.s32 %s43, 1
    %p47 = scmp.eq.s32.totalorder %s9, 1
    %p48 = scmp.ne.s32.totalorder %s43, %s45
    %p49 = scmp.eq.s32.totalorder %s9, 0
    %p50 = por %p48, %p49
    %p51 = scmp.ne.s32.totalorder %s43, %s45
    %p52 = scmp.eq.s32.totalorder %s14, 1
    %p53 = por %p51, %p52
    %p54 = scmp.ne.s32.totalorder %s45, %s46
    %p55 = scmp.eq.s32.totalorder %s14, 0
    %p56 = por %p54, %p55
    %p57 = scmp.ne.s32.totalorder %s45, %s46
    %p58 = scmp.eq.s32.totalorder %s15, 1
    %p59 = por %p57, %p58
    %p61 = scmp.ne.s32.totalorder %s46, %s60
    %p62 = scmp.eq.s32.totalorder %s15, 0
    %p63 = por %p61, %p62
    %s65 = sadd.s32 %s64, 1
    %p68 = scmp.eq.s32.totalorder %s9, 1
    %p69 = scmp.ne.s32.totalorder %s64, %s66
    %p70 = scmp.eq.s32.totalorder %s9, 0
    %p71 = por %p69, %p70
    %p72 = scmp.ne.s32.totalorder %s64, %s66
    %p73 = scmp.eq.s32.totalorder %s14, 1
    %p74 = por %p72, %p73
    %p75 = scmp.ne.s32.totalorder %s66, %s67
    %p76 = scmp.eq.s32.totalorder %s14, 0
    %p77 = por %p75, %p76
    %p78 = scmp.ne.s32.totalorder %s66, %s67
    %p79 = scmp.eq.s32.totalorder %s15, 1
    %p80 = por %p78, %p79
    %p82 = scmp.ne.s32.totalorder %s67, %s81
    %p83 = scmp.eq.s32.totalorder %s15, 0
    %p84 = por %p82, %p83
    %s85 = ssub.s32 %s9, %s16
    %p86 = scmp.eq.s32.totalorder %s85, 0
    %s88 = sadd.s32 %s87, 1
    %s89 = scalar_select %p86, %s87, %s88
    %p92 = pneg %p86
    %p93 = scmp.eq.s32.totalorder %s9, 1
    %p94 = por %p92, %p93
    %p95 = scmp.ne.s32.totalorder %s87, %s90
    %p96 = scmp.eq.s32.totalorder %s9, 0
    %p97 = por %p95, %p96
    %p98 = scmp.ne.s32.totalorder %s87, %s90
    %p99 = scmp.eq.s32.totalorder %s14, 1
    %p100 = por %p98, %p99
    %p101 = scmp.ne.s32.totalorder %s90, %s91
    %p102 = scmp.eq.s32.totalorder %s14, 0
    %p103 = por %p101, %p102
    %p104 = scmp.ne.s32.totalorder %s90, %s91
    %p105 = scmp.eq.s32.totalorder %s15, 1
    %p106 = por %p104, %p105
    %p108 = scmp.ne.s32.totalorder %s91, %s107
    %p109 = scmp.eq.s32.totalorder %s15, 0
    %p110 = por %p108, %p109
    %p111 = scmp.le.s32.totalorder 1, %s9
    %p112 = scmp.lt.s32.totalorder %s9, 3
    %p113 = pnand %p111, %p112
    %p114 = pneg %p113
    // Predicated region
    $region9: #{discriminator_forward.5} parent=5 // pred_check
      _
    $region10: #{discriminator_forward.5} parent=5 // pred_check_branch
      %116 = sbr.rel (%p113) target = $region12
    $region11: #{discriminator_forward.5} parent=5 // pred_region
      %s117 = ssub.s32 %s9, 1
      // Predicated region
      $region13: #{discriminator_forward.5} parent=11 // pred_check
        %p118 = pneg %p56
      $region14: #{discriminator_forward.5} parent=11 // pred_check_branch
        %120 = sbr.rel (%p118) target = $region16
      $region15: #{discriminator_forward.5} parent=11 // pred_region
        _
      $region16: #{discriminator_forward.5} parent=11 // pred_fallthru
        _
      // Predicated region
      $region17: #{discriminator_forward.5} parent=11 // pred_check
        %p121 = pneg %p77
      $region18: #{discriminator_forward.5} parent=11 // pred_check_branch
        %123 = sbr.rel (%p121) target = $region20
      $region19: #{discriminator_forward.5} parent=11 // pred_region
        _
      $region20: #{discriminator_forward.5} parent=11 // pred_fallthru
        _
    $region12: #{discriminator_forward.5} parent=5 // pred_fallthru
      _
    %p124 = scmp.lt.s32.totalorder %s9, 2
    // Predicated region
    $region21: #{discriminator_forward.5} parent=5 // pred_check
      %p125 = pneg %p124
    $region22: #{discriminator_forward.5} parent=5 // pred_check_branch
      %127 = sbr.rel (%p125) target = $region24
    $region23: #{discriminator_forward.5} parent=5 // pred_region
      // Predicated region
      $region25: #{discriminator_forward.5} parent=23 // pred_check
        %p128 = pneg %p29
      $region26: #{discriminator_forward.5} parent=23 // pred_check_branch
        %130 = sbr.rel (%p128) target = $region28
      $region27: #{discriminator_forward.5} parent=23 // pred_region
        %p131 = scmp.lt.s32.totalorder %s9, 1
        %s132 = scalar_select %p131, %s9, 1
        %s133 = smul.addr %s132, 44
        %s134 = smul.addr %s133, 4
        %s135 = scalar_lea.vmem %s0, %s134
      $region28: #{discriminator_forward.5} parent=23 // pred_fallthru
        _
    $region24: #{discriminator_forward.5} parent=5 // pred_fallthru
      _
    %p136 = scmp.le.s32.totalorder 1, %s9
    %p137 = scmp.lt.s32.totalorder %s9, 3
    %p138 = pnand %p136, %p137
    %p139 = pneg %p138
    // Predicated region
    $region29: #{discriminator_forward.5} parent=5 // pred_check
      _
    $region30: #{discriminator_forward.5} parent=5 // pred_check_branch
      %141 = sbr.rel (%p138) target = $region32
    $region31: #{discriminator_forward.5} parent=5 // pred_region
      %s142 = ssub.s32 %s9, 1
      %p143 = scmp.lt.s32.totalorder %s14, 1
      %s144 = scalar_select %p143, %s14, 1
      %s145 = smul.addr %s144, 44
      %s146 = smul.addr %s145, 4
      %s147 = scalar_lea.vmem %s0, %s146
      %p148 = pneg %p35
      %p149 = pneg %p32
      %p150 = pneg %p56
      %p151 = pneg %p53
      %p152 = pneg %p77
      %p153 = pneg %p74
      %p154 = pneg %p103
      %p155 = pneg %p100
      %p156 = scmp.lt.s32.totalorder %s14, 1
      %s157 = scalar_select %p156, %s14, 1
      %s158 = smul.addr %s157, 9
      %s159 = smul.addr %s158, 4
      %s160 = scalar_lea.vmem %s3, %s159
      %p161 = scmp.lt.s32.totalorder %s14, 1
      %s162 = scalar_select %p161, %s14, 1
      %s163 = smul.addr %s162, 44
      %s164 = smul.addr %s163, 4
      %s165 = scalar_lea.vmem %s0, %s164
      %p166 = scmp.lt.s32.totalorder %s14, 1
      %s167 = scalar_select %p166, %s14, 1
      %s168 = smul.addr %s167, 9
      %s169 = smul.addr %s168, 4
      %s170 = scalar_lea.vmem %s3, %s169
      %v171 = vld [vmem:[%s165] sm:$0xf]
      %v172 = vld [vmem:[%s165 + $0x4] sm:$0xf]
      %v173 = vld [vmem:[%s165 + $0x8] sm:$0xf]
      %v174 = vld [vmem:[%s165 + $0xc] sm:$0xf]
      %v175 = vld [vmem:[%s165 + $0x10] sm:$0xf]
      %v176 = vld [vmem:[%s165 + $0x14] sm:$0xf]
      %v177 = vld [vmem:[%s165 + $0x18] sm:$0xf]
      %v178 = vld [vmem:[%s165 + $0x1c] sm:$0xf]
      %v179 = vld [vmem:[%s165 + $0x20] sm:$0xf]
      %v180 = vld [vmem:[%s165 + $0x24] sm:$0xf]
      %v181 = vld [vmem:[%s165 + $0x28] sm:$0x1]
      %v182 = vld [vmem:[%s165 + $0x2c] sm:$0xf]
      %v183 = vld [vmem:[%s165 + $0x30] sm:$0xf]
      %v184 = vld [vmem:[%s165 + $0x34] sm:$0xf]
      %v185 = vld [vmem:[%s165 + $0x38] sm:$0xf]
      %v186 = vld [vmem:[%s165 + $0x3c] sm:$0xf]
      %v187 = vld [vmem:[%s165 + $0x40] sm:$0xf]
      %v188 = vld [vmem:[%s165 + $0x44] sm:$0xf]
      %v189 = vld [vmem:[%s165 + $0x48] sm:$0xf]
      %v190 = vld [vmem:[%s165 + $0x4c] sm:$0xf]
      %v191 = vld [vmem:[%s165 + $0x50] sm:$0xf]
      %v192 = vld [vmem:[%s165 + $0x54] sm:$0x1]
      %v193 = vld [vmem:[%s165 + $0x58] sm:$0xf]
      %v194 = vld [vmem:[%s165 + $0x5c] sm:$0xf]
      %v195 = vld [vmem:[%s165 + $0x60] sm:$0xf]
      %v196 = vld [vmem:[%s165 + $0x64] sm:$0xf]
      %v197 = vld [vmem:[%s165 + $0x68] sm:$0xf]
      %v198 = vld [vmem:[%s165 + $0x6c] sm:$0xf]
      %v199 = vld [vmem:[%s165 + $0x70] sm:$0xf]
      %v200 = vld [vmem:[%s165 + $0x74] sm:$0xf]
      %v201 = vld [vmem:[%s165 + $0x78] sm:$0xf]
      %v202 = vld [vmem:[%s165 + $0x7c] sm:$0xf]
      %v203 = vld [vmem:[%s165 + $0x80] sm:$0x1]
      %v204 = vld [vmem:[%s165 + $0x84] sm:$0xf]
      %v205 = vld [vmem:[%s165 + $0x88] sm:$0xf]
      %v206 = vld [vmem:[%s165 + $0x8c] sm:$0xf]
      %v207 = vld [vmem:[%s165 + $0x90] sm:$0xf]
      %v208 = vld [vmem:[%s165 + $0x94] sm:$0xf]
      %v209 = vld [vmem:[%s165 + $0x98] sm:$0xf]
      %v210 = vld [vmem:[%s165 + $0x9c] sm:$0xf]
      %v211 = vld [vmem:[%s165 + $0xa0] sm:$0xf]
      %v212 = vld [vmem:[%s165 + $0xa4] sm:$0xf]
      %v213 = vld [vmem:[%s165 + $0xa8] sm:$0xf]
      %v214 = vld [vmem:[%s165 + $0xac] sm:$0x1]
      %v215 = vunpack.c.l.bf16 %v171
      %v216 = vunpack.c.l.bf16 %v172
      %v217 = vunpack.c.l.bf16 %v173
      %v218 = vunpack.c.l.bf16 %v174
      %v219 = vunpack.c.l.bf16 %v175
      %v220 = vunpack.c.l.bf16 %v176
      %v221 = vunpack.c.l.bf16 %v177
      %v222 = vunpack.c.l.bf16 %v178
      %v223 = vunpack.c.l.bf16 %v179
      %v224 = vunpack.c.l.bf16 %v180
      %v225 = vunpack.c.l.bf16 %v181
      %v226 = vunpack.c.l.bf16 %v182
      %v227 = vunpack.c.l.bf16 %v183
      %v228 = vunpack.c.l.bf16 %v184
      %v229 = vunpack.c.l.bf16 %v185
      %v230 = vunpack.c.l.bf16 %v186
      %v231 = vunpack.c.l.bf16 %v187
      %v232 = vunpack.c.l.bf16 %v188
      %v233 = vunpack.c.l.bf16 %v189
      %v234 = vunpack.c.l.bf16 %v190
      %v235 = vunpack.c.l.bf16 %v191
      %v236 = vunpack.c.l.bf16 %v192
      %v237 = vunpack.c.l.bf16 %v193
      %v238 = vunpack.c.l.bf16 %v194
      %v239 = vunpack.c.l.bf16 %v195
      %v240 = vunpack.c.l.bf16 %v196
      %v241 = vunpack.c.l.bf16 %v197
      %v242 = vunpack.c.l.bf16 %v198
      %v243 = vunpack.c.l.bf16 %v199
      %v244 = vunpack.c.l.bf16 %v200
      %v245 = vunpack.c.l.bf16 %v201
      %v246 = vunpack.c.l.bf16 %v202
      %v247 = vunpack.c.l.bf16 %v203
      %v248 = vunpack.c.l.bf16 %v204
      %v249 = vunpack.c.l.bf16 %v205
      %v250 = vunpack.c.l.bf16 %v206
      %v251 = vunpack.c.l.bf16 %v207
      %v252 = vunpack.c.l.bf16 %v208
      %v253 = vunpack.c.l.bf16 %v209
      %v254 = vunpack.c.l.bf16 %v210
      %v255 = vunpack.c.l.bf16 %v211
      %v256 = vunpack.c.l.bf16 %v212
      %v257 = vunpack.c.l.bf16 %v213
      %v258 = vunpack.c.l.bf16 %v214
      %vm259 = vcmask 64512
      %260 = vst.msk [vmem:[#allocation2] sm:$0xff] %vm259, %v215
      %261 = vst.msk [vmem:[#allocation2 + $0x8] sm:$0xff] %vm259, %v216
      %262 = vst.msk [vmem:[#allocation2 + $0x10] sm:$0xff] %vm259, %v217
      %263 = vst.msk [vmem:[#allocation2 + $0x18] sm:$0xff] %vm259, %v218
      %264 = vst.msk [vmem:[#allocation2 + $0x20] sm:$0xff] %vm259, %v219
      %265 = vst.msk [vmem:[#allocation2 + $0x28] sm:$0xff] %vm259, %v220
      %266 = vst.msk [vmem:[#allocation2 + $0x30] sm:$0xff] %vm259, %v221
      %267 = vst.msk [vmem:[#allocation2 + $0x38] sm:$0xff] %vm259, %v222
      %268 = vst.msk [vmem:[#allocation2 + $0x40] sm:$0xff] %vm259, %v223
      %269 = vst.msk [vmem:[#allocation2 + $0x48] sm:$0xff] %vm259, %v224
      %vm270 = vcmask 58368
      %271 = vst.msk [vmem:[#allocation2 + $0x50] sm:$0x3] %vm270, %v225
      %272 = vst.msk [vmem:[#allocation2 + $0x58] sm:$0xff] %vm259, %v226
      %273 = vst.msk [vmem:[#allocation2 + $0x60] sm:$0xff] %vm259, %v227
      %274 = vst.msk [vmem:[#allocation2 + $0x68] sm:$0xff] %vm259, %v228
      %275 = vst.msk [vmem:[#allocation2 + $0x70] sm:$0xff] %vm259, %v229
      %276 = vst.msk [vmem:[#allocation2 + $0x78] sm:$0xff] %vm259, %v230
      %277 = vst.msk [vmem:[#allocation2 + $0x80] sm:$0xff] %vm259, %v231
      %278 = vst.msk [vmem:[#allocation2 + $0x88] sm:$0xff] %vm259, %v232
      %279 = vst.msk [vmem:[#allocation2 + $0x90] sm:$0xff] %vm259, %v233
      %280 = vst.msk [vmem:[#allocation2 + $0x98] sm:$0xff] %vm259, %v234
      %281 = vst.msk [vmem:[#allocation2 + $0xa0] sm:$0xff] %vm259, %v235
      %282 = vst.msk [vmem:[#allocation2 + $0xa8] sm:$0x3] %vm270, %v236
      %283 = vst.msk [vmem:[#allocation2 + $0xb0] sm:$0xff] %vm259, %v237
      %284 = vst.msk [vmem:[#allocation2 + $0xb8] sm:$0xff] %vm259, %v238
      %285 = vst.msk [vmem:[#allocation2 + $0xc0] sm:$0xff] %vm259, %v239
      %286 = vst.msk [vmem:[#allocation2 + $0xc8] sm:$0xff] %vm259, %v240
      %287 = vst.msk [vmem:[#allocation2 + $0xd0] sm:$0xff] %vm259, %v241
      %288 = vst.msk [vmem:[#allocation2 + $0xd8] sm:$0xff] %vm259, %v242
      %289 = vst.msk [vmem:[#allocation2 + $0xe0] sm:$0xff] %vm259, %v243
      %290 = vst.msk [vmem:[#allocation2 + $0xe8] sm:$0xff] %vm259, %v244
      %291 = vst.msk [vmem:[#allocation2 + $0xf0] sm:$0xff] %vm259, %v245
      %292 = vst.msk [vmem:[#allocation2 + $0xf8] sm:$0xff] %vm259, %v246
      %293 = vst.msk [vmem:[#allocation2 + $0x100] sm:$0x3] %vm270, %v247
      %294 = vst.msk [vmem:[#allocation2 + $0x108] sm:$0xff] %vm259, %v248
      %295 = vst.msk [vmem:[#allocation2 + $0x110] sm:$0xff] %vm259, %v249
      %296 = vst.msk [vmem:[#allocation2 + $0x118] sm:$0xff] %vm259, %v250
      %297 = vst.msk [vmem:[#allocation2 + $0x120] sm:$0xff] %vm259, %v251
      %298 = vst.msk [vmem:[#allocation2 + $0x128] sm:$0xff] %vm259, %v252
      %299 = vst.msk [vmem:[#allocation2 + $0x130] sm:$0xff] %vm259, %v253
      %300 = vst.msk [vmem:[#allocation2 + $0x138] sm:$0xff] %vm259, %v254
      %301 = vst.msk [vmem:[#allocation2 + $0x140] sm:$0xff] %vm259, %v255
      %302 = vst.msk [vmem:[#allocation2 + $0x148] sm:$0xff] %vm259, %v256
      %303 = vst.msk [vmem:[#allocation2 + $0x150] sm:$0xff] %vm259, %v257
      %304 = vst.msk [vmem:[#allocation2 + $0x158] sm:$0x3] %vm270, %v258
      %vm305 = vcmask 130048
      %306 = vst.msk [vmem:[#allocation3] sm:$0xff] %vm305, 0.0
      %307 = vst.msk [vmem:[#allocation3 + $0x8] sm:$0xff] %vm305, 0.0
      %308 = vst.msk [vmem:[#allocation3 + $0x10] sm:$0xff] %vm305, 0.0
      %309 = vst.msk [vmem:[#allocation3 + $0x18] sm:$0xff] %vm305, 0.0
      %310 = vst.msk [vmem:[#allocation3 + $0x20] sm:$0xff] %vm305, 0.0
      %311 = vst.msk [vmem:[#allocation3 + $0x28] sm:$0xff] %vm305, 0.0
      %312 = vst.msk [vmem:[#allocation3 + $0x30] sm:$0xff] %vm305, 0.0
      %313 = vst.msk [vmem:[#allocation3 + $0x38] sm:$0xff] %vm305, 0.0
      %314 = vst.msk [vmem:[#allocation3 + $0x40] sm:$0xff] %vm305, 0.0
      %v315 = vld [vmem:[#allocation2] sm:$0xff]
      %v316 = vld [vmem:[#allocation2 + $0x8] sm:$0xff]
      %v317 = vld [vmem:[#allocation2 + $0x10] sm:$0xff]
      %v318 = vld [vmem:[#allocation2 + $0x18] sm:$0xff]
      %v319 = vld [vmem:[#allocation2 + $0x20] sm:$0xff]
      %v320 = vld [vmem:[#allocation2 + $0x28] sm:$0xff]
      %v321 = vld [vmem:[#allocation2 + $0x30] sm:$0xff]
      %v322 = vld [vmem:[#allocation2 + $0x38] sm:$0xff]
      %v323 = vld [vmem:[#allocation2 + $0x40] sm:$0xff]
      %v324 = vld [vmem:[%s1] sm:$0xff]
      %v325 = vld [vmem:[#allocation3] sm:$0xff]
      %v326 = vld [vmem:[#allocation3 + $0x8] sm:$0xff]
      %v327 = vld [vmem:[#allocation3 + $0x10] sm:$0xff]
      %v328 = vld [vmem:[#allocation3 + $0x18] sm:$0xff]
      %v329 = vld [vmem:[#allocation3 + $0x20] sm:$0xff]
      %v330 = vld [vmem:[#allocation3 + $0x28] sm:$0xff]
      %v331 = vld [vmem:[#allocation3 + $0x30] sm:$0xff]
      %v332 = vld [vmem:[#allocation3 + $0x38] sm:$0xff]
      %v333 = vld [vmem:[#allocation3 + $0x40] sm:$0xff]
      %v335 = vsel %vm259, %v315, 0
      %v338 = vsel %vm259, %v316, 0
      %v341 = vsel %vm259, %v317, 0
      %v344 = vsel %vm259, %v318, 0
      %v347 = vsel %vm259, %v319, 0
      %v350 = vsel %vm259, %v320, 0
      %v353 = vsel %vm259, %v321, 0
      %v356 = vsel %vm259, %v322, 0
      %v359 = vsel %vm259, %v323, 0
      %361 = vmatprep.subr.mxu0 0.0
      %362 = vmatpush1.msra.mxu0 0.0
      %363 = vmatprep.subr.mxu0 0.0
      %364 = vmatpush1.msra.mxu0 0.0
      %365 = vmatprep.subr.mxu0 0.0
      %366 = vmatpush1.msra.mxu0 0.0
      %367 = vmatprep.subr.mxu0 0.0
      %368 = vmatpush1.msra.mxu0 0.0
      %369 = vmatprep.subr.mxu0 0.0
      %370 = vmatpush1.msra.mxu0 0.0
      %371 = vmatprep.subr.mxu0 0.0
      %372 = vmatpush1.msra.mxu0 0.0
      %373 = vmatprep.subr.mxu0 0.0
      %374 = vmatpush1.msra.mxu0 0.0
      %375 = vmatprep.subr.mxu0 0.0
      %376 = vmatpush1.msra.mxu0 0.0
      %377 = vmatprep.subr.mxu0 0.0
      %378 = vmatpush1.msra.mxu0 0.0
      %379 = vmatprep.subr.mxu0 0.0
      %380 = vmatpush1.msra.mxu0 0.0
      %381 = vmatprep.subr.mxu0 0.0
      %382 = vmatpush1.msra.mxu0 0.0
      %383 = vmatprep.subr.mxu0 0.0
      %384 = vmatpush1.msra.mxu0 0.0
      %385 = vmatprep.subr.mxu0 0.0
      %386 = vmatpush1.msra.mxu0 0.0
      %387 = vmatprep.subr.mxu0 0.0
      %388 = vmatpush1.msra.mxu0 0.0
      %389 = vmatprep.subr.mxu0 0.0
      %390 = vmatpush1.msra.mxu0 0.0
      %391 = vmatprep.subr.mxu0 0.0
      %392 = vmatpush1.msra.mxu0 %v324
      %393 = vmatprep.subr.mxu0 0.0
      %394 = vmatpush2.msra.mxu0 0.0
      %395 = vmatprep.subr.mxu0 0.0
      %396 = vmatpush2.msra.mxu0 0.0
      %397 = vmatprep.subr.mxu0 0.0
      %398 = vmatpush2.msra.mxu0 0.0
      %399 = vmatprep.subr.mxu0 0.0
      %400 = vmatpush2.msra.mxu0 0.0
      %401 = vmatprep.subr.mxu0 0.0
      %402 = vmatpush2.msra.mxu0 0.0
      %403 = vmatprep.subr.mxu0 0.0
      %404 = vmatpush2.msra.mxu0 0.0
      %405 = vmatprep.subr.mxu0 0.0
      %406 = vmatpush2.msra.mxu0 0.0
      %407 = vmatprep.subr.mxu0 0.0
      %408 = vmatpush2.msra.mxu0 0.0
      %409 = vmatprep.subr.mxu0 0.0
      %410 = vmatpush2.msra.mxu0 0.0
      %411 = vmatprep.subr.mxu0 0.0
      %412 = vmatpush2.msra.mxu0 0.0
      %413 = vmatprep.subr.mxu0 0.0
      %414 = vmatpush2.msra.mxu0 0.0
      %415 = vmatprep.subr.mxu0 0.0
      %416 = vmatpush2.msra.mxu0 0.0
      %417 = vmatprep.subr.mxu0 0.0
      %418 = vmatpush2.msra.mxu0 0.0
      %419 = vmatprep.subr.mxu0 0.0
      %420 = vmatpush2.msra.mxu0 0.0
      %421 = vmatprep.subr.mxu0 0.0
      %422 = vmatpush2.msra.mxu0 0.0
      %423 = vmatprep.subr.mxu0 0.0
      %424 = vmatpush2.msra.mxu0 0.0
      %425 = vmatprep.mubr.f32.mxu0 0.0
      %426 = vmatmul.mubr.f32.gmra.mxu0 %v335
      %v427 = vpop.f32.mrf.mxu0
      %v428 = vadd.f32 0.0, %v427
      %v429 = vpop.f32.mrf.mxu0
      %430 = vmatprep.mubr.f32.mxu0 0.0
      %431 = vmatmul.mubr.f32.gmra.mxu0 %v338
      %v432 = vpop.f32.mrf.mxu0
      %v433 = vadd.f32 0.0, %v432
      %v434 = vpop.f32.mrf.mxu0
      %435 = vmatprep.mubr.f32.mxu0 0.0
      %436 = vmatmul.mubr.f32.gmra.mxu0 %v341
      %v437 = vpop.f32.mrf.mxu0
      %v438 = vadd.f32 0.0, %v437
      %v439 = vpop.f32.mrf.mxu0
      %440 = vmatprep.mubr.f32.mxu0 0.0
      %441 = vmatmul.mubr.f32.gmra.mxu0 %v344
      %v442 = vpop.f32.mrf.mxu0
      %v443 = vadd.f32 0.0, %v442
      %v444 = vpop.f32.mrf.mxu0
      %445 = vmatprep.mubr.f32.mxu0 0.0
      %446 = vmatmul.mubr.f32.gmra.mxu0 %v347
      %v447 = vpop.f32.mrf.mxu0
      %v448 = vadd.f32 0.0, %v447
      %v449 = vpop.f32.mrf.mxu0
      %450 = vmatprep.mubr.f32.mxu0 0.0
      %451 = vmatmul.mubr.f32.gmra.mxu0 %v350
      %v452 = vpop.f32.mrf.mxu0
      %v453 = vadd.f32 0.0, %v452
      %v454 = vpop.f32.mrf.mxu0
      %455 = vmatprep.mubr.f32.mxu0 0.0
      %456 = vmatmul.mubr.f32.gmra.mxu0 %v353
      %v457 = vpop.f32.mrf.mxu0
      %v458 = vadd.f32 0.0, %v457
      %v459 = vpop.f32.mrf.mxu0
      %460 = vmatprep.mubr.f32.mxu0 0.0
      %461 = vmatmul.mubr.f32.gmra.mxu0 %v356
      %v462 = vpop.f32.mrf.mxu0
      %v463 = vadd.f32 0.0, %v462
      %v464 = vpop.f32.mrf.mxu0
      %465 = vmatprep.mubr.f32.mxu0 0.0
      %466 = vmatmul.mubr.f32.gmra.mxu0 %v359
      %v467 = vpop.f32.mrf.mxu0
      %v468 = vadd.f32 0.0, %v467
      %v469 = vpop.f32.mrf.mxu0
      %470 = vdwg.mxu0
      %v471 = vadd.f32 %v325, %v428
      %v472 = vadd.f32 %v326, %v433
      %v473 = vadd.f32 %v327, %v438
      %v474 = vadd.f32 %v328, %v443
      %v475 = vadd.f32 %v329, %v448
      %v476 = vadd.f32 %v330, %v453
      %v477 = vadd.f32 %v331, %v458
      %v478 = vadd.f32 %v332, %v463
      %v479 = vadd.f32 %v333, %v468
      %480 = vst.msk [vmem:[#allocation3] sm:$0xff] %vm305, %v471
      %481 = vst.msk [vmem:[#allocation3 + $0x8] sm:$0xff] %vm305, %v472
      %482 = vst.msk [vmem:[#allocation3 + $0x10] sm:$0xff] %vm305, %v473
      %483 = vst.msk [vmem:[#allocation3 + $0x18] sm:$0xff] %vm305, %v474
      %484 = vst.msk [vmem:[#allocation3 + $0x20] sm:$0xff] %vm305, %v475
      %485 = vst.msk [vmem:[#allocation3 + $0x28] sm:$0xff] %vm305, %v476
      %486 = vst.msk [vmem:[#allocation3 + $0x30] sm:$0xff] %vm305, %v477
      %487 = vst.msk [vmem:[#allocation3 + $0x38] sm:$0xff] %vm305, %v478
      %488 = vst.msk [vmem:[#allocation3 + $0x40] sm:$0xff] %vm305, %v479
      %s489 = scalar_lea.vmem [#allocation2], 88
      %v490 = vld [vmem:[%s489] sm:$0xff]
      %v491 = vld [vmem:[%s489 + $0x8] sm:$0xff]
      %v492 = vld [vmem:[%s489 + $0x10] sm:$0xff]
      %v493 = vld [vmem:[%s489 + $0x18] sm:$0xff]
      %v494 = vld [vmem:[%s489 + $0x20] sm:$0xff]
      %v495 = vld [vmem:[%s489 + $0x28] sm:$0xff]
      %v496 = vld [vmem:[%s489 + $0x30] sm:$0xff]
      %v497 = vld [vmem:[%s489 + $0x38] sm:$0xff]
      %v498 = vld [vmem:[%s489 + $0x40] sm:$0xff]
      %v499 = vld [vmem:[%s1 + $0x8] sm:$0xff]
      %v500 = vld [vmem:[#allocation3] sm:$0xff]
      %v501 = vld [vmem:[#allocation3 + $0x8] sm:$0xff]
      %v502 = vld [vmem:[#allocation3 + $0x10] sm:$0xff]
      %v503 = vld [vmem:[#allocation3 + $0x18] sm:$0xff]
      %v504 = vld [vmem:[#allocation3 + $0x20] sm:$0xff]
      %v505 = vld [vmem:[#allocation3 + $0x28] sm:$0xff]
      %v506 = vld [vmem:[#allocation3 + $0x30] sm:$0xff]
      %v507 = vld [vmem:[#allocation3 + $0x38] sm:$0xff]
      %v508 = vld [vmem:[#allocation3 + $0x40] sm:$0xff]
      %v510 = vsel %vm259, %v490, 0
      %v513 = vsel %vm259, %v491, 0
      %v516 = vsel %vm259, %v492, 0
      %v519 = vsel %vm259, %v493, 0
      %v522 = vsel %vm259, %v494, 0
      %v525 = vsel %vm259, %v495, 0
      %v528 = vsel %vm259, %v496, 0
      %v531 = vsel %vm259, %v497, 0
      %v534 = vsel %vm259, %v498, 0
      %536 = vmatprep.subr.mxu0 0.0
      %537 = vmatpush1.msra.mxu0 0.0
      %538 = vmatprep.subr.mxu0 0.0
      %539 = vmatpush1.msra.mxu0 0.0
      %540 = vmatprep.subr.mxu0 0.0
      %541 = vmatpush1.msra.mxu0 0.0
      %542 = vmatprep.subr.mxu0 0.0
      %543 = vmatpush1.msra.mxu0 0.0
      %544 = vmatprep.subr.mxu0 0.0
      %545 = vmatpush1.msra.mxu0 0.0
      %546 = vmatprep.subr.mxu0 0.0
      %547 = vmatpush1.msra.mxu0 0.0
      %548 = vmatprep.subr.mxu0 0.0
      %549 = vmatpush1.msra.mxu0 0.0
      %550 = vmatprep.subr.mxu0 0.0
      %551 = vmatpush1.msra.mxu0 0.0
      %552 = vmatprep.subr.mxu0 0.0
      %553 = vmatpush1.msra.mxu0 0.0
      %554 = vmatprep.subr.mxu0 0.0
      %555 = vmatpush1.msra.mxu0 0.0
      %556 = vmatprep.subr.mxu0 0.0
      %557 = vmatpush1.msra.mxu0 0.0
      %558 = vmatprep.subr.mxu0 0.0
      %559 = vmatpush1.msra.mxu0 0.0
      %560 = vmatprep.subr.mxu0 0.0
      %561 = vmatpush1.msra.mxu0 0.0
      %562 = vmatprep.subr.mxu0 0.0
      %563 = vmatpush1.msra.mxu0 0.0
      %564 = vmatprep.subr.mxu0 0.0
      %565 = vmatpush1.msra.mxu0 0.0
      %566 = vmatprep.subr.mxu0 0.0
      %567 = vmatpush1.msra.mxu0 %v499
      %568 = vmatprep.subr.mxu0 0.0
      %569 = vmatpush2.msra.mxu0 0.0
      %570 = vmatprep.subr.mxu0 0.0
      %571 = vmatpush2.msra.mxu0 0.0
      %572 = vmatprep.subr.mxu0 0.0
      %573 = vmatpush2.msra.mxu0 0.0
      %574 = vmatprep.subr.mxu0 0.0
      %575 = vmatpush2.msra.mxu0 0.0
      %576 = vmatprep.subr.mxu0 0.0
      %577 = vmatpush2.msra.mxu0 0.0
      %578 = vmatprep.subr.mxu0 0.0
      %579 = vmatpush2.msra.mxu0 0.0
      %580 = vmatprep.subr.mxu0 0.0
      %581 = vmatpush2.msra.mxu0 0.0
      %582 = vmatprep.subr.mxu0 0.0
      %583 = vmatpush2.msra.mxu0 0.0
      %584 = vmatprep.subr.mxu0 0.0
      %585 = vmatpush2.msra.mxu0 0.0
      %586 = vmatprep.subr.mxu0 0.0
      %587 = vmatpush2.msra.mxu0 0.0
      %588 = vmatprep.subr.mxu0 0.0
      %589 = vmatpush2.msra.mxu0 0.0
      %590 = vmatprep.subr.mxu0 0.0
      %591 = vmatpush2.msra.mxu0 0.0
      %592 = vmatprep.subr.mxu0 0.0
      %593 = vmatpush2.msra.mxu0 0.0
      %594 = vmatprep.subr.mxu0 0.0
      %595 = vmatpush2.msra.mxu0 0.0
      %596 = vmatprep.subr.mxu0 0.0
      %597 = vmatpush2.msra.mxu0 0.0
      %598 = vmatprep.subr.mxu0 0.0
      %599 = vmatpush2.msra.mxu0 0.0
      %600 = vmatprep.mubr.f32.mxu0 0.0
      %601 = vmatmul.mubr.f32.gmra.mxu0 %v510
      %v602 = vpop.f32.mrf.mxu0
      %v603 = vadd.f32 0.0, %v602
      %v604 = vpop.f32.mrf.mxu0
      %605 = vmatprep.mubr.f32.mxu0 0.0
      %606 = vmatmul.mubr.f32.gmra.mxu0 %v513
      %v607 = vpop.f32.mrf.mxu0
      %v608 = vadd.f32 0.0, %v607
      %v609 = vpop.f32.mrf.mxu0
      %610 = vmatprep.mubr.f32.mxu0 0.0
      %611 = vmatmul.mubr.f32.gmra.mxu0 %v516
      %v612 = vpop.f32.mrf.mxu0
      %v613 = vadd.f32 0.0, %v612
      %v614 = vpop.f32.mrf.mxu0
      %615 = vmatprep.mubr.f32.mxu0 0.0
      %616 = vmatmul.mubr.f32.gmra.mxu0 %v519
      %v617 = vpop.f32.mrf.mxu0
      %v618 = vadd.f32 0.0, %v617
      %v619 = vpop.f32.mrf.mxu0
      %620 = vmatprep.mubr.f32.mxu0 0.0
      %621 = vmatmul.mubr.f32.gmra.mxu0 %v522
      %v622 = vpop.f32.mrf.mxu0
      %v623 = vadd.f32 0.0, %v622
      %v624 = vpop.f32.mrf.mxu0
      %625 = vmatprep.mubr.f32.mxu0 0.0
      %626 = vmatmul.mubr.f32.gmra.mxu0 %v525
      %v627 = vpop.f32.mrf.mxu0
      %v628 = vadd.f32 0.0, %v627
      %v629 = vpop.f32.mrf.mxu0
      %630 = vmatprep.mubr.f32.mxu0 0.0
      %631 = vmatmul.mubr.f32.gmra.mxu0 %v528
      %v632 = vpop.f32.mrf.mxu0
      %v633 = vadd.f32 0.0, %v632
      %v634 = vpop.f32.mrf.mxu0
      %635 = vmatprep.mubr.f32.mxu0 0.0
      %636 = vmatmul.mubr.f32.gmra.mxu0 %v531
      %v637 = vpop.f32.mrf.mxu0
      %v638 = vadd.f32 0.0, %v637
      %v639 = vpop.f32.mrf.mxu0
      %640 = vmatprep.mubr.f32.mxu0 0.0
      %641 = vmatmul.mubr.f32.gmra.mxu0 %v534
      %v642 = vpop.f32.mrf.mxu0
      %v643 = vadd.f32 0.0, %v642
      %v644 = vpop.f32.mrf.mxu0
      %645 = vdwg.mxu0
      %v646 = vadd.f32 %v500, %v603
      %v647 = vadd.f32 %v501, %v608
      %v648 = vadd.f32 %v502, %v613
      %v649 = vadd.f32 %v503, %v618
      %v650 = vadd.f32 %v504, %v623
      %v651 = vadd.f32 %v505, %v628
      %v652 = vadd.f32 %v506, %v633
      %v653 = vadd.f32 %v507, %v638
      %v654 = vadd.f32 %v508, %v643
      %655 = vst.msk [vmem:[#allocation3] sm:$0xff] %vm305, %v646
      %656 = vst.msk [vmem:[#allocation3 + $0x8] sm:$0xff] %vm305, %v647
      %657 = vst.msk [vmem:[#allocation3 + $0x10] sm:$0xff] %vm305, %v648
      %658 = vst.msk [vmem:[#allocation3 + $0x18] sm:$0xff] %vm305, %v649
      %659 = vst.msk [vmem:[#allocation3 + $0x20] sm:$0xff] %vm305, %v650
      %660 = vst.msk [vmem:[#allocation3 + $0x28] sm:$0xff] %vm305, %v651
      %661 = vst.msk [vmem:[#allocation3 + $0x30] sm:$0xff] %vm305, %v652
      %662 = vst.msk [vmem:[#allocation3 + $0x38] sm:$0xff] %vm305, %v653
      %663 = vst.msk [vmem:[#allocation3 + $0x40] sm:$0xff] %vm305, %v654
      %v664 = vld [vmem:[#allocation2 + $0x1] sm:$0xff]
      %v665 = vld [vmem:[#allocation2 + $0x9] sm:$0xff]
      %v666 = vld [vmem:[#allocation2 + $0x11] sm:$0xff]
      %v667 = vld [vmem:[#allocation2 + $0x19] sm:$0xff]
      %v668 = vld [vmem:[#allocation2 + $0x21] sm:$0xff]
      %v669 = vld [vmem:[#allocation2 + $0x29] sm:$0xff]
      %v670 = vld [vmem:[#allocation2 + $0x31] sm:$0xff]
      %v671 = vld [vmem:[#allocation2 + $0x39] sm:$0xff]
      %v672 = vld [vmem:[#allocation2 + $0x41] sm:$0xff]
      %v673 = vld [vmem:[%s1 + $0x10] sm:$0xff]
      %v674 = vld [vmem:[#allocation3] sm:$0xff]
      %v675 = vld [vmem:[#allocation3 + $0x8] sm:$0xff]
      %v676 = vld [vmem:[#allocation3 + $0x10] sm:$0xff]
      %v677 = vld [vmem:[#allocation3 + $0x18] sm:$0xff]
      %v678 = vld [vmem:[#allocation3 + $0x20] sm:$0xff]
      %v679 = vld [vmem:[#allocation3 + $0x28] sm:$0xff]
      %v680 = vld [vmem:[#allocation3 + $0x30] sm:$0xff]
      %v681 = vld [vmem:[#allocation3 + $0x38] sm:$0xff]
      %v682 = vld [vmem:[#allocation3 + $0x40] sm:$0xff]
      %v684 = vsel %vm259, %v664, 0
      %v687 = vsel %vm259, %v665, 0
      %v690 = vsel %vm259, %v666, 0
      %v693 = vsel %vm259, %v667, 0
      %v696 = vsel %vm259, %v668, 0
      %v699 = vsel %vm259, %v669, 0
      %v702 = vsel %vm259, %v670, 0
      %v705 = vsel %vm259, %v671, 0
      %v708 = vsel %vm259, %v672, 0
      %710 = vmatprep.subr.mxu0 0.0
      %711 = vmatpush1.msra.mxu0 0.0
      %712 = vmatprep.subr.mxu0 0.0
      %713 = vmatpush1.msra.mxu0 0.0
      %714 = vmatprep.subr.mxu0 0.0
      %715 = vmatpush1.msra.mxu0 0.0
      %716 = vmatprep.subr.mxu0 0.0
      %717 = vmatpush1.msra.mxu0 0.0
      %718 = vmatprep.subr.mxu0 0.0
      %719 = vmatpush1.msra.mxu0 0.0
      %720 = vmatprep.subr.mxu0 0.0
      %721 = vmatpush1.msra.mxu0 0.0
      %722 = vmatprep.subr.mxu0 0.0
      %723 = vmatpush1.msra.mxu0 0.0
      %724 = vmatprep.subr.mxu0 0.0
      %725 = vmatpush1.msra.mxu0 0.0
      %726 = vmatprep.subr.mxu0 0.0
      %727 = vmatpush1.msra.mxu0 0.0
      %728 = vmatprep.subr.mxu0 0.0
      %729 = vmatpush1.msra.mxu0 0.0
      %730 = vmatprep.subr.mxu0 0.0
      %731 = vmatpush1.msra.mxu0 0.0
      %732 = vmatprep.subr.mxu0 0.0
      %733 = vmatpush1.msra.mxu0 0.0
      %734 = vmatprep.subr.mxu0 0.0
      %735 = vmatpush1.msra.mxu0 0.0
      %736 = vmatprep.subr.mxu0 0.0
      %737 = vmatpush1.msra.mxu0 0.0
      %738 = vmatprep.subr.mxu0 0.0
      %739 = vmatpush1.msra.mxu0 0.0
      %740 = vmatprep.subr.mxu0 0.0
      %741 = vmatpush1.msra.mxu0 %v673
      %742 = vmatprep.subr.mxu0 0.0
      %743 = vmatpush2.msra.mxu0 0.0
      %744 = vmatprep.subr.mxu0 0.0
      %745 = vmatpush2.msra.mxu0 0.0
      %746 = vmatprep.subr.mxu0 0.0
      %747 = vmatpush2.msra.mxu0 0.0
      %748 = vmatprep.subr.mxu0 0.0
      %749 = vmatpush2.msra.mxu0 0.0
      %750 = vmatprep.subr.mxu0 0.0
      %751 = vmatpush2.msra.mxu0 0.0
      %752 = vmatprep.subr.mxu0 0.0
      %753 = vmatpush2.msra.mxu0 0.0
      %754 = vmatprep.subr.mxu0 0.0
      %755 = vmatpush2.msra.mxu0 0.0
      %756 = vmatprep.subr.mxu0 0.0
      %757 = vmatpush2.msra.mxu0 0.0
      %758 = vmatprep.subr.mxu0 0.0
      %759 = vmatpush2.msra.mxu0 0.0
      %760 = vmatprep.subr.mxu0 0.0
      %761 = vmatpush2.msra.mxu0 0.0
      %762 = vmatprep.subr.mxu0 0.0
      %763 = vmatpush2.msra.mxu0 0.0
      %764 = vmatprep.subr.mxu0 0.0
      %765 = vmatpush2.msra.mxu0 0.0
      %766 = vmatprep.subr.mxu0 0.0
      %767 = vmatpush2.msra.mxu0 0.0
      %768 = vmatprep.subr.mxu0 0.0
      %769 = vmatpush2.msra.mxu0 0.0
      %770 = vmatprep.subr.mxu0 0.0
      %771 = vmatpush2.msra.mxu0 0.0
      %772 = vmatprep.subr.mxu0 0.0
      %773 = vmatpush2.msra.mxu0 0.0
      %774 = vmatprep.mubr.f32.mxu0 0.0
      %775 = vmatmul.mubr.f32.gmra.mxu0 %v684
      %v776 = vpop.f32.mrf.mxu0
      %v777 = vadd.f32 0.0, %v776
      %v778 = vpop.f32.mrf.mxu0
      %779 = vmatprep.mubr.f32.mxu0 0.0
      %780 = vmatmul.mubr.f32.gmra.mxu0 %v687
      %v781 = vpop.f32.mrf.mxu0
      %v782 = vadd.f32 0.0, %v781
      %v783 = vpop.f32.mrf.mxu0
      %784 = vmatprep.mubr.f32.mxu0 0.0
      %785 = vmatmul.mubr.f32.gmra.mxu0 %v690
      %v786 = vpop.f32.mrf.mxu0
      %v787 = vadd.f32 0.0, %v786
      %v788 = vpop.f32.mrf.mxu0
      %789 = vmatprep.mubr.f32.mxu0 0.0
      %790 = vmatmul.mubr.f32.gmra.mxu0 %v693
      %v791 = vpop.f32.mrf.mxu0
      %v792 = vadd.f32 0.0, %v791
      %v793 = vpop.f32.mrf.mxu0
      %794 = vmatprep.mubr.f32.mxu0 0.0
      %795 = vmatmul.mubr.f32.gmra.mxu0 %v696
      %v796 = vpop.f32.mrf.mxu0
      %v797 = vadd.f32 0.0, %v796
      %v798 = vpop.f32.mrf.mxu0
      %799 = vmatprep.mubr.f32.mxu0 0.0
      %800 = vmatmul.mubr.f32.gmra.mxu0 %v699
      %v801 = vpop.f32.mrf.mxu0
      %v802 = vadd.f32 0.0, %v801
      %v803 = vpop.f32.mrf.mxu0
      %804 = vmatprep.mubr.f32.mxu0 0.0
      %805 = vmatmul.mubr.f32.gmra.mxu0 %v702
      %v806 = vpop.f32.mrf.mxu0
      %v807 = vadd.f32 0.0, %v806
      %v808 = vpop.f32.mrf.mxu0
      %809 = vmatprep.mubr.f32.mxu0 0.0
      %810 = vmatmul.mubr.f32.gmra.mxu0 %v705
      %v811 = vpop.f32.mrf.mxu0
      %v812 = vadd.f32 0.0, %v811
      %v813 = vpop.f32.mrf.mxu0
      %814 = vmatprep.mubr.f32.mxu0 0.0
      %815 = vmatmul.mubr.f32.gmra.mxu0 %v708
      %v816 = vpop.f32.mrf.mxu0
      %v817 = vadd.f32 0.0, %v816
      %v818 = vpop.f32.mrf.mxu0
      %819 = vdwg.mxu0
      %v820 = vadd.f32 %v674, %v777
      %v821 = vadd.f32 %v675, %v782
      %v822 = vadd.f32 %v676, %v787
      %v823 = vadd.f32 %v677, %v792
      %v824 = vadd.f32 %v678, %v797
      %v825 = vadd.f32 %v679, %v802
      %v826 = vadd.f32 %v680, %v807
      %v827 = vadd.f32 %v681, %v812
      %v828 = vadd.f32 %v682, %v817
      %829 = vst.msk [vmem:[#allocation3] sm:$0xff] %vm305, %v820
      %830 = vst.msk [vmem:[#allocation3 + $0x8] sm:$0xff] %vm305, %v821
      %831 = vst.msk [vmem:[#allocation3 + $0x10] sm:$0xff] %vm305, %v822
      %832 = vst.msk [vmem:[#allocation3 + $0x18] sm:$0xff] %vm305, %v823
      %833 = vst.msk [vmem:[#allocation3 + $0x20] sm:$0xff] %vm305, %v824
      %834 = vst.msk [vmem:[#allocation3 + $0x28] sm:$0xff] %vm305, %v825
      %835 = vst.msk [vmem:[#allocation3 + $0x30] sm:$0xff] %vm305, %v826
      %836 = vst.msk [vmem:[#allocation3 + $0x38] sm:$0xff] %vm305, %v827
      %837 = vst.msk [vmem:[#allocation3 + $0x40] sm:$0xff] %vm305, %v828
      %s838 = scalar_lea.vmem [#allocation2], 176
      %v839 = vld [vmem:[%s838] sm:$0xff]
      %v840 = vld [vmem:[%s838 + $0x8] sm:$0xff]
      %v841 = vld [vmem:[%s838 + $0x10] sm:$0xff]
      %v842 = vld [vmem:[%s838 + $0x18] sm:$0xff]
      %v843 = vld [vmem:[%s838 + $0x20] sm:$0xff]
      %v844 = vld [vmem:[%s838 + $0x28] sm:$0xff]
      %v845 = vld [vmem:[%s838 + $0x30] sm:$0xff]
      %v846 = vld [vmem:[%s838 + $0x38] sm:$0xff]
      %v847 = vld [vmem:[%s838 + $0x40] sm:$0xff]
      %v848 = vld [vmem:[%s1 + $0x18] sm:$0xff]
      %v849 = vld [vmem:[#allocation3] sm:$0xff]
      %v850 = vld [vmem:[#allocation3 + $0x8] sm:$0xff]
      %v851 = vld [vmem:[#allocation3 + $0x10] sm:$0xff]
      %v852 = vld [vmem:[#allocation3 + $0x18] sm:$0xff]
      %v853 = vld [vmem:[#allocation3 + $0x20] sm:$0xff]
      %v854 = vld [vmem:[#allocation3 + $0x28] sm:$0xff]
      %v855 = vld [vmem:[#allocation3 + $0x30] sm:$0xff]
      %v856 = vld [vmem:[#allocation3 + $0x38] sm:$0xff]
      %v857 = vld [vmem:[#allocation3 + $0x40] sm:$0xff]
      %v859 = vsel %vm259, %v839, 0
      %v862 = vsel %vm259, %v840, 0
      %v865 = vsel %vm259, %v841, 0
      %v868 = vsel %vm259, %v842, 0
      %v871 = vsel %vm259, %v843, 0
      %v874 = vsel %vm259, %v844, 0
      %v877 = vsel %vm259, %v845, 0
      %v880 = vsel %vm259, %v846, 0
      %v883 = vsel %vm259, %v847, 0
      %885 = vmatprep.subr.mxu0 0.0
      %886 = vmatpush1.msra.mxu0 0.0
      %887 = vmatprep.subr.mxu0 0.0
      %888 = vmatpush1.msra.mxu0 0.0
      %889 = vmatprep.subr.mxu0 0.0
      %890 = vmatpush1.msra.mxu0 0.0
      %891 = vmatprep.subr.mxu0 0.0
      %892 = vmatpush1.msra.mxu0 0.0
      %893 = vmatprep.subr.mxu0 0.0
      %894 = vmatpush1.msra.mxu0 0.0
      %895 = vmatprep.subr.mxu0 0.0
      %896 = vmatpush1.msra.mxu0 0.0
      %897 = vmatprep.subr.mxu0 0.0
      %898 = vmatpush1.msra.mxu0 0.0
      %899 = vmatprep.subr.mxu0 0.0
      %900 = vmatpush1.msra.mxu0 0.0
      %901 = vmatprep.subr.mxu0 0.0
      %902 = vmatpush1.msra.mxu0 0.0
      %903 = vmatprep.subr.mxu0 0.0
      %904 = vmatpush1.msra.mxu0 0.0
      %905 = vmatprep.subr.mxu0 0.0
      %906 = vmatpush1.msra.mxu0 0.0
      %907 = vmatprep.subr.mxu0 0.0
      %908 = vmatpush1.msra.mxu0 0.0
      %909 = vmatprep.subr.mxu0 0.0
      %910 = vmatpush1.msra.mxu0 0.0
      %911 = vmatprep.subr.mxu0 0.0
      %912 = vmatpush1.msra.mxu0 0.0
      %913 = vmatprep.subr.mxu0 0.0
      %914 = vmatpush1.msra.mxu0 0.0
      %915 = vmatprep.subr.mxu0 0.0
      %916 = vmatpush1.msra.mxu0 %v848
      %917 = vmatprep.subr.mxu0 0.0
      %918 = vmatpush2.msra.mxu0 0.0
      %919 = vmatprep.subr.mxu0 0.0
      %920 = vmatpush2.msra.mxu0 0.0
      %921 = vmatprep.subr.mxu0 0.0
      %922 = vmatpush2.msra.mxu0 0.0
      %923 = vmatprep.subr.mxu0 0.0
      %924 = vmatpush2.msra.mxu0 0.0
      %925 = vmatprep.subr.mxu0 0.0
      %926 = vmatpush2.msra.mxu0 0.0
      %927 = vmatprep.subr.mxu0 0.0
      %928 = vmatpush2.msra.mxu0 0.0
      %929 = vmatprep.subr.mxu0 0.0
      %930 = vmatpush2.msra.mxu0 0.0
      %931 = vmatprep.subr.mxu0 0.0
      %932 = vmatpush2.msra.mxu0 0.0
      %933 = vmatprep.subr.mxu0 0.0
      %934 = vmatpush2.msra.mxu0 0.0
      %935 = vmatprep.subr.mxu0 0.0
      %936 = vmatpush2.msra.mxu0 0.0
      %937 = vmatprep.subr.mxu0 0.0
      %938 = vmatpush2.msra.mxu0 0.0
      %939 = vmatprep.subr.mxu0 0.0
      %940 = vmatpush2.msra.mxu0 0.0
      %941 = vmatprep.subr.mxu0 0.0
      %942 = vmatpush2.msra.mxu0 0.0
      %943 = vmatprep.subr.mxu0 0.0
      %944 = vmatpush2.msra.mxu0 0.0
      %945 = vmatprep.subr.mxu0 0.0
      %946 = vmatpush2.msra.mxu0 0.0
      %947 = vmatprep.subr.mxu0 0.0
      %948 = vmatpush2.msra.mxu0 0.0
      %949 = vmatprep.mubr.f32.mxu0 0.0
      %950 = vmatmul.mubr.f32.gmra.mxu0 %v859
      %v951 = vpop.f32.mrf.mxu0
      %v952 = vadd.f32 0.0, %v951
      %v953 = vpop.f32.mrf.mxu0
      %954 = vmatprep.mubr.f32.mxu0 0.0
      %955 = vmatmul.mubr.f32.gmra.mxu0 %v862
      %v956 = vpop.f32.mrf.mxu0
      %v957 = vadd.f32 0.0, %v956
      %v958 = vpop.f32.mrf.mxu0
      %959 = vmatprep.mubr.f32.mxu0 0.0
      %960 = vmatmul.mubr.f32.gmra.mxu0 %v865
      %v961 = vpop.f32.mrf.mxu0
      %v962 = vadd.f32 0.0, %v961
      %v963 = vpop.f32.mrf.mxu0
      %964 = vmatprep.mubr.f32.mxu0 0.0
      %965 = vmatmul.mubr.f32.gmra.mxu0 %v868
      %v966 = vpop.f32.mrf.mxu0
      %v967 = vadd.f32 0.0, %v966
      %v968 = vpop.f32.mrf.mxu0
      %969 = vmatprep.mubr.f32.mxu0 0.0
      %970 = vmatmul.mubr.f32.gmra.mxu0 %v871
      %v971 = vpop.f32.mrf.mxu0
      %v972 = vadd.f32 0.0, %v971
      %v973 = vpop.f32.mrf.mxu0
      %974 = vmatprep.mubr.f32.mxu0 0.0
      %975 = vmatmul.mubr.f32.gmra.mxu0 %v874
      %v976 = vpop.f32.mrf.mxu0
      %v977 = vadd.f32 0.0, %v976
      %v978 = vpop.f32.mrf.mxu0
      %979 = vmatprep.mubr.f32.mxu0 0.0
      %980 = vmatmul.mubr.f32.gmra.mxu0 %v877
      %v981 = vpop.f32.mrf.mxu0
      %v982 = vadd.f32 0.0, %v981
      %v983 = vpop.f32.mrf.mxu0
      %984 = vmatprep.mubr.f32.mxu0 0.0
      %985 = vmatmul.mubr.f32.gmra.mxu0 %v880
      %v986 = vpop.f32.mrf.mxu0
      %v987 = vadd.f32 0.0, %v986
      %v988 = vpop.f32.mrf.mxu0
      %989 = vmatprep.mubr.f32.mxu0 0.0
      %990 = vmatmul.mubr.f32.gmra.mxu0 %v883
      %v991 = vpop.f32.mrf.mxu0
      %v992 = vadd.f32 0.0, %v991
      %v993 = vpop.f32.mrf.mxu0
      %994 = vdwg.mxu0
      %v995 = vadd.f32 %v849, %v952
      %v996 = vadd.f32 %v850, %v957
      %v997 = vadd.f32 %v851, %v962
      %v998 = vadd.f32 %v852, %v967
      %v999 = vadd.f32 %v853, %v972
      %v1000 = vadd.f32 %v854, %v977
      %v1001 = vadd.f32 %v855, %v982
      %v1002 = vadd.f32 %v856, %v987
      %v1003 = vadd.f32 %v857, %v992
      %1004 = vst.msk [vmem:[#allocation3] sm:$0xff] %vm305, %v995
      %1005 = vst.msk [vmem:[#allocation3 + $0x8] sm:$0xff] %vm305, %v996
      %1006 = vst.msk [vmem:[#allocation3 + $0x10] sm:$0xff] %vm305, %v997
      %1007 = vst.msk [vmem:[#allocation3 + $0x18] sm:$0xff] %vm305, %v998
      %1008 = vst.msk [vmem:[#allocation3 + $0x20] sm:$0xff] %vm305, %v999
      %1009 = vst.msk [vmem:[#allocation3 + $0x28] sm:$0xff] %vm305, %v1000
      %1010 = vst.msk [vmem:[#allocation3 + $0x30] sm:$0xff] %vm305, %v1001
      %1011 = vst.msk [vmem:[#allocation3 + $0x38] sm:$0xff] %vm305, %v1002
      %1012 = vst.msk [vmem:[#allocation3 + $0x40] sm:$0xff] %vm305, %v1003
      %s1013 = scalar_lea.vmem [#allocation2], 264
      %v1014 = vld [vmem:[%s1013] sm:$0xff]
      %v1015 = vld [vmem:[%s1013 + $0x8] sm:$0xff]
      %v1016 = vld [vmem:[%s1013 + $0x10] sm:$0xff]
      %v1017 = vld [vmem:[%s1013 + $0x18] sm:$0xff]
      %v1018 = vld [vmem:[%s1013 + $0x20] sm:$0xff]
      %v1019 = vld [vmem:[%s1013 + $0x28] sm:$0xff]
      %v1020 = vld [vmem:[%s1013 + $0x30] sm:$0xff]
      %v1021 = vld [vmem:[%s1013 + $0x38] sm:$0xff]
      %v1022 = vld [vmem:[%s1013 + $0x40] sm:$0xff]
      %v1023 = vld [vmem:[%s1 + $0x20] sm:$0xff]
      %v1024 = vld [vmem:[#allocation3] sm:$0xff]
      %v1025 = vld [vmem:[#allocation3 + $0x8] sm:$0xff]
      %v1026 = vld [vmem:[#allocation3 + $0x10] sm:$0xff]
      %v1027 = vld [vmem:[#allocation3 + $0x18] sm:$0xff]
      %v1028 = vld [vmem:[#allocation3 + $0x20] sm:$0xff]
      %v1029 = vld [vmem:[#allocation3 + $0x28] sm:$0xff]
      %v1030 = vld [vmem:[#allocation3 + $0x30] sm:$0xff]
      %v1031 = vld [vmem:[#allocation3 + $0x38] sm:$0xff]
      %v1032 = vld [vmem:[#allocation3 + $0x40] sm:$0xff]
      %v1034 = vsel %vm259, %v1014, 0
      %v1037 = vsel %vm259, %v1015, 0
      %v1040 = vsel %vm259, %v1016, 0
      %v1043 = vsel %vm259, %v1017, 0
      %v1046 = vsel %vm259, %v1018, 0
      %v1049 = vsel %vm259, %v1019, 0
      %v1052 = vsel %vm259, %v1020, 0
      %v1055 = vsel %vm259, %v1021, 0
      %v1058 = vsel %vm259, %v1022, 0
      %1060 = vmatprep.subr.mxu0 0.0
      %1061 = vmatpush1.msra.mxu0 0.0
      %1062 = vmatprep.subr.mxu0 0.0
      %1063 = vmatpush1.msra.mxu0 0.0
      %1064 = vmatprep.subr.mxu0 0.0
      %1065 = vmatpush1.msra.mxu0 0.0
      %1066 = vmatprep.subr.mxu0 0.0
      %1067 = vmatpush1.msra.mxu0 0.0
      %1068 = vmatprep.subr.mxu0 0.0
      %1069 = vmatpush1.msra.mxu0 0.0
      %1070 = vmatprep.subr.mxu0 0.0
      %1071 = vmatpush1.msra.mxu0 0.0
      %1072 = vmatprep.subr.mxu0 0.0
      %1073 = vmatpush1.msra.mxu0 0.0
      %1074 = vmatprep.subr.mxu0 0.0
      %1075 = vmatpush1.msra.mxu0 0.0
      %1076 = vmatprep.subr.mxu0 0.0
      %1077 = vmatpush1.msra.mxu0 0.0
      %1078 = vmatprep.subr.mxu0 0.0
      %1079 = vmatpush1.msra.mxu0 0.0
      %1080 = vmatprep.subr.mxu0 0.0
      %1081 = vmatpush1.msra.mxu0 0.0
      %1082 = vmatprep.subr.mxu0 0.0
      %1083 = vmatpush1.msra.mxu0 0.0
      %1084 = vmatprep.subr.mxu0 0.0
      %1085 = vmatpush1.msra.mxu0 0.0
      %1086 = vmatprep.subr.mxu0 0.0
      %1087 = vmatpush1.msra.mxu0 0.0
      %1088 = vmatprep.subr.mxu0 0.0
      %1089 = vmatpush1.msra.mxu0 0.0
      %1090 = vmatprep.subr.mxu0 0.0
      %1091 = vmatpush1.msra.mxu0 %v1023
      %1092 = vmatprep.subr.mxu0 0.0
      %1093 = vmatpush2.msra.mxu0 0.0
      %1094 = vmatprep.subr.mxu0 0.0
      %1095 = vmatpush2.msra.mxu0 0.0
      %1096 = vmatprep.subr.mxu0 0.0
      %1097 = vmatpush2.msra.mxu0 0.0
      %1098 = vmatprep.subr.mxu0 0.0
      %1099 = vmatpush2.msra.mxu0 0.0
      %1100 = vmatprep.subr.mxu0 0.0
      %1101 = vmatpush2.msra.mxu0 0.0
      %1102 = vmatprep.subr.mxu0 0.0
      %1103 = vmatpush2.msra.mxu0 0.0
      %1104 = vmatprep.subr.mxu0 0.0
      %1105 = vmatpush2.msra.mxu0 0.0
      %1106 = vmatprep.subr.mxu0 0.0
      %1107 = vmatpush2.msra.mxu0 0.0
      %1108 = vmatprep.subr.mxu0 0.0
      %1109 = vmatpush2.msra.mxu0 0.0
      %1110 = vmatprep.subr.mxu0 0.0
      %1111 = vmatpush2.msra.mxu0 0.0
      %1112 = vmatprep.subr.mxu0 0.0
      %1113 = vmatpush2.msra.mxu0 0.0
      %1114 = vmatprep.subr.mxu0 0.0
      %1115 = vmatpush2.msra.mxu0 0.0
      %1116 = vmatprep.subr.mxu0 0.0
      %1117 = vmatpush2.msra.mxu0 0.0
      %1118 = vmatprep.subr.mxu0 0.0
      %1119 = vmatpush2.msra.mxu0 0.0
      %1120 = vmatprep.subr.mxu0 0.0
      %1121 = vmatpush2.msra.mxu0 0.0
      %1122 = vmatprep.subr.mxu0 0.0
      %1123 = vmatpush2.msra.mxu0 0.0
      %1124 = vmatprep.mubr.f32.mxu0 0.0
      %1125 = vmatmul.mubr.f32.gmra.mxu0 %v1034
      %v1126 = vpop.f32.mrf.mxu0
      %v1127 = vadd.f32 0.0, %v1126
      %v1128 = vpop.f32.mrf.mxu0
      %1129 = vmatprep.mubr.f32.mxu0 0.0
      %1130 = vmatmul.mubr.f32.gmra.mxu0 %v1037
      %v1131 = vpop.f32.mrf.mxu0
      %v1132 = vadd.f32 0.0, %v1131
      %v1133 = vpop.f32.mrf.mxu0
      %1134 = vmatprep.mubr.f32.mxu0 0.0
      %1135 = vmatmul.mubr.f32.gmra.mxu0 %v1040
      %v1136 = vpop.f32.mrf.mxu0
      %v1137 = vadd.f32 0.0, %v1136
      %v1138 = vpop.f32.mrf.mxu0
      %1139 = vmatprep.mubr.f32.mxu0 0.0
      %1140 = vmatmul.mubr.f32.gmra.mxu0 %v1043
      %v1141 = vpop.f32.mrf.mxu0
      %v1142 = vadd.f32 0.0, %v1141
      %v1143 = vpop.f32.mrf.mxu0
      %1144 = vmatprep.mubr.f32.mxu0 0.0
      %1145 = vmatmul.mubr.f32.gmra.mxu0 %v1046
      %v1146 = vpop.f32.mrf.mxu0
      %v1147 = vadd.f32 0.0, %v1146
      %v1148 = vpop.f32.mrf.mxu0
      %1149 = vmatprep.mubr.f32.mxu0 0.0
      %1150 = vmatmul.mubr.f32.gmra.mxu0 %v1049
      %v1151 = vpop.f32.mrf.mxu0
      %v1152 = vadd.f32 0.0, %v1151
      %v1153 = vpop.f32.mrf.mxu0
      %1154 = vmatprep.mubr.f32.mxu0 0.0
      %1155 = vmatmul.mubr.f32.gmra.mxu0 %v1052
      %v1156 = vpop.f32.mrf.mxu0
      %v1157 = vadd.f32 0.0, %v1156
      %v1158 = vpop.f32.mrf.mxu0
      %1159 = vmatprep.mubr.f32.mxu0 0.0
      %1160 = vmatmul.mubr.f32.gmra.mxu0 %v1055
      %v1161 = vpop.f32.mrf.mxu0
      %v1162 = vadd.f32 0.0, %v1161
      %v1163 = vpop.f32.mrf.mxu0
      %1164 = vmatprep.mubr.f32.mxu0 0.0
      %1165 = vmatmul.mubr.f32.gmra.mxu0 %v1058
      %v1166 = vpop.f32.mrf.mxu0
      %v1167 = vadd.f32 0.0, %v1166
      %v1168 = vpop.f32.mrf.mxu0
      %1169 = vdwg.mxu0
      %v1170 = vadd.f32 %v1024, %v1127
      %v1171 = vadd.f32 %v1025, %v1132
      %v1172 = vadd.f32 %v1026, %v1137
      %v1173 = vadd.f32 %v1027, %v1142
      %v1174 = vadd.f32 %v1028, %v1147
      %v1175 = vadd.f32 %v1029, %v1152
      %v1176 = vadd.f32 %v1030, %v1157
      %v1177 = vadd.f32 %v1031, %v1162
      %v1178 = vadd.f32 %v1032, %v1167
      %1179 = vst.msk [vmem:[#allocation3] sm:$0xff] %vm305, %v1170
      %1180 = vst.msk [vmem:[#allocation3 + $0x8] sm:$0xff] %vm305, %v1171
      %1181 = vst.msk [vmem:[#allocation3 + $0x10] sm:$0xff] %vm305, %v1172
      %1182 = vst.msk [vmem:[#allocation3 + $0x18] sm:$0xff] %vm305, %v1173
      %1183 = vst.msk [vmem:[#allocation3 + $0x20] sm:$0xff] %vm305, %v1174
      %1184 = vst.msk [vmem:[#allocation3 + $0x28] sm:$0xff] %vm305, %v1175
      %1185 = vst.msk [vmem:[#allocation3 + $0x30] sm:$0xff] %vm305, %v1176
      %1186 = vst.msk [vmem:[#allocation3 + $0x38] sm:$0xff] %vm305, %v1177
      %1187 = vst.msk [vmem:[#allocation3 + $0x40] sm:$0xff] %vm305, %v1178
      %v1188 = vld [vmem:[%s838 + $0x1] sm:$0xff]
      %v1189 = vld [vmem:[%s838 + $0x9] sm:$0xff]
      %v1190 = vld [vmem:[%s838 + $0x11] sm:$0xff]
      %v1191 = vld [vmem:[%s838 + $0x19] sm:$0xff]
      %v1192 = vld [vmem:[%s838 + $0x21] sm:$0xff]
      %v1193 = vld [vmem:[%s838 + $0x29] sm:$0xff]
      %v1194 = vld [vmem:[%s838 + $0x31] sm:$0xff]
      %v1195 = vld [vmem:[%s838 + $0x39] sm:$0xff]
      %v1196 = vld [vmem:[%s838 + $0x41] sm:$0xff]
      %v1197 = vld [vmem:[%s1 + $0x28] sm:$0xff]
      %v1198 = vld [vmem:[#allocation3] sm:$0xff]
      %v1199 = vld [vmem:[#allocation3 + $0x8] sm:$0xff]
      %v1200 = vld [vmem:[#allocation3 + $0x10] sm:$0xff]
      %v1201 = vld [vmem:[#allocation3 + $0x18] sm:$0xff]
      %v1202 = vld [vmem:[#allocation3 + $0x20] sm:$0xff]
      %v1203 = vld [vmem:[#allocation3 + $0x28] sm:$0xff]
      %v1204 = vld [vmem:[#allocation3 + $0x30] sm:$0xff]
      %v1205 = vld [vmem:[#allocation3 + $0x38] sm:$0xff]
      %v1206 = vld [vmem:[#allocation3 + $0x40] sm:$0xff]
      %v1208 = vsel %vm259, %v1188, 0
      %v1211 = vsel %vm259, %v1189, 0
      %v1214 = vsel %vm259, %v1190, 0
      %v1217 = vsel %vm259, %v1191, 0
      %v1220 = vsel %vm259, %v1192, 0
      %v1223 = vsel %vm259, %v1193, 0
      %v1226 = vsel %vm259, %v1194, 0
      %v1229 = vsel %vm259, %v1195, 0
      %v1232 = vsel %vm259, %v1196, 0
      %1234 = vmatprep.subr.mxu0 0.0
      %1235 = vmatpush1.msra.mxu0 0.0
      %1236 = vmatprep.subr.mxu0 0.0
      %1237 = vmatpush1.msra.mxu0 0.0
      %1238 = vmatprep.subr.mxu0 0.0
      %1239 = vmatpush1.msra.mxu0 0.0
      %1240 = vmatprep.subr.mxu0 0.0
      %1241 = vmatpush1.msra.mxu0 0.0
      %1242 = vmatprep.subr.mxu0 0.0
      %1243 = vmatpush1.msra.mxu0 0.0
      %1244 = vmatprep.subr.mxu0 0.0
      %1245 = vmatpush1.msra.mxu0 0.0
      %1246 = vmatprep.subr.mxu0 0.0
      %1247 = vmatpush1.msra.mxu0 0.0
      %1248 = vmatprep.subr.mxu0 0.0
      %1249 = vmatpush1.msra.mxu0 0.0
      %1250 = vmatprep.subr.mxu0 0.0
      %1251 = vmatpush1.msra.mxu0 0.0
      %1252 = vmatprep.subr.mxu0 0.0
      %1253 = vmatpush1.msra.mxu0 0.0
      %1254 = vmatprep.subr.mxu0 0.0
      %1255 = vmatpush1.msra.mxu0 0.0
      %1256 = vmatprep.subr.mxu0 0.0
      %1257 = vmatpush1.msra.mxu0 0.0
      %1258 = vmatprep.subr.mxu0 0.0
      %1259 = vmatpush1.msra.mxu0 0.0
      %1260 = vmatprep.subr.mxu0 0.0
      %1261 = vmatpush1.msra.mxu0 0.0
      %1262 = vmatprep.subr.mxu0 0.0
      %1263 = vmatpush1.msra.mxu0 0.0
      %1264 = vmatprep.subr.mxu0 0.0
      %1265 = vmatpush1.msra.mxu0 %v1197
      %1266 = vmatprep.subr.mxu0 0.0
      %1267 = vmatpush2.msra.mxu0 0.0
      %1268 = vmatprep.subr.mxu0 0.0
      %1269 = vmatpush2.msra.mxu0 0.0
      %1270 = vmatprep.subr.mxu0 0.0
      %1271 = vmatpush2.msra.mxu0 0.0
      %1272 = vmatprep.subr.mxu0 0.0
      %1273 = vmatpush2.msra.mxu0 0.0
      %1274 = vmatprep.subr.mxu0 0.0
      %1275 = vmatpush2.msra.mxu0 0.0
      %1276 = vmatprep.subr.mxu0 0.0
      %1277 = vmatpush2.msra.mxu0 0.0
      %1278 = vmatprep.subr.mxu0 0.0
      %1279 = vmatpush2.msra.mxu0 0.0
      %1280 = vmatprep.subr.mxu0 0.0
      %1281 = vmatpush2.msra.mxu0 0.0
      %1282 = vmatprep.subr.mxu0 0.0
      %1283 = vmatpush2.msra.mxu0 0.0
      %1284 = vmatprep.subr.mxu0 0.0
      %1285 = vmatpush2.msra.mxu0 0.0
      %1286 = vmatprep.subr.mxu0 0.0
      %1287 = vmatpush2.msra.mxu0 0.0
      %1288 = vmatprep.subr.mxu0 0.0
      %1289 = vmatpush2.msra.mxu0 0.0
      %1290 = vmatprep.subr.mxu0 0.0
      %1291 = vmatpush2.msra.mxu0 0.0
      %1292 = vmatprep.subr.mxu0 0.0
      %1293 = vmatpush2.msra.mxu0 0.0
      %1294 = vmatprep.subr.mxu0 0.0
      %1295 = vmatpush2.msra.mxu0 0.0
      %1296 = vmatprep.subr.mxu0 0.0
      %1297 = vmatpush2.msra.mxu0 0.0
      %1298 = vmatprep.mubr.f32.mxu0 0.0
      %1299 = vmatmul.mubr.f32.gmra.mxu0 %v1208
      %v1300 = vpop.f32.mrf.mxu0
      %v1301 = vadd.f32 0.0, %v1300
      %v1302 = vpop.f32.mrf.mxu0
      %1303 = vmatprep.mubr.f32.mxu0 0.0
      %1304 = vmatmul.mubr.f32.gmra.mxu0 %v1211
      %v1305 = vpop.f32.mrf.mxu0
      %v1306 = vadd.f32 0.0, %v1305
      %v1307 = vpop.f32.mrf.mxu0
      %1308 = vmatprep.mubr.f32.mxu0 0.0
      %1309 = vmatmul.mubr.f32.gmra.mxu0 %v1214
      %v1310 = vpop.f32.mrf.mxu0
      %v1311 = vadd.f32 0.0, %v1310
      %v1312 = vpop.f32.mrf.mxu0
      %1313 = vmatprep.mubr.f32.mxu0 0.0
      %1314 = vmatmul.mubr.f32.gmra.mxu0 %v1217
      %v1315 = vpop.f32.mrf.mxu0
      %v1316 = vadd.f32 0.0, %v1315
      %v1317 = vpop.f32.mrf.mxu0
      %1318 = vmatprep.mubr.f32.mxu0 0.0
      %1319 = vmatmul.mubr.f32.gmra.mxu0 %v1220
      %v1320 = vpop.f32.mrf.mxu0
      %v1321 = vadd.f32 0.0, %v1320
      %v1322 = vpop.f32.mrf.mxu0
      %1323 = vmatprep.mubr.f32.mxu0 0.0
      %1324 = vmatmul.mubr.f32.gmra.mxu0 %v1223
      %v1325 = vpop.f32.mrf.mxu0
      %v1326 = vadd.f32 0.0, %v1325
      %v1327 = vpop.f32.mrf.mxu0
      %1328 = vmatprep.mubr.f32.mxu0 0.0
      %1329 = vmatmul.mubr.f32.gmra.mxu0 %v1226
      %v1330 = vpop.f32.mrf.mxu0
      %v1331 = vadd.f32 0.0, %v1330
      %v1332 = vpop.f32.mrf.mxu0
      %1333 = vmatprep.mubr.f32.mxu0 0.0
      %1334 = vmatmul.mubr.f32.gmra.mxu0 %v1229
      %v1335 = vpop.f32.mrf.mxu0
      %v1336 = vadd.f32 0.0, %v1335
      %v1337 = vpop.f32.mrf.mxu0
      %1338 = vmatprep.mubr.f32.mxu0 0.0
      %1339 = vmatmul.mubr.f32.gmra.mxu0 %v1232
      %v1340 = vpop.f32.mrf.mxu0
      %v1341 = vadd.f32 0.0, %v1340
      %v1342 = vpop.f32.mrf.mxu0
      %1343 = vdwg.mxu0
      %v1344 = vadd.f32 %v1198, %v1301
      %v1345 = vadd.f32 %v1199, %v1306
      %v1346 = vadd.f32 %v1200, %v1311
      %v1347 = vadd.f32 %v1201, %v1316
      %v1348 = vadd.f32 %v1202, %v1321
      %v1349 = vadd.f32 %v1203, %v1326
      %v1350 = vadd.f32 %v1204, %v1331
      %v1351 = vadd.f32 %v1205, %v1336
      %v1352 = vadd.f32 %v1206, %v1341
      %1353 = vst.msk [vmem:[#allocation3] sm:$0xff] %vm305, %v1344
      %1354 = vst.msk [vmem:[#allocation3 + $0x8] sm:$0xff] %vm305, %v1345
      %1355 = vst.msk [vmem:[#allocation3 + $0x10] sm:$0xff] %vm305, %v1346
      %1356 = vst.msk [vmem:[#allocation3 + $0x18] sm:$0xff] %vm305, %v1347
      %1357 = vst.msk [vmem:[#allocation3 + $0x20] sm:$0xff] %vm305, %v1348
      %1358 = vst.msk [vmem:[#allocation3 + $0x28] sm:$0xff] %vm305, %v1349
      %1359 = vst.msk [vmem:[#allocation3 + $0x30] sm:$0xff] %vm305, %v1350
      %1360 = vst.msk [vmem:[#allocation3 + $0x38] sm:$0xff] %vm305, %v1351
      %1361 = vst.msk [vmem:[#allocation3 + $0x40] sm:$0xff] %vm305, %v1352
      %v1362 = vld [vmem:[#allocation2 + $0x9] sm:$0xff]
      %v1363 = vld [vmem:[#allocation2 + $0x11] sm:$0xff]
      %v1364 = vld [vmem:[#allocation2 + $0x19] sm:$0xff]
      %v1365 = vld [vmem:[#allocation2 + $0x21] sm:$0xff]
      %v1366 = vld [vmem:[#allocation2 + $0x29] sm:$0xff]
      %v1367 = vld [vmem:[#allocation2 + $0x31] sm:$0xff]
      %v1368 = vld [vmem:[#allocation2 + $0x39] sm:$0xff]
      %v1369 = vld [vmem:[#allocation2 + $0x41] sm:$0xff]
      %v1370 = vld [vmem:[#allocation2 + $0x49] sm:$0xff]
      %v1371 = vld [vmem:[%s1 + $0x30] sm:$0xff]
      %v1372 = vld [vmem:[#allocation3] sm:$0xff]
      %v1373 = vld [vmem:[#allocation3 + $0x8] sm:$0xff]
      %v1374 = vld [vmem:[#allocation3 + $0x10] sm:$0xff]
      %v1375 = vld [vmem:[#allocation3 + $0x18] sm:$0xff]
      %v1376 = vld [vmem:[#allocation3 + $0x20] sm:$0xff]
      %v1377 = vld [vmem:[#allocation3 + $0x28] sm:$0xff]
      %v1378 = vld [vmem:[#allocation3 + $0x30] sm:$0xff]
      %v1379 = vld [vmem:[#allocation3 + $0x38] sm:$0xff]
      %v1380 = vld [vmem:[#allocation3 + $0x40] sm:$0xff]
      %v1382 = vsel %vm259, %v1362, 0
      %v1385 = vsel %vm259, %v1363, 0
      %v1388 = vsel %vm259, %v1364, 0
      %v1391 = vsel %vm259, %v1365, 0
      %v1394 = vsel %vm259, %v1366, 0
      %v1397 = vsel %vm259, %v1367, 0
      %v1400 = vsel %vm259, %v1368, 0
      %v1403 = vsel %vm259, %v1369, 0
      %v1406 = vsel %vm259, %v1370, 0
      %1408 = vmatprep.subr.mxu0 0.0
      %1409 = vmatpush1.msra.mxu0 0.0
      %1410 = vmatprep.subr.mxu0 0.0
      %1411 = vmatpush1.msra.mxu0 0.0
      %1412 = vmatprep.subr.mxu0 0.0
      %1413 = vmatpush1.msra.mxu0 0.0
      %1414 = vmatprep.subr.mxu0 0.0
      %1415 = vmatpush1.msra.mxu0 0.0
      %1416 = vmatprep.subr.mxu0 0.0
      %1417 = vmatpush1.msra.mxu0 0.0
      %1418 = vmatprep.subr.mxu0 0.0
      %1419 = vmatpush1.msra.mxu0 0.0
      %1420 = vmatprep.subr.mxu0 0.0
      %1421 = vmatpush1.msra.mxu0 0.0
      %1422 = vmatprep.subr.mxu0 0.0
      %1423 = vmatpush1.msra.mxu0 0.0
      %1424 = vmatprep.subr.mxu0 0.0
      %1425 = vmatpush1.msra.mxu0 0.0
      %1426 = vmatprep.subr.mxu0 0.0
      %1427 = vmatpush1.msra.mxu0 0.0
      %1428 = vmatprep.subr.mxu0 0.0
      %1429 = vmatpush1.msra.mxu0 0.0
      %1430 = vmatprep.subr.mxu0 0.0
      %1431 = vmatpush1.msra.mxu0 0.0
      %1432 = vmatprep.subr.mxu0 0.0
      %1433 = vmatpush1.msra.mxu0 0.0
      %1434 = vmatprep.subr.mxu0 0.0
      %1435 = vmatpush1.msra.mxu0 0.0
      %1436 = vmatprep.subr.mxu0 0.0
      %1437 = vmatpush1.msra.mxu0 0.0
      %1438 = vmatprep.subr.mxu0 0.0
      %1439 = vmatpush1.msra.mxu0 %v1371
      %1440 = vmatprep.subr.mxu0 0.0
      %1441 = vmatpush2.msra.mxu0 0.0
      %1442 = vmatprep.subr.mxu0 0.0
      %1443 = vmatpush2.msra.mxu0 0.0
      %1444 = vmatprep.subr.mxu0 0.0
      %1445 = vmatpush2.msra.mxu0 0.0
      %1446 = vmatprep.subr.mxu0 0.0
      %1447 = vmatpush2.msra.mxu0 0.0
      %1448 = vmatprep.subr.mxu0 0.0
      %1449 = vmatpush2.msra.mxu0 0.0
      %1450 = vmatprep.subr.mxu0 0.0
      %1451 = vmatpush2.msra.mxu0 0.0
      %1452 = vmatprep.subr.mxu0 0.0
      %1453 = vmatpush2.msra.mxu0 0.0
      %1454 = vmatprep.subr.mxu0 0.0
      %1455 = vmatpush2.msra.mxu0 0.0
      %1456 = vmatprep.subr.mxu0 0.0
      %1457 = vmatpush2.msra.mxu0 0.0
      %1458 = vmatprep.subr.mxu0 0.0
      %1459 = vmatpush2.msra.mxu0 0.0
      %1460 = vmatprep.subr.mxu0 0.0
      %1461 = vmatpush2.msra.mxu0 0.0
      %1462 = vmatprep.subr.mxu0 0.0
      %1463 = vmatpush2.msra.mxu0 0.0
      %1464 = vmatprep.subr.mxu0 0.0
      %1465 = vmatpush2.msra.mxu0 0.0
      %1466 = vmatprep.subr.mxu0 0.0
      %1467 = vmatpush2.msra.mxu0 0.0
      %1468 = vmatprep.subr.mxu0 0.0
      %1469 = vmatpush2.msra.mxu0 0.0
      %1470 = vmatprep.subr.mxu0 0.0
      %1471 = vmatpush2.msra.mxu0 0.0
      %1472 = vmatprep.mubr.f32.mxu0 0.0
      %1473 = vmatmul.mubr.f32.gmra.mxu0 %v1382
      %v1474 = vpop.f32.mrf.mxu0
      %v1475 = vadd.f32 0.0, %v1474
      %v1476 = vpop.f32.mrf.mxu0
      %1477 = vmatprep.mubr.f32.mxu0 0.0
      %1478 = vmatmul.mubr.f32.gmra.mxu0 %v1385
      %v1479 = vpop.f32.mrf.mxu0
      %v1480 = vadd.f32 0.0, %v1479
      %v1481 = vpop.f32.mrf.mxu0
      %1482 = vmatprep.mubr.f32.mxu0 0.0
      %1483 = vmatmul.mubr.f32.gmra.mxu0 %v1388
      %v1484 = vpop.f32.mrf.mxu0
      %v1485 = vadd.f32 0.0, %v1484
      %v1486 = vpop.f32.mrf.mxu0
      %1487 = vmatprep.mubr.f32.mxu0 0.0
      %1488 = vmatmul.mubr.f32.gmra.mxu0 %v1391
      %v1489 = vpop.f32.mrf.mxu0
      %v1490 = vadd.f32 0.0, %v1489
      %v1491 = vpop.f32.mrf.mxu0
      %1492 = vmatprep.mubr.f32.mxu0 0.0
      %1493 = vmatmul.mubr.f32.gmra.mxu0 %v1394
      %v1494 = vpop.f32.mrf.mxu0
      %v1495 = vadd.f32 0.0, %v1494
      %v1496 = vpop.f32.mrf.mxu0
      %1497 = vmatprep.mubr.f32.mxu0 0.0
      %1498 = vmatmul.mubr.f32.gmra.mxu0 %v1397
      %v1499 = vpop.f32.mrf.mxu0
      %v1500 = vadd.f32 0.0, %v1499
      %v1501 = vpop.f32.mrf.mxu0
      %1502 = vmatprep.mubr.f32.mxu0 0.0
      %1503 = vmatmul.mubr.f32.gmra.mxu0 %v1400
      %v1504 = vpop.f32.mrf.mxu0
      %v1505 = vadd.f32 0.0, %v1504
      %v1506 = vpop.f32.mrf.mxu0
      %1507 = vmatprep.mubr.f32.mxu0 0.0
      %1508 = vmatmul.mubr.f32.gmra.mxu0 %v1403
      %v1509 = vpop.f32.mrf.mxu0
      %v1510 = vadd.f32 0.0, %v1509
      %v1511 = vpop.f32.mrf.mxu0
      %1512 = vmatprep.mubr.f32.mxu0 0.0
      %1513 = vmatmul.mubr.f32.gmra.mxu0 %v1406
      %v1514 = vpop.f32.mrf.mxu0
      %v1515 = vadd.f32 0.0, %v1514
      %v1516 = vpop.f32.mrf.mxu0
      %1517 = vdwg.mxu0
      %v1518 = vadd.f32 %v1372, %v1475
      %v1519 = vadd.f32 %v1373, %v1480
      %v1520 = vadd.f32 %v1374, %v1485
      %v1521 = vadd.f32 %v1375, %v1490
      %v1522 = vadd.f32 %v1376, %v1495
      %v1523 = vadd.f32 %v1377, %v1500
      %v1524 = vadd.f32 %v1378, %v1505
      %v1525 = vadd.f32 %v1379, %v1510
      %v1526 = vadd.f32 %v1380, %v1515
      %1527 = vst.msk [vmem:[#allocation3] sm:$0xff] %vm305, %v1518
      %1528 = vst.msk [vmem:[#allocation3 + $0x8] sm:$0xff] %vm305, %v1519
      %1529 = vst.msk [vmem:[#allocation3 + $0x10] sm:$0xff] %vm305, %v1520
      %1530 = vst.msk [vmem:[#allocation3 + $0x18] sm:$0xff] %vm305, %v1521
      %1531 = vst.msk [vmem:[#allocation3 + $0x20] sm:$0xff] %vm305, %v1522
      %1532 = vst.msk [vmem:[#allocation3 + $0x28] sm:$0xff] %vm305, %v1523
      %1533 = vst.msk [vmem:[#allocation3 + $0x30] sm:$0xff] %vm305, %v1524
      %1534 = vst.msk [vmem:[#allocation3 + $0x38] sm:$0xff] %vm305, %v1525
      %1535 = vst.msk [vmem:[#allocation3 + $0x40] sm:$0xff] %vm305, %v1526
      %v1536 = vld [vmem:[%s489 + $0x9] sm:$0xff]
      %v1537 = vld [vmem:[%s489 + $0x11] sm:$0xff]
      %v1538 = vld [vmem:[%s489 + $0x19] sm:$0xff]
      %v1539 = vld [vmem:[%s489 + $0x21] sm:$0xff]
      %v1540 = vld [vmem:[%s489 + $0x29] sm:$0xff]
      %v1541 = vld [vmem:[%s489 + $0x31] sm:$0xff]
      %v1542 = vld [vmem:[%s489 + $0x39] sm:$0xff]
      %v1543 = vld [vmem:[%s489 + $0x41] sm:$0xff]
      %v1544 = vld [vmem:[%s489 + $0x49] sm:$0xff]
      %v1545 = vld [vmem:[%s1 + $0x38] sm:$0xff]
      %v1546 = vld [vmem:[#allocation3] sm:$0xff]
      %v1547 = vld [vmem:[#allocation3 + $0x8] sm:$0xff]
      %v1548 = vld [vmem:[#allocation3 + $0x10] sm:$0xff]
      %v1549 = vld [vmem:[#allocation3 + $0x18] sm:$0xff]
      %v1550 = vld [vmem:[#allocation3 + $0x20] sm:$0xff]
      %v1551 = vld [vmem:[#allocation3 + $0x28] sm:$0xff]
      %v1552 = vld [vmem:[#allocation3 + $0x30] sm:$0xff]
      %v1553 = vld [vmem:[#allocation3 + $0x38] sm:$0xff]
      %v1554 = vld [vmem:[#allocation3 + $0x40] sm:$0xff]
      %v1556 = vsel %vm259, %v1536, 0
      %v1559 = vsel %vm259, %v1537, 0
      %v1562 = vsel %vm259, %v1538, 0
      %v1565 = vsel %vm259, %v1539, 0
      %v1568 = vsel %vm259, %v1540, 0
      %v1571 = vsel %vm259, %v1541, 0
      %v1574 = vsel %vm259, %v1542, 0
      %v1577 = vsel %vm259, %v1543, 0
      %v1580 = vsel %vm259, %v1544, 0
      %1582 = vmatprep.subr.mxu0 0.0
      %1583 = vmatpush1.msra.mxu0 0.0
      %1584 = vmatprep.subr.mxu0 0.0
      %1585 = vmatpush1.msra.mxu0 0.0
      %1586 = vmatprep.subr.mxu0 0.0
      %1587 = vmatpush1.msra.mxu0 0.0
      %1588 = vmatprep.subr.mxu0 0.0
      %1589 = vmatpush1.msra.mxu0 0.0
      %1590 = vmatprep.subr.mxu0 0.0
      %1591 = vmatpush1.msra.mxu0 0.0
      %1592 = vmatprep.subr.mxu0 0.0
      %1593 = vmatpush1.msra.mxu0 0.0
      %1594 = vmatprep.subr.mxu0 0.0
      %1595 = vmatpush1.msra.mxu0 0.0
      %1596 = vmatprep.subr.mxu0 0.0
      %1597 = vmatpush1.msra.mxu0 0.0
      %1598 = vmatprep.subr.mxu0 0.0
      %1599 = vmatpush1.msra.mxu0 0.0
      %1600 = vmatprep.subr.mxu0 0.0
      %1601 = vmatpush1.msra.mxu0 0.0
      %1602 = vmatprep.subr.mxu0 0.0
      %1603 = vmatpush1.msra.mxu0 0.0
      %1604 = vmatprep.subr.mxu0 0.0
      %1605 = vmatpush1.msra.mxu0 0.0
      %1606 = vmatprep.subr.mxu0 0.0
      %1607 = vmatpush1.msra.mxu0 0.0
      %1608 = vmatprep.subr.mxu0 0.0
      %1609 = vmatpush1.msra.mxu0 0.0
      %1610 = vmatprep.subr.mxu0 0.0
      %1611 = vmatpush1.msra.mxu0 0.0
      %1612 = vmatprep.subr.mxu0 0.0
      %1613 = vmatpush1.msra.mxu0 %v1545
      %1614 = vmatprep.subr.mxu0 0.0
      %1615 = vmatpush2.msra.mxu0 0.0
      %1616 = vmatprep.subr.mxu0 0.0
      %1617 = vmatpush2.msra.mxu0 0.0
      %1618 = vmatprep.subr.mxu0 0.0
      %1619 = vmatpush2.msra.mxu0 0.0
      %1620 = vmatprep.subr.mxu0 0.0
      %1621 = vmatpush2.msra.mxu0 0.0
      %1622 = vmatprep.subr.mxu0 0.0
      %1623 = vmatpush2.msra.mxu0 0.0
      %1624 = vmatprep.subr.mxu0 0.0
      %1625 = vmatpush2.msra.mxu0 0.0
      %1626 = vmatprep.subr.mxu0 0.0
      %1627 = vmatpush2.msra.mxu0 0.0
      %1628 = vmatprep.subr.mxu0 0.0
      %1629 = vmatpush2.msra.mxu0 0.0
      %1630 = vmatprep.subr.mxu0 0.0
      %1631 = vmatpush2.msra.mxu0 0.0
      %1632 = vmatprep.subr.mxu0 0.0
      %1633 = vmatpush2.msra.mxu0 0.0
      %1634 = vmatprep.subr.mxu0 0.0
      %1635 = vmatpush2.msra.mxu0 0.0
      %1636 = vmatprep.subr.mxu0 0.0
      %1637 = vmatpush2.msra.mxu0 0.0
      %1638 = vmatprep.subr.mxu0 0.0
      %1639 = vmatpush2.msra.mxu0 0.0
      %1640 = vmatprep.subr.mxu0 0.0
      %1641 = vmatpush2.msra.mxu0 0.0
      %1642 = vmatprep.subr.mxu0 0.0
      %1643 = vmatpush2.msra.mxu0 0.0
      %1644 = vmatprep.subr.mxu0 0.0
      %1645 = vmatpush2.msra.mxu0 0.0
      %1646 = vmatprep.mubr.f32.mxu0 0.0
      %1647 = vmatmul.mubr.f32.gmra.mxu0 %v1556
      %v1648 = vpop.f32.mrf.mxu0
      %v1649 = vadd.f32 0.0, %v1648
      %v1650 = vpop.f32.mrf.mxu0
      %1651 = vmatprep.mubr.f32.mxu0 0.0
      %1652 = vmatmul.mubr.f32.gmra.mxu0 %v1559
      %v1653 = vpop.f32.mrf.mxu0
      %v1654 = vadd.f32 0.0, %v1653
      %v1655 = vpop.f32.mrf.mxu0
      %1656 = vmatprep.mubr.f32.mxu0 0.0
      %1657 = vmatmul.mubr.f32.gmra.mxu0 %v1562
      %v1658 = vpop.f32.mrf.mxu0
      %v1659 = vadd.f32 0.0, %v1658
      %v1660 = vpop.f32.mrf.mxu0
      %1661 = vmatprep.mubr.f32.mxu0 0.0
      %1662 = vmatmul.mubr.f32.gmra.mxu0 %v1565
      %v1663 = vpop.f32.mrf.mxu0
      %v1664 = vadd.f32 0.0, %v1663
      %v1665 = vpop.f32.mrf.mxu0
      %1666 = vmatprep.mubr.f32.mxu0 0.0
      %1667 = vmatmul.mubr.f32.gmra.mxu0 %v1568
      %v1668 = vpop.f32.mrf.mxu0
      %v1669 = vadd.f32 0.0, %v1668
      %v1670 = vpop.f32.mrf.mxu0
      %1671 = vmatprep.mubr.f32.mxu0 0.0
      %1672 = vmatmul.mubr.f32.gmra.mxu0 %v1571
      %v1673 = vpop.f32.mrf.mxu0
      %v1674 = vadd.f32 0.0, %v1673
      %v1675 = vpop.f32.mrf.mxu0
      %1676 = vmatprep.mubr.f32.mxu0 0.0
      %1677 = vmatmul.mubr.f32.gmra.mxu0 %v1574
      %v1678 = vpop.f32.mrf.mxu0
      %v1679 = vadd.f32 0.0, %v1678
      %v1680 = vpop.f32.mrf.mxu0
      %1681 = vmatprep.mubr.f32.mxu0 0.0
      %1682 = vmatmul.mubr.f32.gmra.mxu0 %v1577
      %v1683 = vpop.f32.mrf.mxu0
      %v1684 = vadd.f32 0.0, %v1683
      %v1685 = vpop.f32.mrf.mxu0
      %1686 = vmatprep.mubr.f32.mxu0 0.0
      %1687 = vmatmul.mubr.f32.gmra.mxu0 %v1580
      %v1688 = vpop.f32.mrf.mxu0
      %v1689 = vadd.f32 0.0, %v1688
      %v1690 = vpop.f32.mrf.mxu0
      %1691 = vdwg.mxu0
      %v1692 = vadd.f32 %v1546, %v1649
      %v1693 = vadd.f32 %v1547, %v1654
      %v1694 = vadd.f32 %v1548, %v1659
      %v1695 = vadd.f32 %v1549, %v1664
      %v1696 = vadd.f32 %v1550, %v1669
      %v1697 = vadd.f32 %v1551, %v1674
      %v1698 = vadd.f32 %v1552, %v1679
      %v1699 = vadd.f32 %v1553, %v1684
      %v1700 = vadd.f32 %v1554, %v1689
      %1701 = vst.msk [vmem:[#allocation3] sm:$0xff] %vm305, %v1692
      %1702 = vst.msk [vmem:[#allocation3 + $0x8] sm:$0xff] %vm305, %v1693
      %1703 = vst.msk [vmem:[#allocation3 + $0x10] sm:$0xff] %vm305, %v1694
      %1704 = vst.msk [vmem:[#allocation3 + $0x18] sm:$0xff] %vm305, %v1695
      %1705 = vst.msk [vmem:[#allocation3 + $0x20] sm:$0xff] %vm305, %v1696
      %1706 = vst.msk [vmem:[#allocation3 + $0x28] sm:$0xff] %vm305, %v1697
      %1707 = vst.msk [vmem:[#allocation3 + $0x30] sm:$0xff] %vm305, %v1698
      %1708 = vst.msk [vmem:[#allocation3 + $0x38] sm:$0xff] %vm305, %v1699
      %1709 = vst.msk [vmem:[#allocation3 + $0x40] sm:$0xff] %vm305, %v1700
      %v1710 = vld [vmem:[#allocation2 + $0xa] sm:$0xff]
      %v1711 = vld [vmem:[#allocation2 + $0x12] sm:$0xff]
      %v1712 = vld [vmem:[#allocation2 + $0x1a] sm:$0xff]
      %v1713 = vld [vmem:[#allocation2 + $0x22] sm:$0xff]
      %v1714 = vld [vmem:[#allocation2 + $0x2a] sm:$0xff]
      %v1715 = vld [vmem:[#allocation2 + $0x32] sm:$0xff]
      %v1716 = vld [vmem:[#allocation2 + $0x3a] sm:$0xff]
      %v1717 = vld [vmem:[#allocation2 + $0x42] sm:$0xff]
      %v1718 = vld [vmem:[#allocation2 + $0x4a] sm:$0xff]
      %v1719 = vld [vmem:[%s1 + $0x40] sm:$0xff]
      %v1720 = vld [vmem:[#allocation3] sm:$0xff]
      %v1721 = vld [vmem:[#allocation3 + $0x8] sm:$0xff]
      %v1722 = vld [vmem:[#allocation3 + $0x10] sm:$0xff]
      %v1723 = vld [vmem:[#allocation3 + $0x18] sm:$0xff]
      %v1724 = vld [vmem:[#allocation3 + $0x20] sm:$0xff]
      %v1725 = vld [vmem:[#allocation3 + $0x28] sm:$0xff]
      %v1726 = vld [vmem:[#allocation3 + $0x30] sm:$0xff]
      %v1727 = vld [vmem:[#allocation3 + $0x38] sm:$0xff]
      %v1728 = vld [vmem:[#allocation3 + $0x40] sm:$0xff]
      %v1730 = vsel %vm259, %v1710, 0
      %v1733 = vsel %vm259, %v1711, 0
      %v1736 = vsel %vm259, %v1712, 0
      %v1739 = vsel %vm259, %v1713, 0
      %v1742 = vsel %vm259, %v1714, 0
      %v1745 = vsel %vm259, %v1715, 0
      %v1748 = vsel %vm259, %v1716, 0
      %v1751 = vsel %vm259, %v1717, 0
      %v1754 = vsel %vm259, %v1718, 0
      %1756 = vmatprep.subr.mxu0 0.0
      %1757 = vmatpush1.msra.mxu0 0.0
      %1758 = vmatprep.subr.mxu0 0.0
      %1759 = vmatpush1.msra.mxu0 0.0
      %1760 = vmatprep.subr.mxu0 0.0
      %1761 = vmatpush1.msra.mxu0 0.0
      %1762 = vmatprep.subr.mxu0 0.0
      %1763 = vmatpush1.msra.mxu0 0.0
      %1764 = vmatprep.subr.mxu0 0.0
      %1765 = vmatpush1.msra.mxu0 0.0
      %1766 = vmatprep.subr.mxu0 0.0
      %1767 = vmatpush1.msra.mxu0 0.0
      %1768 = vmatprep.subr.mxu0 0.0
      %1769 = vmatpush1.msra.mxu0 0.0
      %1770 = vmatprep.subr.mxu0 0.0
      %1771 = vmatpush1.msra.mxu0 0.0
      %1772 = vmatprep.subr.mxu0 0.0
      %1773 = vmatpush1.msra.mxu0 0.0
      %1774 = vmatprep.subr.mxu0 0.0
      %1775 = vmatpush1.msra.mxu0 0.0
      %1776 = vmatprep.subr.mxu0 0.0
      %1777 = vmatpush1.msra.mxu0 0.0
      %1778 = vmatprep.subr.mxu0 0.0
      %1779 = vmatpush1.msra.mxu0 0.0
      %1780 = vmatprep.subr.mxu0 0.0
      %1781 = vmatpush1.msra.mxu0 0.0
      %1782 = vmatprep.subr.mxu0 0.0
      %1783 = vmatpush1.msra.mxu0 0.0
      %1784 = vmatprep.subr.mxu0 0.0
      %1785 = vmatpush1.msra.mxu0 0.0
      %1786 = vmatprep.subr.mxu0 0.0
      %1787 = vmatpush1.msra.mxu0 %v1719
      %1788 = vmatprep.subr.mxu0 0.0
      %1789 = vmatpush2.msra.mxu0 0.0
      %1790 = vmatprep.subr.mxu0 0.0
      %1791 = vmatpush2.msra.mxu0 0.0
      %1792 = vmatprep.subr.mxu0 0.0
      %1793 = vmatpush2.msra.mxu0 0.0
      %1794 = vmatprep.subr.mxu0 0.0
      %1795 = vmatpush2.msra.mxu0 0.0
      %1796 = vmatprep.subr.mxu0 0.0
      %1797 = vmatpush2.msra.mxu0 0.0
      %1798 = vmatprep.subr.mxu0 0.0
      %1799 = vmatpush2.msra.mxu0 0.0
      %1800 = vmatprep.subr.mxu0 0.0
      %1801 = vmatpush2.msra.mxu0 0.0
      %1802 = vmatprep.subr.mxu0 0.0
      %1803 = vmatpush2.msra.mxu0 0.0
      %1804 = vmatprep.subr.mxu0 0.0
      %1805 = vmatpush2.msra.mxu0 0.0
      %1806 = vmatprep.subr.mxu0 0.0
      %1807 = vmatpush2.msra.mxu0 0.0
      %1808 = vmatprep.subr.mxu0 0.0
      %1809 = vmatpush2.msra.mxu0 0.0
      %1810 = vmatprep.subr.mxu0 0.0
      %1811 = vmatpush2.msra.mxu0 0.0
      %1812 = vmatprep.subr.mxu0 0.0
      %1813 = vmatpush2.msra.mxu0 0.0
      %1814 = vmatprep.subr.mxu0 0.0
      %1815 = vmatpush2.msra.mxu0 0.0
      %1816 = vmatprep.subr.mxu0 0.0
      %1817 = vmatpush2.msra.mxu0 0.0
      %1818 = vmatprep.subr.mxu0 0.0
      %1819 = vmatpush2.msra.mxu0 0.0
      %1820 = vmatprep.mubr.f32.mxu0 0.0
      %1821 = vmatmul.mubr.f32.gmra.mxu0 %v1730
      %v1822 = vpop.f32.mrf.mxu0
      %v1823 = vadd.f32 0.0, %v1822
      %v1824 = vpop.f32.mrf.mxu0
      %1825 = vmatprep.mubr.f32.mxu0 0.0
      %1826 = vmatmul.mubr.f32.gmra.mxu0 %v1733
      %v1827 = vpop.f32.mrf.mxu0
      %v1828 = vadd.f32 0.0, %v1827
      %v1829 = vpop.f32.mrf.mxu0
      %1830 = vmatprep.mubr.f32.mxu0 0.0
      %1831 = vmatmul.mubr.f32.gmra.mxu0 %v1736
      %v1832 = vpop.f32.mrf.mxu0
      %v1833 = vadd.f32 0.0, %v1832
      %v1834 = vpop.f32.mrf.mxu0
      %1835 = vmatprep.mubr.f32.mxu0 0.0
      %1836 = vmatmul.mubr.f32.gmra.mxu0 %v1739
      %v1837 = vpop.f32.mrf.mxu0
      %v1838 = vadd.f32 0.0, %v1837
      %v1839 = vpop.f32.mrf.mxu0
      %1840 = vmatprep.mubr.f32.mxu0 0.0
      %1841 = vmatmul.mubr.f32.gmra.mxu0 %v1742
      %v1842 = vpop.f32.mrf.mxu0
      %v1843 = vadd.f32 0.0, %v1842
      %v1844 = vpop.f32.mrf.mxu0
      %1845 = vmatprep.mubr.f32.mxu0 0.0
      %1846 = vmatmul.mubr.f32.gmra.mxu0 %v1745
      %v1847 = vpop.f32.mrf.mxu0
      %v1848 = vadd.f32 0.0, %v1847
      %v1849 = vpop.f32.mrf.mxu0
      %1850 = vmatprep.mubr.f32.mxu0 0.0
      %1851 = vmatmul.mubr.f32.gmra.mxu0 %v1748
      %v1852 = vpop.f32.mrf.mxu0
      %v1853 = vadd.f32 0.0, %v1852
      %v1854 = vpop.f32.mrf.mxu0
      %1855 = vmatprep.mubr.f32.mxu0 0.0
      %1856 = vmatmul.mubr.f32.gmra.mxu0 %v1751
      %v1857 = vpop.f32.mrf.mxu0
      %v1858 = vadd.f32 0.0, %v1857
      %v1859 = vpop.f32.mrf.mxu0
      %1860 = vmatprep.mubr.f32.mxu0 0.0
      %1861 = vmatmul.mubr.f32.gmra.mxu0 %v1754
      %v1862 = vpop.f32.mrf.mxu0
      %v1863 = vadd.f32 0.0, %v1862
      %v1864 = vpop.f32.mrf.mxu0
      %1865 = vdwg.mxu0
      %v1866 = vadd.f32 %v1720, %v1823
      %v1867 = vadd.f32 %v1721, %v1828
      %v1868 = vadd.f32 %v1722, %v1833
      %v1869 = vadd.f32 %v1723, %v1838
      %v1870 = vadd.f32 %v1724, %v1843
      %v1871 = vadd.f32 %v1725, %v1848
      %v1872 = vadd.f32 %v1726, %v1853
      %v1873 = vadd.f32 %v1727, %v1858
      %v1874 = vadd.f32 %v1728, %v1863
      %1875 = vst.msk [vmem:[#allocation3] sm:$0xff] %vm305, %v1866
      %1876 = vst.msk [vmem:[#allocation3 + $0x8] sm:$0xff] %vm305, %v1867
      %1877 = vst.msk [vmem:[#allocation3 + $0x10] sm:$0xff] %vm305, %v1868
      %1878 = vst.msk [vmem:[#allocation3 + $0x18] sm:$0xff] %vm305, %v1869
      %1879 = vst.msk [vmem:[#allocation3 + $0x20] sm:$0xff] %vm305, %v1870
      %1880 = vst.msk [vmem:[#allocation3 + $0x28] sm:$0xff] %vm305, %v1871
      %1881 = vst.msk [vmem:[#allocation3 + $0x30] sm:$0xff] %vm305, %v1872
      %1882 = vst.msk [vmem:[#allocation3 + $0x38] sm:$0xff] %vm305, %v1873
      %1883 = vst.msk [vmem:[#allocation3 + $0x40] sm:$0xff] %vm305, %v1874
      %v1884 = vld [vmem:[#allocation3] sm:$0xff]
      %v1885 = vld [vmem:[#allocation3 + $0x8] sm:$0xff]
      %v1886 = vld [vmem:[#allocation3 + $0x10] sm:$0xff]
      %v1887 = vld [vmem:[#allocation3 + $0x18] sm:$0xff]
      %v1888 = vld [vmem:[#allocation3 + $0x20] sm:$0xff]
      %v1889 = vld [vmem:[#allocation3 + $0x28] sm:$0xff]
      %v1890 = vld [vmem:[#allocation3 + $0x30] sm:$0xff]
      %v1891 = vld [vmem:[#allocation3 + $0x38] sm:$0xff]
      %v1892 = vld [vmem:[#allocation3 + $0x40] sm:$0xff]
      %v1893 = vld [vmem:[%s2] sm:$0xff]
      %v1894 = vld [vmem:[%s2 + $0x8] sm:$0xff]
      %v1895 = vld [vmem:[%s2 + $0x10] sm:$0xff]
      %v1896 = vld [vmem:[%s2 + $0x18] sm:$0xff]
      %v1897 = vld [vmem:[%s2 + $0x20] sm:$0xff]
      %v1898 = vld [vmem:[%s2 + $0x28] sm:$0xff]
      %v1899 = vld [vmem:[%s2 + $0x30] sm:$0xff]
      %v1900 = vld [vmem:[%s2 + $0x38] sm:$0xff]
      %v1901 = vld [vmem:[%s2 + $0x40] sm:$0xff]
      %1903 = vset.pattern.permute.xlu0 0
      %1904 = vperm.xlu0 %1903, %v1893
      %v1905 = vpop.permute.xlu0 %1904
      %1908 = vset.pattern.permute.xlu0 0
      %1909 = vperm.xlu0 %1908, %v1894
      %v1910 = vpop.permute.xlu0 %1909
      %1913 = vset.pattern.permute.xlu0 0
      %1914 = vperm.xlu0 %1913, %v1895
      %v1915 = vpop.permute.xlu0 %1914
      %1918 = vset.pattern.permute.xlu0 0
      %1919 = vperm.xlu0 %1918, %v1896
      %v1920 = vpop.permute.xlu0 %1919
      %1923 = vset.pattern.permute.xlu0 0
      %1924 = vperm.xlu0 %1923, %v1897
      %v1925 = vpop.permute.xlu0 %1924
      %1928 = vset.pattern.permute.xlu0 0
      %1929 = vperm.xlu0 %1928, %v1898
      %v1930 = vpop.permute.xlu0 %1929
      %1933 = vset.pattern.permute.xlu0 0
      %1934 = vperm.xlu0 %1933, %v1899
      %v1935 = vpop.permute.xlu0 %1934
      %1938 = vset.pattern.permute.xlu0 0
      %1939 = vperm.xlu0 %1938, %v1900
      %v1940 = vpop.permute.xlu0 %1939
      %1943 = vset.pattern.permute.xlu0 0
      %1944 = vperm.xlu0 %1943, %v1901
      %v1945 = vpop.permute.xlu0 %1944
      %v1947 = vmul.f32 %v1884, %v1905
      %v1948 = vmul.f32 %v1885, %v1910
      %v1949 = vmul.f32 %v1886, %v1915
      %v1950 = vmul.f32 %v1887, %v1920
      %v1951 = vmul.f32 %v1888, %v1925
      %v1952 = vmul.f32 %v1889, %v1930
      %v1953 = vmul.f32 %v1890, %v1935
      %v1954 = vmul.f32 %v1891, %v1940
      %v1955 = vmul.f32 %v1892, %v1945
      %v1956 = vsel %vm305, %v1947, 0.0
      %v1957 = vsel %vm305, %v1948, 0.0
      %v1958 = vadd.f32 %v1956, %v1957
      %v1959 = vsel %vm305, %v1949, 0.0
      %v1960 = vadd.f32 %v1958, %v1959
      %v1961 = vsel %vm305, %v1950, 0.0
      %v1962 = vadd.f32 %v1960, %v1961
      %v1963 = vsel %vm305, %v1951, 0.0
      %v1964 = vadd.f32 %v1962, %v1963
      %v1965 = vsel %vm305, %v1952, 0.0
      %v1966 = vadd.f32 %v1964, %v1965
      %v1967 = vsel %vm305, %v1953, 0.0
      %v1968 = vadd.f32 %v1966, %v1967
      %v1969 = vsel %vm305, %v1954, 0.0
      %v1970 = vadd.f32 %v1968, %v1969
      %v1971 = vsel %vm305, %v1955, 0.0
      %v1972 = vadd.f32 %v1970, %v1971
      %v1973 = vrot.slane %v1972, 4
      %v1974 = vadd.f32 %v1972, %v1973
      %v1975 = vrot.slane %v1974, 2
      %v1976 = vadd.f32 %v1974, %v1975
      %v1977 = vrot.slane %v1976, 1
      %v1978 = vadd.f32 %v1976, %v1977
      %v1979 = vmul.f32 %v1978, 0.015625
      %v1980 = vmul.f32 %v1947, %v1884
      %v1981 = vmul.f32 %v1948, %v1885
      %v1982 = vmul.f32 %v1949, %v1886
      %v1983 = vmul.f32 %v1950, %v1887
      %v1984 = vmul.f32 %v1951, %v1888
      %v1985 = vmul.f32 %v1952, %v1889
      %v1986 = vmul.f32 %v1953, %v1890
      %v1987 = vmul.f32 %v1954, %v1891
      %v1988 = vmul.f32 %v1955, %v1892
      %v1989 = vsel %vm305, %v1980, 0.0
      %v1990 = vsel %vm305, %v1981, 0.0
      %v1991 = vadd.f32 %v1989, %v1990
      %v1992 = vsel %vm305, %v1982, 0.0
      %v1993 = vadd.f32 %v1991, %v1992
      %v1994 = vsel %vm305, %v1983, 0.0
      %v1995 = vadd.f32 %v1993, %v1994
      %v1996 = vsel %vm305, %v1984, 0.0
      %v1997 = vadd.f32 %v1995, %v1996
      %v1998 = vsel %vm305, %v1985, 0.0
      %v1999 = vadd.f32 %v1997, %v1998
      %v2000 = vsel %vm305, %v1986, 0.0
      %v2001 = vadd.f32 %v1999, %v2000
      %v2002 = vsel %vm305, %v1987, 0.0
      %v2003 = vadd.f32 %v2001, %v2002
      %v2004 = vsel %vm305, %v1988, 0.0
      %v2005 = vadd.f32 %v2003, %v2004
      %v2006 = vrot.slane %v2005, 4
      %v2007 = vadd.f32 %v2005, %v2006
      %v2008 = vrot.slane %v2007, 2
      %v2009 = vadd.f32 %v2007, %v2008
      %v2010 = vrot.slane %v2009, 1
      %v2011 = vadd.f32 %v2009, %v2010
      %v2012 = vmul.f32 %v2011, 0.015625
      %v2013 = vmul.f32 %v1979, %v1979
      %v2014 = vsub.f32 %v2012, %v2013
      %v2015 = vmax.f32 %v2014, 0.0
      %v2016 = vsub.f32 %v1884, %v1979
      %v2017 = vsub.f32 %v1885, %v1979
      %v2018 = vsub.f32 %v1886, %v1979
      %v2019 = vsub.f32 %v1887, %v1979
      %v2020 = vsub.f32 %v1888, %v1979
      %v2021 = vsub.f32 %v1889, %v1979
      %v2022 = vsub.f32 %v1890, %v1979
      %v2023 = vsub.f32 %v1891, %v1979
      %v2024 = vsub.f32 %v1892, %v1979
      %v2025 = vadd.f32 %v2015, 1e-05
      %v2026 = vrsqrt.pop %v2025
      %v2027 = vmul.f32 %v2016, %v2026
      %v2028 = vmul.f32 %v2017, %v2026
      %v2029 = vmul.f32 %v2018, %v2026
      %v2030 = vmul.f32 %v2019, %v2026
      %v2031 = vmul.f32 %v2020, %v2026
      %v2032 = vmul.f32 %v2021, %v2026
      %v2033 = vmul.f32 %v2022, %v2026
      %v2034 = vmul.f32 %v2023, %v2026
      %v2035 = vmul.f32 %v2024, %v2026
      %vm2036 = vcmp.gt.f32.partialorder %v2027, 0.0
      %vm2037 = vcmp.gt.f32.partialorder %v2028, 0.0
      %vm2038 = vcmp.gt.f32.partialorder %v2029, 0.0
      %vm2039 = vcmp.gt.f32.partialorder %v2030, 0.0
      %vm2040 = vcmp.gt.f32.partialorder %v2031, 0.0
      %vm2041 = vcmp.gt.f32.partialorder %v2032, 0.0
      %vm2042 = vcmp.gt.f32.partialorder %v2033, 0.0
      %vm2043 = vcmp.gt.f32.partialorder %v2034, 0.0
      %vm2044 = vcmp.gt.f32.partialorder %v2035, 0.0
      %v2045 = vmul.f32 %v2027, 0.2
      %v2046 = vmul.f32 %v2028, 0.2
      %v2047 = vmul.f32 %v2029, 0.2
      %v2048 = vmul.f32 %v2030, 0.2
      %v2049 = vmul.f32 %v2031, 0.2
      %v2050 = vmul.f32 %v2032, 0.2
      %v2051 = vmul.f32 %v2033, 0.2
      %v2052 = vmul.f32 %v2034, 0.2
      %v2053 = vmul.f32 %v2035, 0.2
      %v2054 = vsel %vm2036, %v2027, %v2045
      %v2055 = vsel %vm2037, %v2028, %v2046
      %v2056 = vsel %vm2038, %v2029, %v2047
      %v2057 = vsel %vm2039, %v2030, %v2048
      %v2058 = vsel %vm2040, %v2031, %v2049
      %v2059 = vsel %vm2041, %v2032, %v2050
      %v2060 = vsel %vm2042, %v2033, %v2051
      %v2061 = vsel %vm2043, %v2034, %v2052
      %v2062 = vsel %vm2044, %v2035, %v2053
      %v2063 = vpack.c.bf16 %v2055, %v2054
      %v2064 = vpack.c.bf16 %v2057, %v2056
      %v2065 = vpack.c.bf16 %v2059, %v2058
      %v2066 = vpack.c.bf16 %v2061, %v2060
      %v2067 = vpack.c.bf16 %v2062, %v2062
      %v2073 = vunpack.c.l.b16 %v2063
      %v2074 = vunpack.c.h.b16 %v2063
      %v2075 = vunpack.c.l.b16 %v2064
      %v2076 = vunpack.c.h.b16 %v2064
      %v2077 = vunpack.c.l.b16 %v2065
      %v2078 = vunpack.c.h.b16 %v2065
      %v2079 = vunpack.c.l.b16 %v2066
      %v2080 = vunpack.c.h.b16 %v2066
      %v2081 = vunpack.c.l.b16 %v2067
      %v2082 = vpack.c.b16 %v2073, %v2073
      %v2083 = vpack.c.b16 %v2074, %v2074
      %v2084 = vpack.c.b16 %v2075, %v2075
      %v2085 = vpack.c.b16 %v2076, %v2076
      %v2086 = vpack.c.b16 %v2077, %v2077
      %v2087 = vpack.c.b16 %v2078, %v2078
      %v2088 = vpack.c.b16 %v2079, %v2079
      %v2089 = vpack.c.b16 %v2080, %v2080
      %v2090 = vpack.c.b16 %v2081, %v2081
      %vm2100 = vcmask 125952
      %2101 = vst.msk [vmem:[%s170] sm:$0xf] %vm2100, %v2082
      %2102 = vst.msk [vmem:[%s170 + $0x4] sm:$0xf] %vm2100, %v2083
      %2103 = vst.msk [vmem:[%s170 + $0x8] sm:$0xf] %vm2100, %v2084
      %2104 = vst.msk [vmem:[%s170 + $0xc] sm:$0xf] %vm2100, %v2085
      %2105 = vst.msk [vmem:[%s170 + $0x10] sm:$0xf] %vm2100, %v2086
      %2106 = vst.msk [vmem:[%s170 + $0x14] sm:$0xf] %vm2100, %v2087
      %2107 = vst.msk [vmem:[%s170 + $0x18] sm:$0xf] %vm2100, %v2088
      %2108 = vst.msk [vmem:[%s170 + $0x1c] sm:$0xf] %vm2100, %v2089
      %2109 = vst.msk [vmem:[%s170 + $0x20] sm:$0xf] %vm2100, %v2090
      %p2110 = scmp.lt.s32.totalorder %s14, 1
      %s2111 = scalar_select %p2110, %s14, 1
      %s2112 = smul.addr %s2111, 9
      %s2113 = smul.addr %s2112, 4
      %s2114 = scalar_lea.vmem %s3, %s2113
      // Predicated region
      $region33: #{discriminator_forward.5} parent=31 // pred_check
        %p2115 = pneg %p100
      $region34: #{discriminator_forward.5} parent=31 // pred_check_branch
        %2117 = sbr.rel (%p2115) target = $region36
      $region35: #{discriminator_forward.5} parent=31 // pred_region
        _
      $region36: #{discriminator_forward.5} parent=31 // pred_fallthru
        _
    $region32: #{discriminator_forward.5} parent=5 // pred_fallthru
      _
    %p2118 = scmp.le.s32.totalorder 2, %s9
    // Predicated region
    $region37: #{discriminator_forward.5} parent=5 // pred_check
      %p2119 = pneg %p2118
    $region38: #{discriminator_forward.5} parent=5 // pred_check_branch
      %2121 = sbr.rel (%p2119) target = $region40
    $region39: #{discriminator_forward.5} parent=5 // pred_region
      %s2122 = ssub.s32 %s9, 2
      // Predicated region
      $region41: #{discriminator_forward.5} parent=39 // pred_check
        %p2123 = pneg %p106
      $region42: #{discriminator_forward.5} parent=39 // pred_check_branch
        %2125 = sbr.rel (%p2123) target = $region44
      $region43: #{discriminator_forward.5} parent=39 // pred_region
        %p2126 = scmp.lt.s32.totalorder %s15, 1
        %s2127 = scalar_select %p2126, %s15, 1
        %s2128 = smul.addr %s2127, 9
        %s2129 = smul.addr %s2128, 4
        %s2130 = scalar_lea.vmem %s3, %s2129
      $region44: #{discriminator_forward.5} parent=39 // pred_fallthru
        _
    $region40: #{discriminator_forward.5} parent=5 // pred_fallthru
      _
  $region6: #{discriminator_forward.5} parent=0 // loop_footer
    %s13 = sadd.s32 1, %s9
  $region7: #{discriminator_forward.5} parent=0 // loop_footer_branch
    %8 = sbr.rel target = $region3
  $region8: #{discriminator_forward.5} parent=0 // loop_exit
    _

// kernel: discriminator_forward.4
$region0: #{discriminator_forward.4}
  #allocation0 [shape = 'u32[]', space=smem, size = 0x4, offset = 0x4, fixed_abs, tag = 'smem constant byte address 0x4 - core index']
  #allocation1 [shape = 'u32[144,128]{1,0:T(1,128)}', space=vmem, size = 0x12000, scoped, tag = 'internal scratch']
  #allocation2 [shape = 'f32[1,326,1]{2,1,0:T(8,128)}', space=vmem, size = 0x29000, scoped, tag = 'scratch operand']
  #allocation3 [shape = 'f32[288,8]{1,0:T(8,128)}', space=vmem, size = 0x24000, scoped, tag = 'scratch operand']
  %s0 = inlined_call_operand.vmem [shape: f32[2,1,326,1], index: 0, kind: input, shape index: {}]
  %s1 = inlined_call_operand.vmem [shape: f32[9,8], index: 1, kind: input, shape index: {}]
  %s2 = inlined_call_operand.vmem [shape: bf16[2,288,8], index: 2, kind: output, shape index: {}]
  %s3 = sld [smem:[#allocation0]]
  $region41: #{discriminator_forward.4} parent=0
    _
  %s5 = ssub.s32 1, %s3
  %s6 = scalar_select 0, %s5, %s3
  loop: start=0, step=1, limit=4
  $region2: #{discriminator_forward.4} parent=0 // loop_pre_header
    _
  $region3: #{discriminator_forward.4} parent=0 // loop_header
    %s8 = sphi 0, %s12
    %p9 = scmp.ge.s32.totalorder %s8, 4
    %s18 = sphi 0, %s20
    %s21 = sphi 0, %s18
    %s22 = sphi 0, %s21
    %s38 = sphi 0, %s22
    %s42 = sphi 0, %s42
    %s44 = sphi 0, %s42
    %s45 = sphi 0, %s44
    %s59 = sphi 0, %s45
    %s65 = sphi 0, %s67
    %s68 = sphi 0, %s65
    %s69 = sphi 0, %s68
    %s85 = sphi 0, %s69
  $region4: #{discriminator_forward.4} parent=0 // loop_header_branch
    %11 = sbr.rel (%p9) target = $region8
  $region5: #{discriminator_forward.4} parent=0 // loop_body
    %s13 = ssub.s32 %s8, 1
    %s14 = ssub.s32 %s8, 2
    %s15 = sadd.s32 %s8, 1
    %s16 = ssub.s32 %s8, %s15
    %p17 = scmp.eq.s32.totalorder %s16, 0
    %s19 = sadd.s32 %s18, 1
    %s20 = scalar_select %p17, %s18, %s19
    %p23 = pneg %p17
    %p24 = scmp.eq.s32.totalorder %s8, 1
    %p25 = por %p23, %p24
    %p26 = scmp.ne.s32.totalorder %s18, %s21
    %p27 = scmp.eq.s32.totalorder %s8, 0
    %p28 = por %p26, %p27
    %p29 = scmp.ne.s32.totalorder %s18, %s21
    %p30 = scmp.eq.s32.totalorder %s13, 1
    %p31 = por %p29, %p30
    %p32 = scmp.ne.s32.totalorder %s21, %s22
    %p33 = scmp.eq.s32.totalorder %s13, 0
    %p34 = por %p32, %p33
    %p35 = scmp.ne.s32.totalorder %s21, %s22
    %p36 = scmp.eq.s32.totalorder %s14, 1
    %p37 = por %p35, %p36
    %p39 = scmp.ne.s32.totalorder %s22, %s38
    %p40 = scmp.eq.s32.totalorder %s14, 0
    %p41 = por %p39, %p40
    %s43 = sadd.s32 %s42, 1
    %p46 = scmp.eq.s32.totalorder %s8, 1
    %p47 = scmp.ne.s32.totalorder %s42, %s44
    %p48 = scmp.eq.s32.totalorder %s8, 0
    %p49 = por %p47, %p48
    %p50 = scmp.ne.s32.totalorder %s42, %s44
    %p51 = scmp.eq.s32.totalorder %s13, 1
    %p52 = por %p50, %p51
    %p53 = scmp.ne.s32.totalorder %s44, %s45
    %p54 = scmp.eq.s32.totalorder %s13, 0
    %p55 = por %p53, %p54
    %p56 = scmp.ne.s32.totalorder %s44, %s45
    %p57 = scmp.eq.s32.totalorder %s14, 1
    %p58 = por %p56, %p57
    %p60 = scmp.ne.s32.totalorder %s45, %s59
    %p61 = scmp.eq.s32.totalorder %s14, 0
    %p62 = por %p60, %p61
    %s63 = ssub.s32 %s8, %s15
    %p64 = scmp.eq.s32.totalorder %s63, 0
    %s66 = sadd.s32 %s65, 1
    %s67 = scalar_select %p64, %s65, %s66
    %p70 = pneg %p64
    %p71 = scmp.eq.s32.totalorder %s8, 1
    %p72 = por %p70, %p71
    %p73 = scmp.ne.s32.totalorder %s65, %s68
    %p74 = scmp.eq.s32.totalorder %s8, 0
    %p75 = por %p73, %p74
    %p76 = scmp.ne.s32.totalorder %s65, %s68
    %p77 = scmp.eq.s32.totalorder %s13, 1
    %p78 = por %p76, %p77
    %p79 = scmp.ne.s32.totalorder %s68, %s69
    %p80 = scmp.eq.s32.totalorder %s13, 0
    %p81 = por %p79, %p80
    %p82 = scmp.ne.s32.totalorder %s68, %s69
    %p83 = scmp.eq.s32.totalorder %s14, 1
    %p84 = por %p82, %p83
    %p86 = scmp.ne.s32.totalorder %s69, %s85
    %p87 = scmp.eq.s32.totalorder %s14, 0
    %p88 = por %p86, %p87
    %p89 = scmp.le.s32.totalorder 1, %s8
    %p90 = scmp.lt.s32.totalorder %s8, 3
    %p91 = pnand %p89, %p90
    %p92 = pneg %p91
    // Predicated region
    $region9: #{discriminator_forward.4} parent=5 // pred_check
      _
    $region10: #{discriminator_forward.4} parent=5 // pred_check_branch
      %94 = sbr.rel (%p91) target = $region12
    $region11: #{discriminator_forward.4} parent=5 // pred_region
      %s95 = ssub.s32 %s8, 1
      // Predicated region
      $region13: #{discriminator_forward.4} parent=11 // pred_check
        %p96 = pneg %p55
      $region14: #{discriminator_forward.4} parent=11 // pred_check_branch
        %98 = sbr.rel (%p96) target = $region16
      $region15: #{discriminator_forward.4} parent=11 // pred_region
        _
      $region16: #{discriminator_forward.4} parent=11 // pred_fallthru
        _
    $region12: #{discriminator_forward.4} parent=5 // pred_fallthru
      _
    %p99 = scmp.lt.s32.totalorder %s8, 2
    // Predicated region
    $region17: #{discriminator_forward.4} parent=5 // pred_check
      %p100 = pneg %p99
    $region18: #{discriminator_forward.4} parent=5 // pred_check_branch
      %102 = sbr.rel (%p100) target = $region20
    $region19: #{discriminator_forward.4} parent=5 // pred_region
      // Predicated region
      $region21: #{discriminator_forward.4} parent=19 // pred_check
        %p103 = pneg %p28
      $region22: #{discriminator_forward.4} parent=19 // pred_check_branch
        %105 = sbr.rel (%p103) target = $region24
      $region23: #{discriminator_forward.4} parent=19 // pred_region
        %p106 = scmp.lt.s32.totalorder %s8, 1
        %s107 = scalar_select %p106, %s8, 1
        %s108 = smul.addr %s107, 41
        %s109 = smul.addr %s108, 8
        %s110 = scalar_lea.vmem %s0, %s109
      $region24: #{discriminator_forward.4} parent=19 // pred_fallthru
        _
    $region20: #{discriminator_forward.4} parent=5 // pred_fallthru
      _
    %p111 = scmp.le.s32.totalorder 1, %s8
    %p112 = scmp.lt.s32.totalorder %s8, 3
    %p113 = pnand %p111, %p112
    %p114 = pneg %p113
    // Predicated region
    $region25: #{discriminator_forward.4} parent=5 // pred_check
      _
    $region26: #{discriminator_forward.4} parent=5 // pred_check_branch
      %116 = sbr.rel (%p113) target = $region28
    $region27: #{discriminator_forward.4} parent=5 // pred_region
      %s117 = ssub.s32 %s8, 1
      %p118 = scmp.lt.s32.totalorder %s13, 1
      %s119 = scalar_select %p118, %s13, 1
      %s120 = smul.addr %s119, 41
      %s121 = smul.addr %s120, 8
      %s122 = scalar_lea.vmem %s0, %s121
      %p123 = pneg %p34
      %p124 = pneg %p31
      %p125 = pneg %p55
      %p126 = pneg %p52
      %p127 = pneg %p81
      %p128 = pneg %p78
      %p129 = scmp.lt.s32.totalorder %s13, 1
      %s130 = scalar_select %p129, %s13, 1
      %s131 = smul.addr %s130, 36
      %s132 = smul.addr %s131, 4
      %s133 = scalar_lea.vmem %s2, %s132
      %p134 = scmp.lt.s32.totalorder %s13, 1
      %s135 = scalar_select %p134, %s13, 1
      %s136 = smul.addr %s135, 41
      %s137 = smul.addr %s136, 8
      %s138 = scalar_lea.vmem %s0, %s137
      %p139 = scmp.lt.s32.totalorder %s13, 1
      %s140 = scalar_select %p139, %s13, 1
      %s141 = smul.addr %s140, 36
      %s142 = smul.addr %s141, 4
      %s143 = scalar_lea.vmem %s2, %s142
      %v144 = vld [vmem:[%s138] sm:$0xff]
      %v145 = vld [vmem:[%s138 + $0x8] sm:$0xff]
      %v146 = vld [vmem:[%s138 + $0x10] sm:$0xff]
      %v147 = vld [vmem:[%s138 + $0x18] sm:$0xff]
      %v148 = vld [vmem:[%s138 + $0x20] sm:$0xff]
      %v149 = vld [vmem:[%s138 + $0x28] sm:$0xff]
      %v150 = vld [vmem:[%s138 + $0x30] sm:$0xff]
      %v151 = vld [vmem:[%s138 + $0x38] sm:$0xff]
      %v152 = vld [vmem:[%s138 + $0x40] sm:$0xff]
      %v153 = vld [vmem:[%s138 + $0x48] sm:$0xff]
      %v154 = vld [vmem:[%s138 + $0x50] sm:$0xff]
      %v155 = vld [vmem:[%s138 + $0x58] sm:$0xff]
      %v156 = vld [vmem:[%s138 + $0x60] sm:$0xff]
      %v157 = vld [vmem:[%s138 + $0x68] sm:$0xff]
      %v158 = vld [vmem:[%s138 + $0x70] sm:$0xff]
      %v159 = vld [vmem:[%s138 + $0x78] sm:$0xff]
      %v160 = vld [vmem:[%s138 + $0x80] sm:$0xff]
      %v161 = vld [vmem:[%s138 + $0x88] sm:$0xff]
      %v162 = vld [vmem:[%s138 + $0x90] sm:$0xff]
      %v163 = vld [vmem:[%s138 + $0x98] sm:$0xff]
      %v164 = vld [vmem:[%s138 + $0xa0] sm:$0xff]
      %v165 = vld [vmem:[%s138 + $0xa8] sm:$0xff]
      %v166 = vld [vmem:[%s138 + $0xb0] sm:$0xff]
      %v167 = vld [vmem:[%s138 + $0xb8] sm:$0xff]
      %v168 = vld [vmem:[%s138 + $0xc0] sm:$0xff]
      %v169 = vld [vmem:[%s138 + $0xc8] sm:$0xff]
      %v170 = vld [vmem:[%s138 + $0xd0] sm:$0xff]
      %v171 = vld [vmem:[%s138 + $0xd8] sm:$0xff]
      %v172 = vld [vmem:[%s138 + $0xe0] sm:$0xff]
      %v173 = vld [vmem:[%s138 + $0xe8] sm:$0xff]
      %v174 = vld [vmem:[%s138 + $0xf0] sm:$0xff]
      %v175 = vld [vmem:[%s138 + $0xf8] sm:$0xff]
      %v176 = vld [vmem:[%s138 + $0x100] sm:$0xff]
      %v177 = vld [vmem:[%s138 + $0x108] sm:$0xff]
      %v178 = vld [vmem:[%s138 + $0x110] sm:$0xff]
      %v179 = vld [vmem:[%s138 + $0x118] sm:$0xff]
      %v180 = vld [vmem:[%s138 + $0x120] sm:$0xff]
      %v181 = vld [vmem:[%s138 + $0x128] sm:$0xff]
      %v182 = vld [vmem:[%s138 + $0x130] sm:$0xff]
      %v183 = vld [vmem:[%s138 + $0x138] sm:$0xff]
      %v184 = vld [vmem:[%s138 + $0x140] sm:$0x3f]
      %vm185 = vcmask 7168
      %186 = vst.msk [vmem:[#allocation2] sm:$0xff] %vm185, %v144
      %187 = vst.msk [vmem:[#allocation2 + $0x8] sm:$0xff] %vm185, %v145
      %188 = vst.msk [vmem:[#allocation2 + $0x10] sm:$0xff] %vm185, %v146
      %189 = vst.msk [vmem:[#allocation2 + $0x18] sm:$0xff] %vm185, %v147
      %190 = vst.msk [vmem:[#allocation2 + $0x20] sm:$0xff] %vm185, %v148
      %191 = vst.msk [vmem:[#allocation2 + $0x28] sm:$0xff] %vm185, %v149
      %192 = vst.msk [vmem:[#allocation2 + $0x30] sm:$0xff] %vm185, %v150
      %193 = vst.msk [vmem:[#allocation2 + $0x38] sm:$0xff] %vm185, %v151
      %194 = vst.msk [vmem:[#allocation2 + $0x40] sm:$0xff] %vm185, %v152
      %195 = vst.msk [vmem:[#allocation2 + $0x48] sm:$0xff] %vm185, %v153
      %196 = vst.msk [vmem:[#allocation2 + $0x50] sm:$0xff] %vm185, %v154
      %197 = vst.msk [vmem:[#allocation2 + $0x58] sm:$0xff] %vm185, %v155
      %198 = vst.msk [vmem:[#allocation2 + $0x60] sm:$0xff] %vm185, %v156
      %199 = vst.msk [vmem:[#allocation2 + $0x68] sm:$0xff] %vm185, %v157
      %200 = vst.msk [vmem:[#allocation2 + $0x70] sm:$0xff] %vm185, %v158
      %201 = vst.msk [vmem:[#allocation2 + $0x78] sm:$0xff] %vm185, %v159
      %202 = vst.msk [vmem:[#allocation2 + $0x80] sm:$0xff] %vm185, %v160
      %203 = vst.msk [vmem:[#allocation2 + $0x88] sm:$0xff] %vm185, %v161
      %204 = vst.msk [vmem:[#allocation2 + $0x90] sm:$0xff] %vm185, %v162
      %205 = vst.msk [vmem:[#allocation2 + $0x98] sm:$0xff] %vm185, %v163
      %206 = vst.msk [vmem:[#allocation2 + $0xa0] sm:$0xff] %vm185, %v164
      %207 = vst.msk [vmem:[#allocation2 + $0xa8] sm:$0xff] %vm185, %v165
      %208 = vst.msk [vmem:[#allocation2 + $0xb0] sm:$0xff] %vm185, %v166
      %209 = vst.msk [vmem:[#allocation2 + $0xb8] sm:$0xff] %vm185, %v167
      %210 = vst.msk [vmem:[#allocation2 + $0xc0] sm:$0xff] %vm185, %v168
      %211 = vst.msk [vmem:[#allocation2 + $0xc8] sm:$0xff] %vm185, %v169
      %212 = vst.msk [vmem:[#allocation2 + $0xd0] sm:$0xff] %vm185, %v170
      %213 = vst.msk [vmem:[#allocation2 + $0xd8] sm:$0xff] %vm185, %v171
      %214 = vst.msk [vmem:[#allocation2 + $0xe0] sm:$0xff] %vm185, %v172
      %215 = vst.msk [vmem:[#allocation2 + $0xe8] sm:$0xff] %vm185, %v173
      %216 = vst.msk [vmem:[#allocation2 + $0xf0] sm:$0xff] %vm185, %v174
      %217 = vst.msk [vmem:[#allocation2 + $0xf8] sm:$0xff] %vm185, %v175
      %218 = vst.msk [vmem:[#allocation2 + $0x100] sm:$0xff] %vm185, %v176
      %219 = vst.msk [vmem:[#allocation2 + $0x108] sm:$0xff] %vm185, %v177
      %220 = vst.msk [vmem:[#allocation2 + $0x110] sm:$0xff] %vm185, %v178
      %221 = vst.msk [vmem:[#allocation2 + $0x118] sm:$0xff] %vm185, %v179
      %222 = vst.msk [vmem:[#allocation2 + $0x120] sm:$0xff] %vm185, %v180
      %223 = vst.msk [vmem:[#allocation2 + $0x128] sm:$0xff] %vm185, %v181
      %224 = vst.msk [vmem:[#allocation2 + $0x130] sm:$0xff] %vm185, %v182
      %225 = vst.msk [vmem:[#allocation2 + $0x138] sm:$0xff] %vm185, %v183
      %vm226 = vcmask 5120
      %227 = vst.msk [vmem:[#allocation2 + $0x140] sm:$0x3f] %vm226, %v184
      %vm228 = vcmask 64512
      %229 = vst.msk [vmem:[#allocation3] sm:$0xff] %vm228, 0.0
      %230 = vst.msk [vmem:[#allocation3 + $0x8] sm:$0xff] %vm228, 0.0
      %231 = vst.msk [vmem:[#allocation3 + $0x10] sm:$0xff] %vm228, 0.0
      %232 = vst.msk [vmem:[#allocation3 + $0x18] sm:$0xff] %vm228, 0.0
      %233 = vst.msk [vmem:[#allocation3 + $0x20] sm:$0xff] %vm228, 0.0
      %234 = vst.msk [vmem:[#allocation3 + $0x28] sm:$0xff] %vm228, 0.0
      %235 = vst.msk [vmem:[#allocation3 + $0x30] sm:$0xff] %vm228, 0.0
      %236 = vst.msk [vmem:[#allocation3 + $0x38] sm:$0xff] %vm228, 0.0
      %237 = vst.msk [vmem:[#allocation3 + $0x40] sm:$0xff] %vm228, 0.0
      %238 = vst.msk [vmem:[#allocation3 + $0x48] sm:$0xff] %vm228, 0.0
      %239 = vst.msk [vmem:[#allocation3 + $0x50] sm:$0xff] %vm228, 0.0
      %240 = vst.msk [vmem:[#allocation3 + $0x58] sm:$0xff] %vm228, 0.0
      %241 = vst.msk [vmem:[#allocation3 + $0x60] sm:$0xff] %vm228, 0.0
      %242 = vst.msk [vmem:[#allocation3 + $0x68] sm:$0xff] %vm228, 0.0
      %243 = vst.msk [vmem:[#allocation3 + $0x70] sm:$0xff] %vm228, 0.0
      %244 = vst.msk [vmem:[#allocation3 + $0x78] sm:$0xff] %vm228, 0.0
      %245 = vst.msk [vmem:[#allocation3 + $0x80] sm:$0xff] %vm228, 0.0
      %246 = vst.msk [vmem:[#allocation3 + $0x88] sm:$0xff] %vm228, 0.0
      %247 = vst.msk [vmem:[#allocation3 + $0x90] sm:$0xff] %vm228, 0.0
      %248 = vst.msk [vmem:[#allocation3 + $0x98] sm:$0xff] %vm228, 0.0
      %249 = vst.msk [vmem:[#allocation3 + $0xa0] sm:$0xff] %vm228, 0.0
      %250 = vst.msk [vmem:[#allocation3 + $0xa8] sm:$0xff] %vm228, 0.0
      %251 = vst.msk [vmem:[#allocation3 + $0xb0] sm:$0xff] %vm228, 0.0
      %252 = vst.msk [vmem:[#allocation3 + $0xb8] sm:$0xff] %vm228, 0.0
      %253 = vst.msk [vmem:[#allocation3 + $0xc0] sm:$0xff] %vm228, 0.0
      %254 = vst.msk [vmem:[#allocation3 + $0xc8] sm:$0xff] %vm228, 0.0
      %255 = vst.msk [vmem:[#allocation3 + $0xd0] sm:$0xff] %vm228, 0.0
      %256 = vst.msk [vmem:[#allocation3 + $0xd8] sm:$0xff] %vm228, 0.0
      %257 = vst.msk [vmem:[#allocation3 + $0xe0] sm:$0xff] %vm228, 0.0
      %258 = vst.msk [vmem:[#allocation3 + $0xe8] sm:$0xff] %vm228, 0.0
      %259 = vst.msk [vmem:[#allocation3 + $0xf0] sm:$0xff] %vm228, 0.0
      %260 = vst.msk [vmem:[#allocation3 + $0xf8] sm:$0xff] %vm228, 0.0
      %261 = vst.msk [vmem:[#allocation3 + $0x100] sm:$0xff] %vm228, 0.0
      %262 = vst.msk [vmem:[#allocation3 + $0x108] sm:$0xff] %vm228, 0.0
      %263 = vst.msk [vmem:[#allocation3 + $0x110] sm:$0xff] %vm228, 0.0
      %264 = vst.msk [vmem:[#allocation3 + $0x118] sm:$0xff] %vm228, 0.0
      %v265 = vld [vmem:[#allocation2] sm:$0xff]
      %v266 = vld [vmem:[#allocation2 + $0x8] sm:$0xff]
      %v267 = vld [vmem:[#allocation2 + $0x10] sm:$0xff]
      %v268 = vld [vmem:[#allocation2 + $0x18] sm:$0xff]
      %v269 = vld [vmem:[#allocation2 + $0x20] sm:$0xff]
      %v270 = vld [vmem:[#allocation2 + $0x28] sm:$0xff]
      %v271 = vld [vmem:[#allocation2 + $0x30] sm:$0xff]
      %v272 = vld [vmem:[#allocation2 + $0x38] sm:$0xff]
      %v273 = vld [vmem:[#allocation2 + $0x40] sm:$0xff]
      %v274 = vld [vmem:[#allocation2 + $0x48] sm:$0xff]
      %v275 = vld [vmem:[#allocation2 + $0x50] sm:$0xff]
      %v276 = vld [vmem:[#allocation2 + $0x58] sm:$0xff]
      %v277 = vld [vmem:[#allocation2 + $0x60] sm:$0xff]
      %v278 = vld [vmem:[#allocation2 + $0x68] sm:$0xff]
      %v279 = vld [vmem:[#allocation2 + $0x70] sm:$0xff]
      %v280 = vld [vmem:[#allocation2 + $0x78] sm:$0xff]
      %v281 = vld [vmem:[#allocation2 + $0x80] sm:$0xff]
      %v282 = vld [vmem:[#allocation2 + $0x88] sm:$0xff]
      %v283 = vld [vmem:[#allocation2 + $0x90] sm:$0xff]
      %v284 = vld [vmem:[#allocation2 + $0x98] sm:$0xff]
      %v285 = vld [vmem:[#allocation2 + $0xa0] sm:$0xff]
      %v286 = vld [vmem:[#allocation2 + $0xa8] sm:$0xff]
      %v287 = vld [vmem:[#allocation2 + $0xb0] sm:$0xff]
      %v288 = vld [vmem:[#allocation2 + $0xb8] sm:$0xff]
      %v289 = vld [vmem:[#allocation2 + $0xc0] sm:$0xff]
      %v290 = vld [vmem:[#allocation2 + $0xc8] sm:$0xff]
      %v291 = vld [vmem:[#allocation2 + $0xd0] sm:$0xff]
      %v292 = vld [vmem:[#allocation2 + $0xd8] sm:$0xff]
      %v293 = vld [vmem:[#allocation2 + $0xe0] sm:$0xff]
      %v294 = vld [vmem:[#allocation2 + $0xe8] sm:$0xff]
      %v295 = vld [vmem:[#allocation2 + $0xf0] sm:$0xff]
      %v296 = vld [vmem:[#allocation2 + $0xf8] sm:$0xff]
      %v297 = vld [vmem:[#allocation2 + $0x100] sm:$0xff]
      %v298 = vld [vmem:[#allocation2 + $0x108] sm:$0xff]
      %v299 = vld [vmem:[#allocation2 + $0x110] sm:$0xff]
      %v300 = vld [vmem:[#allocation2 + $0x118] sm:$0xff]
      %v301 = vld [vmem:[%s1] sm:$0x1]
      %v302 = vld [vmem:[#allocation3] sm:$0xff]
      %v303 = vld [vmem:[#allocation3 + $0x8] sm:$0xff]
      %v304 = vld [vmem:[#allocation3 + $0x10] sm:$0xff]
      %v305 = vld [vmem:[#allocation3 + $0x18] sm:$0xff]
      %v306 = vld [vmem:[#allocation3 + $0x20] sm:$0xff]
      %v307 = vld [vmem:[#allocation3 + $0x28] sm:$0xff]
      %v308 = vld [vmem:[#allocation3 + $0x30] sm:$0xff]
      %v309 = vld [vmem:[#allocation3 + $0x38] sm:$0xff]
      %v310 = vld [vmem:[#allocation3 + $0x40] sm:$0xff]
      %v311 = vld [vmem:[#allocation3 + $0x48] sm:$0xff]
      %v312 = vld [vmem:[#allocation3 + $0x50] sm:$0xff]
      %v313 = vld [vmem:[#allocation3 + $0x58] sm:$0xff]
      %v314 = vld [vmem:[#allocation3 + $0x60] sm:$0xff]
      %v315 = vld [vmem:[#allocation3 + $0x68] sm:$0xff]
      %v316 = vld [vmem:[#allocation3 + $0x70] sm:$0xff]
      %v317 = vld [vmem:[#allocation3 + $0x78] sm:$0xff]
      %v318 = vld [vmem:[#allocation3 + $0x80] sm:$0xff]
      %v319 = vld [vmem:[#allocation3 + $0x88] sm:$0xff]
      %v320 = vld [vmem:[#allocation3 + $0x90] sm:$0xff]
      %v321 = vld [vmem:[#allocation3 + $0x98] sm:$0xff]
      %v322 = vld [vmem:[#allocation3 + $0xa0] sm:$0xff]
      %v323 = vld [vmem:[#allocation3 + $0xa8] sm:$0xff]
      %v324 = vld [vmem:[#allocation3 + $0xb0] sm:$0xff]
      %v325 = vld [vmem:[#allocation3 + $0xb8] sm:$0xff]
      %v326 = vld [vmem:[#allocation3 + $0xc0] sm:$0xff]
      %v327 = vld [vmem:[#allocation3 + $0xc8] sm:$0xff]
      %v328 = vld [vmem:[#allocation3 + $0xd0] sm:$0xff]
      %v329 = vld [vmem:[#allocation3 + $0xd8] sm:$0xff]
      %v330 = vld [vmem:[#allocation3 + $0xe0] sm:$0xff]
      %v331 = vld [vmem:[#allocation3 + $0xe8] sm:$0xff]
      %v332 = vld [vmem:[#allocation3 + $0xf0] sm:$0xff]
      %v333 = vld [vmem:[#allocation3 + $0xf8] sm:$0xff]
      %v334 = vld [vmem:[#allocation3 + $0x100] sm:$0xff]
      %v335 = vld [vmem:[#allocation3 + $0x108] sm:$0xff]
      %v336 = vld [vmem:[#allocation3 + $0x110] sm:$0xff]
      %v337 = vld [vmem:[#allocation3 + $0x118] sm:$0xff]
      %339 = vset.pattern.permute.xlu0 0
      %340 = vperm.xlu0 %339, %v265
      %v341 = vpop.permute.xlu0 %340
      %344 = vset.pattern.permute.xlu0 0
      %345 = vperm.xlu0 %344, %v266
      %v346 = vpop.permute.xlu0 %345
      %349 = vset.pattern.permute.xlu0 0
      %350 = vperm.xlu0 %349, %v267
      %v351 = vpop.permute.xlu0 %350
      %354 = vset.pattern.permute.xlu0 0
      %355 = vperm.xlu0 %354, %v268
      %v356 = vpop.permute.xlu0 %355
      %359 = vset.pattern.permute.xlu0 0
      %360 = vperm.xlu0 %359, %v269
      %v361 = vpop.permute.xlu0 %360
      %364 = vset.pattern.permute.xlu0 0
      %365 = vperm.xlu0 %364, %v270
      %v366 = vpop.permute.xlu0 %365
      %369 = vset.pattern.permute.xlu0 0
      %370 = vperm.xlu0 %369, %v271
      %v371 = vpop.permute.xlu0 %370
      %374 = vset.pattern.permute.xlu0 0
      %375 = vperm.xlu0 %374, %v272
      %v376 = vpop.permute.xlu0 %375
      %379 = vset.pattern.permute.xlu0 0
      %380 = vperm.xlu0 %379, %v273
      %v381 = vpop.permute.xlu0 %380
      %384 = vset.pattern.permute.xlu0 0
      %385 = vperm.xlu0 %384, %v274
      %v386 = vpop.permute.xlu0 %385
      %389 = vset.pattern.permute.xlu0 0
      %390 = vperm.xlu0 %389, %v275
      %v391 = vpop.permute.xlu0 %390
      %394 = vset.pattern.permute.xlu0 0
      %395 = vperm.xlu0 %394, %v276
      %v396 = vpop.permute.xlu0 %395
      %399 = vset.pattern.permute.xlu0 0
      %400 = vperm.xlu0 %399, %v277
      %v401 = vpop.permute.xlu0 %400
      %404 = vset.pattern.permute.xlu0 0
      %405 = vperm.xlu0 %404, %v278
      %v406 = vpop.permute.xlu0 %405
      %409 = vset.pattern.permute.xlu0 0
      %410 = vperm.xlu0 %409, %v279
      %v411 = vpop.permute.xlu0 %410
      %414 = vset.pattern.permute.xlu0 0
      %415 = vperm.xlu0 %414, %v280
      %v416 = vpop.permute.xlu0 %415
      %419 = vset.pattern.permute.xlu0 0
      %420 = vperm.xlu0 %419, %v281
      %v421 = vpop.permute.xlu0 %420
      %424 = vset.pattern.permute.xlu0 0
      %425 = vperm.xlu0 %424, %v282
      %v426 = vpop.permute.xlu0 %425
      %429 = vset.pattern.permute.xlu0 0
      %430 = vperm.xlu0 %429, %v283
      %v431 = vpop.permute.xlu0 %430
      %434 = vset.pattern.permute.xlu0 0
      %435 = vperm.xlu0 %434, %v284
      %v436 = vpop.permute.xlu0 %435
      %439 = vset.pattern.permute.xlu0 0
      %440 = vperm.xlu0 %439, %v285
      %v441 = vpop.permute.xlu0 %440
      %444 = vset.pattern.permute.xlu0 0
      %445 = vperm.xlu0 %444, %v286
      %v446 = vpop.permute.xlu0 %445
      %449 = vset.pattern.permute.xlu0 0
      %450 = vperm.xlu0 %449, %v287
      %v451 = vpop.permute.xlu0 %450
      %454 = vset.pattern.permute.xlu0 0
      %455 = vperm.xlu0 %454, %v288
      %v456 = vpop.permute.xlu0 %455
      %459 = vset.pattern.permute.xlu0 0
      %460 = vperm.xlu0 %459, %v289
      %v461 = vpop.permute.xlu0 %460
      %464 = vset.pattern.permute.xlu0 0
      %465 = vperm.xlu0 %464, %v290
      %v466 = vpop.permute.xlu0 %465
      %469 = vset.pattern.permute.xlu0 0
      %470 = vperm.xlu0 %469, %v291
      %v471 = vpop.permute.xlu0 %470
      %474 = vset.pattern.permute.xlu0 0
      %475 = vperm.xlu0 %474, %v292
      %v476 = vpop.permute.xlu0 %475
      %479 = vset.pattern.permute.xlu0 0
      %480 = vperm.xlu0 %479, %v293
      %v481 = vpop.permute.xlu0 %480
      %484 = vset.pattern.permute.xlu0 0
      %485 = vperm.xlu0 %484, %v294
      %v486 = vpop.permute.xlu0 %485
      %489 = vset.pattern.permute.xlu0 0
      %490 = vperm.xlu0 %489, %v295
      %v491 = vpop.permute.xlu0 %490
      %494 = vset.pattern.permute.xlu0 0
      %495 = vperm.xlu0 %494, %v296
      %v496 = vpop.permute.xlu0 %495
      %499 = vset.pattern.permute.xlu0 0
      %500 = vperm.xlu0 %499, %v297
      %v501 = vpop.permute.xlu0 %500
      %504 = vset.pattern.permute.xlu0 0
      %505 = vperm.xlu0 %504, %v298
      %v506 = vpop.permute.xlu0 %505
      %509 = vset.pattern.permute.xlu0 0
      %510 = vperm.xlu0 %509, %v299
      %v511 = vpop.permute.xlu0 %510
      %514 = vset.pattern.permute.xlu0 0
      %515 = vperm.xlu0 %514, %v300
      %v516 = vpop.permute.xlu0 %515
      %v518 = vlaneseq
      %v519 = vshrl.u32 %v518, 7
      %v520 = vsub.s32 0, %v519
      %v521 = vrot.slane %v301, %v520
      %v522 = vmul.f32 %v341, %v521
      %v523 = vmul.f32 %v346, %v521
      %v524 = vmul.f32 %v351, %v521
      %v525 = vmul.f32 %v356, %v521
      %v526 = vmul.f32 %v361, %v521
      %v527 = vmul.f32 %v366, %v521
      %v528 = vmul.f32 %v371, %v521
      %v529 = vmul.f32 %v376, %v521
      %v530 = vmul.f32 %v381, %v521
      %v531 = vmul.f32 %v386, %v521
      %v532 = vmul.f32 %v391, %v521
      %v533 = vmul.f32 %v396, %v521
      %v534 = vmul.f32 %v401, %v521
      %v535 = vmul.f32 %v406, %v521
      %v536 = vmul.f32 %v411, %v521
      %v537 = vmul.f32 %v416, %v521
      %v538 = vmul.f32 %v421, %v521
      %v539 = vmul.f32 %v426, %v521
      %v540 = vmul.f32 %v431, %v521
      %v541 = vmul.f32 %v436, %v521
      %v542 = vmul.f32 %v441, %v521
      %v543 = vmul.f32 %v446, %v521
      %v544 = vmul.f32 %v451, %v521
      %v545 = vmul.f32 %v456, %v521
      %v546 = vmul.f32 %v461, %v521
      %v547 = vmul.f32 %v466, %v521
      %v548 = vmul.f32 %v471, %v521
      %v549 = vmul.f32 %v476, %v521
      %v550 = vmul.f32 %v481, %v521
      %v551 = vmul.f32 %v486, %v521
      %v552 = vmul.f32 %v491, %v521
      %v553 = vmul.f32 %v496, %v521
      %v554 = vmul.f32 %v501, %v521
      %v555 = vmul.f32 %v506, %v521
      %v556 = vmul.f32 %v511, %v521
      %v557 = vmul.f32 %v516, %v521
      %v558 = vadd.f32 %v302, %v522
      %v559 = vadd.f32 %v303, %v523
      %v560 = vadd.f32 %v304, %v524
      %v561 = vadd.f32 %v305, %v525
      %v562 = vadd.f32 %v306, %v526
      %v563 = vadd.f32 %v307, %v527
      %v564 = vadd.f32 %v308, %v528
      %v565 = vadd.f32 %v309, %v529
      %v566 = vadd.f32 %v310, %v530
      %v567 = vadd.f32 %v311, %v531
      %v568 = vadd.f32 %v312, %v532
      %v569 = vadd.f32 %v313, %v533
      %v570 = vadd.f32 %v314, %v534
      %v571 = vadd.f32 %v315, %v535
      %v572 = vadd.f32 %v316, %v536
      %v573 = vadd.f32 %v317, %v537
      %v574 = vadd.f32 %v318, %v538
      %v575 = vadd.f32 %v319, %v539
      %v576 = vadd.f32 %v320, %v540
      %v577 = vadd.f32 %v321, %v541
      %v578 = vadd.f32 %v322, %v542
      %v579 = vadd.f32 %v323, %v543
      %v580 = vadd.f32 %v324, %v544
      %v581 = vadd.f32 %v325, %v545
      %v582 = vadd.f32 %v326, %v546
      %v583 = vadd.f32 %v327, %v547
      %v584 = vadd.f32 %v328, %v548
      %v585 = vadd.f32 %v329, %v549
      %v586 = vadd.f32 %v330, %v550
      %v587 = vadd.f32 %v331, %v551
      %v588 = vadd.f32 %v332, %v552
      %v589 = vadd.f32 %v333, %v553
      %v590 = vadd.f32 %v334, %v554
      %v591 = vadd.f32 %v335, %v555
      %v592 = vadd.f32 %v336, %v556
      %v593 = vadd.f32 %v337, %v557
      %594 = vst.msk [vmem:[#allocation3] sm:$0xff] %vm228, %v558
      %595 = vst.msk [vmem:[#allocation3 + $0x8] sm:$0xff] %vm228, %v559
      %596 = vst.msk [vmem:[#allocation3 + $0x10] sm:$0xff] %vm228, %v560
      %597 = vst.msk [vmem:[#allocation3 + $0x18] sm:$0xff] %vm228, %v561
      %598 = vst.msk [vmem:[#allocation3 + $0x20] sm:$0xff] %vm228, %v562
      %599 = vst.msk [vmem:[#allocation3 + $0x28] sm:$0xff] %vm228, %v563
      %600 = vst.msk [vmem:[#allocation3 + $0x30] sm:$0xff] %vm228, %v564
      %601 = vst.msk [vmem:[#allocation3 + $0x38] sm:$0xff] %vm228, %v565
      %602 = vst.msk [vmem:[#allocation3 + $0x40] sm:$0xff] %vm228, %v566
      %603 = vst.msk [vmem:[#allocation3 + $0x48] sm:$0xff] %vm228, %v567
      %604 = vst.msk [vmem:[#allocation3 + $0x50] sm:$0xff] %vm228, %v568
      %605 = vst.msk [vmem:[#allocation3 + $0x58] sm:$0xff] %vm228, %v569
      %606 = vst.msk [vmem:[#allocation3 + $0x60] sm:$0xff] %vm228, %v570
      %607 = vst.msk [vmem:[#allocation3 + $0x68] sm:$0xff] %vm228, %v571
      %608 = vst.msk [vmem:[#allocation3 + $0x70] sm:$0xff] %vm228, %v572
      %609 = vst.msk [vmem:[#allocation3 + $0x78] sm:$0xff] %vm228, %v573
      %610 = vst.msk [vmem:[#allocation3 + $0x80] sm:$0xff] %vm228, %v574
      %611 = vst.msk [vmem:[#allocation3 + $0x88] sm:$0xff] %vm228, %v575
      %612 = vst.msk [vmem:[#allocation3 + $0x90] sm:$0xff] %vm228, %v576
      %613 = vst.msk [vmem:[#allocation3 + $0x98] sm:$0xff] %vm228, %v577
      %614 = vst.msk [vmem:[#allocation3 + $0xa0] sm:$0xff] %vm228, %v578
      %615 = vst.msk [vmem:[#allocation3 + $0xa8] sm:$0xff] %vm228, %v579
      %616 = vst.msk [vmem:[#allocation3 + $0xb0] sm:$0xff] %vm228, %v580
      %617 = vst.msk [vmem:[#allocation3 + $0xb8] sm:$0xff] %vm228, %v581
      %618 = vst.msk [vmem:[#allocation3 + $0xc0] sm:$0xff] %vm228, %v582
      %619 = vst.msk [vmem:[#allocation3 + $0xc8] sm:$0xff] %vm228, %v583
      %620 = vst.msk [vmem:[#allocation3 + $0xd0] sm:$0xff] %vm228, %v584
      %621 = vst.msk [vmem:[#allocation3 + $0xd8] sm:$0xff] %vm228, %v585
      %622 = vst.msk [vmem:[#allocation3 + $0xe0] sm:$0xff] %vm228, %v586
      %623 = vst.msk [vmem:[#allocation3 + $0xe8] sm:$0xff] %vm228, %v587
      %624 = vst.msk [vmem:[#allocation3 + $0xf0] sm:$0xff] %vm228, %v588
      %625 = vst.msk [vmem:[#allocation3 + $0xf8] sm:$0xff] %vm228, %v589
      %626 = vst.msk [vmem:[#allocation3 + $0x100] sm:$0xff] %vm228, %v590
      %627 = vst.msk [vmem:[#allocation3 + $0x108] sm:$0xff] %vm228, %v591
      %628 = vst.msk [vmem:[#allocation3 + $0x110] sm:$0xff] %vm228, %v592
      %629 = vst.msk [vmem:[#allocation3 + $0x118] sm:$0xff] %vm228, %v593
      %v630 = vld [vmem:[#allocation2 + $0x1] sm:$0xff]
      %v631 = vld [vmem:[#allocation2 + $0x9] sm:$0xff]
      %v632 = vld [vmem:[#allocation2 + $0x11] sm:$0xff]
      %v633 = vld [vmem:[#allocation2 + $0x19] sm:$0xff]
      %v634 = vld [vmem:[#allocation2 + $0x21] sm:$0xff]
      %v635 = vld [vmem:[#allocation2 + $0x29] sm:$0xff]
      %v636 = vld [vmem:[#allocation2 + $0x31] sm:$0xff]
      %v637 = vld [vmem:[#allocation2 + $0x39] sm:$0xff]
      %v638 = vld [vmem:[#allocation2 + $0x41] sm:$0xff]
      %v639 = vld [vmem:[#allocation2 + $0x49] sm:$0xff]
      %v640 = vld [vmem:[#allocation2 + $0x51] sm:$0xff]
      %v641 = vld [vmem:[#allocation2 + $0x59] sm:$0xff]
      %v642 = vld [vmem:[#allocation2 + $0x61] sm:$0xff]
      %v643 = vld [vmem:[#allocation2 + $0x69] sm:$0xff]
      %v644 = vld [vmem:[#allocation2 + $0x71] sm:$0xff]
      %v645 = vld [vmem:[#allocation2 + $0x79] sm:$0xff]
      %v646 = vld [vmem:[#allocation2 + $0x81] sm:$0xff]
      %v647 = vld [vmem:[#allocation2 + $0x89] sm:$0xff]
      %v648 = vld [vmem:[#allocation2 + $0x91] sm:$0xff]
      %v649 = vld [vmem:[#allocation2 + $0x99] sm:$0xff]
      %v650 = vld [vmem:[#allocation2 + $0xa1] sm:$0xff]
      %v651 = vld [vmem:[#allocation2 + $0xa9] sm:$0xff]
      %v652 = vld [vmem:[#allocation2 + $0xb1] sm:$0xff]
      %v653 = vld [vmem:[#allocation2 + $0xb9] sm:$0xff]
      %v654 = vld [vmem:[#allocation2 + $0xc1] sm:$0xff]
      %v655 = vld [vmem:[#allocation2 + $0xc9] sm:$0xff]
      %v656 = vld [vmem:[#allocation2 + $0xd1] sm:$0xff]
      %v657 = vld [vmem:[#allocation2 + $0xd9] sm:$0xff]
      %v658 = vld [vmem:[#allocation2 + $0xe1] sm:$0xff]
      %v659 = vld [vmem:[#allocation2 + $0xe9] sm:$0xff]
      %v660 = vld [vmem:[#allocation2 + $0xf1] sm:$0xff]
      %v661 = vld [vmem:[#allocation2 + $0xf9] sm:$0xff]
      %v662 = vld [vmem:[#allocation2 + $0x101] sm:$0xff]
      %v663 = vld [vmem:[#allocation2 + $0x109] sm:$0xff]
      %v664 = vld [vmem:[#allocation2 + $0x111] sm:$0xff]
      %v665 = vld [vmem:[#allocation2 + $0x119] sm:$0xff]
      %v666 = vld [vmem:[%s1 + $0x1] sm:$0x1]
      %v667 = vld [vmem:[#allocation3] sm:$0xff]
      %v668 = vld [vmem:[#allocation3 + $0x8] sm:$0xff]
      %v669 = vld [vmem:[#allocation3 + $0x10] sm:$0xff]
      %v670 = vld [vmem:[#allocation3 + $0x18] sm:$0xff]
      %v671 = vld [vmem:[#allocation3 + $0x20] sm:$0xff]
      %v672 = vld [vmem:[#allocation3 + $0x28] sm:$0xff]
      %v673 = vld [vmem:[#allocation3 + $0x30] sm:$0xff]
      %v674 = vld [vmem:[#allocation3 + $0x38] sm:$0xff]
      %v675 = vld [vmem:[#allocation3 + $0x40] sm:$0xff]
      %v676 = vld [vmem:[#allocation3 + $0x48] sm:$0xff]
      %v677 = vld [vmem:[#allocation3 + $0x50] sm:$0xff]
      %v678 = vld [vmem:[#allocation3 + $0x58] sm:$0xff]
      %v679 = vld [vmem:[#allocation3 + $0x60] sm:$0xff]
      %v680 = vld [vmem:[#allocation3 + $0x68] sm:$0xff]
      %v681 = vld [vmem:[#allocation3 + $0x70] sm:$0xff]
      %v682 = vld [vmem:[#allocation3 + $0x78] sm:$0xff]
      %v683 = vld [vmem:[#allocation3 + $0x80] sm:$0xff]
      %v684 = vld [vmem:[#allocation3 + $0x88] sm:$0xff]
      %v685 = vld [vmem:[#allocation3 + $0x90] sm:$0xff]
      %v686 = vld [vmem:[#allocation3 + $0x98] sm:$0xff]
      %v687 = vld [vmem:[#allocation3 + $0xa0] sm:$0xff]
      %v688 = vld [vmem:[#allocation3 + $0xa8] sm:$0xff]
      %v689 = vld [vmem:[#allocation3 + $0xb0] sm:$0xff]
      %v690 = vld [vmem:[#allocation3 + $0xb8] sm:$0xff]
      %v691 = vld [vmem:[#allocation3 + $0xc0] sm:$0xff]
      %v692 = vld [vmem:[#allocation3 + $0xc8] sm:$0xff]
      %v693 = vld [vmem:[#allocation3 + $0xd0] sm:$0xff]
      %v694 = vld [vmem:[#allocation3 + $0xd8] sm:$0xff]
      %v695 = vld [vmem:[#allocation3 + $0xe0] sm:$0xff]
      %v696 = vld [vmem:[#allocation3 + $0xe8] sm:$0xff]
      %v697 = vld [vmem:[#allocation3 + $0xf0] sm:$0xff]
      %v698 = vld [vmem:[#allocation3 + $0xf8] sm:$0xff]
      %v699 = vld [vmem:[#allocation3 + $0x100] sm:$0xff]
      %v700 = vld [vmem:[#allocation3 + $0x108] sm:$0xff]
      %v701 = vld [vmem:[#allocation3 + $0x110] sm:$0xff]
      %v702 = vld [vmem:[#allocation3 + $0x118] sm:$0xff]
      %704 = vset.pattern.permute.xlu0 0
      %705 = vperm.xlu0 %704, %v630
      %v706 = vpop.permute.xlu0 %705
      %709 = vset.pattern.permute.xlu0 0
      %710 = vperm.xlu0 %709, %v631
      %v711 = vpop.permute.xlu0 %710
      %714 = vset.pattern.permute.xlu0 0
      %715 = vperm.xlu0 %714, %v632
      %v716 = vpop.permute.xlu0 %715
      %719 = vset.pattern.permute.xlu0 0
      %720 = vperm.xlu0 %719, %v633
      %v721 = vpop.permute.xlu0 %720
      %724 = vset.pattern.permute.xlu0 0
      %725 = vperm.xlu0 %724, %v634
      %v726 = vpop.permute.xlu0 %725
      %729 = vset.pattern.permute.xlu0 0
      %730 = vperm.xlu0 %729, %v635
      %v731 = vpop.permute.xlu0 %730
      %734 = vset.pattern.permute.xlu0 0
      %735 = vperm.xlu0 %734, %v636
      %v736 = vpop.permute.xlu0 %735
      %739 = vset.pattern.permute.xlu0 0
      %740 = vperm.xlu0 %739, %v637
      %v741 = vpop.permute.xlu0 %740
      %744 = vset.pattern.permute.xlu0 0
      %745 = vperm.xlu0 %744, %v638
      %v746 = vpop.permute.xlu0 %745
      %749 = vset.pattern.permute.xlu0 0
      %750 = vperm.xlu0 %749, %v639
      %v751 = vpop.permute.xlu0 %750
      %754 = vset.pattern.permute.xlu0 0
      %755 = vperm.xlu0 %754, %v640
      %v756 = vpop.permute.xlu0 %755
      %759 = vset.pattern.permute.xlu0 0
      %760 = vperm.xlu0 %759, %v641
      %v761 = vpop.permute.xlu0 %760
      %764 = vset.pattern.permute.xlu0 0
      %765 = vperm.xlu0 %764, %v642
      %v766 = vpop.permute.xlu0 %765
      %769 = vset.pattern.permute.xlu0 0
      %770 = vperm.xlu0 %769, %v643
      %v771 = vpop.permute.xlu0 %770
      %774 = vset.pattern.permute.xlu0 0
      %775 = vperm.xlu0 %774, %v644
      %v776 = vpop.permute.xlu0 %775
      %779 = vset.pattern.permute.xlu0 0
      %780 = vperm.xlu0 %779, %v645
      %v781 = vpop.permute.xlu0 %780
      %784 = vset.pattern.permute.xlu0 0
      %785 = vperm.xlu0 %784, %v646
      %v786 = vpop.permute.xlu0 %785
      %789 = vset.pattern.permute.xlu0 0
      %790 = vperm.xlu0 %789, %v647
      %v791 = vpop.permute.xlu0 %790
      %794 = vset.pattern.permute.xlu0 0
      %795 = vperm.xlu0 %794, %v648
      %v796 = vpop.permute.xlu0 %795
      %799 = vset.pattern.permute.xlu0 0
      %800 = vperm.xlu0 %799, %v649
      %v801 = vpop.permute.xlu0 %800
      %804 = vset.pattern.permute.xlu0 0
      %805 = vperm.xlu0 %804, %v650
      %v806 = vpop.permute.xlu0 %805
      %809 = vset.pattern.permute.xlu0 0
      %810 = vperm.xlu0 %809, %v651
      %v811 = vpop.permute.xlu0 %810
      %814 = vset.pattern.permute.xlu0 0
      %815 = vperm.xlu0 %814, %v652
      %v816 = vpop.permute.xlu0 %815
      %819 = vset.pattern.permute.xlu0 0
      %820 = vperm.xlu0 %819, %v653
      %v821 = vpop.permute.xlu0 %820
      %824 = vset.pattern.permute.xlu0 0
      %825 = vperm.xlu0 %824, %v654
      %v826 = vpop.permute.xlu0 %825
      %829 = vset.pattern.permute.xlu0 0
      %830 = vperm.xlu0 %829, %v655
      %v831 = vpop.permute.xlu0 %830
      %834 = vset.pattern.permute.xlu0 0
      %835 = vperm.xlu0 %834, %v656
      %v836 = vpop.permute.xlu0 %835
      %839 = vset.pattern.permute.xlu0 0
      %840 = vperm.xlu0 %839, %v657
      %v841 = vpop.permute.xlu0 %840
      %844 = vset.pattern.permute.xlu0 0
      %845 = vperm.xlu0 %844, %v658
      %v846 = vpop.permute.xlu0 %845
      %849 = vset.pattern.permute.xlu0 0
      %850 = vperm.xlu0 %849, %v659
      %v851 = vpop.permute.xlu0 %850
      %854 = vset.pattern.permute.xlu0 0
      %855 = vperm.xlu0 %854, %v660
      %v856 = vpop.permute.xlu0 %855
      %859 = vset.pattern.permute.xlu0 0
      %860 = vperm.xlu0 %859, %v661
      %v861 = vpop.permute.xlu0 %860
      %864 = vset.pattern.permute.xlu0 0
      %865 = vperm.xlu0 %864, %v662
      %v866 = vpop.permute.xlu0 %865
      %869 = vset.pattern.permute.xlu0 0
      %870 = vperm.xlu0 %869, %v663
      %v871 = vpop.permute.xlu0 %870
      %874 = vset.pattern.permute.xlu0 0
      %875 = vperm.xlu0 %874, %v664
      %v876 = vpop.permute.xlu0 %875
      %879 = vset.pattern.permute.xlu0 0
      %880 = vperm.xlu0 %879, %v665
      %v881 = vpop.permute.xlu0 %880
      %v883 = vlaneseq
      %v884 = vshrl.u32 %v883, 7
      %v885 = vsub.s32 0, %v884
      %v886 = vrot.slane %v666, %v885
      %v887 = vmul.f32 %v706, %v886
      %v888 = vmul.f32 %v711, %v886
      %v889 = vmul.f32 %v716, %v886
      %v890 = vmul.f32 %v721, %v886
      %v891 = vmul.f32 %v726, %v886
      %v892 = vmul.f32 %v731, %v886
      %v893 = vmul.f32 %v736, %v886
      %v894 = vmul.f32 %v741, %v886
      %v895 = vmul.f32 %v746, %v886
      %v896 = vmul.f32 %v751, %v886
      %v897 = vmul.f32 %v756, %v886
      %v898 = vmul.f32 %v761, %v886
      %v899 = vmul.f32 %v766, %v886
      %v900 = vmul.f32 %v771, %v886
      %v901 = vmul.f32 %v776, %v886
      %v902 = vmul.f32 %v781, %v886
      %v903 = vmul.f32 %v786, %v886
      %v904 = vmul.f32 %v791, %v886
      %v905 = vmul.f32 %v796, %v886
      %v906 = vmul.f32 %v801, %v886
      %v907 = vmul.f32 %v806, %v886
      %v908 = vmul.f32 %v811, %v886
      %v909 = vmul.f32 %v816, %v886
      %v910 = vmul.f32 %v821, %v886
      %v911 = vmul.f32 %v826, %v886
      %v912 = vmul.f32 %v831, %v886
      %v913 = vmul.f32 %v836, %v886
      %v914 = vmul.f32 %v841, %v886
      %v915 = vmul.f32 %v846, %v886
      %v916 = vmul.f32 %v851, %v886
      %v917 = vmul.f32 %v856, %v886
      %v918 = vmul.f32 %v861, %v886
      %v919 = vmul.f32 %v866, %v886
      %v920 = vmul.f32 %v871, %v886
      %v921 = vmul.f32 %v876, %v886
      %v922 = vmul.f32 %v881, %v886
      %v923 = vadd.f32 %v667, %v887
      %v924 = vadd.f32 %v668, %v888
      %v925 = vadd.f32 %v669, %v889
      %v926 = vadd.f32 %v670, %v890
      %v927 = vadd.f32 %v671, %v891
      %v928 = vadd.f32 %v672, %v892
      %v929 = vadd.f32 %v673, %v893
      %v930 = vadd.f32 %v674, %v894
      %v931 = vadd.f32 %v675, %v895
      %v932 = vadd.f32 %v676, %v896
      %v933 = vadd.f32 %v677, %v897
      %v934 = vadd.f32 %v678, %v898
      %v935 = vadd.f32 %v679, %v899
      %v936 = vadd.f32 %v680, %v900
      %v937 = vadd.f32 %v681, %v901
      %v938 = vadd.f32 %v682, %v902
      %v939 = vadd.f32 %v683, %v903
      %v940 = vadd.f32 %v684, %v904
      %v941 = vadd.f32 %v685, %v905
      %v942 = vadd.f32 %v686, %v906
      %v943 = vadd.f32 %v687, %v907
      %v944 = vadd.f32 %v688, %v908
      %v945 = vadd.f32 %v689, %v909
      %v946 = vadd.f32 %v690, %v910
      %v947 = vadd.f32 %v691, %v911
      %v948 = vadd.f32 %v692, %v912
      %v949 = vadd.f32 %v693, %v913
      %v950 = vadd.f32 %v694, %v914
      %v951 = vadd.f32 %v695, %v915
      %v952 = vadd.f32 %v696, %v916
      %v953 = vadd.f32 %v697, %v917
      %v954 = vadd.f32 %v698, %v918
      %v955 = vadd.f32 %v699, %v919
      %v956 = vadd.f32 %v700, %v920
      %v957 = vadd.f32 %v701, %v921
      %v958 = vadd.f32 %v702, %v922
      %959 = vst.msk [vmem:[#allocation3] sm:$0xff] %vm228, %v923
      %960 = vst.msk [vmem:[#allocation3 + $0x8] sm:$0xff] %vm228, %v924
      %961 = vst.msk [vmem:[#allocation3 + $0x10] sm:$0xff] %vm228, %v925
      %962 = vst.msk [vmem:[#allocation3 + $0x18] sm:$0xff] %vm228, %v926
      %963 = vst.msk [vmem:[#allocation3 + $0x20] sm:$0xff] %vm228, %v927
      %964 = vst.msk [vmem:[#allocation3 + $0x28] sm:$0xff] %vm228, %v928
      %965 = vst.msk [vmem:[#allocation3 + $0x30] sm:$0xff] %vm228, %v929
      %966 = vst.msk [vmem:[#allocation3 + $0x38] sm:$0xff] %vm228, %v930
      %967 = vst.msk [vmem:[#allocation3 + $0x40] sm:$0xff] %vm228, %v931
      %968 = vst.msk [vmem:[#allocation3 + $0x48] sm:$0xff] %vm228, %v932
      %969 = vst.msk [vmem:[#allocation3 + $0x50] sm:$0xff] %vm228, %v933
      %970 = vst.msk [vmem:[#allocation3 + $0x58] sm:$0xff] %vm228, %v934
      %971 = vst.msk [vmem:[#allocation3 + $0x60] sm:$0xff] %vm228, %v935
      %972 = vst.msk [vmem:[#allocation3 + $0x68] sm:$0xff] %vm228, %v936
      %973 = vst.msk [vmem:[#allocation3 + $0x70] sm:$0xff] %vm228, %v937
      %974 = vst.msk [vmem:[#allocation3 + $0x78] sm:$0xff] %vm228, %v938
      %975 = vst.msk [vmem:[#allocation3 + $0x80] sm:$0xff] %vm228, %v939
      %976 = vst.msk [vmem:[#allocation3 + $0x88] sm:$0xff] %vm228, %v940
      %977 = vst.msk [vmem:[#allocation3 + $0x90] sm:$0xff] %vm228, %v941
      %978 = vst.msk [vmem:[#allocation3 + $0x98] sm:$0xff] %vm228, %v942
      %979 = vst.msk [vmem:[#allocation3 + $0xa0] sm:$0xff] %vm228, %v943
      %980 = vst.msk [vmem:[#allocation3 + $0xa8] sm:$0xff] %vm228, %v944
      %981 = vst.msk [vmem:[#allocation3 + $0xb0] sm:$0xff] %vm228, %v945
      %982 = vst.msk [vmem:[#allocation3 + $0xb8] sm:$0xff] %vm228, %v946
      %983 = vst.msk [vmem:[#allocation3 + $0xc0] sm:$0xff] %vm228, %v947
      %984 = vst.msk [vmem:[#allocation3 + $0xc8] sm:$0xff] %vm228, %v948
      %985 = vst.msk [vmem:[#allocation3 + $0xd0] sm:$0xff] %vm228, %v949
      %986 = vst.msk [vmem:[#allocation3 + $0xd8] sm:$0xff] %vm228, %v950
      %987 = vst.msk [vmem:[#allocation3 + $0xe0] sm:$0xff] %vm228, %v951
      %988 = vst.msk [vmem:[#allocation3 + $0xe8] sm:$0xff] %vm228, %v952
      %989 = vst.msk [vmem:[#allocation3 + $0xf0] sm:$0xff] %vm228, %v953
      %990 = vst.msk [vmem:[#allocation3 + $0xf8] sm:$0xff] %vm228, %v954
      %991 = vst.msk [vmem:[#allocation3 + $0x100] sm:$0xff] %vm228, %v955
      %992 = vst.msk [vmem:[#allocation3 + $0x108] sm:$0xff] %vm228, %v956
      %993 = vst.msk [vmem:[#allocation3 + $0x110] sm:$0xff] %vm228, %v957
      %994 = vst.msk [vmem:[#allocation3 + $0x118] sm:$0xff] %vm228, %v958
      %v995 = vld [vmem:[#allocation2 + $0x2] sm:$0xff]
      %v996 = vld [vmem:[#allocation2 + $0xa] sm:$0xff]
      %v997 = vld [vmem:[#allocation2 + $0x12] sm:$0xff]
      %v998 = vld [vmem:[#allocation2 + $0x1a] sm:$0xff]
      %v999 = vld [vmem:[#allocation2 + $0x22] sm:$0xff]
      %v1000 = vld [vmem:[#allocation2 + $0x2a] sm:$0xff]
      %v1001 = vld [vmem:[#allocation2 + $0x32] sm:$0xff]
      %v1002 = vld [vmem:[#allocation2 + $0x3a] sm:$0xff]
      %v1003 = vld [vmem:[#allocation2 + $0x42] sm:$0xff]
      %v1004 = vld [vmem:[#allocation2 + $0x4a] sm:$0xff]
      %v1005 = vld [vmem:[#allocation2 + $0x52] sm:$0xff]
      %v1006 = vld [vmem:[#allocation2 + $0x5a] sm:$0xff]
      %v1007 = vld [vmem:[#allocation2 + $0x62] sm:$0xff]
      %v1008 = vld [vmem:[#allocation2 + $0x6a] sm:$0xff]
      %v1009 = vld [vmem:[#allocation2 + $0x72] sm:$0xff]
      %v1010 = vld [vmem:[#allocation2 + $0x7a] sm:$0xff]
      %v1011 = vld [vmem:[#allocation2 + $0x82] sm:$0xff]
      %v1012 = vld [vmem:[#allocation2 + $0x8a] sm:$0xff]
      %v1013 = vld [vmem:[#allocation2 + $0x92] sm:$0xff]
      %v1014 = vld [vmem:[#allocation2 + $0x9a] sm:$0xff]
      %v1015 = vld [vmem:[#allocation2 + $0xa2] sm:$0xff]
      %v1016 = vld [vmem:[#allocation2 + $0xaa] sm:$0xff]
      %v1017 = vld [vmem:[#allocation2 + $0xb2] sm:$0xff]
      %v1018 = vld [vmem:[#allocation2 + $0xba] sm:$0xff]
      %v1019 = vld [vmem:[#allocation2 + $0xc2] sm:$0xff]
      %v1020 = vld [vmem:[#allocation2 + $0xca] sm:$0xff]
      %v1021 = vld [vmem:[#allocation2 + $0xd2] sm:$0xff]
      %v1022 = vld [vmem:[#allocation2 + $0xda] sm:$0xff]
      %v1023 = vld [vmem:[#allocation2 + $0xe2] sm:$0xff]
      %v1024 = vld [vmem:[#allocation2 + $0xea] sm:$0xff]
      %v1025 = vld [vmem:[#allocation2 + $0xf2] sm:$0xff]
      %v1026 = vld [vmem:[#allocation2 + $0xfa] sm:$0xff]
      %v1027 = vld [vmem:[#allocation2 + $0x102] sm:$0xff]
      %v1028 = vld [vmem:[#allocation2 + $0x10a] sm:$0xff]
      %v1029 = vld [vmem:[#allocation2 + $0x112] sm:$0xff]
      %v1030 = vld [vmem:[#allocation2 + $0x11a] sm:$0xff]
      %v1031 = vld [vmem:[%s1 + $0x2] sm:$0x1]
      %v1032 = vld [vmem:[#allocation3] sm:$0xff]
      %v1033 = vld [vmem:[#allocation3 + $0x8] sm:$0xff]
      %v1034 = vld [vmem:[#allocation3 + $0x10] sm:$0xff]
      %v1035 = vld [vmem:[#allocation3 + $0x18] sm:$0xff]
      %v1036 = vld [vmem:[#allocation3 + $0x20] sm:$0xff]
      %v1037 = vld [vmem:[#allocation3 + $0x28] sm:$0xff]
      %v1038 = vld [vmem:[#allocation3 + $0x30] sm:$0xff]
      %v1039 = vld [vmem:[#allocation3 + $0x38] sm:$0xff]
      %v1040 = vld [vmem:[#allocation3 + $0x40] sm:$0xff]
      %v1041 = vld [vmem:[#allocation3 + $0x48] sm:$0xff]
      %v1042 = vld [vmem:[#allocation3 + $0x50] sm:$0xff]
      %v1043 = vld [vmem:[#allocation3 + $0x58] sm:$0xff]
      %v1044 = vld [vmem:[#allocation3 + $0x60] sm:$0xff]
      %v1045 = vld [vmem:[#allocation3 + $0x68] sm:$0xff]
      %v1046 = vld [vmem:[#allocation3 + $0x70] sm:$0xff]
      %v1047 = vld [vmem:[#allocation3 + $0x78] sm:$0xff]
      %v1048 = vld [vmem:[#allocation3 + $0x80] sm:$0xff]
      %v1049 = vld [vmem:[#allocation3 + $0x88] sm:$0xff]
      %v1050 = vld [vmem:[#allocation3 + $0x90] sm:$0xff]
      %v1051 = vld [vmem:[#allocation3 + $0x98] sm:$0xff]
      %v1052 = vld [vmem:[#allocation3 + $0xa0] sm:$0xff]
      %v1053 = vld [vmem:[#allocation3 + $0xa8] sm:$0xff]
      %v1054 = vld [vmem:[#allocation3 + $0xb0] sm:$0xff]
      %v1055 = vld [vmem:[#allocation3 + $0xb8] sm:$0xff]
      %v1056 = vld [vmem:[#allocation3 + $0xc0] sm:$0xff]
      %v1057 = vld [vmem:[#allocation3 + $0xc8] sm:$0xff]
      %v1058 = vld [vmem:[#allocation3 + $0xd0] sm:$0xff]
      %v1059 = vld [vmem:[#allocation3 + $0xd8] sm:$0xff]
      %v1060 = vld [vmem:[#allocation3 + $0xe0] sm:$0xff]
      %v1061 = vld [vmem:[#allocation3 + $0xe8] sm:$0xff]
      %v1062 = vld [vmem:[#allocation3 + $0xf0] sm:$0xff]
      %v1063 = vld [vmem:[#allocation3 + $0xf8] sm:$0xff]
      %v1064 = vld [vmem:[#allocation3 + $0x100] sm:$0xff]
      %v1065 = vld [vmem:[#allocation3 + $0x108] sm:$0xff]
      %v1066 = vld [vmem:[#allocation3 + $0x110] sm:$0xff]
      %v1067 = vld [vmem:[#allocation3 + $0x118] sm:$0xff]
      %1069 = vset.pattern.permute.xlu0 0
      %1070 = vperm.xlu0 %1069, %v995
      %v1071 = vpop.permute.xlu0 %1070
      %1074 = vset.pattern.permute.xlu0 0
      %1075 = vperm.xlu0 %1074, %v996
      %v1076 = vpop.permute.xlu0 %1075
      %1079 = vset.pattern.permute.xlu0 0
      %1080 = vperm.xlu0 %1079, %v997
      %v1081 = vpop.permute.xlu0 %1080
      %1084 = vset.pattern.permute.xlu0 0
      %1085 = vperm.xlu0 %1084, %v998
      %v1086 = vpop.permute.xlu0 %1085
      %1089 = vset.pattern.permute.xlu0 0
      %1090 = vperm.xlu0 %1089, %v999
      %v1091 = vpop.permute.xlu0 %1090
      %1094 = vset.pattern.permute.xlu0 0
      %1095 = vperm.xlu0 %1094, %v1000
      %v1096 = vpop.permute.xlu0 %1095
      %1099 = vset.pattern.permute.xlu0 0
      %1100 = vperm.xlu0 %1099, %v1001
      %v1101 = vpop.permute.xlu0 %1100
      %1104 = vset.pattern.permute.xlu0 0
      %1105 = vperm.xlu0 %1104, %v1002
      %v1106 = vpop.permute.xlu0 %1105
      %1109 = vset.pattern.permute.xlu0 0
      %1110 = vperm.xlu0 %1109, %v1003
      %v1111 = vpop.permute.xlu0 %1110
      %1114 = vset.pattern.permute.xlu0 0
      %1115 = vperm.xlu0 %1114, %v1004
      %v1116 = vpop.permute.xlu0 %1115
      %1119 = vset.pattern.permute.xlu0 0
      %1120 = vperm.xlu0 %1119, %v1005
      %v1121 = vpop.permute.xlu0 %1120
      %1124 = vset.pattern.permute.xlu0 0
      %1125 = vperm.xlu0 %1124, %v1006
      %v1126 = vpop.permute.xlu0 %1125
      %1129 = vset.pattern.permute.xlu0 0
      %1130 = vperm.xlu0 %1129, %v1007
      %v1131 = vpop.permute.xlu0 %1130
      %1134 = vset.pattern.permute.xlu0 0
      %1135 = vperm.xlu0 %1134, %v1008
      %v1136 = vpop.permute.xlu0 %1135
      %1139 = vset.pattern.permute.xlu0 0
      %1140 = vperm.xlu0 %1139, %v1009
      %v1141 = vpop.permute.xlu0 %1140
      %1144 = vset.pattern.permute.xlu0 0
      %1145 = vperm.xlu0 %1144, %v1010
      %v1146 = vpop.permute.xlu0 %1145
      %1149 = vset.pattern.permute.xlu0 0
      %1150 = vperm.xlu0 %1149, %v1011
      %v1151 = vpop.permute.xlu0 %1150
      %1154 = vset.pattern.permute.xlu0 0
      %1155 = vperm.xlu0 %1154, %v1012
      %v1156 = vpop.permute.xlu0 %1155
      %1159 = vset.pattern.permute.xlu0 0
      %1160 = vperm.xlu0 %1159, %v1013
      %v1161 = vpop.permute.xlu0 %1160
      %1164 = vset.pattern.permute.xlu0 0
      %1165 = vperm.xlu0 %1164, %v1014
      %v1166 = vpop.permute.xlu0 %1165
      %1169 = vset.pattern.permute.xlu0 0
      %1170 = vperm.xlu0 %1169, %v1015
      %v1171 = vpop.permute.xlu0 %1170
      %1174 = vset.pattern.permute.xlu0 0
      %1175 = vperm.xlu0 %1174, %v1016
      %v1176 = vpop.permute.xlu0 %1175
      %1179 = vset.pattern.permute.xlu0 0
      %1180 = vperm.xlu0 %1179, %v1017
      %v1181 = vpop.permute.xlu0 %1180
      %1184 = vset.pattern.permute.xlu0 0
      %1185 = vperm.xlu0 %1184, %v1018
      %v1186 = vpop.permute.xlu0 %1185
      %1189 = vset.pattern.permute.xlu0 0
      %1190 = vperm.xlu0 %1189, %v1019
      %v1191 = vpop.permute.xlu0 %1190
      %1194 = vset.pattern.permute.xlu0 0
      %1195 = vperm.xlu0 %1194, %v1020
      %v1196 = vpop.permute.xlu0 %1195
      %1199 = vset.pattern.permute.xlu0 0
      %1200 = vperm.xlu0 %1199, %v1021
      %v1201 = vpop.permute.xlu0 %1200
      %1204 = vset.pattern.permute.xlu0 0
      %1205 = vperm.xlu0 %1204, %v1022
      %v1206 = vpop.permute.xlu0 %1205
      %1209 = vset.pattern.permute.xlu0 0
      %1210 = vperm.xlu0 %1209, %v1023
      %v1211 = vpop.permute.xlu0 %1210
      %1214 = vset.pattern.permute.xlu0 0
      %1215 = vperm.xlu0 %1214, %v1024
      %v1216 = vpop.permute.xlu0 %1215
      %1219 = vset.pattern.permute.xlu0 0
      %1220 = vperm.xlu0 %1219, %v1025
      %v1221 = vpop.permute.xlu0 %1220
      %1224 = vset.pattern.permute.xlu0 0
      %1225 = vperm.xlu0 %1224, %v1026
      %v1226 = vpop.permute.xlu0 %1225
      %1229 = vset.pattern.permute.xlu0 0
      %1230 = vperm.xlu0 %1229, %v1027
      %v1231 = vpop.permute.xlu0 %1230
      %1234 = vset.pattern.permute.xlu0 0
      %1235 = vperm.xlu0 %1234, %v1028
      %v1236 = vpop.permute.xlu0 %1235
      %1239 = vset.pattern.permute.xlu0 0
      %1240 = vperm.xlu0 %1239, %v1029
      %v1241 = vpop.permute.xlu0 %1240
      %1244 = vset.pattern.permute.xlu0 0
      %1245 = vperm.xlu0 %1244, %v1030
      %v1246 = vpop.permute.xlu0 %1245
      %v1248 = vlaneseq
      %v1249 = vshrl.u32 %v1248, 7
      %v1250 = vsub.s32 0, %v1249
      %v1251 = vrot.slane %v1031, %v1250
      %v1252 = vmul.f32 %v1071, %v1251
      %v1253 = vmul.f32 %v1076, %v1251
      %v1254 = vmul.f32 %v1081, %v1251
      %v1255 = vmul.f32 %v1086, %v1251
      %v1256 = vmul.f32 %v1091, %v1251
      %v1257 = vmul.f32 %v1096, %v1251
      %v1258 = vmul.f32 %v1101, %v1251
      %v1259 = vmul.f32 %v1106, %v1251
      %v1260 = vmul.f32 %v1111, %v1251
      %v1261 = vmul.f32 %v1116, %v1251
      %v1262 = vmul.f32 %v1121, %v1251
      %v1263 = vmul.f32 %v1126, %v1251
      %v1264 = vmul.f32 %v1131, %v1251
      %v1265 = vmul.f32 %v1136, %v1251
      %v1266 = vmul.f32 %v1141, %v1251
      %v1267 = vmul.f32 %v1146, %v1251
      %v1268 = vmul.f32 %v1151, %v1251
      %v1269 = vmul.f32 %v1156, %v1251
      %v1270 = vmul.f32 %v1161, %v1251
      %v1271 = vmul.f32 %v1166, %v1251
      %v1272 = vmul.f32 %v1171, %v1251
      %v1273 = vmul.f32 %v1176, %v1251
      %v1274 = vmul.f32 %v1181, %v1251
      %v1275 = vmul.f32 %v1186, %v1251
      %v1276 = vmul.f32 %v1191, %v1251
      %v1277 = vmul.f32 %v1196, %v1251
      %v1278 = vmul.f32 %v1201, %v1251
      %v1279 = vmul.f32 %v1206, %v1251
      %v1280 = vmul.f32 %v1211, %v1251
      %v1281 = vmul.f32 %v1216, %v1251
      %v1282 = vmul.f32 %v1221, %v1251
      %v1283 = vmul.f32 %v1226, %v1251
      %v1284 = vmul.f32 %v1231, %v1251
      %v1285 = vmul.f32 %v1236, %v1251
      %v1286 = vmul.f32 %v1241, %v1251
      %v1287 = vmul.f32 %v1246, %v1251
      %v1288 = vadd.f32 %v1032, %v1252
      %v1289 = vadd.f32 %v1033, %v1253
      %v1290 = vadd.f32 %v1034, %v1254
      %v1291 = vadd.f32 %v1035, %v1255
      %v1292 = vadd.f32 %v1036, %v1256
      %v1293 = vadd.f32 %v1037, %v1257
      %v1294 = vadd.f32 %v1038, %v1258
      %v1295 = vadd.f32 %v1039, %v1259
      %v1296 = vadd.f32 %v1040, %v1260
      %v1297 = vadd.f32 %v1041, %v1261
      %v1298 = vadd.f32 %v1042, %v1262
      %v1299 = vadd.f32 %v1043, %v1263
      %v1300 = vadd.f32 %v1044, %v1264
      %v1301 = vadd.f32 %v1045, %v1265
      %v1302 = vadd.f32 %v1046, %v1266
      %v1303 = vadd.f32 %v1047, %v1267
      %v1304 = vadd.f32 %v1048, %v1268
      %v1305 = vadd.f32 %v1049, %v1269
      %v1306 = vadd.f32 %v1050, %v1270
      %v1307 = vadd.f32 %v1051, %v1271
      %v1308 = vadd.f32 %v1052, %v1272
      %v1309 = vadd.f32 %v1053, %v1273
      %v1310 = vadd.f32 %v1054, %v1274
      %v1311 = vadd.f32 %v1055, %v1275
      %v1312 = vadd.f32 %v1056, %v1276
      %v1313 = vadd.f32 %v1057, %v1277
      %v1314 = vadd.f32 %v1058, %v1278
      %v1315 = vadd.f32 %v1059, %v1279
      %v1316 = vadd.f32 %v1060, %v1280
      %v1317 = vadd.f32 %v1061, %v1281
      %v1318 = vadd.f32 %v1062, %v1282
      %v1319 = vadd.f32 %v1063, %v1283
      %v1320 = vadd.f32 %v1064, %v1284
      %v1321 = vadd.f32 %v1065, %v1285
      %v1322 = vadd.f32 %v1066, %v1286
      %v1323 = vadd.f32 %v1067, %v1287
      %1324 = vst.msk [vmem:[#allocation3] sm:$0xff] %vm228, %v1288
      %1325 = vst.msk [vmem:[#allocation3 + $0x8] sm:$0xff] %vm228, %v1289
      %1326 = vst.msk [vmem:[#allocation3 + $0x10] sm:$0xff] %vm228, %v1290
      %1327 = vst.msk [vmem:[#allocation3 + $0x18] sm:$0xff] %vm228, %v1291
      %1328 = vst.msk [vmem:[#allocation3 + $0x20] sm:$0xff] %vm228, %v1292
      %1329 = vst.msk [vmem:[#allocation3 + $0x28] sm:$0xff] %vm228, %v1293
      %1330 = vst.msk [vmem:[#allocation3 + $0x30] sm:$0xff] %vm228, %v1294
      %1331 = vst.msk [vmem:[#allocation3 + $0x38] sm:$0xff] %vm228, %v1295
      %1332 = vst.msk [vmem:[#allocation3 + $0x40] sm:$0xff] %vm228, %v1296
      %1333 = vst.msk [vmem:[#allocation3 + $0x48] sm:$0xff] %vm228, %v1297
      %1334 = vst.msk [vmem:[#allocation3 + $0x50] sm:$0xff] %vm228, %v1298
      %1335 = vst.msk [vmem:[#allocation3 + $0x58] sm:$0xff] %vm228, %v1299
      %1336 = vst.msk [vmem:[#allocation3 + $0x60] sm:$0xff] %vm228, %v1300
      %1337 = vst.msk [vmem:[#allocation3 + $0x68] sm:$0xff] %vm228, %v1301
      %1338 = vst.msk [vmem:[#allocation3 + $0x70] sm:$0xff] %vm228, %v1302
      %1339 = vst.msk [vmem:[#allocation3 + $0x78] sm:$0xff] %vm228, %v1303
      %1340 = vst.msk [vmem:[#allocation3 + $0x80] sm:$0xff] %vm228, %v1304
      %1341 = vst.msk [vmem:[#allocation3 + $0x88] sm:$0xff] %vm228, %v1305
      %1342 = vst.msk [vmem:[#allocation3 + $0x90] sm:$0xff] %vm228, %v1306
      %1343 = vst.msk [vmem:[#allocation3 + $0x98] sm:$0xff] %vm228, %v1307
      %1344 = vst.msk [vmem:[#allocation3 + $0xa0] sm:$0xff] %vm228, %v1308
      %1345 = vst.msk [vmem:[#allocation3 + $0xa8] sm:$0xff] %vm228, %v1309
      %1346 = vst.msk [vmem:[#allocation3 + $0xb0] sm:$0xff] %vm228, %v1310
      %1347 = vst.msk [vmem:[#allocation3 + $0xb8] sm:$0xff] %vm228, %v1311
      %1348 = vst.msk [vmem:[#allocation3 + $0xc0] sm:$0xff] %vm228, %v1312
      %1349 = vst.msk [vmem:[#allocation3 + $0xc8] sm:$0xff] %vm228, %v1313
      %1350 = vst.msk [vmem:[#allocation3 + $0xd0] sm:$0xff] %vm228, %v1314
      %1351 = vst.msk [vmem:[#allocation3 + $0xd8] sm:$0xff] %vm228, %v1315
      %1352 = vst.msk [vmem:[#allocation3 + $0xe0] sm:$0xff] %vm228, %v1316
      %1353 = vst.msk [vmem:[#allocation3 + $0xe8] sm:$0xff] %vm228, %v1317
      %1354 = vst.msk [vmem:[#allocation3 + $0xf0] sm:$0xff] %vm228, %v1318
      %1355 = vst.msk [vmem:[#allocation3 + $0xf8] sm:$0xff] %vm228, %v1319
      %1356 = vst.msk [vmem:[#allocation3 + $0x100] sm:$0xff] %vm228, %v1320
      %1357 = vst.msk [vmem:[#allocation3 + $0x108] sm:$0xff] %vm228, %v1321
      %1358 = vst.msk [vmem:[#allocation3 + $0x110] sm:$0xff] %vm228, %v1322
      %1359 = vst.msk [vmem:[#allocation3 + $0x118] sm:$0xff] %vm228, %v1323
      %v1360 = vld [vmem:[#allocation2 + $0x12] sm:$0xff]
      %v1361 = vld [vmem:[#allocation2 + $0x1a] sm:$0xff]
      %v1362 = vld [vmem:[#allocation2 + $0x22] sm:$0xff]
      %v1363 = vld [vmem:[#allocation2 + $0x2a] sm:$0xff]
      %v1364 = vld [vmem:[#allocation2 + $0x32] sm:$0xff]
      %v1365 = vld [vmem:[#allocation2 + $0x3a] sm:$0xff]
      %v1366 = vld [vmem:[#allocation2 + $0x42] sm:$0xff]
      %v1367 = vld [vmem:[#allocation2 + $0x4a] sm:$0xff]
      %v1368 = vld [vmem:[#allocation2 + $0x52] sm:$0xff]
      %v1369 = vld [vmem:[#allocation2 + $0x5a] sm:$0xff]
      %v1370 = vld [vmem:[#allocation2 + $0x62] sm:$0xff]
      %v1371 = vld [vmem:[#allocation2 + $0x6a] sm:$0xff]
      %v1372 = vld [vmem:[#allocation2 + $0x72] sm:$0xff]
      %v1373 = vld [vmem:[#allocation2 + $0x7a] sm:$0xff]
      %v1374 = vld [vmem:[#allocation2 + $0x82] sm:$0xff]
      %v1375 = vld [vmem:[#allocation2 + $0x8a] sm:$0xff]
      %v1376 = vld [vmem:[#allocation2 + $0x92] sm:$0xff]
      %v1377 = vld [vmem:[#allocation2 + $0x9a] sm:$0xff]
      %v1378 = vld [vmem:[#allocation2 + $0xa2] sm:$0xff]
      %v1379 = vld [vmem:[#allocation2 + $0xaa] sm:$0xff]
      %v1380 = vld [vmem:[#allocation2 + $0xb2] sm:$0xff]
      %v1381 = vld [vmem:[#allocation2 + $0xba] sm:$0xff]
      %v1382 = vld [vmem:[#allocation2 + $0xc2] sm:$0xff]
      %v1383 = vld [vmem:[#allocation2 + $0xca] sm:$0xff]
      %v1384 = vld [vmem:[#allocation2 + $0xd2] sm:$0xff]
      %v1385 = vld [vmem:[#allocation2 + $0xda] sm:$0xff]
      %v1386 = vld [vmem:[#allocation2 + $0xe2] sm:$0xff]
      %v1387 = vld [vmem:[#allocation2 + $0xea] sm:$0xff]
      %v1388 = vld [vmem:[#allocation2 + $0xf2] sm:$0xff]
      %v1389 = vld [vmem:[#allocation2 + $0xfa] sm:$0xff]
      %v1390 = vld [vmem:[#allocation2 + $0x102] sm:$0xff]
      %v1391 = vld [vmem:[#allocation2 + $0x10a] sm:$0xff]
      %v1392 = vld [vmem:[#allocation2 + $0x112] sm:$0xff]
      %v1393 = vld [vmem:[#allocation2 + $0x11a] sm:$0xff]
      %v1394 = vld [vmem:[#allocation2 + $0x122] sm:$0xff]
      %v1395 = vld [vmem:[#allocation2 + $0x12a] sm:$0xff]
      %v1396 = vld [vmem:[%s1 + $0x3] sm:$0x1]
      %v1397 = vld [vmem:[#allocation3] sm:$0xff]
      %v1398 = vld [vmem:[#allocation3 + $0x8] sm:$0xff]
      %v1399 = vld [vmem:[#allocation3 + $0x10] sm:$0xff]
      %v1400 = vld [vmem:[#allocation3 + $0x18] sm:$0xff]
      %v1401 = vld [vmem:[#allocation3 + $0x20] sm:$0xff]
      %v1402 = vld [vmem:[#allocation3 + $0x28] sm:$0xff]
      %v1403 = vld [vmem:[#allocation3 + $0x30] sm:$0xff]
      %v1404 = vld [vmem:[#allocation3 + $0x38] sm:$0xff]
      %v1405 = vld [vmem:[#allocation3 + $0x40] sm:$0xff]
      %v1406 = vld [vmem:[#allocation3 + $0x48] sm:$0xff]
      %v1407 = vld [vmem:[#allocation3 + $0x50] sm:$0xff]
      %v1408 = vld [vmem:[#allocation3 + $0x58] sm:$0xff]
      %v1409 = vld [vmem:[#allocation3 + $0x60] sm:$0xff]
      %v1410 = vld [vmem:[#allocation3 + $0x68] sm:$0xff]
      %v1411 = vld [vmem:[#allocation3 + $0x70] sm:$0xff]
      %v1412 = vld [vmem:[#allocation3 + $0x78] sm:$0xff]
      %v1413 = vld [vmem:[#allocation3 + $0x80] sm:$0xff]
      %v1414 = vld [vmem:[#allocation3 + $0x88] sm:$0xff]
      %v1415 = vld [vmem:[#allocation3 + $0x90] sm:$0xff]
      %v1416 = vld [vmem:[#allocation3 + $0x98] sm:$0xff]
      %v1417 = vld [vmem:[#allocation3 + $0xa0] sm:$0xff]
      %v1418 = vld [vmem:[#allocation3 + $0xa8] sm:$0xff]
      %v1419 = vld [vmem:[#allocation3 + $0xb0] sm:$0xff]
      %v1420 = vld [vmem:[#allocation3 + $0xb8] sm:$0xff]
      %v1421 = vld [vmem:[#allocation3 + $0xc0] sm:$0xff]
      %v1422 = vld [vmem:[#allocation3 + $0xc8] sm:$0xff]
      %v1423 = vld [vmem:[#allocation3 + $0xd0] sm:$0xff]
      %v1424 = vld [vmem:[#allocation3 + $0xd8] sm:$0xff]
      %v1425 = vld [vmem:[#allocation3 + $0xe0] sm:$0xff]
      %v1426 = vld [vmem:[#allocation3 + $0xe8] sm:$0xff]
      %v1427 = vld [vmem:[#allocation3 + $0xf0] sm:$0xff]
      %v1428 = vld [vmem:[#allocation3 + $0xf8] sm:$0xff]
      %v1429 = vld [vmem:[#allocation3 + $0x100] sm:$0xff]
      %v1430 = vld [vmem:[#allocation3 + $0x108] sm:$0xff]
      %v1431 = vld [vmem:[#allocation3 + $0x110] sm:$0xff]
      %v1432 = vld [vmem:[#allocation3 + $0x118] sm:$0xff]
      %1434 = vset.pattern.permute.xlu0 0
      %1435 = vperm.xlu0 %1434, %v1360
      %v1436 = vpop.permute.xlu0 %1435
      %1439 = vset.pattern.permute.xlu0 0
      %1440 = vperm.xlu0 %1439, %v1361
      %v1441 = vpop.permute.xlu0 %1440
      %1444 = vset.pattern.permute.xlu0 0
      %1445 = vperm.xlu0 %1444, %v1362
      %v1446 = vpop.permute.xlu0 %1445
      %1449 = vset.pattern.permute.xlu0 0
      %1450 = vperm.xlu0 %1449, %v1363
      %v1451 = vpop.permute.xlu0 %1450
      %1454 = vset.pattern.permute.xlu0 0
      %1455 = vperm.xlu0 %1454, %v1364
      %v1456 = vpop.permute.xlu0 %1455
      %1459 = vset.pattern.permute.xlu0 0
      %1460 = vperm.xlu0 %1459, %v1365
      %v1461 = vpop.permute.xlu0 %1460
      %1464 = vset.pattern.permute.xlu0 0
      %1465 = vperm.xlu0 %1464, %v1366
      %v1466 = vpop.permute.xlu0 %1465
      %1469 = vset.pattern.permute.xlu0 0
      %1470 = vperm.xlu0 %1469, %v1367
      %v1471 = vpop.permute.xlu0 %1470
      %1474 = vset.pattern.permute.xlu0 0
      %1475 = vperm.xlu0 %1474, %v1368
      %v1476 = vpop.permute.xlu0 %1475
      %1479 = vset.pattern.permute.xlu0 0
      %1480 = vperm.xlu0 %1479, %v1369
      %v1481 = vpop.permute.xlu0 %1480
      %1484 = vset.pattern.permute.xlu0 0
      %1485 = vperm.xlu0 %1484, %v1370
      %v1486 = vpop.permute.xlu0 %1485
      %1489 = vset.pattern.permute.xlu0 0
      %1490 = vperm.xlu0 %1489, %v1371
      %v1491 = vpop.permute.xlu0 %1490
      %1494 = vset.pattern.permute.xlu0 0
      %1495 = vperm.xlu0 %1494, %v1372
      %v1496 = vpop.permute.xlu0 %1495
      %1499 = vset.pattern.permute.xlu0 0
      %1500 = vperm.xlu0 %1499, %v1373
      %v1501 = vpop.permute.xlu0 %1500
      %1504 = vset.pattern.permute.xlu0 0
      %1505 = vperm.xlu0 %1504, %v1374
      %v1506 = vpop.permute.xlu0 %1505
      %1509 = vset.pattern.permute.xlu0 0
      %1510 = vperm.xlu0 %1509, %v1375
      %v1511 = vpop.permute.xlu0 %1510
      %1514 = vset.pattern.permute.xlu0 0
      %1515 = vperm.xlu0 %1514, %v1376
      %v1516 = vpop.permute.xlu0 %1515
      %1519 = vset.pattern.permute.xlu0 0
      %1520 = vperm.xlu0 %1519, %v1377
      %v1521 = vpop.permute.xlu0 %1520
      %1524 = vset.pattern.permute.xlu0 0
      %1525 = vperm.xlu0 %1524, %v1378
      %v1526 = vpop.permute.xlu0 %1525
      %1529 = vset.pattern.permute.xlu0 0
      %1530 = vperm.xlu0 %1529, %v1379
      %v1531 = vpop.permute.xlu0 %1530
      %1534 = vset.pattern.permute.xlu0 0
      %1535 = vperm.xlu0 %1534, %v1380
      %v1536 = vpop.permute.xlu0 %1535
      %1539 = vset.pattern.permute.xlu0 0
      %1540 = vperm.xlu0 %1539, %v1381
      %v1541 = vpop.permute.xlu0 %1540
      %1544 = vset.pattern.permute.xlu0 0
      %1545 = vperm.xlu0 %1544, %v1382
      %v1546 = vpop.permute.xlu0 %1545
      %1549 = vset.pattern.permute.xlu0 0
      %1550 = vperm.xlu0 %1549, %v1383
      %v1551 = vpop.permute.xlu0 %1550
      %1554 = vset.pattern.permute.xlu0 0
      %1555 = vperm.xlu0 %1554, %v1384
      %v1556 = vpop.permute.xlu0 %1555
      %1559 = vset.pattern.permute.xlu0 0
      %1560 = vperm.xlu0 %1559, %v1385
      %v1561 = vpop.permute.xlu0 %1560
      %1564 = vset.pattern.permute.xlu0 0
      %1565 = vperm.xlu0 %1564, %v1386
      %v1566 = vpop.permute.xlu0 %1565
      %1569 = vset.pattern.permute.xlu0 0
      %1570 = vperm.xlu0 %1569, %v1387
      %v1571 = vpop.permute.xlu0 %1570
      %1574 = vset.pattern.permute.xlu0 0
      %1575 = vperm.xlu0 %1574, %v1388
      %v1576 = vpop.permute.xlu0 %1575
      %1579 = vset.pattern.permute.xlu0 0
      %1580 = vperm.xlu0 %1579, %v1389
      %v1581 = vpop.permute.xlu0 %1580
      %1584 = vset.pattern.permute.xlu0 0
      %1585 = vperm.xlu0 %1584, %v1390
      %v1586 = vpop.permute.xlu0 %1585
      %1589 = vset.pattern.permute.xlu0 0
      %1590 = vperm.xlu0 %1589, %v1391
      %v1591 = vpop.permute.xlu0 %1590
      %1594 = vset.pattern.permute.xlu0 0
      %1595 = vperm.xlu0 %1594, %v1392
      %v1596 = vpop.permute.xlu0 %1595
      %1599 = vset.pattern.permute.xlu0 0
      %1600 = vperm.xlu0 %1599, %v1393
      %v1601 = vpop.permute.xlu0 %1600
      %1604 = vset.pattern.permute.xlu0 0
      %1605 = vperm.xlu0 %1604, %v1394
      %v1606 = vpop.permute.xlu0 %1605
      %1609 = vset.pattern.permute.xlu0 0
      %1610 = vperm.xlu0 %1609, %v1395
      %v1611 = vpop.permute.xlu0 %1610
      %v1613 = vlaneseq
      %v1614 = vshrl.u32 %v1613, 7
      %v1615 = vsub.s32 0, %v1614
      %v1616 = vrot.slane %v1396, %v1615
      %v1617 = vmul.f32 %v1436, %v1616
      %v1618 = vmul.f32 %v1441, %v1616
      %v1619 = vmul.f32 %v1446, %v1616
      %v1620 = vmul.f32 %v1451, %v1616
      %v1621 = vmul.f32 %v1456, %v1616
      %v1622 = vmul.f32 %v1461, %v1616
      %v1623 = vmul.f32 %v1466, %v1616
      %v1624 = vmul.f32 %v1471, %v1616
      %v1625 = vmul.f32 %v1476, %v1616
      %v1626 = vmul.f32 %v1481, %v1616
      %v1627 = vmul.f32 %v1486, %v1616
      %v1628 = vmul.f32 %v1491, %v1616
      %v1629 = vmul.f32 %v1496, %v1616
      %v1630 = vmul.f32 %v1501, %v1616
      %v1631 = vmul.f32 %v1506, %v1616
      %v1632 = vmul.f32 %v1511, %v1616
      %v1633 = vmul.f32 %v1516, %v1616
      %v1634 = vmul.f32 %v1521, %v1616
      %v1635 = vmul.f32 %v1526, %v1616
      %v1636 = vmul.f32 %v1531, %v1616
      %v1637 = vmul.f32 %v1536, %v1616
      %v1638 = vmul.f32 %v1541, %v1616
      %v1639 = vmul.f32 %v1546, %v1616
      %v1640 = vmul.f32 %v1551, %v1616
      %v1641 = vmul.f32 %v1556, %v1616
      %v1642 = vmul.f32 %v1561, %v1616
      %v1643 = vmul.f32 %v1566, %v1616
      %v1644 = vmul.f32 %v1571, %v1616
      %v1645 = vmul.f32 %v1576, %v1616
      %v1646 = vmul.f32 %v1581, %v1616
      %v1647 = vmul.f32 %v1586, %v1616
      %v1648 = vmul.f32 %v1591, %v1616
      %v1649 = vmul.f32 %v1596, %v1616
      %v1650 = vmul.f32 %v1601, %v1616
      %v1651 = vmul.f32 %v1606, %v1616
      %v1652 = vmul.f32 %v1611, %v1616
      %v1653 = vadd.f32 %v1397, %v1617
      %v1654 = vadd.f32 %v1398, %v1618
      %v1655 = vadd.f32 %v1399, %v1619
      %v1656 = vadd.f32 %v1400, %v1620
      %v1657 = vadd.f32 %v1401, %v1621
      %v1658 = vadd.f32 %v1402, %v1622
      %v1659 = vadd.f32 %v1403, %v1623
      %v1660 = vadd.f32 %v1404, %v1624
      %v1661 = vadd.f32 %v1405, %v1625
      %v1662 = vadd.f32 %v1406, %v1626
      %v1663 = vadd.f32 %v1407, %v1627
      %v1664 = vadd.f32 %v1408, %v1628
      %v1665 = vadd.f32 %v1409, %v1629
      %v1666 = vadd.f32 %v1410, %v1630
      %v1667 = vadd.f32 %v1411, %v1631
      %v1668 = vadd.f32 %v1412, %v1632
      %v1669 = vadd.f32 %v1413, %v1633
      %v1670 = vadd.f32 %v1414, %v1634
      %v1671 = vadd.f32 %v1415, %v1635
      %v1672 = vadd.f32 %v1416, %v1636
      %v1673 = vadd.f32 %v1417, %v1637
      %v1674 = vadd.f32 %v1418, %v1638
      %v1675 = vadd.f32 %v1419, %v1639
      %v1676 = vadd.f32 %v1420, %v1640
      %v1677 = vadd.f32 %v1421, %v1641
      %v1678 = vadd.f32 %v1422, %v1642
      %v1679 = vadd.f32 %v1423, %v1643
      %v1680 = vadd.f32 %v1424, %v1644
      %v1681 = vadd.f32 %v1425, %v1645
      %v1682 = vadd.f32 %v1426, %v1646
      %v1683 = vadd.f32 %v1427, %v1647
      %v1684 = vadd.f32 %v1428, %v1648
      %v1685 = vadd.f32 %v1429, %v1649
      %v1686 = vadd.f32 %v1430, %v1650
      %v1687 = vadd.f32 %v1431, %v1651
      %v1688 = vadd.f32 %v1432, %v1652
      %1689 = vst.msk [vmem:[#allocation3] sm:$0xff] %vm228, %v1653
      %1690 = vst.msk [vmem:[#allocation3 + $0x8] sm:$0xff] %vm228, %v1654
      %1691 = vst.msk [vmem:[#allocation3 + $0x10] sm:$0xff] %vm228, %v1655
      %1692 = vst.msk [vmem:[#allocation3 + $0x18] sm:$0xff] %vm228, %v1656
      %1693 = vst.msk [vmem:[#allocation3 + $0x20] sm:$0xff] %vm228, %v1657
      %1694 = vst.msk [vmem:[#allocation3 + $0x28] sm:$0xff] %vm228, %v1658
      %1695 = vst.msk [vmem:[#allocation3 + $0x30] sm:$0xff] %vm228, %v1659
      %1696 = vst.msk [vmem:[#allocation3 + $0x38] sm:$0xff] %vm228, %v1660
      %1697 = vst.msk [vmem:[#allocation3 + $0x40] sm:$0xff] %vm228, %v1661
      %1698 = vst.msk [vmem:[#allocation3 + $0x48] sm:$0xff] %vm228, %v1662
      %1699 = vst.msk [vmem:[#allocation3 + $0x50] sm:$0xff] %vm228, %v1663
      %1700 = vst.msk [vmem:[#allocation3 + $0x58] sm:$0xff] %vm228, %v1664
      %1701 = vst.msk [vmem:[#allocation3 + $0x60] sm:$0xff] %vm228, %v1665
      %1702 = vst.msk [vmem:[#allocation3 + $0x68] sm:$0xff] %vm228, %v1666
      %1703 = vst.msk [vmem:[#allocation3 + $0x70] sm:$0xff] %vm228, %v1667
      %1704 = vst.msk [vmem:[#allocation3 + $0x78] sm:$0xff] %vm228, %v1668
      %1705 = vst.msk [vmem:[#allocation3 + $0x80] sm:$0xff] %vm228, %v1669
      %1706 = vst.msk [vmem:[#allocation3 + $0x88] sm:$0xff] %vm228, %v1670
      %1707 = vst.msk [vmem:[#allocation3 + $0x90] sm:$0xff] %vm228, %v1671
      %1708 = vst.msk [vmem:[#allocation3 + $0x98] sm:$0xff] %vm228, %v1672
      %1709 = vst.msk [vmem:[#allocation3 + $0xa0] sm:$0xff] %vm228, %v1673
      %1710 = vst.msk [vmem:[#allocation3 + $0xa8] sm:$0xff] %vm228, %v1674
      %1711 = vst.msk [vmem:[#allocation3 + $0xb0] sm:$0xff] %vm228, %v1675
      %1712 = vst.msk [vmem:[#allocation3 + $0xb8] sm:$0xff] %vm228, %v1676
      %1713 = vst.msk [vmem:[#allocation3 + $0xc0] sm:$0xff] %vm228, %v1677
      %1714 = vst.msk [vmem:[#allocation3 + $0xc8] sm:$0xff] %vm228, %v1678
      %1715 = vst.msk [vmem:[#allocation3 + $0xd0] sm:$0xff] %vm228, %v1679
      %1716 = vst.msk [vmem:[#allocation3 + $0xd8] sm:$0xff] %vm228, %v1680
      %1717 = vst.msk [vmem:[#allocation3 + $0xe0] sm:$0xff] %vm228, %v1681
      %1718 = vst.msk [vmem:[#allocation3 + $0xe8] sm:$0xff] %vm228, %v1682
      %1719 = vst.msk [vmem:[#allocation3 + $0xf0] sm:$0xff] %vm228, %v1683
      %1720 = vst.msk [vmem:[#allocation3 + $0xf8] sm:$0xff] %vm228, %v1684
      %1721 = vst.msk [vmem:[#allocation3 + $0x100] sm:$0xff] %vm228, %v1685
      %1722 = vst.msk [vmem:[#allocation3 + $0x108] sm:$0xff] %vm228, %v1686
      %1723 = vst.msk [vmem:[#allocation3 + $0x110] sm:$0xff] %vm228, %v1687
      %1724 = vst.msk [vmem:[#allocation3 + $0x118] sm:$0xff] %vm228, %v1688
      %v1725 = vld [vmem:[#allocation2 + $0x13] sm:$0xff]
      %v1726 = vld [vmem:[#allocation2 + $0x1b] sm:$0xff]
      %v1727 = vld [vmem:[#allocation2 + $0x23] sm:$0xff]
      %v1728 = vld [vmem:[#allocation2 + $0x2b] sm:$0xff]
      %v1729 = vld [vmem:[#allocation2 + $0x33] sm:$0xff]
      %v1730 = vld [vmem:[#allocation2 + $0x3b] sm:$0xff]
      %v1731 = vld [vmem:[#allocation2 + $0x43] sm:$0xff]
      %v1732 = vld [vmem:[#allocation2 + $0x4b] sm:$0xff]
      %v1733 = vld [vmem:[#allocation2 + $0x53] sm:$0xff]
      %v1734 = vld [vmem:[#allocation2 + $0x5b] sm:$0xff]
      %v1735 = vld [vmem:[#allocation2 + $0x63] sm:$0xff]
      %v1736 = vld [vmem:[#allocation2 + $0x6b] sm:$0xff]
      %v1737 = vld [vmem:[#allocation2 + $0x73] sm:$0xff]
      %v1738 = vld [vmem:[#allocation2 + $0x7b] sm:$0xff]
      %v1739 = vld [vmem:[#allocation2 + $0x83] sm:$0xff]
      %v1740 = vld [vmem:[#allocation2 + $0x8b] sm:$0xff]
      %v1741 = vld [vmem:[#allocation2 + $0x93] sm:$0xff]
      %v1742 = vld [vmem:[#allocation2 + $0x9b] sm:$0xff]
      %v1743 = vld [vmem:[#allocation2 + $0xa3] sm:$0xff]
      %v1744 = vld [vmem:[#allocation2 + $0xab] sm:$0xff]
      %v1745 = vld [vmem:[#allocation2 + $0xb3] sm:$0xff]
      %v1746 = vld [vmem:[#allocation2 + $0xbb] sm:$0xff]
      %v1747 = vld [vmem:[#allocation2 + $0xc3] sm:$0xff]
      %v1748 = vld [vmem:[#allocation2 + $0xcb] sm:$0xff]
      %v1749 = vld [vmem:[#allocation2 + $0xd3] sm:$0xff]
      %v1750 = vld [vmem:[#allocation2 + $0xdb] sm:$0xff]
      %v1751 = vld [vmem:[#allocation2 + $0xe3] sm:$0xff]
      %v1752 = vld [vmem:[#allocation2 + $0xeb] sm:$0xff]
      %v1753 = vld [vmem:[#allocation2 + $0xf3] sm:$0xff]
      %v1754 = vld [vmem:[#allocation2 + $0xfb] sm:$0xff]
      %v1755 = vld [vmem:[#allocation2 + $0x103] sm:$0xff]
      %v1756 = vld [vmem:[#allocation2 + $0x10b] sm:$0xff]
      %v1757 = vld [vmem:[#allocation2 + $0x113] sm:$0xff]
      %v1758 = vld [vmem:[#allocation2 + $0x11b] sm:$0xff]
      %v1759 = vld [vmem:[#allocation2 + $0x123] sm:$0xff]
      %v1760 = vld [vmem:[#allocation2 + $0x12b] sm:$0xff]
      %v1761 = vld [vmem:[%s1 + $0x4] sm:$0x1]
      %v1762 = vld [vmem:[#allocation3] sm:$0xff]
      %v1763 = vld [vmem:[#allocation3 + $0x8] sm:$0xff]
      %v1764 = vld [vmem:[#allocation3 + $0x10] sm:$0xff]
      %v1765 = vld [vmem:[#allocation3 + $0x18] sm:$0xff]
      %v1766 = vld [vmem:[#allocation3 + $0x20] sm:$0xff]
      %v1767 = vld [vmem:[#allocation3 + $0x28] sm:$0xff]
      %v1768 = vld [vmem:[#allocation3 + $0x30] sm:$0xff]
      %v1769 = vld [vmem:[#allocation3 + $0x38] sm:$0xff]
      %v1770 = vld [vmem:[#allocation3 + $0x40] sm:$0xff]
      %v1771 = vld [vmem:[#allocation3 + $0x48] sm:$0xff]
      %v1772 = vld [vmem:[#allocation3 + $0x50] sm:$0xff]
      %v1773 = vld [vmem:[#allocation3 + $0x58] sm:$0xff]
      %v1774 = vld [vmem:[#allocation3 + $0x60] sm:$0xff]
      %v1775 = vld [vmem:[#allocation3 + $0x68] sm:$0xff]
      %v1776 = vld [vmem:[#allocation3 + $0x70] sm:$0xff]
      %v1777 = vld [vmem:[#allocation3 + $0x78] sm:$0xff]
      %v1778 = vld [vmem:[#allocation3 + $0x80] sm:$0xff]
      %v1779 = vld [vmem:[#allocation3 + $0x88] sm:$0xff]
      %v1780 = vld [vmem:[#allocation3 + $0x90] sm:$0xff]
      %v1781 = vld [vmem:[#allocation3 + $0x98] sm:$0xff]
      %v1782 = vld [vmem:[#allocation3 + $0xa0] sm:$0xff]
      %v1783 = vld [vmem:[#allocation3 + $0xa8] sm:$0xff]
      %v1784 = vld [vmem:[#allocation3 + $0xb0] sm:$0xff]
      %v1785 = vld [vmem:[#allocation3 + $0xb8] sm:$0xff]
      %v1786 = vld [vmem:[#allocation3 + $0xc0] sm:$0xff]
      %v1787 = vld [vmem:[#allocation3 + $0xc8] sm:$0xff]
      %v1788 = vld [vmem:[#allocation3 + $0xd0] sm:$0xff]
      %v1789 = vld [vmem:[#allocation3 + $0xd8] sm:$0xff]
      %v1790 = vld [vmem:[#allocation3 + $0xe0] sm:$0xff]
      %v1791 = vld [vmem:[#allocation3 + $0xe8] sm:$0xff]
      %v1792 = vld [vmem:[#allocation3 + $0xf0] sm:$0xff]
      %v1793 = vld [vmem:[#allocation3 + $0xf8] sm:$0xff]
      %v1794 = vld [vmem:[#allocation3 + $0x100] sm:$0xff]
      %v1795 = vld [vmem:[#allocation3 + $0x108] sm:$0xff]
      %v1796 = vld [vmem:[#allocation3 + $0x110] sm:$0xff]
      %v1797 = vld [vmem:[#allocation3 + $0x118] sm:$0xff]
      %1799 = vset.pattern.permute.xlu0 0
      %1800 = vperm.xlu0 %1799, %v1725
      %v1801 = vpop.permute.xlu0 %1800
      %1804 = vset.pattern.permute.xlu0 0
      %1805 = vperm.xlu0 %1804, %v1726
      %v1806 = vpop.permute.xlu0 %1805
      %1809 = vset.pattern.permute.xlu0 0
      %1810 = vperm.xlu0 %1809, %v1727
      %v1811 = vpop.permute.xlu0 %1810
      %1814 = vset.pattern.permute.xlu0 0
      %1815 = vperm.xlu0 %1814, %v1728
      %v1816 = vpop.permute.xlu0 %1815
      %1819 = vset.pattern.permute.xlu0 0
      %1820 = vperm.xlu0 %1819, %v1729
      %v1821 = vpop.permute.xlu0 %1820
      %1824 = vset.pattern.permute.xlu0 0
      %1825 = vperm.xlu0 %1824, %v1730
      %v1826 = vpop.permute.xlu0 %1825
      %1829 = vset.pattern.permute.xlu0 0
      %1830 = vperm.xlu0 %1829, %v1731
      %v1831 = vpop.permute.xlu0 %1830
      %1834 = vset.pattern.permute.xlu0 0
      %1835 = vperm.xlu0 %1834, %v1732
      %v1836 = vpop.permute.xlu0 %1835
      %1839 = vset.pattern.permute.xlu0 0
      %1840 = vperm.xlu0 %1839, %v1733
      %v1841 = vpop.permute.xlu0 %1840
      %1844 = vset.pattern.permute.xlu0 0
      %1845 = vperm.xlu0 %1844, %v1734
      %v1846 = vpop.permute.xlu0 %1845
      %1849 = vset.pattern.permute.xlu0 0
      %1850 = vperm.xlu0 %1849, %v1735
      %v1851 = vpop.permute.xlu0 %1850
      %1854 = vset.pattern.permute.xlu0 0
      %1855 = vperm.xlu0 %1854, %v1736
      %v1856 = vpop.permute.xlu0 %1855
      %1859 = vset.pattern.permute.xlu0 0
      %1860 = vperm.xlu0 %1859, %v1737
      %v1861 = vpop.permute.xlu0 %1860
      %1864 = vset.pattern.permute.xlu0 0
      %1865 = vperm.xlu0 %1864, %v1738
      %v1866 = vpop.permute.xlu0 %1865
      %1869 = vset.pattern.permute.xlu0 0
      %1870 = vperm.xlu0 %1869, %v1739
      %v1871 = vpop.permute.xlu0 %1870
      %1874 = vset.pattern.permute.xlu0 0
      %1875 = vperm.xlu0 %1874, %v1740
      %v1876 = vpop.permute.xlu0 %1875
      %1879 = vset.pattern.permute.xlu0 0
      %1880 = vperm.xlu0 %1879, %v1741
      %v1881 = vpop.permute.xlu0 %1880
      %1884 = vset.pattern.permute.xlu0 0
      %1885 = vperm.xlu0 %1884, %v1742
      %v1886 = vpop.permute.xlu0 %1885
      %1889 = vset.pattern.permute.xlu0 0
      %1890 = vperm.xlu0 %1889, %v1743
      %v1891 = vpop.permute.xlu0 %1890
      %1894 = vset.pattern.permute.xlu0 0
      %1895 = vperm.xlu0 %1894, %v1744
      %v1896 = vpop.permute.xlu0 %1895
      %1899 = vset.pattern.permute.xlu0 0
      %1900 = vperm.xlu0 %1899, %v1745
      %v1901 = vpop.permute.xlu0 %1900
      %1904 = vset.pattern.permute.xlu0 0
      %1905 = vperm.xlu0 %1904, %v1746
      %v1906 = vpop.permute.xlu0 %1905
      %1909 = vset.pattern.permute.xlu0 0
      %1910 = vperm.xlu0 %1909, %v1747
      %v1911 = vpop.permute.xlu0 %1910
      %1914 = vset.pattern.permute.xlu0 0
      %1915 = vperm.xlu0 %1914, %v1748
      %v1916 = vpop.permute.xlu0 %1915
      %1919 = vset.pattern.permute.xlu0 0
      %1920 = vperm.xlu0 %1919, %v1749
      %v1921 = vpop.permute.xlu0 %1920
      %1924 = vset.pattern.permute.xlu0 0
      %1925 = vperm.xlu0 %1924, %v1750
      %v1926 = vpop.permute.xlu0 %1925
      %1929 = vset.pattern.permute.xlu0 0
      %1930 = vperm.xlu0 %1929, %v1751
      %v1931 = vpop.permute.xlu0 %1930
      %1934 = vset.pattern.permute.xlu0 0
      %1935 = vperm.xlu0 %1934, %v1752
      %v1936 = vpop.permute.xlu0 %1935
      %1939 = vset.pattern.permute.xlu0 0
      %1940 = vperm.xlu0 %1939, %v1753
      %v1941 = vpop.permute.xlu0 %1940
      %1944 = vset.pattern.permute.xlu0 0
      %1945 = vperm.xlu0 %1944, %v1754
      %v1946 = vpop.permute.xlu0 %1945
      %1949 = vset.pattern.permute.xlu0 0
      %1950 = vperm.xlu0 %1949, %v1755
      %v1951 = vpop.permute.xlu0 %1950
      %1954 = vset.pattern.permute.xlu0 0
      %1955 = vperm.xlu0 %1954, %v1756
      %v1956 = vpop.permute.xlu0 %1955
      %1959 = vset.pattern.permute.xlu0 0
      %1960 = vperm.xlu0 %1959, %v1757
      %v1961 = vpop.permute.xlu0 %1960
      %1964 = vset.pattern.permute.xlu0 0
      %1965 = vperm.xlu0 %1964, %v1758
      %v1966 = vpop.permute.xlu0 %1965
      %1969 = vset.pattern.permute.xlu0 0
      %1970 = vperm.xlu0 %1969, %v1759
      %v1971 = vpop.permute.xlu0 %1970
      %1974 = vset.pattern.permute.xlu0 0
      %1975 = vperm.xlu0 %1974, %v1760
      %v1976 = vpop.permute.xlu0 %1975
      %v1978 = vlaneseq
      %v1979 = vshrl.u32 %v1978, 7
      %v1980 = vsub.s32 0, %v1979
      %v1981 = vrot.slane %v1761, %v1980
      %v1982 = vmul.f32 %v1801, %v1981
      %v1983 = vmul.f32 %v1806, %v1981
      %v1984 = vmul.f32 %v1811, %v1981
      %v1985 = vmul.f32 %v1816, %v1981
      %v1986 = vmul.f32 %v1821, %v1981
      %v1987 = vmul.f32 %v1826, %v1981
      %v1988 = vmul.f32 %v1831, %v1981
      %v1989 = vmul.f32 %v1836, %v1981
      %v1990 = vmul.f32 %v1841, %v1981
      %v1991 = vmul.f32 %v1846, %v1981
      %v1992 = vmul.f32 %v1851, %v1981
      %v1993 = vmul.f32 %v1856, %v1981
      %v1994 = vmul.f32 %v1861, %v1981
      %v1995 = vmul.f32 %v1866, %v1981
      %v1996 = vmul.f32 %v1871, %v1981
      %v1997 = vmul.f32 %v1876, %v1981
      %v1998 = vmul.f32 %v1881, %v1981
      %v1999 = vmul.f32 %v1886, %v1981
      %v2000 = vmul.f32 %v1891, %v1981
      %v2001 = vmul.f32 %v1896, %v1981
      %v2002 = vmul.f32 %v1901, %v1981
      %v2003 = vmul.f32 %v1906, %v1981
      %v2004 = vmul.f32 %v1911, %v1981
      %v2005 = vmul.f32 %v1916, %v1981
      %v2006 = vmul.f32 %v1921, %v1981
      %v2007 = vmul.f32 %v1926, %v1981
      %v2008 = vmul.f32 %v1931, %v1981
      %v2009 = vmul.f32 %v1936, %v1981
      %v2010 = vmul.f32 %v1941, %v1981
      %v2011 = vmul.f32 %v1946, %v1981
      %v2012 = vmul.f32 %v1951, %v1981
      %v2013 = vmul.f32 %v1956, %v1981
      %v2014 = vmul.f32 %v1961, %v1981
      %v2015 = vmul.f32 %v1966, %v1981
      %v2016 = vmul.f32 %v1971, %v1981
      %v2017 = vmul.f32 %v1976, %v1981
      %v2018 = vadd.f32 %v1762, %v1982
      %v2019 = vadd.f32 %v1763, %v1983
      %v2020 = vadd.f32 %v1764, %v1984
      %v2021 = vadd.f32 %v1765, %v1985
      %v2022 = vadd.f32 %v1766, %v1986
      %v2023 = vadd.f32 %v1767, %v1987
      %v2024 = vadd.f32 %v1768, %v1988
      %v2025 = vadd.f32 %v1769, %v1989
      %v2026 = vadd.f32 %v1770, %v1990
      %v2027 = vadd.f32 %v1771, %v1991
      %v2028 = vadd.f32 %v1772, %v1992
      %v2029 = vadd.f32 %v1773, %v1993
      %v2030 = vadd.f32 %v1774, %v1994
      %v2031 = vadd.f32 %v1775, %v1995
      %v2032 = vadd.f32 %v1776, %v1996
      %v2033 = vadd.f32 %v1777, %v1997
      %v2034 = vadd.f32 %v1778, %v1998
      %v2035 = vadd.f32 %v1779, %v1999
      %v2036 = vadd.f32 %v1780, %v2000
      %v2037 = vadd.f32 %v1781, %v2001
      %v2038 = vadd.f32 %v1782, %v2002
      %v2039 = vadd.f32 %v1783, %v2003
      %v2040 = vadd.f32 %v1784, %v2004
      %v2041 = vadd.f32 %v1785, %v2005
      %v2042 = vadd.f32 %v1786, %v2006
      %v2043 = vadd.f32 %v1787, %v2007
      %v2044 = vadd.f32 %v1788, %v2008
      %v2045 = vadd.f32 %v1789, %v2009
      %v2046 = vadd.f32 %v1790, %v2010
      %v2047 = vadd.f32 %v1791, %v2011
      %v2048 = vadd.f32 %v1792, %v2012
      %v2049 = vadd.f32 %v1793, %v2013
      %v2050 = vadd.f32 %v1794, %v2014
      %v2051 = vadd.f32 %v1795, %v2015
      %v2052 = vadd.f32 %v1796, %v2016
      %v2053 = vadd.f32 %v1797, %v2017
      %2054 = vst.msk [vmem:[#allocation3] sm:$0xff] %vm228, %v2018
      %2055 = vst.msk [vmem:[#allocation3 + $0x8] sm:$0xff] %vm228, %v2019
      %2056 = vst.msk [vmem:[#allocation3 + $0x10] sm:$0xff] %vm228, %v2020
      %2057 = vst.msk [vmem:[#allocation3 + $0x18] sm:$0xff] %vm228, %v2021
      %2058 = vst.msk [vmem:[#allocation3 + $0x20] sm:$0xff] %vm228, %v2022
      %2059 = vst.msk [vmem:[#allocation3 + $0x28] sm:$0xff] %vm228, %v2023
      %2060 = vst.msk [vmem:[#allocation3 + $0x30] sm:$0xff] %vm228, %v2024
      %2061 = vst.msk [vmem:[#allocation3 + $0x38] sm:$0xff] %vm228, %v2025
      %2062 = vst.msk [vmem:[#allocation3 + $0x40] sm:$0xff] %vm228, %v2026
      %2063 = vst.msk [vmem:[#allocation3 + $0x48] sm:$0xff] %vm228, %v2027
      %2064 = vst.msk [vmem:[#allocation3 + $0x50] sm:$0xff] %vm228, %v2028
      %2065 = vst.msk [vmem:[#allocation3 + $0x58] sm:$0xff] %vm228, %v2029
      %2066 = vst.msk [vmem:[#allocation3 + $0x60] sm:$0xff] %vm228, %v2030
      %2067 = vst.msk [vmem:[#allocation3 + $0x68] sm:$0xff] %vm228, %v2031
      %2068 = vst.msk [vmem:[#allocation3 + $0x70] sm:$0xff] %vm228, %v2032
      %2069 = vst.msk [vmem:[#allocation3 + $0x78] sm:$0xff] %vm228, %v2033
      %2070 = vst.msk [vmem:[#allocation3 + $0x80] sm:$0xff] %vm228, %v2034
      %2071 = vst.msk [vmem:[#allocation3 + $0x88] sm:$0xff] %vm228, %v2035
      %2072 = vst.msk [vmem:[#allocation3 + $0x90] sm:$0xff] %vm228, %v2036
      %2073 = vst.msk [vmem:[#allocation3 + $0x98] sm:$0xff] %vm228, %v2037
      %2074 = vst.msk [vmem:[#allocation3 + $0xa0] sm:$0xff] %vm228, %v2038
      %2075 = vst.msk [vmem:[#allocation3 + $0xa8] sm:$0xff] %vm228, %v2039
      %2076 = vst.msk [vmem:[#allocation3 + $0xb0] sm:$0xff] %vm228, %v2040
      %2077 = vst.msk [vmem:[#allocation3 + $0xb8] sm:$0xff] %vm228, %v2041
      %2078 = vst.msk [vmem:[#allocation3 + $0xc0] sm:$0xff] %vm228, %v2042
      %2079 = vst.msk [vmem:[#allocation3 + $0xc8] sm:$0xff] %vm228, %v2043
      %2080 = vst.msk [vmem:[#allocation3 + $0xd0] sm:$0xff] %vm228, %v2044
      %2081 = vst.msk [vmem:[#allocation3 + $0xd8] sm:$0xff] %vm228, %v2045
      %2082 = vst.msk [vmem:[#allocation3 + $0xe0] sm:$0xff] %vm228, %v2046
      %2083 = vst.msk [vmem:[#allocation3 + $0xe8] sm:$0xff] %vm228, %v2047
      %2084 = vst.msk [vmem:[#allocation3 + $0xf0] sm:$0xff] %vm228, %v2048
      %2085 = vst.msk [vmem:[#allocation3 + $0xf8] sm:$0xff] %vm228, %v2049
      %2086 = vst.msk [vmem:[#allocation3 + $0x100] sm:$0xff] %vm228, %v2050
      %2087 = vst.msk [vmem:[#allocation3 + $0x108] sm:$0xff] %vm228, %v2051
      %2088 = vst.msk [vmem:[#allocation3 + $0x110] sm:$0xff] %vm228, %v2052
      %2089 = vst.msk [vmem:[#allocation3 + $0x118] sm:$0xff] %vm228, %v2053
      %v2090 = vld [vmem:[#allocation2 + $0x14] sm:$0xff]
      %v2091 = vld [vmem:[#allocation2 + $0x1c] sm:$0xff]
      %v2092 = vld [vmem:[#allocation2 + $0x24] sm:$0xff]
      %v2093 = vld [vmem:[#allocation2 + $0x2c] sm:$0xff]
      %v2094 = vld [vmem:[#allocation2 + $0x34] sm:$0xff]
      %v2095 = vld [vmem:[#allocation2 + $0x3c] sm:$0xff]
      %v2096 = vld [vmem:[#allocation2 + $0x44] sm:$0xff]
      %v2097 = vld [vmem:[#allocation2 + $0x4c] sm:$0xff]
      %v2098 = vld [vmem:[#allocation2 + $0x54] sm:$0xff]
      %v2099 = vld [vmem:[#allocation2 + $0x5c] sm:$0xff]
      %v2100 = vld [vmem:[#allocation2 + $0x64] sm:$0xff]
      %v2101 = vld [vmem:[#allocation2 + $0x6c] sm:$0xff]
      %v2102 = vld [vmem:[#allocation2 + $0x74] sm:$0xff]
      %v2103 = vld [vmem:[#allocation2 + $0x7c] sm:$0xff]
      %v2104 = vld [vmem:[#allocation2 + $0x84] sm:$0xff]
      %v2105 = vld [vmem:[#allocation2 + $0x8c] sm:$0xff]
      %v2106 = vld [vmem:[#allocation2 + $0x94] sm:$0xff]
      %v2107 = vld [vmem:[#allocation2 + $0x9c] sm:$0xff]
      %v2108 = vld [vmem:[#allocation2 + $0xa4] sm:$0xff]
      %v2109 = vld [vmem:[#allocation2 + $0xac] sm:$0xff]
      %v2110 = vld [vmem:[#allocation2 + $0xb4] sm:$0xff]
      %v2111 = vld [vmem:[#allocation2 + $0xbc] sm:$0xff]
      %v2112 = vld [vmem:[#allocation2 + $0xc4] sm:$0xff]
      %v2113 = vld [vmem:[#allocation2 + $0xcc] sm:$0xff]
      %v2114 = vld [vmem:[#allocation2 + $0xd4] sm:$0xff]
      %v2115 = vld [vmem:[#allocation2 + $0xdc] sm:$0xff]
      %v2116 = vld [vmem:[#allocation2 + $0xe4] sm:$0xff]
      %v2117 = vld [vmem:[#allocation2 + $0xec] sm:$0xff]
      %v2118 = vld [vmem:[#allocation2 + $0xf4] sm:$0xff]
      %v2119 = vld [vmem:[#allocation2 + $0xfc] sm:$0xff]
      %v2120 = vld [vmem:[#allocation2 + $0x104] sm:$0xff]
      %v2121 = vld [vmem:[#allocation2 + $0x10c] sm:$0xff]
      %v2122 = vld [vmem:[#allocation2 + $0x114] sm:$0xff]
      %v2123 = vld [vmem:[#allocation2 + $0x11c] sm:$0xff]
      %v2124 = vld [vmem:[#allocation2 + $0x124] sm:$0xff]
      %v2125 = vld [vmem:[#allocation2 + $0x12c] sm:$0xff]
      %v2126 = vld [vmem:[%s1 + $0x5] sm:$0x1]
      %v2127 = vld [vmem:[#allocation3] sm:$0xff]
      %v2128 = vld [vmem:[#allocation3 + $0x8] sm:$0xff]
      %v2129 = vld [vmem:[#allocation3 + $0x10] sm:$0xff]
      %v2130 = vld [vmem:[#allocation3 + $0x18] sm:$0xff]
      %v2131 = vld [vmem:[#allocation3 + $0x20] sm:$0xff]
      %v2132 = vld [vmem:[#allocation3 + $0x28] sm:$0xff]
      %v2133 = vld [vmem:[#allocation3 + $0x30] sm:$0xff]
      %v2134 = vld [vmem:[#allocation3 + $0x38] sm:$0xff]
      %v2135 = vld [vmem:[#allocation3 + $0x40] sm:$0xff]
      %v2136 = vld [vmem:[#allocation3 + $0x48] sm:$0xff]
      %v2137 = vld [vmem:[#allocation3 + $0x50] sm:$0xff]
      %v2138 = vld [vmem:[#allocation3 + $0x58] sm:$0xff]
      %v2139 = vld [vmem:[#allocation3 + $0x60] sm:$0xff]
      %v2140 = vld [vmem:[#allocation3 + $0x68] sm:$0xff]
      %v2141 = vld [vmem:[#allocation3 + $0x70] sm:$0xff]
      %v2142 = vld [vmem:[#allocation3 + $0x78] sm:$0xff]
      %v2143 = vld [vmem:[#allocation3 + $0x80] sm:$0xff]
      %v2144 = vld [vmem:[#allocation3 + $0x88] sm:$0xff]
      %v2145 = vld [vmem:[#allocation3 + $0x90] sm:$0xff]
      %v2146 = vld [vmem:[#allocation3 + $0x98] sm:$0xff]
      %v2147 = vld [vmem:[#allocation3 + $0xa0] sm:$0xff]
      %v2148 = vld [vmem:[#allocation3 + $0xa8] sm:$0xff]
      %v2149 = vld [vmem:[#allocation3 + $0xb0] sm:$0xff]
      %v2150 = vld [vmem:[#allocation3 + $0xb8] sm:$0xff]
      %v2151 = vld [vmem:[#allocation3 + $0xc0] sm:$0xff]
      %v2152 = vld [vmem:[#allocation3 + $0xc8] sm:$0xff]
      %v2153 = vld [vmem:[#allocation3 + $0xd0] sm:$0xff]
      %v2154 = vld [vmem:[#allocation3 + $0xd8] sm:$0xff]
      %v2155 = vld [vmem:[#allocation3 + $0xe0] sm:$0xff]
      %v2156 = vld [vmem:[#allocation3 + $0xe8] sm:$0xff]
      %v2157 = vld [vmem:[#allocation3 + $0xf0] sm:$0xff]
      %v2158 = vld [vmem:[#allocation3 + $0xf8] sm:$0xff]
      %v2159 = vld [vmem:[#allocation3 + $0x100] sm:$0xff]
      %v2160 = vld [vmem:[#allocation3 + $0x108] sm:$0xff]
      %v2161 = vld [vmem:[#allocation3 + $0x110] sm:$0xff]
      %v2162 = vld [vmem:[#allocation3 + $0x118] sm:$0xff]
      %2164 = vset.pattern.permute.xlu0 0
      %2165 = vperm.xlu0 %2164, %v2090
      %v2166 = vpop.permute.xlu0 %2165
      %2169 = vset.pattern.permute.xlu0 0
      %2170 = vperm.xlu0 %2169, %v2091
      %v2171 = vpop.permute.xlu0 %2170
      %2174 = vset.pattern.permute.xlu0 0
      %2175 = vperm.xlu0 %2174, %v2092
      %v2176 = vpop.permute.xlu0 %2175
      %2179 = vset.pattern.permute.xlu0 0
      %2180 = vperm.xlu0 %2179, %v2093
      %v2181 = vpop.permute.xlu0 %2180
      %2184 = vset.pattern.permute.xlu0 0
      %2185 = vperm.xlu0 %2184, %v2094
      %v2186 = vpop.permute.xlu0 %2185
      %2189 = vset.pattern.permute.xlu0 0
      %2190 = vperm.xlu0 %2189, %v2095
      %v2191 = vpop.permute.xlu0 %2190
      %2194 = vset.pattern.permute.xlu0 0
      %2195 = vperm.xlu0 %2194, %v2096
      %v2196 = vpop.permute.xlu0 %2195
      %2199 = vset.pattern.permute.xlu0 0
      %2200 = vperm.xlu0 %2199, %v2097
      %v2201 = vpop.permute.xlu0 %2200
      %2204 = vset.pattern.permute.xlu0 0
      %2205 = vperm.xlu0 %2204, %v2098
      %v2206 = vpop.permute.xlu0 %2205
      %2209 = vset.pattern.permute.xlu0 0
      %2210 = vperm.xlu0 %2209, %v2099
      %v2211 = vpop.permute.xlu0 %2210
      %2214 = vset.pattern.permute.xlu0 0
      %2215 = vperm.xlu0 %2214, %v2100
      %v2216 = vpop.permute.xlu0 %2215
      %2219 = vset.pattern.permute.xlu0 0
      %2220 = vperm.xlu0 %2219, %v2101
      %v2221 = vpop.permute.xlu0 %2220
      %2224 = vset.pattern.permute.xlu0 0
      %2225 = vperm.xlu0 %2224, %v2102
      %v2226 = vpop.permute.xlu0 %2225
      %2229 = vset.pattern.permute.xlu0 0
      %2230 = vperm.xlu0 %2229, %v2103
      %v2231 = vpop.permute.xlu0 %2230
      %2234 = vset.pattern.permute.xlu0 0
      %2235 = vperm.xlu0 %2234, %v2104
      %v2236 = vpop.permute.xlu0 %2235
      %2239 = vset.pattern.permute.xlu0 0
      %2240 = vperm.xlu0 %2239, %v2105
      %v2241 = vpop.permute.xlu0 %2240
      %2244 = vset.pattern.permute.xlu0 0
      %2245 = vperm.xlu0 %2244, %v2106
      %v2246 = vpop.permute.xlu0 %2245
      %2249 = vset.pattern.permute.xlu0 0
      %2250 = vperm.xlu0 %2249, %v2107
      %v2251 = vpop.permute.xlu0 %2250
      %2254 = vset.pattern.permute.xlu0 0
      %2255 = vperm.xlu0 %2254, %v2108
      %v2256 = vpop.permute.xlu0 %2255
      %2259 = vset.pattern.permute.xlu0 0
      %2260 = vperm.xlu0 %2259, %v2109
      %v2261 = vpop.permute.xlu0 %2260
      %2264 = vset.pattern.permute.xlu0 0
      %2265 = vperm.xlu0 %2264, %v2110
      %v2266 = vpop.permute.xlu0 %2265
      %2269 = vset.pattern.permute.xlu0 0
      %2270 = vperm.xlu0 %2269, %v2111
      %v2271 = vpop.permute.xlu0 %2270
      %2274 = vset.pattern.permute.xlu0 0
      %2275 = vperm.xlu0 %2274, %v2112
      %v2276 = vpop.permute.xlu0 %2275
      %2279 = vset.pattern.permute.xlu0 0
      %2280 = vperm.xlu0 %2279, %v2113
      %v2281 = vpop.permute.xlu0 %2280
      %2284 = vset.pattern.permute.xlu0 0
      %2285 = vperm.xlu0 %2284, %v2114
      %v2286 = vpop.permute.xlu0 %2285
      %2289 = vset.pattern.permute.xlu0 0
      %2290 = vperm.xlu0 %2289, %v2115
      %v2291 = vpop.permute.xlu0 %2290
      %2294 = vset.pattern.permute.xlu0 0
      %2295 = vperm.xlu0 %2294, %v2116
      %v2296 = vpop.permute.xlu0 %2295
      %2299 = vset.pattern.permute.xlu0 0
      %2300 = vperm.xlu0 %2299, %v2117
      %v2301 = vpop.permute.xlu0 %2300
      %2304 = vset.pattern.permute.xlu0 0
      %2305 = vperm.xlu0 %2304, %v2118
      %v2306 = vpop.permute.xlu0 %2305
      %2309 = vset.pattern.permute.xlu0 0
      %2310 = vperm.xlu0 %2309, %v2119
      %v2311 = vpop.permute.xlu0 %2310
      %2314 = vset.pattern.permute.xlu0 0
      %2315 = vperm.xlu0 %2314, %v2120
      %v2316 = vpop.permute.xlu0 %2315
      %2319 = vset.pattern.permute.xlu0 0
      %2320 = vperm.xlu0 %2319, %v2121
      %v2321 = vpop.permute.xlu0 %2320
      %2324 = vset.pattern.permute.xlu0 0
      %2325 = vperm.xlu0 %2324, %v2122
      %v2326 = vpop.permute.xlu0 %2325
      %2329 = vset.pattern.permute.xlu0 0
      %2330 = vperm.xlu0 %2329, %v2123
      %v2331 = vpop.permute.xlu0 %2330
      %2334 = vset.pattern.permute.xlu0 0
      %2335 = vperm.xlu0 %2334, %v2124
      %v2336 = vpop.permute.xlu0 %2335
      %2339 = vset.pattern.permute.xlu0 0
      %2340 = vperm.xlu0 %2339, %v2125
      %v2341 = vpop.permute.xlu0 %2340
      %v2343 = vlaneseq
      %v2344 = vshrl.u32 %v2343, 7
      %v2345 = vsub.s32 0, %v2344
      %v2346 = vrot.slane %v2126, %v2345
      %v2347 = vmul.f32 %v2166, %v2346
      %v2348 = vmul.f32 %v2171, %v2346
      %v2349 = vmul.f32 %v2176, %v2346
      %v2350 = vmul.f32 %v2181, %v2346
      %v2351 = vmul.f32 %v2186, %v2346
      %v2352 = vmul.f32 %v2191, %v2346
      %v2353 = vmul.f32 %v2196, %v2346
      %v2354 = vmul.f32 %v2201, %v2346
      %v2355 = vmul.f32 %v2206, %v2346
      %v2356 = vmul.f32 %v2211, %v2346
      %v2357 = vmul.f32 %v2216, %v2346
      %v2358 = vmul.f32 %v2221, %v2346
      %v2359 = vmul.f32 %v2226, %v2346
      %v2360 = vmul.f32 %v2231, %v2346
      %v2361 = vmul.f32 %v2236, %v2346
      %v2362 = vmul.f32 %v2241, %v2346
      %v2363 = vmul.f32 %v2246, %v2346
      %v2364 = vmul.f32 %v2251, %v2346
      %v2365 = vmul.f32 %v2256, %v2346
      %v2366 = vmul.f32 %v2261, %v2346
      %v2367 = vmul.f32 %v2266, %v2346
      %v2368 = vmul.f32 %v2271, %v2346
      %v2369 = vmul.f32 %v2276, %v2346
      %v2370 = vmul.f32 %v2281, %v2346
      %v2371 = vmul.f32 %v2286, %v2346
      %v2372 = vmul.f32 %v2291, %v2346
      %v2373 = vmul.f32 %v2296, %v2346
      %v2374 = vmul.f32 %v2301, %v2346
      %v2375 = vmul.f32 %v2306, %v2346
      %v2376 = vmul.f32 %v2311, %v2346
      %v2377 = vmul.f32 %v2316, %v2346
      %v2378 = vmul.f32 %v2321, %v2346
      %v2379 = vmul.f32 %v2326, %v2346
      %v2380 = vmul.f32 %v2331, %v2346
      %v2381 = vmul.f32 %v2336, %v2346
      %v2382 = vmul.f32 %v2341, %v2346
      %v2383 = vadd.f32 %v2127, %v2347
      %v2384 = vadd.f32 %v2128, %v2348
      %v2385 = vadd.f32 %v2129, %v2349
      %v2386 = vadd.f32 %v2130, %v2350
      %v2387 = vadd.f32 %v2131, %v2351
      %v2388 = vadd.f32 %v2132, %v2352
      %v2389 = vadd.f32 %v2133, %v2353
      %v2390 = vadd.f32 %v2134, %v2354
      %v2391 = vadd.f32 %v2135, %v2355
      %v2392 = vadd.f32 %v2136, %v2356
      %v2393 = vadd.f32 %v2137, %v2357
      %v2394 = vadd.f32 %v2138, %v2358
      %v2395 = vadd.f32 %v2139, %v2359
      %v2396 = vadd.f32 %v2140, %v2360
      %v2397 = vadd.f32 %v2141, %v2361
      %v2398 = vadd.f32 %v2142, %v2362
      %v2399 = vadd.f32 %v2143, %v2363
      %v2400 = vadd.f32 %v2144, %v2364
      %v2401 = vadd.f32 %v2145, %v2365
      %v2402 = vadd.f32 %v2146, %v2366
      %v2403 = vadd.f32 %v2147, %v2367
      %v2404 = vadd.f32 %v2148, %v2368
      %v2405 = vadd.f32 %v2149, %v2369
      %v2406 = vadd.f32 %v2150, %v2370
      %v2407 = vadd.f32 %v2151, %v2371
      %v2408 = vadd.f32 %v2152, %v2372
      %v2409 = vadd.f32 %v2153, %v2373
      %v2410 = vadd.f32 %v2154, %v2374
      %v2411 = vadd.f32 %v2155, %v2375
      %v2412 = vadd.f32 %v2156, %v2376
      %v2413 = vadd.f32 %v2157, %v2377
      %v2414 = vadd.f32 %v2158, %v2378
      %v2415 = vadd.f32 %v2159, %v2379
      %v2416 = vadd.f32 %v2160, %v2380
      %v2417 = vadd.f32 %v2161, %v2381
      %v2418 = vadd.f32 %v2162, %v2382
      %2419 = vst.msk [vmem:[#allocation3] sm:$0xff] %vm228, %v2383
      %2420 = vst.msk [vmem:[#allocation3 + $0x8] sm:$0xff] %vm228, %v2384
      %2421 = vst.msk [vmem:[#allocation3 + $0x10] sm:$0xff] %vm228, %v2385
      %2422 = vst.msk [vmem:[#allocation3 + $0x18] sm:$0xff] %vm228, %v2386
      %2423 = vst.msk [vmem:[#allocation3 + $0x20] sm:$0xff] %vm228, %v2387
      %2424 = vst.msk [vmem:[#allocation3 + $0x28] sm:$0xff] %vm228, %v2388
      %2425 = vst.msk [vmem:[#allocation3 + $0x30] sm:$0xff] %vm228, %v2389
      %2426 = vst.msk [vmem:[#allocation3 + $0x38] sm:$0xff] %vm228, %v2390
      %2427 = vst.msk [vmem:[#allocation3 + $0x40] sm:$0xff] %vm228, %v2391
      %2428 = vst.msk [vmem:[#allocation3 + $0x48] sm:$0xff] %vm228, %v2392
      %2429 = vst.msk [vmem:[#allocation3 + $0x50] sm:$0xff] %vm228, %v2393
      %2430 = vst.msk [vmem:[#allocation3 + $0x58] sm:$0xff] %vm228, %v2394
      %2431 = vst.msk [vmem:[#allocation3 + $0x60] sm:$0xff] %vm228, %v2395
      %2432 = vst.msk [vmem:[#allocation3 + $0x68] sm:$0xff] %vm228, %v2396
      %2433 = vst.msk [vmem:[#allocation3 + $0x70] sm:$0xff] %vm228, %v2397
      %2434 = vst.msk [vmem:[#allocation3 + $0x78] sm:$0xff] %vm228, %v2398
      %2435 = vst.msk [vmem:[#allocation3 + $0x80] sm:$0xff] %vm228, %v2399
      %2436 = vst.msk [vmem:[#allocation3 + $0x88] sm:$0xff] %vm228, %v2400
      %2437 = vst.msk [vmem:[#allocation3 + $0x90] sm:$0xff] %vm228, %v2401
      %2438 = vst.msk [vmem:[#allocation3 + $0x98] sm:$0xff] %vm228, %v2402
      %2439 = vst.msk [vmem:[#allocation3 + $0xa0] sm:$0xff] %vm228, %v2403
      %2440 = vst.msk [vmem:[#allocation3 + $0xa8] sm:$0xff] %vm228, %v2404
      %2441 = vst.msk [vmem:[#allocation3 + $0xb0] sm:$0xff] %vm228, %v2405
      %2442 = vst.msk [vmem:[#allocation3 + $0xb8] sm:$0xff] %vm228, %v2406
      %2443 = vst.msk [vmem:[#allocation3 + $0xc0] sm:$0xff] %vm228, %v2407
      %2444 = vst.msk [vmem:[#allocation3 + $0xc8] sm:$0xff] %vm228, %v2408
      %2445 = vst.msk [vmem:[#allocation3 + $0xd0] sm:$0xff] %vm228, %v2409
      %2446 = vst.msk [vmem:[#allocation3 + $0xd8] sm:$0xff] %vm228, %v2410
      %2447 = vst.msk [vmem:[#allocation3 + $0xe0] sm:$0xff] %vm228, %v2411
      %2448 = vst.msk [vmem:[#allocation3 + $0xe8] sm:$0xff] %vm228, %v2412
      %2449 = vst.msk [vmem:[#allocation3 + $0xf0] sm:$0xff] %vm228, %v2413
      %2450 = vst.msk [vmem:[#allocation3 + $0xf8] sm:$0xff] %vm228, %v2414
      %2451 = vst.msk [vmem:[#allocation3 + $0x100] sm:$0xff] %vm228, %v2415
      %2452 = vst.msk [vmem:[#allocation3 + $0x108] sm:$0xff] %vm228, %v2416
      %2453 = vst.msk [vmem:[#allocation3 + $0x110] sm:$0xff] %vm228, %v2417
      %2454 = vst.msk [vmem:[#allocation3 + $0x118] sm:$0xff] %vm228, %v2418
      %v2455 = vld [vmem:[#allocation2 + $0x24] sm:$0xff]
      %v2456 = vld [vmem:[#allocation2 + $0x2c] sm:$0xff]
      %v2457 = vld [vmem:[#allocation2 + $0x34] sm:$0xff]
      %v2458 = vld [vmem:[#allocation2 + $0x3c] sm:$0xff]
      %v2459 = vld [vmem:[#allocation2 + $0x44] sm:$0xff]
      %v2460 = vld [vmem:[#allocation2 + $0x4c] sm:$0xff]
      %v2461 = vld [vmem:[#allocation2 + $0x54] sm:$0xff]
      %v2462 = vld [vmem:[#allocation2 + $0x5c] sm:$0xff]
      %v2463 = vld [vmem:[#allocation2 + $0x64] sm:$0xff]
      %v2464 = vld [vmem:[#allocation2 + $0x6c] sm:$0xff]
      %v2465 = vld [vmem:[#allocation2 + $0x74] sm:$0xff]
      %v2466 = vld [vmem:[#allocation2 + $0x7c] sm:$0xff]
      %v2467 = vld [vmem:[#allocation2 + $0x84] sm:$0xff]
      %v2468 = vld [vmem:[#allocation2 + $0x8c] sm:$0xff]
      %v2469 = vld [vmem:[#allocation2 + $0x94] sm:$0xff]
      %v2470 = vld [vmem:[#allocation2 + $0x9c] sm:$0xff]
      %v2471 = vld [vmem:[#allocation2 + $0xa4] sm:$0xff]
      %v2472 = vld [vmem:[#allocation2 + $0xac] sm:$0xff]
      %v2473 = vld [vmem:[#allocation2 + $0xb4] sm:$0xff]
      %v2474 = vld [vmem:[#allocation2 + $0xbc] sm:$0xff]
      %v2475 = vld [vmem:[#allocation2 + $0xc4] sm:$0xff]
      %v2476 = vld [vmem:[#allocation2 + $0xcc] sm:$0xff]
      %v2477 = vld [vmem:[#allocation2 + $0xd4] sm:$0xff]
      %v2478 = vld [vmem:[#allocation2 + $0xdc] sm:$0xff]
      %v2479 = vld [vmem:[#allocation2 + $0xe4] sm:$0xff]
      %v2480 = vld [vmem:[#allocation2 + $0xec] sm:$0xff]
      %v2481 = vld [vmem:[#allocation2 + $0xf4] sm:$0xff]
      %v2482 = vld [vmem:[#allocation2 + $0xfc] sm:$0xff]
      %v2483 = vld [vmem:[#allocation2 + $0x104] sm:$0xff]
      %v2484 = vld [vmem:[#allocation2 + $0x10c] sm:$0xff]
      %v2485 = vld [vmem:[#allocation2 + $0x114] sm:$0xff]
      %v2486 = vld [vmem:[#allocation2 + $0x11c] sm:$0xff]
      %v2487 = vld [vmem:[#allocation2 + $0x124] sm:$0xff]
      %v2488 = vld [vmem:[#allocation2 + $0x12c] sm:$0xff]
      %v2489 = vld [vmem:[#allocation2 + $0x134] sm:$0xff]
      %v2490 = vld [vmem:[#allocation2 + $0x13c] sm:$0xff]
      %v2491 = vld [vmem:[%s1 + $0x6] sm:$0x1]
      %v2492 = vld [vmem:[#allocation3] sm:$0xff]
      %v2493 = vld [vmem:[#allocation3 + $0x8] sm:$0xff]
      %v2494 = vld [vmem:[#allocation3 + $0x10] sm:$0xff]
      %v2495 = vld [vmem:[#allocation3 + $0x18] sm:$0xff]
      %v2496 = vld [vmem:[#allocation3 + $0x20] sm:$0xff]
      %v2497 = vld [vmem:[#allocation3 + $0x28] sm:$0xff]
      %v2498 = vld [vmem:[#allocation3 + $0x30] sm:$0xff]
      %v2499 = vld [vmem:[#allocation3 + $0x38] sm:$0xff]
      %v2500 = vld [vmem:[#allocation3 + $0x40] sm:$0xff]
      %v2501 = vld [vmem:[#allocation3 + $0x48] sm:$0xff]
      %v2502 = vld [vmem:[#allocation3 + $0x50] sm:$0xff]
      %v2503 = vld [vmem:[#allocation3 + $0x58] sm:$0xff]
      %v2504 = vld [vmem:[#allocation3 + $0x60] sm:$0xff]
      %v2505 = vld [vmem:[#allocation3 + $0x68] sm:$0xff]
      %v2506 = vld [vmem:[#allocation3 + $0x70] sm:$0xff]
      %v2507 = vld [vmem:[#allocation3 + $0x78] sm:$0xff]
      %v2508 = vld [vmem:[#allocation3 + $0x80] sm:$0xff]
      %v2509 = vld [vmem:[#allocation3 + $0x88] sm:$0xff]
      %v2510 = vld [vmem:[#allocation3 + $0x90] sm:$0xff]
      %v2511 = vld [vmem:[#allocation3 + $0x98] sm:$0xff]
      %v2512 = vld [vmem:[#allocation3 + $0xa0] sm:$0xff]
      %v2513 = vld [vmem:[#allocation3 + $0xa8] sm:$0xff]
      %v2514 = vld [vmem:[#allocation3 + $0xb0] sm:$0xff]
      %v2515 = vld [vmem:[#allocation3 + $0xb8] sm:$0xff]
      %v2516 = vld [vmem:[#allocation3 + $0xc0] sm:$0xff]
      %v2517 = vld [vmem:[#allocation3 + $0xc8] sm:$0xff]
      %v2518 = vld [vmem:[#allocation3 + $0xd0] sm:$0xff]
      %v2519 = vld [vmem:[#allocation3 + $0xd8] sm:$0xff]
      %v2520 = vld [vmem:[#allocation3 + $0xe0] sm:$0xff]
      %v2521 = vld [vmem:[#allocation3 + $0xe8] sm:$0xff]
      %v2522 = vld [vmem:[#allocation3 + $0xf0] sm:$0xff]
      %v2523 = vld [vmem:[#allocation3 + $0xf8] sm:$0xff]
      %v2524 = vld [vmem:[#allocation3 + $0x100] sm:$0xff]
      %v2525 = vld [vmem:[#allocation3 + $0x108] sm:$0xff]
      %v2526 = vld [vmem:[#allocation3 + $0x110] sm:$0xff]
      %v2527 = vld [vmem:[#allocation3 + $0x118] sm:$0xff]
      %2529 = vset.pattern.permute.xlu0 0
      %2530 = vperm.xlu0 %2529, %v2455
      %v2531 = vpop.permute.xlu0 %2530
      %2534 = vset.pattern.permute.xlu0 0
      %2535 = vperm.xlu0 %2534, %v2456
      %v2536 = vpop.permute.xlu0 %2535
      %2539 = vset.pattern.permute.xlu0 0
      %2540 = vperm.xlu0 %2539, %v2457
      %v2541 = vpop.permute.xlu0 %2540
      %2544 = vset.pattern.permute.xlu0 0
      %2545 = vperm.xlu0 %2544, %v2458
      %v2546 = vpop.permute.xlu0 %2545
      %2549 = vset.pattern.permute.xlu0 0
      %2550 = vperm.xlu0 %2549, %v2459
      %v2551 = vpop.permute.xlu0 %2550
      %2554 = vset.pattern.permute.xlu0 0
      %2555 = vperm.xlu0 %2554, %v2460
      %v2556 = vpop.permute.xlu0 %2555
      %2559 = vset.pattern.permute.xlu0 0
      %2560 = vperm.xlu0 %2559, %v2461
      %v2561 = vpop.permute.xlu0 %2560
      %2564 = vset.pattern.permute.xlu0 0
      %2565 = vperm.xlu0 %2564, %v2462
      %v2566 = vpop.permute.xlu0 %2565
      %2569 = vset.pattern.permute.xlu0 0
      %2570 = vperm.xlu0 %2569, %v2463
      %v2571 = vpop.permute.xlu0 %2570
      %2574 = vset.pattern.permute.xlu0 0
      %2575 = vperm.xlu0 %2574, %v2464
      %v2576 = vpop.permute.xlu0 %2575
      %2579 = vset.pattern.permute.xlu0 0
      %2580 = vperm.xlu0 %2579, %v2465
      %v2581 = vpop.permute.xlu0 %2580
      %2584 = vset.pattern.permute.xlu0 0
      %2585 = vperm.xlu0 %2584, %v2466
      %v2586 = vpop.permute.xlu0 %2585
      %2589 = vset.pattern.permute.xlu0 0
      %2590 = vperm.xlu0 %2589, %v2467
      %v2591 = vpop.permute.xlu0 %2590
      %2594 = vset.pattern.permute.xlu0 0
      %2595 = vperm.xlu0 %2594, %v2468
      %v2596 = vpop.permute.xlu0 %2595
      %2599 = vset.pattern.permute.xlu0 0
      %2600 = vperm.xlu0 %2599, %v2469
      %v2601 = vpop.permute.xlu0 %2600
      %2604 = vset.pattern.permute.xlu0 0
      %2605 = vperm.xlu0 %2604, %v2470
      %v2606 = vpop.permute.xlu0 %2605
      %2609 = vset.pattern.permute.xlu0 0
      %2610 = vperm.xlu0 %2609, %v2471
      %v2611 = vpop.permute.xlu0 %2610
      %2614 = vset.pattern.permute.xlu0 0
      %2615 = vperm.xlu0 %2614, %v2472
      %v2616 = vpop.permute.xlu0 %2615
      %2619 = vset.pattern.permute.xlu0 0
      %2620 = vperm.xlu0 %2619, %v2473
      %v2621 = vpop.permute.xlu0 %2620
      %2624 = vset.pattern.permute.xlu0 0
      %2625 = vperm.xlu0 %2624, %v2474
      %v2626 = vpop.permute.xlu0 %2625
      %2629 = vset.pattern.permute.xlu0 0
      %2630 = vperm.xlu0 %2629, %v2475
      %v2631 = vpop.permute.xlu0 %2630
      %2634 = vset.pattern.permute.xlu0 0
      %2635 = vperm.xlu0 %2634, %v2476
      %v2636 = vpop.permute.xlu0 %2635
      %2639 = vset.pattern.permute.xlu0 0
      %2640 = vperm.xlu0 %2639, %v2477
      %v2641 = vpop.permute.xlu0 %2640
      %2644 = vset.pattern.permute.xlu0 0
      %2645 = vperm.xlu0 %2644, %v2478
      %v2646 = vpop.permute.xlu0 %2645
      %2649 = vset.pattern.permute.xlu0 0
      %2650 = vperm.xlu0 %2649, %v2479
      %v2651 = vpop.permute.xlu0 %2650
      %2654 = vset.pattern.permute.xlu0 0
      %2655 = vperm.xlu0 %2654, %v2480
      %v2656 = vpop.permute.xlu0 %2655
      %2659 = vset.pattern.permute.xlu0 0
      %2660 = vperm.xlu0 %2659, %v2481
      %v2661 = vpop.permute.xlu0 %2660
      %2664 = vset.pattern.permute.xlu0 0
      %2665 = vperm.xlu0 %2664, %v2482
      %v2666 = vpop.permute.xlu0 %2665
      %2669 = vset.pattern.permute.xlu0 0
      %2670 = vperm.xlu0 %2669, %v2483
      %v2671 = vpop.permute.xlu0 %2670
      %2674 = vset.pattern.permute.xlu0 0
      %2675 = vperm.xlu0 %2674, %v2484
      %v2676 = vpop.permute.xlu0 %2675
      %2679 = vset.pattern.permute.xlu0 0
      %2680 = vperm.xlu0 %2679, %v2485
      %v2681 = vpop.permute.xlu0 %2680
      %2684 = vset.pattern.permute.xlu0 0
      %2685 = vperm.xlu0 %2684, %v2486
      %v2686 = vpop.permute.xlu0 %2685
      %2689 = vset.pattern.permute.xlu0 0
      %2690 = vperm.xlu0 %2689, %v2487
      %v2691 = vpop.permute.xlu0 %2690
      %2694 = vset.pattern.permute.xlu0 0
      %2695 = vperm.xlu0 %2694, %v2488
      %v2696 = vpop.permute.xlu0 %2695
      %2699 = vset.pattern.permute.xlu0 0
      %2700 = vperm.xlu0 %2699, %v2489
      %v2701 = vpop.permute.xlu0 %2700
      %2704 = vset.pattern.permute.xlu0 0
      %2705 = vperm.xlu0 %2704, %v2490
      %v2706 = vpop.permute.xlu0 %2705
      %v2708 = vlaneseq
      %v2709 = vshrl.u32 %v2708, 7
      %v2710 = vsub.s32 0, %v2709
      %v2711 = vrot.slane %v2491, %v2710
      %v2712 = vmul.f32 %v2531, %v2711
      %v2713 = vmul.f32 %v2536, %v2711
      %v2714 = vmul.f32 %v2541, %v2711
      %v2715 = vmul.f32 %v2546, %v2711
      %v2716 = vmul.f32 %v2551, %v2711
      %v2717 = vmul.f32 %v2556, %v2711
      %v2718 = vmul.f32 %v2561, %v2711
      %v2719 = vmul.f32 %v2566, %v2711
      %v2720 = vmul.f32 %v2571, %v2711
      %v2721 = vmul.f32 %v2576, %v2711
      %v2722 = vmul.f32 %v2581, %v2711
      %v2723 = vmul.f32 %v2586, %v2711
      %v2724 = vmul.f32 %v2591, %v2711
      %v2725 = vmul.f32 %v2596, %v2711
      %v2726 = vmul.f32 %v2601, %v2711
      %v2727 = vmul.f32 %v2606, %v2711
      %v2728 = vmul.f32 %v2611, %v2711
      %v2729 = vmul.f32 %v2616, %v2711
      %v2730 = vmul.f32 %v2621, %v2711
      %v2731 = vmul.f32 %v2626, %v2711
      %v2732 = vmul.f32 %v2631, %v2711
      %v2733 = vmul.f32 %v2636, %v2711
      %v2734 = vmul.f32 %v2641, %v2711
      %v2735 = vmul.f32 %v2646, %v2711
      %v2736 = vmul.f32 %v2651, %v2711
      %v2737 = vmul.f32 %v2656, %v2711
      %v2738 = vmul.f32 %v2661, %v2711
      %v2739 = vmul.f32 %v2666, %v2711
      %v2740 = vmul.f32 %v2671, %v2711
      %v2741 = vmul.f32 %v2676, %v2711
      %v2742 = vmul.f32 %v2681, %v2711
      %v2743 = vmul.f32 %v2686, %v2711
      %v2744 = vmul.f32 %v2691, %v2711
      %v2745 = vmul.f32 %v2696, %v2711
      %v2746 = vmul.f32 %v2701, %v2711
      %v2747 = vmul.f32 %v2706, %v2711
      %v2748 = vadd.f32 %v2492, %v2712
      %v2749 = vadd.f32 %v2493, %v2713
      %v2750 = vadd.f32 %v2494, %v2714
      %v2751 = vadd.f32 %v2495, %v2715
      %v2752 = vadd.f32 %v2496, %v2716
      %v2753 = vadd.f32 %v2497, %v2717
      %v2754 = vadd.f32 %v2498, %v2718
      %v2755 = vadd.f32 %v2499, %v2719
      %v2756 = vadd.f32 %v2500, %v2720
      %v2757 = vadd.f32 %v2501, %v2721
      %v2758 = vadd.f32 %v2502, %v2722
      %v2759 = vadd.f32 %v2503, %v2723
      %v2760 = vadd.f32 %v2504, %v2724
      %v2761 = vadd.f32 %v2505, %v2725
      %v2762 = vadd.f32 %v2506, %v2726
      %v2763 = vadd.f32 %v2507, %v2727
      %v2764 = vadd.f32 %v2508, %v2728
      %v2765 = vadd.f32 %v2509, %v2729
      %v2766 = vadd.f32 %v2510, %v2730
      %v2767 = vadd.f32 %v2511, %v2731
      %v2768 = vadd.f32 %v2512, %v2732
      %v2769 = vadd.f32 %v2513, %v2733
      %v2770 = vadd.f32 %v2514, %v2734
      %v2771 = vadd.f32 %v2515, %v2735
      %v2772 = vadd.f32 %v2516, %v2736
      %v2773 = vadd.f32 %v2517, %v2737
      %v2774 = vadd.f32 %v2518, %v2738
      %v2775 = vadd.f32 %v2519, %v2739
      %v2776 = vadd.f32 %v2520, %v2740
      %v2777 = vadd.f32 %v2521, %v2741
      %v2778 = vadd.f32 %v2522, %v2742
      %v2779 = vadd.f32 %v2523, %v2743
      %v2780 = vadd.f32 %v2524, %v2744
      %v2781 = vadd.f32 %v2525, %v2745
      %v2782 = vadd.f32 %v2526, %v2746
      %v2783 = vadd.f32 %v2527, %v2747
      %2784 = vst.msk [vmem:[#allocation3] sm:$0xff] %vm228, %v2748
      %2785 = vst.msk [vmem:[#allocation3 + $0x8] sm:$0xff] %vm228, %v2749
      %2786 = vst.msk [vmem:[#allocation3 + $0x10] sm:$0xff] %vm228, %v2750
      %2787 = vst.msk [vmem:[#allocation3 + $0x18] sm:$0xff] %vm228, %v2751
      %2788 = vst.msk [vmem:[#allocation3 + $0x20] sm:$0xff] %vm228, %v2752
      %2789 = vst.msk [vmem:[#allocation3 + $0x28] sm:$0xff] %vm228, %v2753
      %2790 = vst.msk [vmem:[#allocation3 + $0x30] sm:$0xff] %vm228, %v2754
      %2791 = vst.msk [vmem:[#allocation3 + $0x38] sm:$0xff] %vm228, %v2755
      %2792 = vst.msk [vmem:[#allocation3 + $0x40] sm:$0xff] %vm228, %v2756
      %2793 = vst.msk [vmem:[#allocation3 + $0x48] sm:$0xff] %vm228, %v2757
      %2794 = vst.msk [vmem:[#allocation3 + $0x50] sm:$0xff] %vm228, %v2758
      %2795 = vst.msk [vmem:[#allocation3 + $0x58] sm:$0xff] %vm228, %v2759
      %2796 = vst.msk [vmem:[#allocation3 + $0x60] sm:$0xff] %vm228, %v2760
      %2797 = vst.msk [vmem:[#allocation3 + $0x68] sm:$0xff] %vm228, %v2761
      %2798 = vst.msk [vmem:[#allocation3 + $0x70] sm:$0xff] %vm228, %v2762
      %2799 = vst.msk [vmem:[#allocation3 + $0x78] sm:$0xff] %vm228, %v2763
      %2800 = vst.msk [vmem:[#allocation3 + $0x80] sm:$0xff] %vm228, %v2764
      %2801 = vst.msk [vmem:[#allocation3 + $0x88] sm:$0xff] %vm228, %v2765
      %2802 = vst.msk [vmem:[#allocation3 + $0x90] sm:$0xff] %vm228, %v2766
      %2803 = vst.msk [vmem:[#allocation3 + $0x98] sm:$0xff] %vm228, %v2767
      %2804 = vst.msk [vmem:[#allocation3 + $0xa0] sm:$0xff] %vm228, %v2768
      %2805 = vst.msk [vmem:[#allocation3 + $0xa8] sm:$0xff] %vm228, %v2769
      %2806 = vst.msk [vmem:[#allocation3 + $0xb0] sm:$0xff] %vm228, %v2770
      %2807 = vst.msk [vmem:[#allocation3 + $0xb8] sm:$0xff] %vm228, %v2771
      %2808 = vst.msk [vmem:[#allocation3 + $0xc0] sm:$0xff] %vm228, %v2772
      %2809 = vst.msk [vmem:[#allocation3 + $0xc8] sm:$0xff] %vm228, %v2773
      %2810 = vst.msk [vmem:[#allocation3 + $0xd0] sm:$0xff] %vm228, %v2774
      %2811 = vst.msk [vmem:[#allocation3 + $0xd8] sm:$0xff] %vm228, %v2775
      %2812 = vst.msk [vmem:[#allocation3 + $0xe0] sm:$0xff] %vm228, %v2776
      %2813 = vst.msk [vmem:[#allocation3 + $0xe8] sm:$0xff] %vm228, %v2777
      %2814 = vst.msk [vmem:[#allocation3 + $0xf0] sm:$0xff] %vm228, %v2778
      %2815 = vst.msk [vmem:[#allocation3 + $0xf8] sm:$0xff] %vm228, %v2779
      %2816 = vst.msk [vmem:[#allocation3 + $0x100] sm:$0xff] %vm228, %v2780
      %2817 = vst.msk [vmem:[#allocation3 + $0x108] sm:$0xff] %vm228, %v2781
      %2818 = vst.msk [vmem:[#allocation3 + $0x110] sm:$0xff] %vm228, %v2782
      %2819 = vst.msk [vmem:[#allocation3 + $0x118] sm:$0xff] %vm228, %v2783
      %v2820 = vld [vmem:[#allocation2 + $0x25] sm:$0xff]
      %v2821 = vld [vmem:[#allocation2 + $0x2d] sm:$0xff]
      %v2822 = vld [vmem:[#allocation2 + $0x35] sm:$0xff]
      %v2823 = vld [vmem:[#allocation2 + $0x3d] sm:$0xff]
      %v2824 = vld [vmem:[#allocation2 + $0x45] sm:$0xff]
      %v2825 = vld [vmem:[#allocation2 + $0x4d] sm:$0xff]
      %v2826 = vld [vmem:[#allocation2 + $0x55] sm:$0xff]
      %v2827 = vld [vmem:[#allocation2 + $0x5d] sm:$0xff]
      %v2828 = vld [vmem:[#allocation2 + $0x65] sm:$0xff]
      %v2829 = vld [vmem:[#allocation2 + $0x6d] sm:$0xff]
      %v2830 = vld [vmem:[#allocation2 + $0x75] sm:$0xff]
      %v2831 = vld [vmem:[#allocation2 + $0x7d] sm:$0xff]
      %v2832 = vld [vmem:[#allocation2 + $0x85] sm:$0xff]
      %v2833 = vld [vmem:[#allocation2 + $0x8d] sm:$0xff]
      %v2834 = vld [vmem:[#allocation2 + $0x95] sm:$0xff]
      %v2835 = vld [vmem:[#allocation2 + $0x9d] sm:$0xff]
      %v2836 = vld [vmem:[#allocation2 + $0xa5] sm:$0xff]
      %v2837 = vld [vmem:[#allocation2 + $0xad] sm:$0xff]
      %v2838 = vld [vmem:[#allocation2 + $0xb5] sm:$0xff]
      %v2839 = vld [vmem:[#allocation2 + $0xbd] sm:$0xff]
      %v2840 = vld [vmem:[#allocation2 + $0xc5] sm:$0xff]
      %v2841 = vld [vmem:[#allocation2 + $0xcd] sm:$0xff]
      %v2842 = vld [vmem:[#allocation2 + $0xd5] sm:$0xff]
      %v2843 = vld [vmem:[#allocation2 + $0xdd] sm:$0xff]
      %v2844 = vld [vmem:[#allocation2 + $0xe5] sm:$0xff]
      %v2845 = vld [vmem:[#allocation2 + $0xed] sm:$0xff]
      %v2846 = vld [vmem:[#allocation2 + $0xf5] sm:$0xff]
      %v2847 = vld [vmem:[#allocation2 + $0xfd] sm:$0xff]
      %v2848 = vld [vmem:[#allocation2 + $0x105] sm:$0xff]
      %v2849 = vld [vmem:[#allocation2 + $0x10d] sm:$0xff]
      %v2850 = vld [vmem:[#allocation2 + $0x115] sm:$0xff]
      %v2851 = vld [vmem:[#allocation2 + $0x11d] sm:$0xff]
      %v2852 = vld [vmem:[#allocation2 + $0x125] sm:$0xff]
      %v2853 = vld [vmem:[#allocation2 + $0x12d] sm:$0xff]
      %v2854 = vld [vmem:[#allocation2 + $0x135] sm:$0xff]
      %v2855 = vld [vmem:[#allocation2 + $0x13d] sm:$0xff]
      %v2856 = vld [vmem:[%s1 + $0x7] sm:$0x1]
      %v2857 = vld [vmem:[#allocation3] sm:$0xff]
      %v2858 = vld [vmem:[#allocation3 + $0x8] sm:$0xff]
      %v2859 = vld [vmem:[#allocation3 + $0x10] sm:$0xff]
      %v2860 = vld [vmem:[#allocation3 + $0x18] sm:$0xff]
      %v2861 = vld [vmem:[#allocation3 + $0x20] sm:$0xff]
      %v2862 = vld [vmem:[#allocation3 + $0x28] sm:$0xff]
      %v2863 = vld [vmem:[#allocation3 + $0x30] sm:$0xff]
      %v2864 = vld [vmem:[#allocation3 + $0x38] sm:$0xff]
      %v2865 = vld [vmem:[#allocation3 + $0x40] sm:$0xff]
      %v2866 = vld [vmem:[#allocation3 + $0x48] sm:$0xff]
      %v2867 = vld [vmem:[#allocation3 + $0x50] sm:$0xff]
      %v2868 = vld [vmem:[#allocation3 + $0x58] sm:$0xff]
      %v2869 = vld [vmem:[#allocation3 + $0x60] sm:$0xff]
      %v2870 = vld [vmem:[#allocation3 + $0x68] sm:$0xff]
      %v2871 = vld [vmem:[#allocation3 + $0x70] sm:$0xff]
      %v2872 = vld [vmem:[#allocation3 + $0x78] sm:$0xff]
      %v2873 = vld [vmem:[#allocation3 + $0x80] sm:$0xff]
      %v2874 = vld [vmem:[#allocation3 + $0x88] sm:$0xff]
      %v2875 = vld [vmem:[#allocation3 + $0x90] sm:$0xff]
      %v2876 = vld [vmem:[#allocation3 + $0x98] sm:$0xff]
      %v2877 = vld [vmem:[#allocation3 + $0xa0] sm:$0xff]
      %v2878 = vld [vmem:[#allocation3 + $0xa8] sm:$0xff]
      %v2879 = vld [vmem:[#allocation3 + $0xb0] sm:$0xff]
      %v2880 = vld [vmem:[#allocation3 + $0xb8] sm:$0xff]
      %v2881 = vld [vmem:[#allocation3 + $0xc0] sm:$0xff]
      %v2882 = vld [vmem:[#allocation3 + $0xc8] sm:$0xff]
      %v2883 = vld [vmem:[#allocation3 + $0xd0] sm:$0xff]
      %v2884 = vld [vmem:[#allocation3 + $0xd8] sm:$0xff]
      %v2885 = vld [vmem:[#allocation3 + $0xe0] sm:$0xff]
      %v2886 = vld [vmem:[#allocation3 + $0xe8] sm:$0xff]
      %v2887 = vld [vmem:[#allocation3 + $0xf0] sm:$0xff]
      %v2888 = vld [vmem:[#allocation3 + $0xf8] sm:$0xff]
      %v2889 = vld [vmem:[#allocation3 + $0x100] sm:$0xff]
      %v2890 = vld [vmem:[#allocation3 + $0x108] sm:$0xff]
      %v2891 = vld [vmem:[#allocation3 + $0x110] sm:$0xff]
      %v2892 = vld [vmem:[#allocation3 + $0x118] sm:$0xff]
      %2894 = vset.pattern.permute.xlu0 0
      %2895 = vperm.xlu0 %2894, %v2820
      %v2896 = vpop.permute.xlu0 %2895
      %2899 = vset.pattern.permute.xlu0 0
      %2900 = vperm.xlu0 %2899, %v2821
      %v2901 = vpop.permute.xlu0 %2900
      %2904 = vset.pattern.permute.xlu0 0
      %2905 = vperm.xlu0 %2904, %v2822
      %v2906 = vpop.permute.xlu0 %2905
      %2909 = vset.pattern.permute.xlu0 0
      %2910 = vperm.xlu0 %2909, %v2823
      %v2911 = vpop.permute.xlu0 %2910
      %2914 = vset.pattern.permute.xlu0 0
      %2915 = vperm.xlu0 %2914, %v2824
      %v2916 = vpop.permute.xlu0 %2915
      %2919 = vset.pattern.permute.xlu0 0
      %2920 = vperm.xlu0 %2919, %v2825
      %v2921 = vpop.permute.xlu0 %2920
      %2924 = vset.pattern.permute.xlu0 0
      %2925 = vperm.xlu0 %2924, %v2826
      %v2926 = vpop.permute.xlu0 %2925
      %2929 = vset.pattern.permute.xlu0 0
      %2930 = vperm.xlu0 %2929, %v2827
      %v2931 = vpop.permute.xlu0 %2930
      %2934 = vset.pattern.permute.xlu0 0
      %2935 = vperm.xlu0 %2934, %v2828
      %v2936 = vpop.permute.xlu0 %2935
      %2939 = vset.pattern.permute.xlu0 0
      %2940 = vperm.xlu0 %2939, %v2829
      %v2941 = vpop.permute.xlu0 %2940
      %2944 = vset.pattern.permute.xlu0 0
      %2945 = vperm.xlu0 %2944, %v2830
      %v2946 = vpop.permute.xlu0 %2945
      %2949 = vset.pattern.permute.xlu0 0
      %2950 = vperm.xlu0 %2949, %v2831
      %v2951 = vpop.permute.xlu0 %2950
      %2954 = vset.pattern.permute.xlu0 0
      %2955 = vperm.xlu0 %2954, %v2832
      %v2956 = vpop.permute.xlu0 %2955
      %2959 = vset.pattern.permute.xlu0 0
      %2960 = vperm.xlu0 %2959, %v2833
      %v2961 = vpop.permute.xlu0 %2960
      %2964 = vset.pattern.permute.xlu0 0
      %2965 = vperm.xlu0 %2964, %v2834
      %v2966 = vpop.permute.xlu0 %2965
      %2969 = vset.pattern.permute.xlu0 0
      %2970 = vperm.xlu0 %2969, %v2835
      %v2971 = vpop.permute.xlu0 %2970
      %2974 = vset.pattern.permute.xlu0 0
      %2975 = vperm.xlu0 %2974, %v2836
      %v2976 = vpop.permute.xlu0 %2975
      %2979 = vset.pattern.permute.xlu0 0
      %2980 = vperm.xlu0 %2979, %v2837
      %v2981 = vpop.permute.xlu0 %2980
      %2984 = vset.pattern.permute.xlu0 0
      %2985 = vperm.xlu0 %2984, %v2838
      %v2986 = vpop.permute.xlu0 %2985
      %2989 = vset.pattern.permute.xlu0 0
      %2990 = vperm.xlu0 %2989, %v2839
      %v2991 = vpop.permute.xlu0 %2990
      %2994 = vset.pattern.permute.xlu0 0
      %2995 = vperm.xlu0 %2994, %v2840
      %v2996 = vpop.permute.xlu0 %2995
      %2999 = vset.pattern.permute.xlu0 0
      %3000 = vperm.xlu0 %2999, %v2841
      %v3001 = vpop.permute.xlu0 %3000
      %3004 = vset.pattern.permute.xlu0 0
      %3005 = vperm.xlu0 %3004, %v2842
      %v3006 = vpop.permute.xlu0 %3005
      %3009 = vset.pattern.permute.xlu0 0
      %3010 = vperm.xlu0 %3009, %v2843
      %v3011 = vpop.permute.xlu0 %3010
      %3014 = vset.pattern.permute.xlu0 0
      %3015 = vperm.xlu0 %3014, %v2844
      %v3016 = vpop.permute.xlu0 %3015
      %3019 = vset.pattern.permute.xlu0 0
      %3020 = vperm.xlu0 %3019, %v2845
      %v3021 = vpop.permute.xlu0 %3020
      %3024 = vset.pattern.permute.xlu0 0
      %3025 = vperm.xlu0 %3024, %v2846
      %v3026 = vpop.permute.xlu0 %3025
      %3029 = vset.pattern.permute.xlu0 0
      %3030 = vperm.xlu0 %3029, %v2847
      %v3031 = vpop.permute.xlu0 %3030
      %3034 = vset.pattern.permute.xlu0 0
      %3035 = vperm.xlu0 %3034, %v2848
      %v3036 = vpop.permute.xlu0 %3035
      %3039 = vset.pattern.permute.xlu0 0
      %3040 = vperm.xlu0 %3039, %v2849
      %v3041 = vpop.permute.xlu0 %3040
      %3044 = vset.pattern.permute.xlu0 0
      %3045 = vperm.xlu0 %3044, %v2850
      %v3046 = vpop.permute.xlu0 %3045
      %3049 = vset.pattern.permute.xlu0 0
      %3050 = vperm.xlu0 %3049, %v2851
      %v3051 = vpop.permute.xlu0 %3050
      %3054 = vset.pattern.permute.xlu0 0
      %3055 = vperm.xlu0 %3054, %v2852
      %v3056 = vpop.permute.xlu0 %3055
      %3059 = vset.pattern.permute.xlu0 0
      %3060 = vperm.xlu0 %3059, %v2853
      %v3061 = vpop.permute.xlu0 %3060
      %3064 = vset.pattern.permute.xlu0 0
      %3065 = vperm.xlu0 %3064, %v2854
      %v3066 = vpop.permute.xlu0 %3065
      %3069 = vset.pattern.permute.xlu0 0
      %3070 = vperm.xlu0 %3069, %v2855
      %v3071 = vpop.permute.xlu0 %3070
      %v3073 = vlaneseq
      %v3074 = vshrl.u32 %v3073, 7
      %v3075 = vsub.s32 0, %v3074
      %v3076 = vrot.slane %v2856, %v3075
      %v3077 = vmul.f32 %v2896, %v3076
      %v3078 = vmul.f32 %v2901, %v3076
      %v3079 = vmul.f32 %v2906, %v3076
      %v3080 = vmul.f32 %v2911, %v3076
      %v3081 = vmul.f32 %v2916, %v3076
      %v3082 = vmul.f32 %v2921, %v3076
      %v3083 = vmul.f32 %v2926, %v3076
      %v3084 = vmul.f32 %v2931, %v3076
      %v3085 = vmul.f32 %v2936, %v3076
      %v3086 = vmul.f32 %v2941, %v3076
      %v3087 = vmul.f32 %v2946, %v3076
      %v3088 = vmul.f32 %v2951, %v3076
      %v3089 = vmul.f32 %v2956, %v3076
      %v3090 = vmul.f32 %v2961, %v3076
      %v3091 = vmul.f32 %v2966, %v3076
      %v3092 = vmul.f32 %v2971, %v3076
      %v3093 = vmul.f32 %v2976, %v3076
      %v3094 = vmul.f32 %v2981, %v3076
      %v3095 = vmul.f32 %v2986, %v3076
      %v3096 = vmul.f32 %v2991, %v3076
      %v3097 = vmul.f32 %v2996, %v3076
      %v3098 = vmul.f32 %v3001, %v3076
      %v3099 = vmul.f32 %v3006, %v3076
      %v3100 = vmul.f32 %v3011, %v3076
      %v3101 = vmul.f32 %v3016, %v3076
      %v3102 = vmul.f32 %v3021, %v3076
      %v3103 = vmul.f32 %v3026, %v3076
      %v3104 = vmul.f32 %v3031, %v3076
      %v3105 = vmul.f32 %v3036, %v3076
      %v3106 = vmul.f32 %v3041, %v3076
      %v3107 = vmul.f32 %v3046, %v3076
      %v3108 = vmul.f32 %v3051, %v3076
      %v3109 = vmul.f32 %v3056, %v3076
      %v3110 = vmul.f32 %v3061, %v3076
      %v3111 = vmul.f32 %v3066, %v3076
      %v3112 = vmul.f32 %v3071, %v3076
      %v3113 = vadd.f32 %v2857, %v3077
      %v3114 = vadd.f32 %v2858, %v3078
      %v3115 = vadd.f32 %v2859, %v3079
      %v3116 = vadd.f32 %v2860, %v3080
      %v3117 = vadd.f32 %v2861, %v3081
      %v3118 = vadd.f32 %v2862, %v3082
      %v3119 = vadd.f32 %v2863, %v3083
      %v3120 = vadd.f32 %v2864, %v3084
      %v3121 = vadd.f32 %v2865, %v3085
      %v3122 = vadd.f32 %v2866, %v3086
      %v3123 = vadd.f32 %v2867, %v3087
      %v3124 = vadd.f32 %v2868, %v3088
      %v3125 = vadd.f32 %v2869, %v3089
      %v3126 = vadd.f32 %v2870, %v3090
      %v3127 = vadd.f32 %v2871, %v3091
      %v3128 = vadd.f32 %v2872, %v3092
      %v3129 = vadd.f32 %v2873, %v3093
      %v3130 = vadd.f32 %v2874, %v3094
      %v3131 = vadd.f32 %v2875, %v3095
      %v3132 = vadd.f32 %v2876, %v3096
      %v3133 = vadd.f32 %v2877, %v3097
      %v3134 = vadd.f32 %v2878, %v3098
      %v3135 = vadd.f32 %v2879, %v3099
      %v3136 = vadd.f32 %v2880, %v3100
      %v3137 = vadd.f32 %v2881, %v3101
      %v3138 = vadd.f32 %v2882, %v3102
      %v3139 = vadd.f32 %v2883, %v3103
      %v3140 = vadd.f32 %v2884, %v3104
      %v3141 = vadd.f32 %v2885, %v3105
      %v3142 = vadd.f32 %v2886, %v3106
      %v3143 = vadd.f32 %v2887, %v3107
      %v3144 = vadd.f32 %v2888, %v3108
      %v3145 = vadd.f32 %v2889, %v3109
      %v3146 = vadd.f32 %v2890, %v3110
      %v3147 = vadd.f32 %v2891, %v3111
      %v3148 = vadd.f32 %v2892, %v3112
      %3149 = vst.msk [vmem:[#allocation3] sm:$0xff] %vm228, %v3113
      %3150 = vst.msk [vmem:[#allocation3 + $0x8] sm:$0xff] %vm228, %v3114
      %3151 = vst.msk [vmem:[#allocation3 + $0x10] sm:$0xff] %vm228, %v3115
      %3152 = vst.msk [vmem:[#allocation3 + $0x18] sm:$0xff] %vm228, %v3116
      %3153 = vst.msk [vmem:[#allocation3 + $0x20] sm:$0xff] %vm228, %v3117
      %3154 = vst.msk [vmem:[#allocation3 + $0x28] sm:$0xff] %vm228, %v3118
      %3155 = vst.msk [vmem:[#allocation3 + $0x30] sm:$0xff] %vm228, %v3119
      %3156 = vst.msk [vmem:[#allocation3 + $0x38] sm:$0xff] %vm228, %v3120
      %3157 = vst.msk [vmem:[#allocation3 + $0x40] sm:$0xff] %vm228, %v3121
      %3158 = vst.msk [vmem:[#allocation3 + $0x48] sm:$0xff] %vm228, %v3122
      %3159 = vst.msk [vmem:[#allocation3 + $0x50] sm:$0xff] %vm228, %v3123
      %3160 = vst.msk [vmem:[#allocation3 + $0x58] sm:$0xff] %vm228, %v3124
      %3161 = vst.msk [vmem:[#allocation3 + $0x60] sm:$0xff] %vm228, %v3125
      %3162 = vst.msk [vmem:[#allocation3 + $0x68] sm:$0xff] %vm228, %v3126
      %3163 = vst.msk [vmem:[#allocation3 + $0x70] sm:$0xff] %vm228, %v3127
      %3164 = vst.msk [vmem:[#allocation3 + $0x78] sm:$0xff] %vm228, %v3128
      %3165 = vst.msk [vmem:[#allocation3 + $0x80] sm:$0xff] %vm228, %v3129
      %3166 = vst.msk [vmem:[#allocation3 + $0x88] sm:$0xff] %vm228, %v3130
      %3167 = vst.msk [vmem:[#allocation3 + $0x90] sm:$0xff] %vm228, %v3131
      %3168 = vst.msk [vmem:[#allocation3 + $0x98] sm:$0xff] %vm228, %v3132
      %3169 = vst.msk [vmem:[#allocation3 + $0xa0] sm:$0xff] %vm228, %v3133
      %3170 = vst.msk [vmem:[#allocation3 + $0xa8] sm:$0xff] %vm228, %v3134
      %3171 = vst.msk [vmem:[#allocation3 + $0xb0] sm:$0xff] %vm228, %v3135
      %3172 = vst.msk [vmem:[#allocation3 + $0xb8] sm:$0xff] %vm228, %v3136
      %3173 = vst.msk [vmem:[#allocation3 + $0xc0] sm:$0xff] %vm228, %v3137
      %3174 = vst.msk [vmem:[#allocation3 + $0xc8] sm:$0xff] %vm228, %v3138
      %3175 = vst.msk [vmem:[#allocation3 + $0xd0] sm:$0xff] %vm228, %v3139
      %3176 = vst.msk [vmem:[#allocation3 + $0xd8] sm:$0xff] %vm228, %v3140
      %3177 = vst.msk [vmem:[#allocation3 + $0xe0] sm:$0xff] %vm228, %v3141
      %3178 = vst.msk [vmem:[#allocation3 + $0xe8] sm:$0xff] %vm228, %v3142
      %3179 = vst.msk [vmem:[#allocation3 + $0xf0] sm:$0xff] %vm228, %v3143
      %3180 = vst.msk [vmem:[#allocation3 + $0xf8] sm:$0xff] %vm228, %v3144
      %3181 = vst.msk [vmem:[#allocation3 + $0x100] sm:$0xff] %vm228, %v3145
      %3182 = vst.msk [vmem:[#allocation3 + $0x108] sm:$0xff] %vm228, %v3146
      %3183 = vst.msk [vmem:[#allocation3 + $0x110] sm:$0xff] %vm228, %v3147
      %3184 = vst.msk [vmem:[#allocation3 + $0x118] sm:$0xff] %vm228, %v3148
      %v3185 = vld [vmem:[#allocation2 + $0x26] sm:$0xff]
      %v3186 = vld [vmem:[#allocation2 + $0x2e] sm:$0xff]
      %v3187 = vld [vmem:[#allocation2 + $0x36] sm:$0xff]
      %v3188 = vld [vmem:[#allocation2 + $0x3e] sm:$0xff]
      %v3189 = vld [vmem:[#allocation2 + $0x46] sm:$0xff]
      %v3190 = vld [vmem:[#allocation2 + $0x4e] sm:$0xff]
      %v3191 = vld [vmem:[#allocation2 + $0x56] sm:$0xff]
      %v3192 = vld [vmem:[#allocation2 + $0x5e] sm:$0xff]
      %v3193 = vld [vmem:[#allocation2 + $0x66] sm:$0xff]
      %v3194 = vld [vmem:[#allocation2 + $0x6e] sm:$0xff]
      %v3195 = vld [vmem:[#allocation2 + $0x76] sm:$0xff]
      %v3196 = vld [vmem:[#allocation2 + $0x7e] sm:$0xff]
      %v3197 = vld [vmem:[#allocation2 + $0x86] sm:$0xff]
      %v3198 = vld [vmem:[#allocation2 + $0x8e] sm:$0xff]
      %v3199 = vld [vmem:[#allocation2 + $0x96] sm:$0xff]
      %v3200 = vld [vmem:[#allocation2 + $0x9e] sm:$0xff]
      %v3201 = vld [vmem:[#allocation2 + $0xa6] sm:$0xff]
      %v3202 = vld [vmem:[#allocation2 + $0xae] sm:$0xff]
      %v3203 = vld [vmem:[#allocation2 + $0xb6] sm:$0xff]
      %v3204 = vld [vmem:[#allocation2 + $0xbe] sm:$0xff]
      %v3205 = vld [vmem:[#allocation2 + $0xc6] sm:$0xff]
      %v3206 = vld [vmem:[#allocation2 + $0xce] sm:$0xff]
      %v3207 = vld [vmem:[#allocation2 + $0xd6] sm:$0xff]
      %v3208 = vld [vmem:[#allocation2 + $0xde] sm:$0xff]
      %v3209 = vld [vmem:[#allocation2 + $0xe6] sm:$0xff]
      %v3210 = vld [vmem:[#allocation2 + $0xee] sm:$0xff]
      %v3211 = vld [vmem:[#allocation2 + $0xf6] sm:$0xff]
      %v3212 = vld [vmem:[#allocation2 + $0xfe] sm:$0xff]
      %v3213 = vld [vmem:[#allocation2 + $0x106] sm:$0xff]
      %v3214 = vld [vmem:[#allocation2 + $0x10e] sm:$0xff]
      %v3215 = vld [vmem:[#allocation2 + $0x116] sm:$0xff]
      %v3216 = vld [vmem:[#allocation2 + $0x11e] sm:$0xff]
      %v3217 = vld [vmem:[#allocation2 + $0x126] sm:$0xff]
      %v3218 = vld [vmem:[#allocation2 + $0x12e] sm:$0xff]
      %v3219 = vld [vmem:[#allocation2 + $0x136] sm:$0xff]
      %v3220 = vld [vmem:[#allocation2 + $0x13e] sm:$0xff]
      %v3221 = vld [vmem:[%s1 + $0x8] sm:$0x1]
      %v3222 = vld [vmem:[#allocation3] sm:$0xff]
      %v3223 = vld [vmem:[#allocation3 + $0x8] sm:$0xff]
      %v3224 = vld [vmem:[#allocation3 + $0x10] sm:$0xff]
      %v3225 = vld [vmem:[#allocation3 + $0x18] sm:$0xff]
      %v3226 = vld [vmem:[#allocation3 + $0x20] sm:$0xff]
      %v3227 = vld [vmem:[#allocation3 + $0x28] sm:$0xff]
      %v3228 = vld [vmem:[#allocation3 + $0x30] sm:$0xff]
      %v3229 = vld [vmem:[#allocation3 + $0x38] sm:$0xff]
      %v3230 = vld [vmem:[#allocation3 + $0x40] sm:$0xff]
      %v3231 = vld [vmem:[#allocation3 + $0x48] sm:$0xff]
      %v3232 = vld [vmem:[#allocation3 + $0x50] sm:$0xff]
      %v3233 = vld [vmem:[#allocation3 + $0x58] sm:$0xff]
      %v3234 = vld [vmem:[#allocation3 + $0x60] sm:$0xff]
      %v3235 = vld [vmem:[#allocation3 + $0x68] sm:$0xff]
      %v3236 = vld [vmem:[#allocation3 + $0x70] sm:$0xff]
      %v3237 = vld [vmem:[#allocation3 + $0x78] sm:$0xff]
      %v3238 = vld [vmem:[#allocation3 + $0x80] sm:$0xff]
      %v3239 = vld [vmem:[#allocation3 + $0x88] sm:$0xff]
      %v3240 = vld [vmem:[#allocation3 + $0x90] sm:$0xff]
      %v3241 = vld [vmem:[#allocation3 + $0x98] sm:$0xff]
      %v3242 = vld [vmem:[#allocation3 + $0xa0] sm:$0xff]
      %v3243 = vld [vmem:[#allocation3 + $0xa8] sm:$0xff]
      %v3244 = vld [vmem:[#allocation3 + $0xb0] sm:$0xff]
      %v3245 = vld [vmem:[#allocation3 + $0xb8] sm:$0xff]
      %v3246 = vld [vmem:[#allocation3 + $0xc0] sm:$0xff]
      %v3247 = vld [vmem:[#allocation3 + $0xc8] sm:$0xff]
      %v3248 = vld [vmem:[#allocation3 + $0xd0] sm:$0xff]
      %v3249 = vld [vmem:[#allocation3 + $0xd8] sm:$0xff]
      %v3250 = vld [vmem:[#allocation3 + $0xe0] sm:$0xff]
      %v3251 = vld [vmem:[#allocation3 + $0xe8] sm:$0xff]
      %v3252 = vld [vmem:[#allocation3 + $0xf0] sm:$0xff]
      %v3253 = vld [vmem:[#allocation3 + $0xf8] sm:$0xff]
      %v3254 = vld [vmem:[#allocation3 + $0x100] sm:$0xff]
      %v3255 = vld [vmem:[#allocation3 + $0x108] sm:$0xff]
      %v3256 = vld [vmem:[#allocation3 + $0x110] sm:$0xff]
      %v3257 = vld [vmem:[#allocation3 + $0x118] sm:$0xff]
      %3259 = vset.pattern.permute.xlu0 0
      %3260 = vperm.xlu0 %3259, %v3185
      %v3261 = vpop.permute.xlu0 %3260
      %3264 = vset.pattern.permute.xlu0 0
      %3265 = vperm.xlu0 %3264, %v3186
      %v3266 = vpop.permute.xlu0 %3265
      %3269 = vset.pattern.permute.xlu0 0
      %3270 = vperm.xlu0 %3269, %v3187
      %v3271 = vpop.permute.xlu0 %3270
      %3274 = vset.pattern.permute.xlu0 0
      %3275 = vperm.xlu0 %3274, %v3188
      %v3276 = vpop.permute.xlu0 %3275
      %3279 = vset.pattern.permute.xlu0 0
      %3280 = vperm.xlu0 %3279, %v3189
      %v3281 = vpop.permute.xlu0 %3280
      %3284 = vset.pattern.permute.xlu0 0
      %3285 = vperm.xlu0 %3284, %v3190
      %v3286 = vpop.permute.xlu0 %3285
      %3289 = vset.pattern.permute.xlu0 0
      %3290 = vperm.xlu0 %3289, %v3191
      %v3291 = vpop.permute.xlu0 %3290
      %3294 = vset.pattern.permute.xlu0 0
      %3295 = vperm.xlu0 %3294, %v3192
      %v3296 = vpop.permute.xlu0 %3295
      %3299 = vset.pattern.permute.xlu0 0
      %3300 = vperm.xlu0 %3299, %v3193
      %v3301 = vpop.permute.xlu0 %3300
      %3304 = vset.pattern.permute.xlu0 0
      %3305 = vperm.xlu0 %3304, %v3194
      %v3306 = vpop.permute.xlu0 %3305
      %3309 = vset.pattern.permute.xlu0 0
      %3310 = vperm.xlu0 %3309, %v3195
      %v3311 = vpop.permute.xlu0 %3310
      %3314 = vset.pattern.permute.xlu0 0
      %3315 = vperm.xlu0 %3314, %v3196
      %v3316 = vpop.permute.xlu0 %3315
      %3319 = vset.pattern.permute.xlu0 0
      %3320 = vperm.xlu0 %3319, %v3197
      %v3321 = vpop.permute.xlu0 %3320
      %3324 = vset.pattern.permute.xlu0 0
      %3325 = vperm.xlu0 %3324, %v3198
      %v3326 = vpop.permute.xlu0 %3325
      %3329 = vset.pattern.permute.xlu0 0
      %3330 = vperm.xlu0 %3329, %v3199
      %v3331 = vpop.permute.xlu0 %3330
      %3334 = vset.pattern.permute.xlu0 0
      %3335 = vperm.xlu0 %3334, %v3200
      %v3336 = vpop.permute.xlu0 %3335
      %3339 = vset.pattern.permute.xlu0 0
      %3340 = vperm.xlu0 %3339, %v3201
      %v3341 = vpop.permute.xlu0 %3340
      %3344 = vset.pattern.permute.xlu0 0
      %3345 = vperm.xlu0 %3344, %v3202
      %v3346 = vpop.permute.xlu0 %3345
      %3349 = vset.pattern.permute.xlu0 0
      %3350 = vperm.xlu0 %3349, %v3203
      %v3351 = vpop.permute.xlu0 %3350
      %3354 = vset.pattern.permute.xlu0 0
      %3355 = vperm.xlu0 %3354, %v3204
      %v3356 = vpop.permute.xlu0 %3355
      %3359 = vset.pattern.permute.xlu0 0
      %3360 = vperm.xlu0 %3359, %v3205
      %v3361 = vpop.permute.xlu0 %3360
      %3364 = vset.pattern.permute.xlu0 0
      %3365 = vperm.xlu0 %3364, %v3206
      %v3366 = vpop.permute.xlu0 %3365
      %3369 = vset.pattern.permute.xlu0 0
      %3370 = vperm.xlu0 %3369, %v3207
      %v3371 = vpop.permute.xlu0 %3370
      %3374 = vset.pattern.permute.xlu0 0
      %3375 = vperm.xlu0 %3374, %v3208
      %v3376 = vpop.permute.xlu0 %3375
      %3379 = vset.pattern.permute.xlu0 0
      %3380 = vperm.xlu0 %3379, %v3209
      %v3381 = vpop.permute.xlu0 %3380
      %3384 = vset.pattern.permute.xlu0 0
      %3385 = vperm.xlu0 %3384, %v3210
      %v3386 = vpop.permute.xlu0 %3385
      %3389 = vset.pattern.permute.xlu0 0
      %3390 = vperm.xlu0 %3389, %v3211
      %v3391 = vpop.permute.xlu0 %3390
      %3394 = vset.pattern.permute.xlu0 0
      %3395 = vperm.xlu0 %3394, %v3212
      %v3396 = vpop.permute.xlu0 %3395
      %3399 = vset.pattern.permute.xlu0 0
      %3400 = vperm.xlu0 %3399, %v3213
      %v3401 = vpop.permute.xlu0 %3400
      %3404 = vset.pattern.permute.xlu0 0
      %3405 = vperm.xlu0 %3404, %v3214
      %v3406 = vpop.permute.xlu0 %3405
      %3409 = vset.pattern.permute.xlu0 0
      %3410 = vperm.xlu0 %3409, %v3215
      %v3411 = vpop.permute.xlu0 %3410
      %3414 = vset.pattern.permute.xlu0 0
      %3415 = vperm.xlu0 %3414, %v3216
      %v3416 = vpop.permute.xlu0 %3415
      %3419 = vset.pattern.permute.xlu0 0
      %3420 = vperm.xlu0 %3419, %v3217
      %v3421 = vpop.permute.xlu0 %3420
      %3424 = vset.pattern.permute.xlu0 0
      %3425 = vperm.xlu0 %3424, %v3218
      %v3426 = vpop.permute.xlu0 %3425
      %3429 = vset.pattern.permute.xlu0 0
      %3430 = vperm.xlu0 %3429, %v3219
      %v3431 = vpop.permute.xlu0 %3430
      %3434 = vset.pattern.permute.xlu0 0
      %3435 = vperm.xlu0 %3434, %v3220
      %v3436 = vpop.permute.xlu0 %3435
      %v3438 = vlaneseq
      %v3439 = vshrl.u32 %v3438, 7
      %v3440 = vsub.s32 0, %v3439
      %v3441 = vrot.slane %v3221, %v3440
      %v3442 = vmul.f32 %v3261, %v3441
      %v3443 = vmul.f32 %v3266, %v3441
      %v3444 = vmul.f32 %v3271, %v3441
      %v3445 = vmul.f32 %v3276, %v3441
      %v3446 = vmul.f32 %v3281, %v3441
      %v3447 = vmul.f32 %v3286, %v3441
      %v3448 = vmul.f32 %v3291, %v3441
      %v3449 = vmul.f32 %v3296, %v3441
      %v3450 = vmul.f32 %v3301, %v3441
      %v3451 = vmul.f32 %v3306, %v3441
      %v3452 = vmul.f32 %v3311, %v3441
      %v3453 = vmul.f32 %v3316, %v3441
      %v3454 = vmul.f32 %v3321, %v3441
      %v3455 = vmul.f32 %v3326, %v3441
      %v3456 = vmul.f32 %v3331, %v3441
      %v3457 = vmul.f32 %v3336, %v3441
      %v3458 = vmul.f32 %v3341, %v3441
      %v3459 = vmul.f32 %v3346, %v3441
      %v3460 = vmul.f32 %v3351, %v3441
      %v3461 = vmul.f32 %v3356, %v3441
      %v3462 = vmul.f32 %v3361, %v3441
      %v3463 = vmul.f32 %v3366, %v3441
      %v3464 = vmul.f32 %v3371, %v3441
      %v3465 = vmul.f32 %v3376, %v3441
      %v3466 = vmul.f32 %v3381, %v3441
      %v3467 = vmul.f32 %v3386, %v3441
      %v3468 = vmul.f32 %v3391, %v3441
      %v3469 = vmul.f32 %v3396, %v3441
      %v3470 = vmul.f32 %v3401, %v3441
      %v3471 = vmul.f32 %v3406, %v3441
      %v3472 = vmul.f32 %v3411, %v3441
      %v3473 = vmul.f32 %v3416, %v3441
      %v3474 = vmul.f32 %v3421, %v3441
      %v3475 = vmul.f32 %v3426, %v3441
      %v3476 = vmul.f32 %v3431, %v3441
      %v3477 = vmul.f32 %v3436, %v3441
      %v3478 = vadd.f32 %v3222, %v3442
      %v3479 = vadd.f32 %v3223, %v3443
      %v3480 = vadd.f32 %v3224, %v3444
      %v3481 = vadd.f32 %v3225, %v3445
      %v3482 = vadd.f32 %v3226, %v3446
      %v3483 = vadd.f32 %v3227, %v3447
      %v3484 = vadd.f32 %v3228, %v3448
      %v3485 = vadd.f32 %v3229, %v3449
      %v3486 = vadd.f32 %v3230, %v3450
      %v3487 = vadd.f32 %v3231, %v3451
      %v3488 = vadd.f32 %v3232, %v3452
      %v3489 = vadd.f32 %v3233, %v3453
      %v3490 = vadd.f32 %v3234, %v3454
      %v3491 = vadd.f32 %v3235, %v3455
      %v3492 = vadd.f32 %v3236, %v3456
      %v3493 = vadd.f32 %v3237, %v3457
      %v3494 = vadd.f32 %v3238, %v3458
      %v3495 = vadd.f32 %v3239, %v3459
      %v3496 = vadd.f32 %v3240, %v3460
      %v3497 = vadd.f32 %v3241, %v3461
      %v3498 = vadd.f32 %v3242, %v3462
      %v3499 = vadd.f32 %v3243, %v3463
      %v3500 = vadd.f32 %v3244, %v3464
      %v3501 = vadd.f32 %v3245, %v3465
      %v3502 = vadd.f32 %v3246, %v3466
      %v3503 = vadd.f32 %v3247, %v3467
      %v3504 = vadd.f32 %v3248, %v3468
      %v3505 = vadd.f32 %v3249, %v3469
      %v3506 = vadd.f32 %v3250, %v3470
      %v3507 = vadd.f32 %v3251, %v3471
      %v3508 = vadd.f32 %v3252, %v3472
      %v3509 = vadd.f32 %v3253, %v3473
      %v3510 = vadd.f32 %v3254, %v3474
      %v3511 = vadd.f32 %v3255, %v3475
      %v3512 = vadd.f32 %v3256, %v3476
      %v3513 = vadd.f32 %v3257, %v3477
      %3514 = vst.msk [vmem:[#allocation3] sm:$0xff] %vm228, %v3478
      %3515 = vst.msk [vmem:[#allocation3 + $0x8] sm:$0xff] %vm228, %v3479
      %3516 = vst.msk [vmem:[#allocation3 + $0x10] sm:$0xff] %vm228, %v3480
      %3517 = vst.msk [vmem:[#allocation3 + $0x18] sm:$0xff] %vm228, %v3481
      %3518 = vst.msk [vmem:[#allocation3 + $0x20] sm:$0xff] %vm228, %v3482
      %3519 = vst.msk [vmem:[#allocation3 + $0x28] sm:$0xff] %vm228, %v3483
      %3520 = vst.msk [vmem:[#allocation3 + $0x30] sm:$0xff] %vm228, %v3484
      %3521 = vst.msk [vmem:[#allocation3 + $0x38] sm:$0xff] %vm228, %v3485
      %3522 = vst.msk [vmem:[#allocation3 + $0x40] sm:$0xff] %vm228, %v3486
      %3523 = vst.msk [vmem:[#allocation3 + $0x48] sm:$0xff] %vm228, %v3487
      %3524 = vst.msk [vmem:[#allocation3 + $0x50] sm:$0xff] %vm228, %v3488
      %3525 = vst.msk [vmem:[#allocation3 + $0x58] sm:$0xff] %vm228, %v3489
      %3526 = vst.msk [vmem:[#allocation3 + $0x60] sm:$0xff] %vm228, %v3490
      %3527 = vst.msk [vmem:[#allocation3 + $0x68] sm:$0xff] %vm228, %v3491
      %3528 = vst.msk [vmem:[#allocation3 + $0x70] sm:$0xff] %vm228, %v3492
      %3529 = vst.msk [vmem:[#allocation3 + $0x78] sm:$0xff] %vm228, %v3493
      %3530 = vst.msk [vmem:[#allocation3 + $0x80] sm:$0xff] %vm228, %v3494
      %3531 = vst.msk [vmem:[#allocation3 + $0x88] sm:$0xff] %vm228, %v3495
      %3532 = vst.msk [vmem:[#allocation3 + $0x90] sm:$0xff] %vm228, %v3496
      %3533 = vst.msk [vmem:[#allocation3 + $0x98] sm:$0xff] %vm228, %v3497
      %3534 = vst.msk [vmem:[#allocation3 + $0xa0] sm:$0xff] %vm228, %v3498
      %3535 = vst.msk [vmem:[#allocation3 + $0xa8] sm:$0xff] %vm228, %v3499
      %3536 = vst.msk [vmem:[#allocation3 + $0xb0] sm:$0xff] %vm228, %v3500
      %3537 = vst.msk [vmem:[#allocation3 + $0xb8] sm:$0xff] %vm228, %v3501
      %3538 = vst.msk [vmem:[#allocation3 + $0xc0] sm:$0xff] %vm228, %v3502
      %3539 = vst.msk [vmem:[#allocation3 + $0xc8] sm:$0xff] %vm228, %v3503
      %3540 = vst.msk [vmem:[#allocation3 + $0xd0] sm:$0xff] %vm228, %v3504
      %3541 = vst.msk [vmem:[#allocation3 + $0xd8] sm:$0xff] %vm228, %v3505
      %3542 = vst.msk [vmem:[#allocation3 + $0xe0] sm:$0xff] %vm228, %v3506
      %3543 = vst.msk [vmem:[#allocation3 + $0xe8] sm:$0xff] %vm228, %v3507
      %3544 = vst.msk [vmem:[#allocation3 + $0xf0] sm:$0xff] %vm228, %v3508
      %3545 = vst.msk [vmem:[#allocation3 + $0xf8] sm:$0xff] %vm228, %v3509
      %3546 = vst.msk [vmem:[#allocation3 + $0x100] sm:$0xff] %vm228, %v3510
      %3547 = vst.msk [vmem:[#allocation3 + $0x108] sm:$0xff] %vm228, %v3511
      %3548 = vst.msk [vmem:[#allocation3 + $0x110] sm:$0xff] %vm228, %v3512
      %3549 = vst.msk [vmem:[#allocation3 + $0x118] sm:$0xff] %vm228, %v3513
      %v3550 = vld [vmem:[#allocation3] sm:$0xff]
      %v3551 = vld [vmem:[#allocation3 + $0x8] sm:$0xff]
      %v3552 = vld [vmem:[#allocation3 + $0x10] sm:$0xff]
      %v3553 = vld [vmem:[#allocation3 + $0x18] sm:$0xff]
      %v3554 = vld [vmem:[#allocation3 + $0x20] sm:$0xff]
      %v3555 = vld [vmem:[#allocation3 + $0x28] sm:$0xff]
      %v3556 = vld [vmem:[#allocation3 + $0x30] sm:$0xff]
      %v3557 = vld [vmem:[#allocation3 + $0x38] sm:$0xff]
      %v3558 = vld [vmem:[#allocation3 + $0x40] sm:$0xff]
      %v3559 = vld [vmem:[#allocation3 + $0x48] sm:$0xff]
      %v3560 = vld [vmem:[#allocation3 + $0x50] sm:$0xff]
      %v3561 = vld [vmem:[#allocation3 + $0x58] sm:$0xff]
      %v3562 = vld [vmem:[#allocation3 + $0x60] sm:$0xff]
      %v3563 = vld [vmem:[#allocation3 + $0x68] sm:$0xff]
      %v3564 = vld [vmem:[#allocation3 + $0x70] sm:$0xff]
      %v3565 = vld [vmem:[#allocation3 + $0x78] sm:$0xff]
      %v3566 = vld [vmem:[#allocation3 + $0x80] sm:$0xff]
      %v3567 = vld [vmem:[#allocation3 + $0x88] sm:$0xff]
      %v3568 = vld [vmem:[#allocation3 + $0x90] sm:$0xff]
      %v3569 = vld [vmem:[#allocation3 + $0x98] sm:$0xff]
      %v3570 = vld [vmem:[#allocation3 + $0xa0] sm:$0xff]
      %v3571 = vld [vmem:[#allocation3 + $0xa8] sm:$0xff]
      %v3572 = vld [vmem:[#allocation3 + $0xb0] sm:$0xff]
      %v3573 = vld [vmem:[#allocation3 + $0xb8] sm:$0xff]
      %v3574 = vld [vmem:[#allocation3 + $0xc0] sm:$0xff]
      %v3575 = vld [vmem:[#allocation3 + $0xc8] sm:$0xff]
      %v3576 = vld [vmem:[#allocation3 + $0xd0] sm:$0xff]
      %v3577 = vld [vmem:[#allocation3 + $0xd8] sm:$0xff]
      %v3578 = vld [vmem:[#allocation3 + $0xe0] sm:$0xff]
      %v3579 = vld [vmem:[#allocation3 + $0xe8] sm:$0xff]
      %v3580 = vld [vmem:[#allocation3 + $0xf0] sm:$0xff]
      %v3581 = vld [vmem:[#allocation3 + $0xf8] sm:$0xff]
      %v3582 = vld [vmem:[#allocation3 + $0x100] sm:$0xff]
      %v3583 = vld [vmem:[#allocation3 + $0x108] sm:$0xff]
      %v3584 = vld [vmem:[#allocation3 + $0x110] sm:$0xff]
      %v3585 = vld [vmem:[#allocation3 + $0x118] sm:$0xff]
      %vm3586 = vcmp.gt.f32.partialorder %v3550, 0.0
      %vm3587 = vcmp.gt.f32.partialorder %v3551, 0.0
      %vm3588 = vcmp.gt.f32.partialorder %v3552, 0.0
      %vm3589 = vcmp.gt.f32.partialorder %v3553, 0.0
      %vm3590 = vcmp.gt.f32.partialorder %v3554, 0.0
      %vm3591 = vcmp.gt.f32.partialorder %v3555, 0.0
      %vm3592 = vcmp.gt.f32.partialorder %v3556, 0.0
      %vm3593 = vcmp.gt.f32.partialorder %v3557, 0.0
      %vm3594 = vcmp.gt.f32.partialorder %v3558, 0.0
      %vm3595 = vcmp.gt.f32.partialorder %v3559, 0.0
      %vm3596 = vcmp.gt.f32.partialorder %v3560, 0.0
      %vm3597 = vcmp.gt.f32.partialorder %v3561, 0.0
      %vm3598 = vcmp.gt.f32.partialorder %v3562, 0.0
      %vm3599 = vcmp.gt.f32.partialorder %v3563, 0.0
      %vm3600 = vcmp.gt.f32.partialorder %v3564, 0.0
      %vm3601 = vcmp.gt.f32.partialorder %v3565, 0.0
      %vm3602 = vcmp.gt.f32.partialorder %v3566, 0.0
      %vm3603 = vcmp.gt.f32.partialorder %v3567, 0.0
      %vm3604 = vcmp.gt.f32.partialorder %v3568, 0.0
      %vm3605 = vcmp.gt.f32.partialorder %v3569, 0.0
      %vm3606 = vcmp.gt.f32.partialorder %v3570, 0.0
      %vm3607 = vcmp.gt.f32.partialorder %v3571, 0.0
      %vm3608 = vcmp.gt.f32.partialorder %v3572, 0.0
      %vm3609 = vcmp.gt.f32.partialorder %v3573, 0.0
      %vm3610 = vcmp.gt.f32.partialorder %v3574, 0.0
      %vm3611 = vcmp.gt.f32.partialorder %v3575, 0.0
      %vm3612 = vcmp.gt.f32.partialorder %v3576, 0.0
      %vm3613 = vcmp.gt.f32.partialorder %v3577, 0.0
      %vm3614 = vcmp.gt.f32.partialorder %v3578, 0.0
      %vm3615 = vcmp.gt.f32.partialorder %v3579, 0.0
      %vm3616 = vcmp.gt.f32.partialorder %v3580, 0.0
      %vm3617 = vcmp.gt.f32.partialorder %v3581, 0.0
      %vm3618 = vcmp.gt.f32.partialorder %v3582, 0.0
      %vm3619 = vcmp.gt.f32.partialorder %v3583, 0.0
      %vm3620 = vcmp.gt.f32.partialorder %v3584, 0.0
      %vm3621 = vcmp.gt.f32.partialorder %v3585, 0.0
      %v3622 = vmul.f32 %v3550, 0.2
      %v3623 = vmul.f32 %v3551, 0.2
      %v3624 = vmul.f32 %v3552, 0.2
      %v3625 = vmul.f32 %v3553, 0.2
      %v3626 = vmul.f32 %v3554, 0.2
      %v3627 = vmul.f32 %v3555, 0.2
      %v3628 = vmul.f32 %v3556, 0.2
      %v3629 = vmul.f32 %v3557, 0.2
      %v3630 = vmul.f32 %v3558, 0.2
      %v3631 = vmul.f32 %v3559, 0.2
      %v3632 = vmul.f32 %v3560, 0.2
      %v3633 = vmul.f32 %v3561, 0.2
      %v3634 = vmul.f32 %v3562, 0.2
      %v3635 = vmul.f32 %v3563, 0.2
      %v3636 = vmul.f32 %v3564, 0.2
      %v3637 = vmul.f32 %v3565, 0.2
      %v3638 = vmul.f32 %v3566, 0.2
      %v3639 = vmul.f32 %v3567, 0.2
      %v3640 = vmul.f32 %v3568, 0.2
      %v3641 = vmul.f32 %v3569, 0.2
      %v3642 = vmul.f32 %v3570, 0.2
      %v3643 = vmul.f32 %v3571, 0.2
      %v3644 = vmul.f32 %v3572, 0.2
      %v3645 = vmul.f32 %v3573, 0.2
      %v3646 = vmul.f32 %v3574, 0.2
      %v3647 = vmul.f32 %v3575, 0.2
      %v3648 = vmul.f32 %v3576, 0.2
      %v3649 = vmul.f32 %v3577, 0.2
      %v3650 = vmul.f32 %v3578, 0.2
      %v3651 = vmul.f32 %v3579, 0.2
      %v3652 = vmul.f32 %v3580, 0.2
      %v3653 = vmul.f32 %v3581, 0.2
      %v3654 = vmul.f32 %v3582, 0.2
      %v3655 = vmul.f32 %v3583, 0.2
      %v3656 = vmul.f32 %v3584, 0.2
      %v3657 = vmul.f32 %v3585, 0.2
      %v3658 = vsel %vm3586, %v3550, %v3622
      %v3659 = vsel %vm3587, %v3551, %v3623
      %v3660 = vsel %vm3588, %v3552, %v3624
      %v3661 = vsel %vm3589, %v3553, %v3625
      %v3662 = vsel %vm3590, %v3554, %v3626
      %v3663 = vsel %vm3591, %v3555, %v3627
      %v3664 = vsel %vm3592, %v3556, %v3628
      %v3665 = vsel %vm3593, %v3557, %v3629
      %v3666 = vsel %vm3594, %v3558, %v3630
      %v3667 = vsel %vm3595, %v3559, %v3631
      %v3668 = vsel %vm3596, %v3560, %v3632
      %v3669 = vsel %vm3597, %v3561, %v3633
      %v3670 = vsel %vm3598, %v3562, %v3634
      %v3671 = vsel %vm3599, %v3563, %v3635
      %v3672 = vsel %vm3600, %v3564, %v3636
      %v3673 = vsel %vm3601, %v3565, %v3637
      %v3674 = vsel %vm3602, %v3566, %v3638
      %v3675 = vsel %vm3603, %v3567, %v3639
      %v3676 = vsel %vm3604, %v3568, %v3640
      %v3677 = vsel %vm3605, %v3569, %v3641
      %v3678 = vsel %vm3606, %v3570, %v3642
      %v3679 = vsel %vm3607, %v3571, %v3643
      %v3680 = vsel %vm3608, %v3572, %v3644
      %v3681 = vsel %vm3609, %v3573, %v3645
      %v3682 = vsel %vm3610, %v3574, %v3646
      %v3683 = vsel %vm3611, %v3575, %v3647
      %v3684 = vsel %vm3612, %v3576, %v3648
      %v3685 = vsel %vm3613, %v3577, %v3649
      %v3686 = vsel %vm3614, %v3578, %v3650
      %v3687 = vsel %vm3615, %v3579, %v3651
      %v3688 = vsel %vm3616, %v3580, %v3652
      %v3689 = vsel %vm3617, %v3581, %v3653
      %v3690 = vsel %vm3618, %v3582, %v3654
      %v3691 = vsel %vm3619, %v3583, %v3655
      %v3692 = vsel %vm3620, %v3584, %v3656
      %v3693 = vsel %vm3621, %v3585, %v3657
      %v3694 = vpack.c.bf16 %v3659, %v3658
      %v3695 = vpack.c.bf16 %v3661, %v3660
      %v3696 = vpack.c.bf16 %v3663, %v3662
      %v3697 = vpack.c.bf16 %v3665, %v3664
      %v3698 = vpack.c.bf16 %v3667, %v3666
      %v3699 = vpack.c.bf16 %v3669, %v3668
      %v3700 = vpack.c.bf16 %v3671, %v3670
      %v3701 = vpack.c.bf16 %v3673, %v3672
      %v3702 = vpack.c.bf16 %v3675, %v3674
      %v3703 = vpack.c.bf16 %v3677, %v3676
      %v3704 = vpack.c.bf16 %v3679, %v3678
      %v3705 = vpack.c.bf16 %v3681, %v3680
      %v3706 = vpack.c.bf16 %v3683, %v3682
      %v3707 = vpack.c.bf16 %v3685, %v3684
      %v3708 = vpack.c.bf16 %v3687, %v3686
      %v3709 = vpack.c.bf16 %v3689, %v3688
      %v3710 = vpack.c.bf16 %v3691, %v3690
      %v3711 = vpack.c.bf16 %v3693, %v3692
      %v3730 = vunpack.c.l.b16 %v3694
      %v3731 = vunpack.c.h.b16 %v3694
      %v3732 = vunpack.c.l.b16 %v3695
      %v3733 = vunpack.c.h.b16 %v3695
      %v3734 = vunpack.c.l.b16 %v3696
      %v3735 = vunpack.c.h.b16 %v3696
      %v3736 = vunpack.c.l.b16 %v3697
      %v3737 = vunpack.c.h.b16 %v3697
      %v3738 = vunpack.c.l.b16 %v3698
      %v3739 = vunpack.c.h.b16 %v3698
      %v3740 = vunpack.c.l.b16 %v3699
      %v3741 = vunpack.c.h.b16 %v3699
      %v3742 = vunpack.c.l.b16 %v3700
      %v3743 = vunpack.c.h.b16 %v3700
      %v3744 = vunpack.c.l.b16 %v3701
      %v3745 = vunpack.c.h.b16 %v3701
      %v3746 = vunpack.c.l.b16 %v3702
      %v3747 = vunpack.c.h.b16 %v3702
      %v3748 = vunpack.c.l.b16 %v3703
      %v3749 = vunpack.c.h.b16 %v3703
      %v3750 = vunpack.c.l.b16 %v3704
      %v3751 = vunpack.c.h.b16 %v3704
      %v3752 = vunpack.c.l.b16 %v3705
      %v3753 = vunpack.c.h.b16 %v3705
      %v3754 = vunpack.c.l.b16 %v3706
      %v3755 = vunpack.c.h.b16 %v3706
      %v3756 = vunpack.c.l.b16 %v3707
      %v3757 = vunpack.c.h.b16 %v3707
      %v3758 = vunpack.c.l.b16 %v3708
      %v3759 = vunpack.c.h.b16 %v3708
      %v3760 = vunpack.c.l.b16 %v3709
      %v3761 = vunpack.c.h.b16 %v3709
      %v3762 = vunpack.c.l.b16 %v3710
      %v3763 = vunpack.c.h.b16 %v3710
      %v3764 = vunpack.c.l.b16 %v3711
      %v3765 = vunpack.c.h.b16 %v3711
      %v3766 = vpack.c.b16 %v3730, %v3730
      %v3767 = vpack.c.b16 %v3731, %v3731
      %v3768 = vpack.c.b16 %v3732, %v3732
      %v3769 = vpack.c.b16 %v3733, %v3733
      %v3770 = vpack.c.b16 %v3734, %v3734
      %v3771 = vpack.c.b16 %v3735, %v3735
      %v3772 = vpack.c.b16 %v3736, %v3736
      %v3773 = vpack.c.b16 %v3737, %v3737
      %v3774 = vpack.c.b16 %v3738, %v3738
      %v3775 = vpack.c.b16 %v3739, %v3739
      %v3776 = vpack.c.b16 %v3740, %v3740
      %v3777 = vpack.c.b16 %v3741, %v3741
      %v3778 = vpack.c.b16 %v3742, %v3742
      %v3779 = vpack.c.b16 %v3743, %v3743
      %v3780 = vpack.c.b16 %v3744, %v3744
      %v3781 = vpack.c.b16 %v3745, %v3745
      %v3782 = vpack.c.b16 %v3746, %v3746
      %v3783 = vpack.c.b16 %v3747, %v3747
      %v3784 = vpack.c.b16 %v3748, %v3748
      %v3785 = vpack.c.b16 %v3749, %v3749
      %v3786 = vpack.c.b16 %v3750, %v3750
      %v3787 = vpack.c.b16 %v3751, %v3751
      %v3788 = vpack.c.b16 %v3752, %v3752
      %v3789 = vpack.c.b16 %v3753, %v3753
      %v3790 = vpack.c.b16 %v3754, %v3754
      %v3791 = vpack.c.b16 %v3755, %v3755
      %v3792 = vpack.c.b16 %v3756, %v3756
      %v3793 = vpack.c.b16 %v3757, %v3757
      %v3794 = vpack.c.b16 %v3758, %v3758
      %v3795 = vpack.c.b16 %v3759, %v3759
      %v3796 = vpack.c.b16 %v3760, %v3760
      %v3797 = vpack.c.b16 %v3761, %v3761
      %v3798 = vpack.c.b16 %v3762, %v3762
      %v3799 = vpack.c.b16 %v3763, %v3763
      %v3800 = vpack.c.b16 %v3764, %v3764
      %v3801 = vpack.c.b16 %v3765, %v3765
      %vm3838 = vcmask 60416
      %3839 = vst.msk [vmem:[%s143] sm:$0xf] %vm3838, %v3766
      %3840 = vst.msk [vmem:[%s143 + $0x4] sm:$0xf] %vm3838, %v3767
      %3841 = vst.msk [vmem:[%s143 + $0x8] sm:$0xf] %vm3838, %v3768
      %3842 = vst.msk [vmem:[%s143 + $0xc] sm:$0xf] %vm3838, %v3769
      %3843 = vst.msk [vmem:[%s143 + $0x10] sm:$0xf] %vm3838, %v3770
      %3844 = vst.msk [vmem:[%s143 + $0x14] sm:$0xf] %vm3838, %v3771
      %3845 = vst.msk [vmem:[%s143 + $0x18] sm:$0xf] %vm3838, %v3772
      %3846 = vst.msk [vmem:[%s143 + $0x1c] sm:$0xf] %vm3838, %v3773
      %3847 = vst.msk [vmem:[%s143 + $0x20] sm:$0xf] %vm3838, %v3774
      %3848 = vst.msk [vmem:[%s143 + $0x24] sm:$0xf] %vm3838, %v3775
      %3849 = vst.msk [vmem:[%s143 + $0x28] sm:$0xf] %vm3838, %v3776
      %3850 = vst.msk [vmem:[%s143 + $0x2c] sm:$0xf] %vm3838, %v3777
      %3851 = vst.msk [vmem:[%s143 + $0x30] sm:$0xf] %vm3838, %v3778
      %3852 = vst.msk [vmem:[%s143 + $0x34] sm:$0xf] %vm3838, %v3779
      %3853 = vst.msk [vmem:[%s143 + $0x38] sm:$0xf] %vm3838, %v3780
      %3854 = vst.msk [vmem:[%s143 + $0x3c] sm:$0xf] %vm3838, %v3781
      %3855 = vst.msk [vmem:[%s143 + $0x40] sm:$0xf] %vm3838, %v3782
      %3856 = vst.msk [vmem:[%s143 + $0x44] sm:$0xf] %vm3838, %v3783
      %3857 = vst.msk [vmem:[%s143 + $0x48] sm:$0xf] %vm3838, %v3784
      %3858 = vst.msk [vmem:[%s143 + $0x4c] sm:$0xf] %vm3838, %v3785
      %3859 = vst.msk [vmem:[%s143 + $0x50] sm:$0xf] %vm3838, %v3786
      %3860 = vst.msk [vmem:[%s143 + $0x54] sm:$0xf] %vm3838, %v3787
      %3861 = vst.msk [vmem:[%s143 + $0x58] sm:$0xf] %vm3838, %v3788
      %3862 = vst.msk [vmem:[%s143 + $0x5c] sm:$0xf] %vm3838, %v3789
      %3863 = vst.msk [vmem:[%s143 + $0x60] sm:$0xf] %vm3838, %v3790
      %3864 = vst.msk [vmem:[%s143 + $0x64] sm:$0xf] %vm3838, %v3791
      %3865 = vst.msk [vmem:[%s143 + $0x68] sm:$0xf] %vm3838, %v3792
      %3866 = vst.msk [vmem:[%s143 + $0x6c] sm:$0xf] %vm3838, %v3793
      %3867 = vst.msk [vmem:[%s143 + $0x70] sm:$0xf] %vm3838, %v3794
      %3868 = vst.msk [vmem:[%s143 + $0x74] sm:$0xf] %vm3838, %v3795
      %3869 = vst.msk [vmem:[%s143 + $0x78] sm:$0xf] %vm3838, %v3796
      %3870 = vst.msk [vmem:[%s143 + $0x7c] sm:$0xf] %vm3838, %v3797
      %3871 = vst.msk [vmem:[%s143 + $0x80] sm:$0xf] %vm3838, %v3798
      %3872 = vst.msk [vmem:[%s143 + $0x84] sm:$0xf] %vm3838, %v3799
      %3873 = vst.msk [vmem:[%s143 + $0x88] sm:$0xf] %vm3838, %v3800
      %3874 = vst.msk [vmem:[%s143 + $0x8c] sm:$0xf] %vm3838, %v3801
      %p3875 = scmp.lt.s32.totalorder %s13, 1
      %s3876 = scalar_select %p3875, %s13, 1
      %s3877 = smul.addr %s3876, 36
      %s3878 = smul.addr %s3877, 4
      %s3879 = scalar_lea.vmem %s2, %s3878
      // Predicated region
      $region29: #{discriminator_forward.4} parent=27 // pred_check
        %p3880 = pneg %p78
      $region30: #{discriminator_forward.4} parent=27 // pred_check_branch
        %3882 = sbr.rel (%p3880) target = $region32
      $region31: #{discriminator_forward.4} parent=27 // pred_region
        _
      $region32: #{discriminator_forward.4} parent=27 // pred_fallthru
        _
    $region28: #{discriminator_forward.4} parent=5 // pred_fallthru
      _
    %p3883 = scmp.le.s32.totalorder 2, %s8
    // Predicated region
    $region33: #{discriminator_forward.4} parent=5 // pred_check
      %p3884 = pneg %p3883
    $region34: #{discriminator_forward.4} parent=5 // pred_check_branch
      %3886 = sbr.rel (%p3884) target = $region36
    $region35: #{discriminator_forward.4} parent=5 // pred_region
      %s3887 = ssub.s32 %s8, 2
      // Predicated region
      $region37: #{discriminator_forward.4} parent=35 // pred_check
        %p3888 = pneg %p84
      $region38: #{discriminator_forward.4} parent=35 // pred_check_branch
        %3890 = sbr.rel (%p3888) target = $region40
      $region39: #{discriminator_forward.4} parent=35 // pred_region
        %p3891 = scmp.lt.s32.totalorder %s14, 1
        %s3892 = scalar_select %p3891, %s14, 1
        %s3893 = smul.addr %s3892, 36
        %s3894 = smul.addr %s3893, 4
        %s3895 = scalar_lea.vmem %s2, %s3894
      $region40: #{discriminator_forward.4} parent=35 // pred_fallthru
        _
    $region36: #{discriminator_forward.4} parent=5 // pred_fallthru
      _
  $region6: #{discriminator_forward.4} parent=0 // loop_footer
    %s12 = sadd.s32 1, %s8
  $region7: #{discriminator_forward.4} parent=0 // loop_footer_branch
    %7 = sbr.rel target = $region3
  $region8: #{discriminator_forward.4} parent=0 // loop_exit
    _

// kernel: discriminator_forward.7
$region0: #{discriminator_forward.7}
  #allocation0 [shape = 'u32[]', space=smem, size = 0x4, offset = 0x4, fixed_abs, tag = 'smem constant byte address 0x4 - core index']
  #allocation1 [shape = 'u32[144,128]{1,0:T(1,128)}', space=vmem, size = 0x12000, scoped, tag = 'internal scratch']
  #allocation2 [shape = 'f32[1,39,32]{2,1,0:T(8,128)}', space=vmem, size = 0x5000, scoped, tag = 'scratch operand']
  #allocation3 [shape = 'f32[18,32]{1,0:T(8,128)}', space=vmem, size = 0x3000, scoped, tag = 'scratch operand']
  #allocation4 [shape = 'f32[1]{0:T(128)S(6)}', space=smem, size = 0x200, scoped, tag = 'scoped memory for discriminator_forward.7']
  %s0 = inlined_call_operand.vmem [shape: bf16[2,1,39,32], index: 0, kind: input, shape index: {}]
  %s1 = inlined_call_operand.vmem [shape: f32[16,32], index: 1, kind: input, shape index: {}]
  %s2 = inlined_call_operand.<no memory space> [shape: f32[1], index: 2, kind: input, shape index: {}]
  %s3 = inlined_call_operand.vmem [shape: f32[2,18,1], index: 3, kind: output, shape index: {}]
  %s4 = sld [smem:[#allocation0]]
  $region45: #{discriminator_forward.7} parent=0
    _
  %s6 = ssub.s32 1, %s4
  %s7 = scalar_select 0, %s6, %s4
  %8 = sst [smem:[#allocation4]] %s2
  loop: start=0, step=1, limit=4
  $region2: #{discriminator_forward.7} parent=0 // loop_pre_header
    _
  $region3: #{discriminator_forward.7} parent=0 // loop_header
    %s10 = sphi 0, %s14
    %p11 = scmp.ge.s32.totalorder %s10, 4
    %s20 = sphi 0, %s22
    %s23 = sphi 0, %s20
    %s24 = sphi 0, %s23
    %s40 = sphi 0, %s24
    %s44 = sphi 0, %s44
    %s46 = sphi 0, %s44
    %s47 = sphi 0, %s46
    %s61 = sphi 0, %s47
    %s65 = sphi 0, %s65
    %s67 = sphi 0, %s65
    %s68 = sphi 0, %s67
    %s82 = sphi 0, %s68
    %s88 = sphi 0, %s90
    %s91 = sphi 0, %s88
    %s92 = sphi 0, %s91
    %s108 = sphi 0, %s92
  $region4: #{discriminator_forward.7} parent=0 // loop_header_branch
    %13 = sbr.rel (%p11) target = $region8
  $region5: #{discriminator_forward.7} parent=0 // loop_body
    %s15 = ssub.s32 %s10, 1
    %s16 = ssub.s32 %s10, 2
    %s17 = sadd.s32 %s10, 1
    %s18 = ssub.s32 %s10, %s17
    %p19 = scmp.eq.s32.totalorder %s18, 0
    %s21 = sadd.s32 %s20, 1
    %s22 = scalar_select %p19, %s20, %s21
    %p25 = pneg %p19
    %p26 = scmp.eq.s32.totalorder %s10, 1
    %p27 = por %p25, %p26
    %p28 = scmp.ne.s32.totalorder %s20, %s23
    %p29 = scmp.eq.s32.totalorder %s10, 0
    %p30 = por %p28, %p29
    %p31 = scmp.ne.s32.totalorder %s20, %s23
    %p32 = scmp.eq.s32.totalorder %s15, 1
    %p33 = por %p31, %p32
    %p34 = scmp.ne.s32.totalorder %s23, %s24
    %p35 = scmp.eq.s32.totalorder %s15, 0
    %p36 = por %p34, %p35
    %p37 = scmp.ne.s32.totalorder %s23, %s24
    %p38 = scmp.eq.s32.totalorder %s16, 1
    %p39 = por %p37, %p38
    %p41 = scmp.ne.s32.totalorder %s24, %s40
    %p42 = scmp.eq.s32.totalorder %s16, 0
    %p43 = por %p41, %p42
    %s45 = sadd.s32 %s44, 1
    %p48 = scmp.eq.s32.totalorder %s10, 1
    %p49 = scmp.ne.s32.totalorder %s44, %s46
    %p50 = scmp.eq.s32.totalorder %s10, 0
    %p51 = por %p49, %p50
    %p52 = scmp.ne.s32.totalorder %s44, %s46
    %p53 = scmp.eq.s32.totalorder %s15, 1
    %p54 = por %p52, %p53
    %p55 = scmp.ne.s32.totalorder %s46, %s47
    %p56 = scmp.eq.s32.totalorder %s15, 0
    %p57 = por %p55, %p56
    %p58 = scmp.ne.s32.totalorder %s46, %s47
    %p59 = scmp.eq.s32.totalorder %s16, 1
    %p60 = por %p58, %p59
    %p62 = scmp.ne.s32.totalorder %s47, %s61
    %p63 = scmp.eq.s32.totalorder %s16, 0
    %p64 = por %p62, %p63
    %s66 = sadd.s32 %s65, 1
    %p69 = scmp.eq.s32.totalorder %s10, 1
    %p70 = scmp.ne.s32.totalorder %s65, %s67
    %p71 = scmp.eq.s32.totalorder %s10, 0
    %p72 = por %p70, %p71
    %p73 = scmp.ne.s32.totalorder %s65, %s67
    %p74 = scmp.eq.s32.totalorder %s15, 1
    %p75 = por %p73, %p74
    %p76 = scmp.ne.s32.totalorder %s67, %s68
    %p77 = scmp.eq.s32.totalorder %s15, 0
    %p78 = por %p76, %p77
    %p79 = scmp.ne.s32.totalorder %s67, %s68
    %p80 = scmp.eq.s32.totalorder %s16, 1
    %p81 = por %p79, %p80
    %p83 = scmp.ne.s32.totalorder %s68, %s82
    %p84 = scmp.eq.s32.totalorder %s16, 0
    %p85 = por %p83, %p84
    %s86 = ssub.s32 %s10, %s17
    %p87 = scmp.eq.s32.totalorder %s86, 0
    %s89 = sadd.s32 %s88, 1
    %s90 = scalar_select %p87, %s88, %s89
    %p93 = pneg %p87
    %p94 = scmp.eq.s32.totalorder %s10, 1
    %p95 = por %p93, %p94
    %p96 = scmp.ne.s32.totalorder %s88, %s91
    %p97 = scmp.eq.s32.totalorder %s10, 0
    %p98 = por %p96, %p97
    %p99 = scmp.ne.s32.totalorder %s88, %s91
    %p100 = scmp.eq.s32.totalorder %s15, 1
    %p101 = por %p99, %p100
    %p102 = scmp.ne.s32.totalorder %s91, %s92
    %p103 = scmp.eq.s32.totalorder %s15, 0
    %p104 = por %p102, %p103
    %p105 = scmp.ne.s32.totalorder %s91, %s92
    %p106 = scmp.eq.s32.totalorder %s16, 1
    %p107 = por %p105, %p106
    %p109 = scmp.ne.s32.totalorder %s92, %s108
    %p110 = scmp.eq.s32.totalorder %s16, 0
    %p111 = por %p109, %p110
    %p112 = scmp.le.s32.totalorder 1, %s10
    %p113 = scmp.lt.s32.totalorder %s10, 3
    %p114 = pnand %p112, %p113
    %p115 = pneg %p114
    // Predicated region
    $region9: #{discriminator_forward.7} parent=5 // pred_check
      _
    $region10: #{discriminator_forward.7} parent=5 // pred_check_branch
      %117 = sbr.rel (%p114) target = $region12
    $region11: #{discriminator_forward.7} parent=5 // pred_region
      %s118 = ssub.s32 %s10, 1
      // Predicated region
      $region13: #{discriminator_forward.7} parent=11 // pred_check
        %p119 = pneg %p57
      $region14: #{discriminator_forward.7} parent=11 // pred_check_branch
        %121 = sbr.rel (%p119) target = $region16
      $region15: #{discriminator_forward.7} parent=11 // pred_region
        _
      $region16: #{discriminator_forward.7} parent=11 // pred_fallthru
        _
      // Predicated region
      $region17: #{discriminator_forward.7} parent=11 // pred_check
        %p122 = pneg %p78
      $region18: #{discriminator_forward.7} parent=11 // pred_check_branch
        %124 = sbr.rel (%p122) target = $region20
      $region19: #{discriminator_forward.7} parent=11 // pred_region
        _
      $region20: #{discriminator_forward.7} parent=11 // pred_fallthru
        _
    $region12: #{discriminator_forward.7} parent=5 // pred_fallthru
      _
    %p125 = scmp.lt.s32.totalorder %s10, 2
    // Predicated region
    $region21: #{discriminator_forward.7} parent=5 // pred_check
      %p126 = pneg %p125
    $region22: #{discriminator_forward.7} parent=5 // pred_check_branch
      %128 = sbr.rel (%p126) target = $region24
    $region23: #{discriminator_forward.7} parent=5 // pred_region
      // Predicated region
      $region25: #{discriminator_forward.7} parent=23 // pred_check
        %p129 = pneg %p30
      $region26: #{discriminator_forward.7} parent=23 // pred_check_branch
        %131 = sbr.rel (%p129) target = $region28
      $region27: #{discriminator_forward.7} parent=23 // pred_region
        %p132 = scmp.lt.s32.totalorder %s10, 1
        %s133 = scalar_select %p132, %s10, 1
        %s134 = smul.addr %s133, 5
        %s135 = smul.addr %s134, 4
        %s136 = scalar_lea.vmem %s0, %s135
      $region28: #{discriminator_forward.7} parent=23 // pred_fallthru
        _
    $region24: #{discriminator_forward.7} parent=5 // pred_fallthru
      _
    %p137 = scmp.le.s32.totalorder 1, %s10
    %p138 = scmp.lt.s32.totalorder %s10, 3
    %p139 = pnand %p137, %p138
    %p140 = pneg %p139
    // Predicated region
    $region29: #{discriminator_forward.7} parent=5 // pred_check
      _
    $region30: #{discriminator_forward.7} parent=5 // pred_check_branch
      %142 = sbr.rel (%p139) target = $region32
    $region31: #{discriminator_forward.7} parent=5 // pred_region
      %s143 = ssub.s32 %s10, 1
      %p144 = scmp.lt.s32.totalorder %s15, 1
      %s145 = scalar_select %p144, %s15, 1
      %s146 = smul.addr %s145, 5
      %s147 = smul.addr %s146, 4
      %s148 = scalar_lea.vmem %s0, %s147
      %p149 = pneg %p36
      %p150 = pneg %p33
      %p151 = pneg %p57
      %p152 = pneg %p54
      %p153 = pneg %p78
      %p154 = pneg %p75
      %p155 = pneg %p104
      %p156 = pneg %p101
      %p157 = scmp.lt.s32.totalorder %s15, 1
      %s158 = scalar_select %p157, %s15, 1
      %s159 = smul.addr %s158, 3
      %s160 = smul.addr %s159, 8
      %s161 = scalar_lea.vmem %s3, %s160
      %p162 = scmp.lt.s32.totalorder %s15, 1
      %s163 = scalar_select %p162, %s15, 1
      %s164 = smul.addr %s163, 5
      %s165 = smul.addr %s164, 4
      %s166 = scalar_lea.vmem %s0, %s165
      %p167 = scmp.lt.s32.totalorder %s15, 1
      %s168 = scalar_select %p167, %s15, 1
      %s169 = smul.addr %s168, 3
      %s170 = smul.addr %s169, 8
      %s171 = scalar_lea.vmem %s3, %s170
      %v172 = vld [vmem:[%s166] sm:$0xf]
      %v173 = vld [vmem:[%s166 + $0x4] sm:$0xf]
      %v174 = vld [vmem:[%s166 + $0x8] sm:$0xf]
      %v175 = vld [vmem:[%s166 + $0xc] sm:$0xf]
      %v176 = vld [vmem:[%s166 + $0x10] sm:$0xf]
      %v177 = vunpack.c.l.bf16 %v172
      %v178 = vunpack.c.l.bf16 %v173
      %v179 = vunpack.c.l.bf16 %v174
      %v180 = vunpack.c.l.bf16 %v175
      %v181 = vunpack.c.l.bf16 %v176
      %vm182 = vcmask 261120
      %183 = vst.msk [vmem:[#allocation2] sm:$0xff] %vm182, %v177
      %184 = vst.msk [vmem:[#allocation2 + $0x8] sm:$0xff] %vm182, %v178
      %185 = vst.msk [vmem:[#allocation2 + $0x10] sm:$0xff] %vm182, %v179
      %186 = vst.msk [vmem:[#allocation2 + $0x18] sm:$0xff] %vm182, %v180
      %vm187 = vcmask 260096
      %188 = vst.msk [vmem:[#allocation2 + $0x20] sm:$0x7f] %vm187, %v181
      %189 = vst.msk [vmem:[#allocation3] sm:$0xff] %vm182, 0.0
      %190 = vst.msk [vmem:[#allocation3 + $0x8] sm:$0xff] %vm182, 0.0
      %vm191 = vcmask 254976
      %192 = vst.msk [vmem:[#allocation3 + $0x10] sm:$0x3] %vm191, 0.0
      %v193 = vld [vmem:[#allocation2] sm:$0xff]
      %v194 = vld [vmem:[#allocation2 + $0x8] sm:$0xff]
      %v195 = vld [vmem:[#allocation2 + $0x10] sm:$0x3]
      %v196 = vld [vmem:[%s1] sm:$0x1]
      %v197 = vld [vmem:[#allocation3] sm:$0xff]
      %v198 = vld [vmem:[#allocation3 + $0x8] sm:$0xff]
      %v199 = vld [vmem:[#allocation3 + $0x10] sm:$0x3]
      %v200 = vlaneseq
      %v201 = vshrl.u32 %v200, 7
      %v202 = vsub.s32 0, %v201
      %v203 = vrot.slane %v196, %v202
      %v204 = vmul.f32 %v193, %v203
      %v205 = vmul.f32 %v194, %v203
      %v206 = vmul.f32 %v195, %v203
      %v207 = vadd.f32 %v197, %v204
      %v208 = vadd.f32 %v198, %v205
      %v209 = vadd.f32 %v199, %v206
      %210 = vst.msk [vmem:[#allocation3] sm:$0xff] %vm182, %v207
      %211 = vst.msk [vmem:[#allocation3 + $0x8] sm:$0xff] %vm182, %v208
      %212 = vst.msk [vmem:[#allocation3 + $0x10] sm:$0x3] %vm191, %v209
      %v213 = vld [vmem:[#allocation2 + $0x1] sm:$0xff]
      %v214 = vld [vmem:[#allocation2 + $0x9] sm:$0xff]
      %v215 = vld [vmem:[#allocation2 + $0x11] sm:$0x3]
      %v216 = vld [vmem:[%s1 + $0x1] sm:$0x1]
      %v217 = vld [vmem:[#allocation3] sm:$0xff]
      %v218 = vld [vmem:[#allocation3 + $0x8] sm:$0xff]
      %v219 = vld [vmem:[#allocation3 + $0x10] sm:$0x3]
      %v220 = vlaneseq
      %v221 = vshrl.u32 %v220, 7
      %v222 = vsub.s32 0, %v221
      %v223 = vrot.slane %v216, %v222
      %v224 = vmul.f32 %v213, %v223
      %v225 = vmul.f32 %v214, %v223
      %v226 = vmul.f32 %v215, %v223
      %v227 = vadd.f32 %v217, %v224
      %v228 = vadd.f32 %v218, %v225
      %v229 = vadd.f32 %v219, %v226
      %230 = vst.msk [vmem:[#allocation3] sm:$0xff] %vm182, %v227
      %231 = vst.msk [vmem:[#allocation3 + $0x8] sm:$0xff] %vm182, %v228
      %232 = vst.msk [vmem:[#allocation3 + $0x10] sm:$0x3] %vm191, %v229
      %v233 = vld [vmem:[#allocation2 + $0x2] sm:$0xff]
      %v234 = vld [vmem:[#allocation2 + $0xa] sm:$0xff]
      %v235 = vld [vmem:[#allocation2 + $0x12] sm:$0x3]
      %v236 = vld [vmem:[%s1 + $0x2] sm:$0x1]
      %v237 = vld [vmem:[#allocation3] sm:$0xff]
      %v238 = vld [vmem:[#allocation3 + $0x8] sm:$0xff]
      %v239 = vld [vmem:[#allocation3 + $0x10] sm:$0x3]
      %v240 = vlaneseq
      %v241 = vshrl.u32 %v240, 7
      %v242 = vsub.s32 0, %v241
      %v243 = vrot.slane %v236, %v242
      %v244 = vmul.f32 %v233, %v243
      %v245 = vmul.f32 %v234, %v243
      %v246 = vmul.f32 %v235, %v243
      %v247 = vadd.f32 %v237, %v244
      %v248 = vadd.f32 %v238, %v245
      %v249 = vadd.f32 %v239, %v246
      %250 = vst.msk [vmem:[#allocation3] sm:$0xff] %vm182, %v247
      %251 = vst.msk [vmem:[#allocation3 + $0x8] sm:$0xff] %vm182, %v248
      %252 = vst.msk [vmem:[#allocation3 + $0x10] sm:$0x3] %vm191, %v249
      %v253 = vld [vmem:[#allocation2 + $0x3] sm:$0xff]
      %v254 = vld [vmem:[#allocation2 + $0xb] sm:$0xff]
      %v255 = vld [vmem:[#allocation2 + $0x13] sm:$0x3]
      %v256 = vld [vmem:[%s1 + $0x3] sm:$0x1]
      %v257 = vld [vmem:[#allocation3] sm:$0xff]
      %v258 = vld [vmem:[#allocation3 + $0x8] sm:$0xff]
      %v259 = vld [vmem:[#allocation3 + $0x10] sm:$0x3]
      %v260 = vlaneseq
      %v261 = vshrl.u32 %v260, 7
      %v262 = vsub.s32 0, %v261
      %v263 = vrot.slane %v256, %v262
      %v264 = vmul.f32 %v253, %v263
      %v265 = vmul.f32 %v254, %v263
      %v266 = vmul.f32 %v255, %v263
      %v267 = vadd.f32 %v257, %v264
      %v268 = vadd.f32 %v258, %v265
      %v269 = vadd.f32 %v259, %v266
      %270 = vst.msk [vmem:[#allocation3] sm:$0xff] %vm182, %v267
      %271 = vst.msk [vmem:[#allocation3 + $0x8] sm:$0xff] %vm182, %v268
      %272 = vst.msk [vmem:[#allocation3 + $0x10] sm:$0x3] %vm191, %v269
      %v273 = vld [vmem:[#allocation2 + $0x6] sm:$0xff]
      %v274 = vld [vmem:[#allocation2 + $0xe] sm:$0xff]
      %v275 = vld [vmem:[#allocation2 + $0x16] sm:$0x3]
      %v276 = vld [vmem:[%s1 + $0x4] sm:$0x1]
      %v277 = vld [vmem:[#allocation3] sm:$0xff]
      %v278 = vld [vmem:[#allocation3 + $0x8] sm:$0xff]
      %v279 = vld [vmem:[#allocation3 + $0x10] sm:$0x3]
      %v280 = vlaneseq
      %v281 = vshrl.u32 %v280, 7
      %v282 = vsub.s32 0, %v281
      %v283 = vrot.slane %v276, %v282
      %v284 = vmul.f32 %v273, %v283
      %v285 = vmul.f32 %v274, %v283
      %v286 = vmul.f32 %v275, %v283
      %v287 = vadd.f32 %v277, %v284
      %v288 = vadd.f32 %v278, %v285
      %v289 = vadd.f32 %v279, %v286
      %290 = vst.msk [vmem:[#allocation3] sm:$0xff] %vm182, %v287
      %291 = vst.msk [vmem:[#allocation3 + $0x8] sm:$0xff] %vm182, %v288
      %292 = vst.msk [vmem:[#allocation3 + $0x10] sm:$0x3] %vm191, %v289
      %v293 = vld [vmem:[#allocation2 + $0x7] sm:$0xff]
      %v294 = vld [vmem:[#allocation2 + $0xf] sm:$0xff]
      %v295 = vld [vmem:[#allocation2 + $0x17] sm:$0x3]
      %v296 = vld [vmem:[%s1 + $0x5] sm:$0x1]
      %v297 = vld [vmem:[#allocation3] sm:$0xff]
      %v298 = vld [vmem:[#allocation3 + $0x8] sm:$0xff]
      %v299 = vld [vmem:[#allocation3 + $0x10] sm:$0x3]
      %v300 = vlaneseq
      %v301 = vshrl.u32 %v300, 7
      %v302 = vsub.s32 0, %v301
      %v303 = vrot.slane %v296, %v302
      %v304 = vmul.f32 %v293, %v303
      %v305 = vmul.f32 %v294, %v303
      %v306 = vmul.f32 %v295, %v303
      %v307 = vadd.f32 %v297, %v304
      %v308 = vadd.f32 %v298, %v305
      %v309 = vadd.f32 %v299, %v306
      %310 = vst.msk [vmem:[#allocation3] sm:$0xff] %vm182, %v307
      %311 = vst.msk [vmem:[#allocation3 + $0x8] sm:$0xff] %vm182, %v308
      %312 = vst.msk [vmem:[#allocation3 + $0x10] sm:$0x3] %vm191, %v309
      %v313 = vld [vmem:[#allocation2 + $0x8] sm:$0xff]
      %v314 = vld [vmem:[#allocation2 + $0x10] sm:$0xff]
      %v315 = vld [vmem:[#allocation2 + $0x18] sm:$0x3]
      %v316 = vld [vmem:[%s1 + $0x6] sm:$0x1]
      %v317 = vld [vmem:[#allocation3] sm:$0xff]
      %v318 = vld [vmem:[#allocation3 + $0x8] sm:$0xff]
      %v319 = vld [vmem:[#allocation3 + $0x10] sm:$0x3]
      %v320 = vlaneseq
      %v321 = vshrl.u32 %v320, 7
      %v322 = vsub.s32 0, %v321
      %v323 = vrot.slane %v316, %v322
      %v324 = vmul.f32 %v313, %v323
      %v325 = vmul.f32 %v314, %v323
      %v326 = vmul.f32 %v315, %v323
      %v327 = vadd.f32 %v317, %v324
      %v328 = vadd.f32 %v318, %v325
      %v329 = vadd.f32 %v319, %v326
      %330 = vst.msk [vmem:[#allocation3] sm:$0xff] %vm182, %v327
      %331 = vst.msk [vmem:[#allocation3 + $0x8] sm:$0xff] %vm182, %v328
      %332 = vst.msk [vmem:[#allocation3 + $0x10] sm:$0x3] %vm191, %v329
      %v333 = vld [vmem:[#allocation2 + $0x9] sm:$0xff]
      %v334 = vld [vmem:[#allocation2 + $0x11] sm:$0xff]
      %v335 = vld [vmem:[#allocation2 + $0x19] sm:$0x3]
      %v336 = vld [vmem:[%s1 + $0x7] sm:$0x1]
      %v337 = vld [vmem:[#allocation3] sm:$0xff]
      %v338 = vld [vmem:[#allocation3 + $0x8] sm:$0xff]
      %v339 = vld [vmem:[#allocation3 + $0x10] sm:$0x3]
      %v340 = vlaneseq
      %v341 = vshrl.u32 %v340, 7
      %v342 = vsub.s32 0, %v341
      %v343 = vrot.slane %v336, %v342
      %v344 = vmul.f32 %v333, %v343
      %v345 = vmul.f32 %v334, %v343
      %v346 = vmul.f32 %v335, %v343
      %v347 = vadd.f32 %v337, %v344
      %v348 = vadd.f32 %v338, %v345
      %v349 = vadd.f32 %v339, %v346
      %350 = vst.msk [vmem:[#allocation3] sm:$0xff] %vm182, %v347
      %351 = vst.msk [vmem:[#allocation3 + $0x8] sm:$0xff] %vm182, %v348
      %352 = vst.msk [vmem:[#allocation3 + $0x10] sm:$0x3] %vm191, %v349
      %v353 = vld [vmem:[#allocation2 + $0xc] sm:$0xff]
      %v354 = vld [vmem:[#allocation2 + $0x14] sm:$0xff]
      %v355 = vld [vmem:[#allocation2 + $0x1c] sm:$0x3]
      %v356 = vld [vmem:[%s1 + $0x8] sm:$0x1]
      %v357 = vld [vmem:[#allocation3] sm:$0xff]
      %v358 = vld [vmem:[#allocation3 + $0x8] sm:$0xff]
      %v359 = vld [vmem:[#allocation3 + $0x10] sm:$0x3]
      %v360 = vlaneseq
      %v361 = vshrl.u32 %v360, 7
      %v362 = vsub.s32 0, %v361
      %v363 = vrot.slane %v356, %v362
      %v364 = vmul.f32 %v353, %v363
      %v365 = vmul.f32 %v354, %v363
      %v366 = vmul.f32 %v355, %v363
      %v367 = vadd.f32 %v357, %v364
      %v368 = vadd.f32 %v358, %v365
      %v369 = vadd.f32 %v359, %v366
      %370 = vst.msk [vmem:[#allocation3] sm:$0xff] %vm182, %v367
      %371 = vst.msk [vmem:[#allocation3 + $0x8] sm:$0xff] %vm182, %v368
      %372 = vst.msk [vmem:[#allocation3 + $0x10] sm:$0x3] %vm191, %v369
      %v373 = vld [vmem:[#allocation2 + $0xd] sm:$0xff]
      %v374 = vld [vmem:[#allocation2 + $0x15] sm:$0xff]
      %v375 = vld [vmem:[#allocation2 + $0x1d] sm:$0x3]
      %v376 = vld [vmem:[%s1 + $0x9] sm:$0x1]
      %v377 = vld [vmem:[#allocation3] sm:$0xff]
      %v378 = vld [vmem:[#allocation3 + $0x8] sm:$0xff]
      %v379 = vld [vmem:[#allocation3 + $0x10] sm:$0x3]
      %v380 = vlaneseq
      %v381 = vshrl.u32 %v380, 7
      %v382 = vsub.s32 0, %v381
      %v383 = vrot.slane %v376, %v382
      %v384 = vmul.f32 %v373, %v383
      %v385 = vmul.f32 %v374, %v383
      %v386 = vmul.f32 %v375, %v383
      %v387 = vadd.f32 %v377, %v384
      %v388 = vadd.f32 %v378, %v385
      %v389 = vadd.f32 %v379, %v386
      %390 = vst.msk [vmem:[#allocation3] sm:$0xff] %vm182, %v387
      %391 = vst.msk [vmem:[#allocation3 + $0x8] sm:$0xff] %vm182, %v388
      %392 = vst.msk [vmem:[#allocation3 + $0x10] sm:$0x3] %vm191, %v389
      %v393 = vld [vmem:[#allocation2 + $0xe] sm:$0xff]
      %v394 = vld [vmem:[#allocation2 + $0x16] sm:$0xff]
      %v395 = vld [vmem:[#allocation2 + $0x1e] sm:$0x3]
      %v396 = vld [vmem:[%s1 + $0xa] sm:$0x1]
      %v397 = vld [vmem:[#allocation3] sm:$0xff]
      %v398 = vld [vmem:[#allocation3 + $0x8] sm:$0xff]
      %v399 = vld [vmem:[#allocation3 + $0x10] sm:$0x3]
      %v400 = vlaneseq
      %v401 = vshrl.u32 %v400, 7
      %v402 = vsub.s32 0, %v401
      %v403 = vrot.slane %v396, %v402
      %v404 = vmul.f32 %v393, %v403
      %v405 = vmul.f32 %v394, %v403
      %v406 = vmul.f32 %v395, %v403
      %v407 = vadd.f32 %v397, %v404
      %v408 = vadd.f32 %v398, %v405
      %v409 = vadd.f32 %v399, %v406
      %410 = vst.msk [vmem:[#allocation3] sm:$0xff] %vm182, %v407
      %411 = vst.msk [vmem:[#allocation3 + $0x8] sm:$0xff] %vm182, %v408
      %412 = vst.msk [vmem:[#allocation3 + $0x10] sm:$0x3] %vm191, %v409
      %v413 = vld [vmem:[#allocation2 + $0xf] sm:$0xff]
      %v414 = vld [vmem:[#allocation2 + $0x17] sm:$0xff]
      %v415 = vld [vmem:[#allocation2 + $0x1f] sm:$0x3]
      %v416 = vld [vmem:[%s1 + $0xb] sm:$0x1]
      %v417 = vld [vmem:[#allocation3] sm:$0xff]
      %v418 = vld [vmem:[#allocation3 + $0x8] sm:$0xff]
      %v419 = vld [vmem:[#allocation3 + $0x10] sm:$0x3]
      %v420 = vlaneseq
      %v421 = vshrl.u32 %v420, 7
      %v422 = vsub.s32 0, %v421
      %v423 = vrot.slane %v416, %v422
      %v424 = vmul.f32 %v413, %v423
      %v425 = vmul.f32 %v414, %v423
      %v426 = vmul.f32 %v415, %v423
      %v427 = vadd.f32 %v417, %v424
      %v428 = vadd.f32 %v418, %v425
      %v429 = vadd.f32 %v419, %v426
      %430 = vst.msk [vmem:[#allocation3] sm:$0xff] %vm182, %v427
      %431 = vst.msk [vmem:[#allocation3 + $0x8] sm:$0xff] %vm182, %v428
      %432 = vst.msk [vmem:[#allocation3 + $0x10] sm:$0x3] %vm191, %v429
      %v433 = vld [vmem:[#allocation2 + $0x12] sm:$0xff]
      %v434 = vld [vmem:[#allocation2 + $0x1a] sm:$0xff]
      %v435 = vld [vmem:[#allocation2 + $0x22] sm:$0x3]
      %v436 = vld [vmem:[%s1 + $0xc] sm:$0x1]
      %v437 = vld [vmem:[#allocation3] sm:$0xff]
      %v438 = vld [vmem:[#allocation3 + $0x8] sm:$0xff]
      %v439 = vld [vmem:[#allocation3 + $0x10] sm:$0x3]
      %v440 = vlaneseq
      %v441 = vshrl.u32 %v440, 7
      %v442 = vsub.s32 0, %v441
      %v443 = vrot.slane %v436, %v442
      %v444 = vmul.f32 %v433, %v443
      %v445 = vmul.f32 %v434, %v443
      %v446 = vmul.f32 %v435, %v443
      %v447 = vadd.f32 %v437, %v444
      %v448 = vadd.f32 %v438, %v445
      %v449 = vadd.f32 %v439, %v446
      %450 = vst.msk [vmem:[#allocation3] sm:$0xff] %vm182, %v447
      %451 = vst.msk [vmem:[#allocation3 + $0x8] sm:$0xff] %vm182, %v448
      %452 = vst.msk [vmem:[#allocation3 + $0x10] sm:$0x3] %vm191, %v449
      %v453 = vld [vmem:[#allocation2 + $0x13] sm:$0xff]
      %v454 = vld [vmem:[#allocation2 + $0x1b] sm:$0xff]
      %v455 = vld [vmem:[#allocation2 + $0x23] sm:$0x3]
      %v456 = vld [vmem:[%s1 + $0xd] sm:$0x1]
      %v457 = vld [vmem:[#allocation3] sm:$0xff]
      %v458 = vld [vmem:[#allocation3 + $0x8] sm:$0xff]
      %v459 = vld [vmem:[#allocation3 + $0x10] sm:$0x3]
      %v460 = vlaneseq
      %v461 = vshrl.u32 %v460, 7
      %v462 = vsub.s32 0, %v461
      %v463 = vrot.slane %v456, %v462
      %v464 = vmul.f32 %v453, %v463
      %v465 = vmul.f32 %v454, %v463
      %v466 = vmul.f32 %v455, %v463
      %v467 = vadd.f32 %v457, %v464
      %v468 = vadd.f32 %v458, %v465
      %v469 = vadd.f32 %v459, %v466
      %470 = vst.msk [vmem:[#allocation3] sm:$0xff] %vm182, %v467
      %471 = vst.msk [vmem:[#allocation3 + $0x8] sm:$0xff] %vm182, %v468
      %472 = vst.msk [vmem:[#allocation3 + $0x10] sm:$0x3] %vm191, %v469
      %v473 = vld [vmem:[#allocation2 + $0x14] sm:$0xff]
      %v474 = vld [vmem:[#allocation2 + $0x1c] sm:$0xff]
      %v475 = vld [vmem:[#allocation2 + $0x24] sm:$0x3]
      %v476 = vld [vmem:[%s1 + $0xe] sm:$0x1]
      %v477 = vld [vmem:[#allocation3] sm:$0xff]
      %v478 = vld [vmem:[#allocation3 + $0x8] sm:$0xff]
      %v479 = vld [vmem:[#allocation3 + $0x10] sm:$0x3]
      %v480 = vlaneseq
      %v481 = vshrl.u32 %v480, 7
      %v482 = vsub.s32 0, %v481
      %v483 = vrot.slane %v476, %v482
      %v484 = vmul.f32 %v473, %v483
      %v485 = vmul.f32 %v474, %v483
      %v486 = vmul.f32 %v475, %v483
      %v487 = vadd.f32 %v477, %v484
      %v488 = vadd.f32 %v478, %v485
      %v489 = vadd.f32 %v479, %v486
      %490 = vst.msk [vmem:[#allocation3] sm:$0xff] %vm182, %v487
      %491 = vst.msk [vmem:[#allocation3 + $0x8] sm:$0xff] %vm182, %v488
      %492 = vst.msk [vmem:[#allocation3 + $0x10] sm:$0x3] %vm191, %v489
      %v493 = vld [vmem:[#allocation2 + $0x15] sm:$0xff]
      %v494 = vld [vmem:[#allocation2 + $0x1d] sm:$0xff]
      %v495 = vld [vmem:[#allocation2 + $0x25] sm:$0x3]
      %v496 = vld [vmem:[%s1 + $0xf] sm:$0x1]
      %v497 = vld [vmem:[#allocation3] sm:$0xff]
      %v498 = vld [vmem:[#allocation3 + $0x8] sm:$0xff]
      %v499 = vld [vmem:[#allocation3 + $0x10] sm:$0x3]
      %v500 = vlaneseq
      %v501 = vshrl.u32 %v500, 7
      %v502 = vsub.s32 0, %v501
      %v503 = vrot.slane %v496, %v502
      %v504 = vmul.f32 %v493, %v503
      %v505 = vmul.f32 %v494, %v503
      %v506 = vmul.f32 %v495, %v503
      %v507 = vadd.f32 %v497, %v504
      %v508 = vadd.f32 %v498, %v505
      %v509 = vadd.f32 %v499, %v506
      %510 = vst.msk [vmem:[#allocation3] sm:$0xff] %vm182, %v507
      %511 = vst.msk [vmem:[#allocation3 + $0x8] sm:$0xff] %vm182, %v508
      %512 = vst.msk [vmem:[#allocation3 + $0x10] sm:$0x3] %vm191, %v509
      %v513 = vld [vmem:[#allocation3] sm:$0xff]
      %v514 = vld [vmem:[#allocation3 + $0x8] sm:$0xff]
      %v515 = vld [vmem:[#allocation3 + $0x10] sm:$0x3]
      %v516 = vsel %vm182, %v513, 0.0
      %517 = vadd.xlane.f32.xlu0 %v516
      %v518 = vpop.xlane.xlu0 %517
      %v519 = vsel %vm182, %v514, 0.0
      %520 = vadd.xlane.f32.xlu0 %v519
      %v521 = vpop.xlane.xlu0 %520
      %v522 = vsel %vm191, %v515, 0.0
      %523 = vadd.xlane.f32.xlu0 %v522
      %v524 = vpop.xlane.xlu0 %523
      %s525 = sld [smem:[#allocation4]]
      %v526 = vstv %s525
      %v527 = vadd.f32 %v518, %v526
      %v528 = vadd.f32 %v521, %v526
      %v529 = vadd.f32 %v524, %v526
      %vm530 = vcmask 7168
      %531 = vst.msk [vmem:[%s171] sm:$0xff] %vm530, %v527
      %532 = vst.msk [vmem:[%s171 + $0x8] sm:$0xff] %vm530, %v528
      %vm533 = vcmask 1024
      %534 = vst.msk [vmem:[%s171 + $0x10] sm:$0x3] %vm533, %v529
      %p535 = scmp.lt.s32.totalorder %s15, 1
      %s536 = scalar_select %p535, %s15, 1
      %s537 = smul.addr %s536, 3
      %s538 = smul.addr %s537, 8
      %s539 = scalar_lea.vmem %s3, %s538
      // Predicated region
      $region33: #{discriminator_forward.7} parent=31 // pred_check
        %p540 = pneg %p101
      $region34: #{discriminator_forward.7} parent=31 // pred_check_branch
        %542 = sbr.rel (%p540) target = $region36
      $region35: #{discriminator_forward.7} parent=31 // pred_region
        _
      $region36: #{discriminator_forward.7} parent=31 // pred_fallthru
        _
    $region32: #{discriminator_forward.7} parent=5 // pred_fallthru
      _
    %p543 = scmp.le.s32.totalorder 2, %s10
    // Predicated region
    $region37: #{discriminator_forward.7} parent=5 // pred_check
      %p544 = pneg %p543
    $region38: #{discriminator_forward.7} parent=5 // pred_check_branch
      %546 = sbr.rel (%p544) target = $region40
    $region39: #{discriminator_forward.7} parent=5 // pred_region
      %s547 = ssub.s32 %s10, 2
      // Predicated region
      $region41: #{discriminator_forward.7} parent=39 // pred_check
        %p548 = pneg %p107
      $region42: #{discriminator_forward.7} parent=39 // pred_check_branch
        %550 = sbr.rel (%p548) target = $region44
      $region43: #{discriminator_forward.7} parent=39 // pred_region
        %p551 = scmp.lt.s32.totalorder %s16, 1
        %s552 = scalar_select %p551, %s16, 1
        %s553 = smul.addr %s552, 3
        %s554 = smul.addr %s553, 8
        %s555 = scalar_lea.vmem %s3, %s554
      $region44: #{discriminator_forward.7} parent=39 // pred_fallthru
        _
    $region40: #{discriminator_forward.7} parent=5 // pred_fallthru
      _
  $region6: #{discriminator_forward.7} parent=0 // loop_footer
    %s14 = sadd.s32 1, %s10
  $region7: #{discriminator_forward.7} parent=0 // loop_footer_branch
    %9 = sbr.rel target = $region3
  $region8: #{discriminator_forward.7} parent=0 // loop_exit
    _

// kernel: discriminator_forward.6
$region0: #{discriminator_forward.6}
  #allocation0 [shape = 'u32[]', space=smem, size = 0x4, offset = 0x4, fixed_abs, tag = 'smem constant byte address 0x4 - core index']
  #allocation1 [shape = 'u32[144,128]{1,0:T(1,128)}', space=vmem, size = 0x12000, scoped, tag = 'internal scratch']
  #allocation2 [shape = 'f32[4,26,16]{2,1,0:T(8,128)}', space=vmem, size = 0x10000, scoped, tag = 'scratch operand']
  #allocation3 [shape = 'f32[20,32]{1,0:T(8,128)}', space=vmem, size = 0x3000, scoped, tag = 'scratch operand']
  %s0 = inlined_call_operand.vmem [shape: bf16[2,4,26,16], index: 0, kind: input, shape index: {}]
  %s1 = inlined_call_operand.vmem [shape: f32[144,32], index: 1, kind: input, shape index: {}]
  %s2 = inlined_call_operand.vmem [shape: f32[20,1], index: 2, kind: input, shape index: {}]
  %s3 = inlined_call_operand.vmem [shape: bf16[2,20,32], index: 3, kind: output, shape index: {}]
  %s4 = sld [smem:[#allocation0]]
  $region45: #{discriminator_forward.6} parent=0
    _
  %s6 = ssub.s32 1, %s4
  %s7 = scalar_select 0, %s6, %s4
  loop: start=0, step=1, limit=4
  $region2: #{discriminator_forward.6} parent=0 // loop_pre_header
    _
  $region3: #{discriminator_forward.6} parent=0 // loop_header
    %s9 = sphi 0, %s13
    %p10 = scmp.ge.s32.totalorder %s9, 4
    %s19 = sphi 0, %s21
    %s22 = sphi 0, %s19
    %s23 = sphi 0, %s22
    %s39 = sphi 0, %s23
    %s43 = sphi 0, %s43
    %s45 = sphi 0, %s43
    %s46 = sphi 0, %s45
    %s60 = sphi 0, %s46
    %s64 = sphi 0, %s64
    %s66 = sphi 0, %s64
    %s67 = sphi 0, %s66
    %s81 = sphi 0, %s67
    %s87 = sphi 0, %s89
    %s90 = sphi 0, %s87
    %s91 = sphi 0, %s90
    %s107 = sphi 0, %s91
  $region4: #{discriminator_forward.6} parent=0 // loop_header_branch
    %12 = sbr.rel (%p10) target = $region8
  $region5: #{discriminator_forward.6} parent=0 // loop_body
    %s14 = ssub.s32 %s9, 1
    %s15 = ssub.s32 %s9, 2
    %s16 = sadd.s32 %s9, 1
    %s17 = ssub.s32 %s9, %s16
    %p18 = scmp.eq.s32.totalorder %s17, 0
    %s20 = sadd.s32 %s19, 1
    %s21 = scalar_select %p18, %s19, %s20
    %p24 = pneg %p18
    %p25 = scmp.eq.s32.totalorder %s9, 1
    %p26 = por %p24, %p25
    %p27 = scmp.ne.s32.totalorder %s19, %s22
    %p28 = scmp.eq.s32.totalorder %s9, 0
    %p29 = por %p27, %p28
    %p30 = scmp.ne.s32.totalorder %s19, %s22
    %p31 = scmp.eq.s32.totalorder %s14, 1
    %p32 = por %p30, %p31
    %p33 = scmp.ne.s32.totalorder %s22, %s23
    %p34 = scmp.eq.s32.totalorder %s14, 0
    %p35 = por %p33, %p34
    %p36 = scmp.ne.s32.totalorder %s22, %s23
    %p37 = scmp.eq.s32.totalorder %s15, 1
    %p38 = por %p36, %p37
    %p40 = scmp.ne.s32.totalorder %s23, %s39
    %p41 = scmp.eq.s32.totalorder %s15, 0
    %p42 = por %p40, %p41
    %s44 = sadd.s32 %s43, 1
    %p47 = scmp.eq.s32.totalorder %s9, 1
    %p48 = scmp.ne.s32.totalorder %s43, %s45
    %p49 = scmp.eq.s32.totalorder %s9, 0
    %p50 = por %p48, %p49
    %p51 = scmp.ne.s32.totalorder %s43, %s45
    %p52 = scmp.eq.s32.totalorder %s14, 1
    %p53 = por %p51, %p52
    %p54 = scmp.ne.s32.totalorder %s45, %s46
    %p55 = scmp.eq.s32.totalorder %s14, 0
    %p56 = por %p54, %p55
    %p57 = scmp.ne.s32.totalorder %s45, %s46
    %p58 = scmp.eq.s32.totalorder %s15, 1
    %p59 = por %p57, %p58
    %p61 = scmp.ne.s32.totalorder %s46, %s60
    %p62 = scmp.eq.s32.totalorder %s15, 0
    %p63 = por %p61, %p62
    %s65 = sadd.s32 %s64, 1
    %p68 = scmp.eq.s32.totalorder %s9, 1
    %p69 = scmp.ne.s32.totalorder %s64, %s66
    %p70 = scmp.eq.s32.totalorder %s9, 0
    %p71 = por %p69, %p70
    %p72 = scmp.ne.s32.totalorder %s64, %s66
    %p73 = scmp.eq.s32.totalorder %s14, 1
    %p74 = por %p72, %p73
    %p75 = scmp.ne.s32.totalorder %s66, %s67
    %p76 = scmp.eq.s32.totalorder %s14, 0
    %p77 = por %p75, %p76
    %p78 = scmp.ne.s32.totalorder %s66, %s67
    %p79 = scmp.eq.s32.totalorder %s15, 1
    %p80 = por %p78, %p79
    %p82 = scmp.ne.s32.totalorder %s67, %s81
    %p83 = scmp.eq.s32.totalorder %s15, 0
    %p84 = por %p82, %p83
    %s85 = ssub.s32 %s9, %s16
    %p86 = scmp.eq.s32.totalorder %s85, 0
    %s88 = sadd.s32 %s87, 1
    %s89 = scalar_select %p86, %s87, %s88
    %p92 = pneg %p86
    %p93 = scmp.eq.s32.totalorder %s9, 1
    %p94 = por %p92, %p93
    %p95 = scmp.ne.s32.totalorder %s87, %s90
    %p96 = scmp.eq.s32.totalorder %s9, 0
    %p97 = por %p95, %p96
    %p98 = scmp.ne.s32.totalorder %s87, %s90
    %p99 = scmp.eq.s32.totalorder %s14, 1
    %p100 = por %p98, %p99
    %p101 = scmp.ne.s32.totalorder %s90, %s91
    %p102 = scmp.eq.s32.totalorder %s14, 0
    %p103 = por %p101, %p102
    %p104 = scmp.ne.s32.totalorder %s90, %s91
    %p105 = scmp.eq.s32.totalorder %s15, 1
    %p106 = por %p104, %p105
    %p108 = scmp.ne.s32.totalorder %s91, %s107
    %p109 = scmp.eq.s32.totalorder %s15, 0
    %p110 = por %p108, %p109
    %p111 = scmp.le.s32.totalorder 1, %s9
    %p112 = scmp.lt.s32.totalorder %s9, 3
    %p113 = pnand %p111, %p112
    %p114 = pneg %p113
    // Predicated region
    $region9: #{discriminator_forward.6} parent=5 // pred_check
      _
    $region10: #{discriminator_forward.6} parent=5 // pred_check_branch
      %116 = sbr.rel (%p113) target = $region12
    $region11: #{discriminator_forward.6} parent=5 // pred_region
      %s117 = ssub.s32 %s9, 1
      // Predicated region
      $region13: #{discriminator_forward.6} parent=11 // pred_check
        %p118 = pneg %p56
      $region14: #{discriminator_forward.6} parent=11 // pred_check_branch
        %120 = sbr.rel (%p118) target = $region16
      $region15: #{discriminator_forward.6} parent=11 // pred_region
        _
      $region16: #{discriminator_forward.6} parent=11 // pred_fallthru
        _
      // Predicated region
      $region17: #{discriminator_forward.6} parent=11 // pred_check
        %p121 = pneg %p77
      $region18: #{discriminator_forward.6} parent=11 // pred_check_branch
        %123 = sbr.rel (%p121) target = $region20
      $region19: #{discriminator_forward.6} parent=11 // pred_region
        _
      $region20: #{discriminator_forward.6} parent=11 // pred_fallthru
        _
    $region12: #{discriminator_forward.6} parent=5 // pred_fallthru
      _
    %p124 = scmp.lt.s32.totalorder %s9, 2
    // Predicated region
    $region21: #{discriminator_forward.6} parent=5 // pred_check
      %p125 = pneg %p124
    $region22: #{discriminator_forward.6} parent=5 // pred_check_branch
      %127 = sbr.rel (%p125) target = $region24
    $region23: #{discriminator_forward.6} parent=5 // pred_region
      // Predicated region
      $region25: #{discriminator_forward.6} parent=23 // pred_check
        %p128 = pneg %p29
      $region26: #{discriminator_forward.6} parent=23 // pred_check_branch
        %130 = sbr.rel (%p128) target = $region28
      $region27: #{discriminator_forward.6} parent=23 // pred_region
        %p131 = scmp.lt.s32.totalorder %s9, 1
        %s132 = scalar_select %p131, %s9, 1
        %s133 = smul.addr %s132, 16
        %s134 = smul.addr %s133, 4
        %s135 = scalar_lea.vmem %s0, %s134
      $region28: #{discriminator_forward.6} parent=23 // pred_fallthru
        _
    $region24: #{discriminator_forward.6} parent=5 // pred_fallthru
      _
    %p136 = scmp.le.s32.totalorder 1, %s9
    %p137 = scmp.lt.s32.totalorder %s9, 3
    %p138 = pnand %p136, %p137
    %p139 = pneg %p138
    // Predicated region
    $region29: #{discriminator_forward.6} parent=5 // pred_check
      _
    $region30: #{discriminator_forward.6} parent=5 // pred_check_branch
      %141 = sbr.rel (%p138) target = $region32
    $region31: #{discriminator_forward.6} parent=5 // pred_region
      %s142 = ssub.s32 %s9, 1
      %p143 = scmp.lt.s32.totalorder %s14, 1
      %s144 = scalar_select %p143, %s14, 1
      %s145 = smul.addr %s144, 16
      %s146 = smul.addr %s145, 4
      %s147 = scalar_lea.vmem %s0, %s146
      %p148 = pneg %p35
      %p149 = pneg %p32
      %p150 = pneg %p56
      %p151 = pneg %p53
      %p152 = pneg %p77
      %p153 = pneg %p74
      %p154 = pneg %p103
      %p155 = pneg %p100
      %p156 = scmp.lt.s32.totalorder %s14, 1
      %s157 = scalar_select %p156, %s14, 1
      %s158 = smul.addr %s157, 3
      %s159 = smul.addr %s158, 4
      %s160 = scalar_lea.vmem %s3, %s159
      %p161 = scmp.lt.s32.totalorder %s14, 1
      %s162 = scalar_select %p161, %s14, 1
      %s163 = smul.addr %s162, 16
      %s164 = smul.addr %s163, 4
      %s165 = scalar_lea.vmem %s0, %s164
      %p166 = scmp.lt.s32.totalorder %s14, 1
      %s167 = scalar_select %p166, %s14, 1
      %s168 = smul.addr %s167, 3
      %s169 = smul.addr %s168, 4
      %s170 = scalar_lea.vmem %s3, %s169
      %v171 = vld [vmem:[%s165] sm:$0xf]
      %v172 = vld [vmem:[%s165 + $0x4] sm:$0xf]
      %v173 = vld [vmem:[%s165 + $0x8] sm:$0xf]
      %v174 = vld [vmem:[%s165 + $0xc] sm:$0x1]
      %v175 = vld [vmem:[%s165 + $0x10] sm:$0xf]
      %v176 = vld [vmem:[%s165 + $0x14] sm:$0xf]
      %v177 = vld [vmem:[%s165 + $0x18] sm:$0xf]
      %v178 = vld [vmem:[%s165 + $0x1c] sm:$0x1]
      %v179 = vld [vmem:[%s165 + $0x20] sm:$0xf]
      %v180 = vld [vmem:[%s165 + $0x24] sm:$0xf]
      %v181 = vld [vmem:[%s165 + $0x28] sm:$0xf]
      %v182 = vld [vmem:[%s165 + $0x2c] sm:$0x1]
      %v183 = vld [vmem:[%s165 + $0x30] sm:$0xf]
      %v184 = vld [vmem:[%s165 + $0x34] sm:$0xf]
      %v185 = vld [vmem:[%s165 + $0x38] sm:$0xf]
      %v186 = vld [vmem:[%s165 + $0x3c] sm:$0x1]
      %v187 = vunpack.c.l.bf16 %v171
      %v188 = vunpack.c.l.bf16 %v172
      %v189 = vunpack.c.l.bf16 %v173
      %v190 = vunpack.c.l.bf16 %v174
      %v191 = vunpack.c.l.bf16 %v175
      %v192 = vunpack.c.l.bf16 %v176
      %v193 = vunpack.c.l.bf16 %v177
      %v194 = vunpack.c.l.bf16 %v178
      %v195 = vunpack.c.l.bf16 %v179
      %v196 = vunpack.c.l.bf16 %v180
      %v197 = vunpack.c.l.bf16 %v181
      %v198 = vunpack.c.l.bf16 %v182
      %v199 = vunpack.c.l.bf16 %v183
      %v200 = vunpack.c.l.bf16 %v184
      %v201 = vunpack.c.l.bf16 %v185
      %v202 = vunpack.c.l.bf16 %v186
      %vm203 = vcmask 130048
      %204 = vst.msk [vmem:[#allocation2] sm:$0xff] %vm203, %v187
      %205 = vst.msk [vmem:[#allocation2 + $0x8] sm:$0xff] %vm203, %v188
      %206 = vst.msk [vmem:[#allocation2 + $0x10] sm:$0xff] %vm203, %v189
      %vm207 = vcmask 123904
      %208 = vst.msk [vmem:[#allocation2 + $0x18] sm:$0x3] %vm207, %v190
      %209 = vst.msk [vmem:[#allocation2 + $0x20] sm:$0xff] %vm203, %v191
      %210 = vst.msk [vmem:[#allocation2 + $0x28] sm:$0xff] %vm203, %v192
      %211 = vst.msk [vmem:[#allocation2 + $0x30] sm:$0xff] %vm203, %v193
      %212 = vst.msk [vmem:[#allocation2 + $0x38] sm:$0x3] %vm207, %v194
      %213 = vst.msk [vmem:[#allocation2 + $0x40] sm:$0xff] %vm203, %v195
      %214 = vst.msk [vmem:[#allocation2 + $0x48] sm:$0xff] %vm203, %v196
      %215 = vst.msk [vmem:[#allocation2 + $0x50] sm:$0xff] %vm203, %v197
      %216 = vst.msk [vmem:[#allocation2 + $0x58] sm:$0x3] %vm207, %v198
      %217 = vst.msk [vmem:[#allocation2 + $0x60] sm:$0xff] %vm203, %v199
      %218 = vst.msk [vmem:[#allocation2 + $0x68] sm:$0xff] %vm203, %v200
      %219 = vst.msk [vmem:[#allocation2 + $0x70] sm:$0xff] %vm203, %v201
      %220 = vst.msk [vmem:[#allocation2 + $0x78] sm:$0x3] %vm207, %v202
      %vm221 = vcmask 261120
      %222 = vst.msk [vmem:[#allocation3] sm:$0xff] %vm221, 0.0
      %223 = vst.msk [vmem:[#allocation3 + $0x8] sm:$0xff] %vm221, 0.0
      %vm224 = vcmask 257024
      %225 = vst.msk [vmem:[#allocation3 + $0x10] sm:$0xf] %vm224, 0.0
      %v226 = vld [vmem:[#allocation2] sm:$0xff]
      %v227 = vld [vmem:[#allocation2 + $0x8] sm:$0xff]
      %v228 = vld [vmem:[#allocation2 + $0x10] sm:$0xf]
      %v229 = vld [vmem:[%s1] sm:$0xff]
      %v230 = vld [vmem:[%s1 + $0x8] sm:$0xff]
      %v231 = vld [vmem:[#allocation3] sm:$0xff]
      %v232 = vld [vmem:[#allocation3 + $0x8] sm:$0xff]
      %v233 = vld [vmem:[#allocation3 + $0x10] sm:$0xf]
      %v235 = vsel %vm203, %v226, 0
      %v238 = vsel %vm203, %v227, 0
      %v241 = vsel %vm203, %v228, 0
      %243 = vmatprep.subr.mxu0 0.0
      %244 = vmatpush1.msra.mxu0 0.0
      %245 = vmatprep.subr.mxu0 0.0
      %246 = vmatpush1.msra.mxu0 0.0
      %247 = vmatprep.subr.mxu0 0.0
      %248 = vmatpush1.msra.mxu0 0.0
      %249 = vmatprep.subr.mxu0 0.0
      %250 = vmatpush1.msra.mxu0 0.0
      %251 = vmatprep.subr.mxu0 0.0
      %252 = vmatpush1.msra.mxu0 0.0
      %253 = vmatprep.subr.mxu0 0.0
      %254 = vmatpush1.msra.mxu0 0.0
      %255 = vmatprep.subr.mxu0 0.0
      %256 = vmatpush1.msra.mxu0 0.0
      %257 = vmatprep.subr.mxu0 0.0
      %258 = vmatpush1.msra.mxu0 0.0
      %259 = vmatprep.subr.mxu0 0.0
      %260 = vmatpush1.msra.mxu0 0.0
      %261 = vmatprep.subr.mxu0 0.0
      %262 = vmatpush1.msra.mxu0 0.0
      %263 = vmatprep.subr.mxu0 0.0
      %264 = vmatpush1.msra.mxu0 0.0
      %265 = vmatprep.subr.mxu0 0.0
      %266 = vmatpush1.msra.mxu0 0.0
      %267 = vmatprep.subr.mxu0 0.0
      %268 = vmatpush1.msra.mxu0 0.0
      %269 = vmatprep.subr.mxu0 0.0
      %270 = vmatpush1.msra.mxu0 0.0
      %271 = vmatprep.subr.mxu0 0.0
      %272 = vmatpush1.msra.mxu0 %v230
      %273 = vmatprep.subr.mxu0 0.0
      %274 = vmatpush1.msra.mxu0 %v229
      %275 = vmatprep.subr.mxu0 0.0
      %276 = vmatpush2.msra.mxu0 0.0
      %277 = vmatprep.subr.mxu0 0.0
      %278 = vmatpush2.msra.mxu0 0.0
      %279 = vmatprep.subr.mxu0 0.0
      %280 = vmatpush2.msra.mxu0 0.0
      %281 = vmatprep.subr.mxu0 0.0
      %282 = vmatpush2.msra.mxu0 0.0
      %283 = vmatprep.subr.mxu0 0.0
      %284 = vmatpush2.msra.mxu0 0.0
      %285 = vmatprep.subr.mxu0 0.0
      %286 = vmatpush2.msra.mxu0 0.0
      %287 = vmatprep.subr.mxu0 0.0
      %288 = vmatpush2.msra.mxu0 0.0
      %289 = vmatprep.subr.mxu0 0.0
      %290 = vmatpush2.msra.mxu0 0.0
      %291 = vmatprep.subr.mxu0 0.0
      %292 = vmatpush2.msra.mxu0 0.0
      %293 = vmatprep.subr.mxu0 0.0
      %294 = vmatpush2.msra.mxu0 0.0
      %295 = vmatprep.subr.mxu0 0.0
      %296 = vmatpush2.msra.mxu0 0.0
      %297 = vmatprep.subr.mxu0 0.0
      %298 = vmatpush2.msra.mxu0 0.0
      %299 = vmatprep.subr.mxu0 0.0
      %300 = vmatpush2.msra.mxu0 0.0
      %301 = vmatprep.subr.mxu0 0.0
      %302 = vmatpush2.msra.mxu0 0.0
      %303 = vmatprep.subr.mxu0 0.0
      %304 = vmatpush2.msra.mxu0 0.0
      %305 = vmatprep.subr.mxu0 0.0
      %306 = vmatpush2.msra.mxu0 0.0
      %307 = vmatprep.mubr.f32.mxu0 0.0
      %308 = vmatmul.mubr.f32.gmra.mxu0 %v235
      %v309 = vpop.f32.mrf.mxu0
      %v310 = vadd.f32 0.0, %v309
      %v311 = vpop.f32.mrf.mxu0
      %312 = vmatprep.mubr.f32.mxu0 0.0
      %313 = vmatmul.mubr.f32.gmra.mxu0 %v238
      %v314 = vpop.f32.mrf.mxu0
      %v315 = vadd.f32 0.0, %v314
      %v316 = vpop.f32.mrf.mxu0
      %317 = vmatprep.mubr.f32.mxu0 0.0
      %318 = vmatmul.mubr.f32.gmra.mxu0 %v241
      %v319 = vpop.f32.mrf.mxu0
      %v320 = vadd.f32 0.0, %v319
      %v321 = vpop.f32.mrf.mxu0
      %322 = vdwg.mxu0
      %v323 = vadd.f32 %v231, %v310
      %v324 = vadd.f32 %v232, %v315
      %v325 = vadd.f32 %v233, %v320
      %326 = vst.msk [vmem:[#allocation3] sm:$0xff] %vm221, %v323
      %327 = vst.msk [vmem:[#allocation3 + $0x8] sm:$0xff] %vm221, %v324
      %328 = vst.msk [vmem:[#allocation3 + $0x10] sm:$0xf] %vm224, %v325
      %s329 = scalar_lea.vmem [#allocation2], 32
      %v330 = vld [vmem:[%s329] sm:$0xff]
      %v331 = vld [vmem:[%s329 + $0x8] sm:$0xff]
      %v332 = vld [vmem:[%s329 + $0x10] sm:$0xf]
      %v333 = vld [vmem:[%s1 + $0x10] sm:$0xff]
      %v334 = vld [vmem:[%s1 + $0x18] sm:$0xff]
      %v335 = vld [vmem:[#allocation3] sm:$0xff]
      %v336 = vld [vmem:[#allocation3 + $0x8] sm:$0xff]
      %v337 = vld [vmem:[#allocation3 + $0x10] sm:$0xf]
      %v339 = vsel %vm203, %v330, 0
      %v342 = vsel %vm203, %v331, 0
      %v345 = vsel %vm203, %v332, 0
      %347 = vmatprep.subr.mxu0 0.0
      %348 = vmatpush1.msra.mxu0 0.0
      %349 = vmatprep.subr.mxu0 0.0
      %350 = vmatpush1.msra.mxu0 0.0
      %351 = vmatprep.subr.mxu0 0.0
      %352 = vmatpush1.msra.mxu0 0.0
      %353 = vmatprep.subr.mxu0 0.0
      %354 = vmatpush1.msra.mxu0 0.0
      %355 = vmatprep.subr.mxu0 0.0
      %356 = vmatpush1.msra.mxu0 0.0
      %357 = vmatprep.subr.mxu0 0.0
      %358 = vmatpush1.msra.mxu0 0.0
      %359 = vmatprep.subr.mxu0 0.0
      %360 = vmatpush1.msra.mxu0 0.0
      %361 = vmatprep.subr.mxu0 0.0
      %362 = vmatpush1.msra.mxu0 0.0
      %363 = vmatprep.subr.mxu0 0.0
      %364 = vmatpush1.msra.mxu0 0.0
      %365 = vmatprep.subr.mxu0 0.0
      %366 = vmatpush1.msra.mxu0 0.0
      %367 = vmatprep.subr.mxu0 0.0
      %368 = vmatpush1.msra.mxu0 0.0
      %369 = vmatprep.subr.mxu0 0.0
      %370 = vmatpush1.msra.mxu0 0.0
      %371 = vmatprep.subr.mxu0 0.0
      %372 = vmatpush1.msra.mxu0 0.0
      %373 = vmatprep.subr.mxu0 0.0
      %374 = vmatpush1.msra.mxu0 0.0
      %375 = vmatprep.subr.mxu0 0.0
      %376 = vmatpush1.msra.mxu0 %v334
      %377 = vmatprep.subr.mxu0 0.0
      %378 = vmatpush1.msra.mxu0 %v333
      %379 = vmatprep.subr.mxu0 0.0
      %380 = vmatpush2.msra.mxu0 0.0
      %381 = vmatprep.subr.mxu0 0.0
      %382 = vmatpush2.msra.mxu0 0.0
      %383 = vmatprep.subr.mxu0 0.0
      %384 = vmatpush2.msra.mxu0 0.0
      %385 = vmatprep.subr.mxu0 0.0
      %386 = vmatpush2.msra.mxu0 0.0
      %387 = vmatprep.subr.mxu0 0.0
      %388 = vmatpush2.msra.mxu0 0.0
      %389 = vmatprep.subr.mxu0 0.0
      %390 = vmatpush2.msra.mxu0 0.0
      %391 = vmatprep.subr.mxu0 0.0
      %392 = vmatpush2.msra.mxu0 0.0
      %393 = vmatprep.subr.mxu0 0.0
      %394 = vmatpush2.msra.mxu0 0.0
      %395 = vmatprep.subr.mxu0 0.0
      %396 = vmatpush2.msra.mxu0 0.0
      %397 = vmatprep.subr.mxu0 0.0
      %398 = vmatpush2.msra.mxu0 0.0
      %399 = vmatprep.subr.mxu0 0.0
      %400 = vmatpush2.msra.mxu0 0.0
      %401 = vmatprep.subr.mxu0 0.0
      %402 = vmatpush2.msra.mxu0 0.0
      %403 = vmatprep.subr.mxu0 0.0
      %404 = vmatpush2.msra.mxu0 0.0
      %405 = vmatprep.subr.mxu0 0.0
      %406 = vmatpush2.msra.mxu0 0.0
      %407 = vmatprep.subr.mxu0 0.0
      %408 = vmatpush2.msra.mxu0 0.0
      %409 = vmatprep.subr.mxu0 0.0
      %410 = vmatpush2.msra.mxu0 0.0
      %411 = vmatprep.mubr.f32.mxu0 0.0
      %412 = vmatmul.mubr.f32.gmra.mxu0 %v339
      %v413 = vpop.f32.mrf.mxu0
      %v414 = vadd.f32 0.0, %v413
      %v415 = vpop.f32.mrf.mxu0
      %416 = vmatprep.mubr.f32.mxu0 0.0
      %417 = vmatmul.mubr.f32.gmra.mxu0 %v342
      %v418 = vpop.f32.mrf.mxu0
      %v419 = vadd.f32 0.0, %v418
      %v420 = vpop.f32.mrf.mxu0
      %421 = vmatprep.mubr.f32.mxu0 0.0
      %422 = vmatmul.mubr.f32.gmra.mxu0 %v345
      %v423 = vpop.f32.mrf.mxu0
      %v424 = vadd.f32 0.0, %v423
      %v425 = vpop.f32.mrf.mxu0
      %426 = vdwg.mxu0
      %v427 = vadd.f32 %v335, %v414
      %v428 = vadd.f32 %v336, %v419
      %v429 = vadd.f32 %v337, %v424
      %430 = vst.msk [vmem:[#allocation3] sm:$0xff] %vm221, %v427
      %431 = vst.msk [vmem:[#allocation3 + $0x8] sm:$0xff] %vm221, %v428
      %432 = vst.msk [vmem:[#allocation3 + $0x10] sm:$0xf] %vm224, %v429
      %v433 = vld [vmem:[#allocation2 + $0x1] sm:$0xff]
      %v434 = vld [vmem:[#allocation2 + $0x9] sm:$0xff]
      %v435 = vld [vmem:[#allocation2 + $0x11] sm:$0xf]
      %v436 = vld [vmem:[%s1 + $0x20] sm:$0xff]
      %v437 = vld [vmem:[%s1 + $0x28] sm:$0xff]
      %v438 = vld [vmem:[#allocation3] sm:$0xff]
      %v439 = vld [vmem:[#allocation3 + $0x8] sm:$0xff]
      %v440 = vld [vmem:[#allocation3 + $0x10] sm:$0xf]
      %v442 = vsel %vm203, %v433, 0
      %v445 = vsel %vm203, %v434, 0
      %v448 = vsel %vm203, %v435, 0
      %450 = vmatprep.subr.mxu0 0.0
      %451 = vmatpush1.msra.mxu0 0.0
      %452 = vmatprep.subr.mxu0 0.0
      %453 = vmatpush1.msra.mxu0 0.0
      %454 = vmatprep.subr.mxu0 0.0
      %455 = vmatpush1.msra.mxu0 0.0
      %456 = vmatprep.subr.mxu0 0.0
      %457 = vmatpush1.msra.mxu0 0.0
      %458 = vmatprep.subr.mxu0 0.0
      %459 = vmatpush1.msra.mxu0 0.0
      %460 = vmatprep.subr.mxu0 0.0
      %461 = vmatpush1.msra.mxu0 0.0
      %462 = vmatprep.subr.mxu0 0.0
      %463 = vmatpush1.msra.mxu0 0.0
      %464 = vmatprep.subr.mxu0 0.0
      %465 = vmatpush1.msra.mxu0 0.0
      %466 = vmatprep.subr.mxu0 0.0
      %467 = vmatpush1.msra.mxu0 0.0
      %468 = vmatprep.subr.mxu0 0.0
      %469 = vmatpush1.msra.mxu0 0.0
      %470 = vmatprep.subr.mxu0 0.0
      %471 = vmatpush1.msra.mxu0 0.0
      %472 = vmatprep.subr.mxu0 0.0
      %473 = vmatpush1.msra.mxu0 0.0
      %474 = vmatprep.subr.mxu0 0.0
      %475 = vmatpush1.msra.mxu0 0.0
      %476 = vmatprep.subr.mxu0 0.0
      %477 = vmatpush1.msra.mxu0 0.0
      %478 = vmatprep.subr.mxu0 0.0
      %479 = vmatpush1.msra.mxu0 %v437
      %480 = vmatprep.subr.mxu0 0.0
      %481 = vmatpush1.msra.mxu0 %v436
      %482 = vmatprep.subr.mxu0 0.0
      %483 = vmatpush2.msra.mxu0 0.0
      %484 = vmatprep.subr.mxu0 0.0
      %485 = vmatpush2.msra.mxu0 0.0
      %486 = vmatprep.subr.mxu0 0.0
      %487 = vmatpush2.msra.mxu0 0.0
      %488 = vmatprep.subr.mxu0 0.0
      %489 = vmatpush2.msra.mxu0 0.0
      %490 = vmatprep.subr.mxu0 0.0
      %491 = vmatpush2.msra.mxu0 0.0
      %492 = vmatprep.subr.mxu0 0.0
      %493 = vmatpush2.msra.mxu0 0.0
      %494 = vmatprep.subr.mxu0 0.0
      %495 = vmatpush2.msra.mxu0 0.0
      %496 = vmatprep.subr.mxu0 0.0
      %497 = vmatpush2.msra.mxu0 0.0
      %498 = vmatprep.subr.mxu0 0.0
      %499 = vmatpush2.msra.mxu0 0.0
      %500 = vmatprep.subr.mxu0 0.0
      %501 = vmatpush2.msra.mxu0 0.0
      %502 = vmatprep.subr.mxu0 0.0
      %503 = vmatpush2.msra.mxu0 0.0
      %504 = vmatprep.subr.mxu0 0.0
      %505 = vmatpush2.msra.mxu0 0.0
      %506 = vmatprep.subr.mxu0 0.0
      %507 = vmatpush2.msra.mxu0 0.0
      %508 = vmatprep.subr.mxu0 0.0
      %509 = vmatpush2.msra.mxu0 0.0
      %510 = vmatprep.subr.mxu0 0.0
      %511 = vmatpush2.msra.mxu0 0.0
      %512 = vmatprep.subr.mxu0 0.0
      %513 = vmatpush2.msra.mxu0 0.0
      %514 = vmatprep.mubr.f32.mxu0 0.0
      %515 = vmatmul.mubr.f32.gmra.mxu0 %v442
      %v516 = vpop.f32.mrf.mxu0
      %v517 = vadd.f32 0.0, %v516
      %v518 = vpop.f32.mrf.mxu0
      %519 = vmatprep.mubr.f32.mxu0 0.0
      %520 = vmatmul.mubr.f32.gmra.mxu0 %v445
      %v521 = vpop.f32.mrf.mxu0
      %v522 = vadd.f32 0.0, %v521
      %v523 = vpop.f32.mrf.mxu0
      %524 = vmatprep.mubr.f32.mxu0 0.0
      %525 = vmatmul.mubr.f32.gmra.mxu0 %v448
      %v526 = vpop.f32.mrf.mxu0
      %v527 = vadd.f32 0.0, %v526
      %v528 = vpop.f32.mrf.mxu0
      %529 = vdwg.mxu0
      %v530 = vadd.f32 %v438, %v517
      %v531 = vadd.f32 %v439, %v522
      %v532 = vadd.f32 %v440, %v527
      %533 = vst.msk [vmem:[#allocation3] sm:$0xff] %vm221, %v530
      %534 = vst.msk [vmem:[#allocation3 + $0x8] sm:$0xff] %vm221, %v531
      %535 = vst.msk [vmem:[#allocation3 + $0x10] sm:$0xf] %vm224, %v532
      %s536 = scalar_lea.vmem [#allocation2], 64
      %v537 = vld [vmem:[%s536] sm:$0xff]
      %v538 = vld [vmem:[%s536 + $0x8] sm:$0xff]
      %v539 = vld [vmem:[%s536 + $0x10] sm:$0xf]
      %v540 = vld [vmem:[%s1 + $0x30] sm:$0xff]
      %v541 = vld [vmem:[%s1 + $0x38] sm:$0xff]
      %v542 = vld [vmem:[#allocation3] sm:$0xff]
      %v543 = vld [vmem:[#allocation3 + $0x8] sm:$0xff]
      %v544 = vld [vmem:[#allocation3 + $0x10] sm:$0xf]
      %v546 = vsel %vm203, %v537, 0
      %v549 = vsel %vm203, %v538, 0
      %v552 = vsel %vm203, %v539, 0
      %554 = vmatprep.subr.mxu0 0.0
      %555 = vmatpush1.msra.mxu0 0.0
      %556 = vmatprep.subr.mxu0 0.0
      %557 = vmatpush1.msra.mxu0 0.0
      %558 = vmatprep.subr.mxu0 0.0
      %559 = vmatpush1.msra.mxu0 0.0
      %560 = vmatprep.subr.mxu0 0.0
      %561 = vmatpush1.msra.mxu0 0.0
      %562 = vmatprep.subr.mxu0 0.0
      %563 = vmatpush1.msra.mxu0 0.0
      %564 = vmatprep.subr.mxu0 0.0
      %565 = vmatpush1.msra.mxu0 0.0
      %566 = vmatprep.subr.mxu0 0.0
      %567 = vmatpush1.msra.mxu0 0.0
      %568 = vmatprep.subr.mxu0 0.0
      %569 = vmatpush1.msra.mxu0 0.0
      %570 = vmatprep.subr.mxu0 0.0
      %571 = vmatpush1.msra.mxu0 0.0
      %572 = vmatprep.subr.mxu0 0.0
      %573 = vmatpush1.msra.mxu0 0.0
      %574 = vmatprep.subr.mxu0 0.0
      %575 = vmatpush1.msra.mxu0 0.0
      %576 = vmatprep.subr.mxu0 0.0
      %577 = vmatpush1.msra.mxu0 0.0
      %578 = vmatprep.subr.mxu0 0.0
      %579 = vmatpush1.msra.mxu0 0.0
      %580 = vmatprep.subr.mxu0 0.0
      %581 = vmatpush1.msra.mxu0 0.0
      %582 = vmatprep.subr.mxu0 0.0
      %583 = vmatpush1.msra.mxu0 %v541
      %584 = vmatprep.subr.mxu0 0.0
      %585 = vmatpush1.msra.mxu0 %v540
      %586 = vmatprep.subr.mxu0 0.0
      %587 = vmatpush2.msra.mxu0 0.0
      %588 = vmatprep.subr.mxu0 0.0
      %589 = vmatpush2.msra.mxu0 0.0
      %590 = vmatprep.subr.mxu0 0.0
      %591 = vmatpush2.msra.mxu0 0.0
      %592 = vmatprep.subr.mxu0 0.0
      %593 = vmatpush2.msra.mxu0 0.0
      %594 = vmatprep.subr.mxu0 0.0
      %595 = vmatpush2.msra.mxu0 0.0
      %596 = vmatprep.subr.mxu0 0.0
      %597 = vmatpush2.msra.mxu0 0.0
      %598 = vmatprep.subr.mxu0 0.0
      %599 = vmatpush2.msra.mxu0 0.0
      %600 = vmatprep.subr.mxu0 0.0
      %601 = vmatpush2.msra.mxu0 0.0
      %602 = vmatprep.subr.mxu0 0.0
      %603 = vmatpush2.msra.mxu0 0.0
      %604 = vmatprep.subr.mxu0 0.0
      %605 = vmatpush2.msra.mxu0 0.0
      %606 = vmatprep.subr.mxu0 0.0
      %607 = vmatpush2.msra.mxu0 0.0
      %608 = vmatprep.subr.mxu0 0.0
      %609 = vmatpush2.msra.mxu0 0.0
      %610 = vmatprep.subr.mxu0 0.0
      %611 = vmatpush2.msra.mxu0 0.0
      %612 = vmatprep.subr.mxu0 0.0
      %613 = vmatpush2.msra.mxu0 0.0
      %614 = vmatprep.subr.mxu0 0.0
      %615 = vmatpush2.msra.mxu0 0.0
      %616 = vmatprep.subr.mxu0 0.0
      %617 = vmatpush2.msra.mxu0 0.0
      %618 = vmatprep.mubr.f32.mxu0 0.0
      %619 = vmatmul.mubr.f32.gmra.mxu0 %v546
      %v620 = vpop.f32.mrf.mxu0
      %v621 = vadd.f32 0.0, %v620
      %v622 = vpop.f32.mrf.mxu0
      %623 = vmatprep.mubr.f32.mxu0 0.0
      %624 = vmatmul.mubr.f32.gmra.mxu0 %v549
      %v625 = vpop.f32.mrf.mxu0
      %v626 = vadd.f32 0.0, %v625
      %v627 = vpop.f32.mrf.mxu0
      %628 = vmatprep.mubr.f32.mxu0 0.0
      %629 = vmatmul.mubr.f32.gmra.mxu0 %v552
      %v630 = vpop.f32.mrf.mxu0
      %v631 = vadd.f32 0.0, %v630
      %v632 = vpop.f32.mrf.mxu0
      %633 = vdwg.mxu0
      %v634 = vadd.f32 %v542, %v621
      %v635 = vadd.f32 %v543, %v626
      %v636 = vadd.f32 %v544, %v631
      %637 = vst.msk [vmem:[#allocation3] sm:$0xff] %vm221, %v634
      %638 = vst.msk [vmem:[#allocation3 + $0x8] sm:$0xff] %vm221, %v635
      %639 = vst.msk [vmem:[#allocation3 + $0x10] sm:$0xf] %vm224, %v636
      %s640 = scalar_lea.vmem [#allocation2], 96
      %v641 = vld [vmem:[%s640] sm:$0xff]
      %v642 = vld [vmem:[%s640 + $0x8] sm:$0xff]
      %v643 = vld [vmem:[%s640 + $0x10] sm:$0xf]
      %v644 = vld [vmem:[%s1 + $0x40] sm:$0xff]
      %v645 = vld [vmem:[%s1 + $0x48] sm:$0xff]
      %v646 = vld [vmem:[#allocation3] sm:$0xff]
      %v647 = vld [vmem:[#allocation3 + $0x8] sm:$0xff]
      %v648 = vld [vmem:[#allocation3 + $0x10] sm:$0xf]
      %v650 = vsel %vm203, %v641, 0
      %v653 = vsel %vm203, %v642, 0
      %v656 = vsel %vm203, %v643, 0
      %658 = vmatprep.subr.mxu0 0.0
      %659 = vmatpush1.msra.mxu0 0.0
      %660 = vmatprep.subr.mxu0 0.0
      %661 = vmatpush1.msra.mxu0 0.0
      %662 = vmatprep.subr.mxu0 0.0
      %663 = vmatpush1.msra.mxu0 0.0
      %664 = vmatprep.subr.mxu0 0.0
      %665 = vmatpush1.msra.mxu0 0.0
      %666 = vmatprep.subr.mxu0 0.0
      %667 = vmatpush1.msra.mxu0 0.0
      %668 = vmatprep.subr.mxu0 0.0
      %669 = vmatpush1.msra.mxu0 0.0
      %670 = vmatprep.subr.mxu0 0.0
      %671 = vmatpush1.msra.mxu0 0.0
      %672 = vmatprep.subr.mxu0 0.0
      %673 = vmatpush1.msra.mxu0 0.0
      %674 = vmatprep.subr.mxu0 0.0
      %675 = vmatpush1.msra.mxu0 0.0
      %676 = vmatprep.subr.mxu0 0.0
      %677 = vmatpush1.msra.mxu0 0.0
      %678 = vmatprep.subr.mxu0 0.0
      %679 = vmatpush1.msra.mxu0 0.0
      %680 = vmatprep.subr.mxu0 0.0
      %681 = vmatpush1.msra.mxu0 0.0
      %682 = vmatprep.subr.mxu0 0.0
      %683 = vmatpush1.msra.mxu0 0.0
      %684 = vmatprep.subr.mxu0 0.0
      %685 = vmatpush1.msra.mxu0 0.0
      %686 = vmatprep.subr.mxu0 0.0
      %687 = vmatpush1.msra.mxu0 %v645
      %688 = vmatprep.subr.mxu0 0.0
      %689 = vmatpush1.msra.mxu0 %v644
      %690 = vmatprep.subr.mxu0 0.0
      %691 = vmatpush2.msra.mxu0 0.0
      %692 = vmatprep.subr.mxu0 0.0
      %693 = vmatpush2.msra.mxu0 0.0
      %694 = vmatprep.subr.mxu0 0.0
      %695 = vmatpush2.msra.mxu0 0.0
      %696 = vmatprep.subr.mxu0 0.0
      %697 = vmatpush2.msra.mxu0 0.0
      %698 = vmatprep.subr.mxu0 0.0
      %699 = vmatpush2.msra.mxu0 0.0
      %700 = vmatprep.subr.mxu0 0.0
      %701 = vmatpush2.msra.mxu0 0.0
      %702 = vmatprep.subr.mxu0 0.0
      %703 = vmatpush2.msra.mxu0 0.0
      %704 = vmatprep.subr.mxu0 0.0
      %705 = vmatpush2.msra.mxu0 0.0
      %706 = vmatprep.subr.mxu0 0.0
      %707 = vmatpush2.msra.mxu0 0.0
      %708 = vmatprep.subr.mxu0 0.0
      %709 = vmatpush2.msra.mxu0 0.0
      %710 = vmatprep.subr.mxu0 0.0
      %711 = vmatpush2.msra.mxu0 0.0
      %712 = vmatprep.subr.mxu0 0.0
      %713 = vmatpush2.msra.mxu0 0.0
      %714 = vmatprep.subr.mxu0 0.0
      %715 = vmatpush2.msra.mxu0 0.0
      %716 = vmatprep.subr.mxu0 0.0
      %717 = vmatpush2.msra.mxu0 0.0
      %718 = vmatprep.subr.mxu0 0.0
      %719 = vmatpush2.msra.mxu0 0.0
      %720 = vmatprep.subr.mxu0 0.0
      %721 = vmatpush2.msra.mxu0 0.0
      %722 = vmatprep.mubr.f32.mxu0 0.0
      %723 = vmatmul.mubr.f32.gmra.mxu0 %v650
      %v724 = vpop.f32.mrf.mxu0
      %v725 = vadd.f32 0.0, %v724
      %v726 = vpop.f32.mrf.mxu0
      %727 = vmatprep.mubr.f32.mxu0 0.0
      %728 = vmatmul.mubr.f32.gmra.mxu0 %v653
      %v729 = vpop.f32.mrf.mxu0
      %v730 = vadd.f32 0.0, %v729
      %v731 = vpop.f32.mrf.mxu0
      %732 = vmatprep.mubr.f32.mxu0 0.0
      %733 = vmatmul.mubr.f32.gmra.mxu0 %v656
      %v734 = vpop.f32.mrf.mxu0
      %v735 = vadd.f32 0.0, %v734
      %v736 = vpop.f32.mrf.mxu0
      %737 = vdwg.mxu0
      %v738 = vadd.f32 %v646, %v725
      %v739 = vadd.f32 %v647, %v730
      %v740 = vadd.f32 %v648, %v735
      %741 = vst.msk [vmem:[#allocation3] sm:$0xff] %vm221, %v738
      %742 = vst.msk [vmem:[#allocation3 + $0x8] sm:$0xff] %vm221, %v739
      %743 = vst.msk [vmem:[#allocation3 + $0x10] sm:$0xf] %vm224, %v740
      %v744 = vld [vmem:[%s536 + $0x1] sm:$0xff]
      %v745 = vld [vmem:[%s536 + $0x9] sm:$0xff]
      %v746 = vld [vmem:[%s536 + $0x11] sm:$0xf]
      %v747 = vld [vmem:[%s1 + $0x50] sm:$0xff]
      %v748 = vld [vmem:[%s1 + $0x58] sm:$0xff]
      %v749 = vld [vmem:[#allocation3] sm:$0xff]
      %v750 = vld [vmem:[#allocation3 + $0x8] sm:$0xff]
      %v751 = vld [vmem:[#allocation3 + $0x10] sm:$0xf]
      %v753 = vsel %vm203, %v744, 0
      %v756 = vsel %vm203, %v745, 0
      %v759 = vsel %vm203, %v746, 0
      %761 = vmatprep.subr.mxu0 0.0
      %762 = vmatpush1.msra.mxu0 0.0
      %763 = vmatprep.subr.mxu0 0.0
      %764 = vmatpush1.msra.mxu0 0.0
      %765 = vmatprep.subr.mxu0 0.0
      %766 = vmatpush1.msra.mxu0 0.0
      %767 = vmatprep.subr.mxu0 0.0
      %768 = vmatpush1.msra.mxu0 0.0
      %769 = vmatprep.subr.mxu0 0.0
      %770 = vmatpush1.msra.mxu0 0.0
      %771 = vmatprep.subr.mxu0 0.0
      %772 = vmatpush1.msra.mxu0 0.0
      %773 = vmatprep.subr.mxu0 0.0
      %774 = vmatpush1.msra.mxu0 0.0
      %775 = vmatprep.subr.mxu0 0.0
      %776 = vmatpush1.msra.mxu0 0.0
      %777 = vmatprep.subr.mxu0 0.0
      %778 = vmatpush1.msra.mxu0 0.0
      %779 = vmatprep.subr.mxu0 0.0
      %780 = vmatpush1.msra.mxu0 0.0
      %781 = vmatprep.subr.mxu0 0.0
      %782 = vmatpush1.msra.mxu0 0.0
      %783 = vmatprep.subr.mxu0 0.0
      %784 = vmatpush1.msra.mxu0 0.0
      %785 = vmatprep.subr.mxu0 0.0
      %786 = vmatpush1.msra.mxu0 0.0
      %787 = vmatprep.subr.mxu0 0.0
      %788 = vmatpush1.msra.mxu0 0.0
      %789 = vmatprep.subr.mxu0 0.0
      %790 = vmatpush1.msra.mxu0 %v748
      %791 = vmatprep.subr.mxu0 0.0
      %792 = vmatpush1.msra.mxu0 %v747
      %793 = vmatprep.subr.mxu0 0.0
      %794 = vmatpush2.msra.mxu0 0.0
      %795 = vmatprep.subr.mxu0 0.0
      %796 = vmatpush2.msra.mxu0 0.0
      %797 = vmatprep.subr.mxu0 0.0
      %798 = vmatpush2.msra.mxu0 0.0
      %799 = vmatprep.subr.mxu0 0.0
      %800 = vmatpush2.msra.mxu0 0.0
      %801 = vmatprep.subr.mxu0 0.0
      %802 = vmatpush2.msra.mxu0 0.0
      %803 = vmatprep.subr.mxu0 0.0
      %804 = vmatpush2.msra.mxu0 0.0
      %805 = vmatprep.subr.mxu0 0.0
      %806 = vmatpush2.msra.mxu0 0.0
      %807 = vmatprep.subr.mxu0 0.0
      %808 = vmatpush2.msra.mxu0 0.0
      %809 = vmatprep.subr.mxu0 0.0
      %810 = vmatpush2.msra.mxu0 0.0
      %811 = vmatprep.subr.mxu0 0.0
      %812 = vmatpush2.msra.mxu0 0.0
      %813 = vmatprep.subr.mxu0 0.0
      %814 = vmatpush2.msra.mxu0 0.0
      %815 = vmatprep.subr.mxu0 0.0
      %816 = vmatpush2.msra.mxu0 0.0
      %817 = vmatprep.subr.mxu0 0.0
      %818 = vmatpush2.msra.mxu0 0.0
      %819 = vmatprep.subr.mxu0 0.0
      %820 = vmatpush2.msra.mxu0 0.0
      %821 = vmatprep.subr.mxu0 0.0
      %822 = vmatpush2.msra.mxu0 0.0
      %823 = vmatprep.subr.mxu0 0.0
      %824 = vmatpush2.msra.mxu0 0.0
      %825 = vmatprep.mubr.f32.mxu0 0.0
      %826 = vmatmul.mubr.f32.gmra.mxu0 %v753
      %v827 = vpop.f32.mrf.mxu0
      %v828 = vadd.f32 0.0, %v827
      %v829 = vpop.f32.mrf.mxu0
      %830 = vmatprep.mubr.f32.mxu0 0.0
      %831 = vmatmul.mubr.f32.gmra.mxu0 %v756
      %v832 = vpop.f32.mrf.mxu0
      %v833 = vadd.f32 0.0, %v832
      %v834 = vpop.f32.mrf.mxu0
      %835 = vmatprep.mubr.f32.mxu0 0.0
      %836 = vmatmul.mubr.f32.gmra.mxu0 %v759
      %v837 = vpop.f32.mrf.mxu0
      %v838 = vadd.f32 0.0, %v837
      %v839 = vpop.f32.mrf.mxu0
      %840 = vdwg.mxu0
      %v841 = vadd.f32 %v749, %v828
      %v842 = vadd.f32 %v750, %v833
      %v843 = vadd.f32 %v751, %v838
      %844 = vst.msk [vmem:[#allocation3] sm:$0xff] %vm221, %v841
      %845 = vst.msk [vmem:[#allocation3 + $0x8] sm:$0xff] %vm221, %v842
      %846 = vst.msk [vmem:[#allocation3 + $0x10] sm:$0xf] %vm224, %v843
      %v847 = vld [vmem:[#allocation2 + $0x5] sm:$0xff]
      %v848 = vld [vmem:[#allocation2 + $0xd] sm:$0xff]
      %v849 = vld [vmem:[#allocation2 + $0x15] sm:$0xf]
      %v850 = vld [vmem:[%s1 + $0x60] sm:$0xff]
      %v851 = vld [vmem:[%s1 + $0x68] sm:$0xff]
      %v852 = vld [vmem:[#allocation3] sm:$0xff]
      %v853 = vld [vmem:[#allocation3 + $0x8] sm:$0xff]
      %v854 = vld [vmem:[#allocation3 + $0x10] sm:$0xf]
      %v856 = vsel %vm203, %v847, 0
      %v859 = vsel %vm203, %v848, 0
      %v862 = vsel %vm203, %v849, 0
      %864 = vmatprep.subr.mxu0 0.0
      %865 = vmatpush1.msra.mxu0 0.0
      %866 = vmatprep.subr.mxu0 0.0
      %867 = vmatpush1.msra.mxu0 0.0
      %868 = vmatprep.subr.mxu0 0.0
      %869 = vmatpush1.msra.mxu0 0.0
      %870 = vmatprep.subr.mxu0 0.0
      %871 = vmatpush1.msra.mxu0 0.0
      %872 = vmatprep.subr.mxu0 0.0
      %873 = vmatpush1.msra.mxu0 0.0
      %874 = vmatprep.subr.mxu0 0.0
      %875 = vmatpush1.msra.mxu0 0.0
      %876 = vmatprep.subr.mxu0 0.0
      %877 = vmatpush1.msra.mxu0 0.0
      %878 = vmatprep.subr.mxu0 0.0
      %879 = vmatpush1.msra.mxu0 0.0
      %880 = vmatprep.subr.mxu0 0.0
      %881 = vmatpush1.msra.mxu0 0.0
      %882 = vmatprep.subr.mxu0 0.0
      %883 = vmatpush1.msra.mxu0 0.0
      %884 = vmatprep.subr.mxu0 0.0
      %885 = vmatpush1.msra.mxu0 0.0
      %886 = vmatprep.subr.mxu0 0.0
      %887 = vmatpush1.msra.mxu0 0.0
      %888 = vmatprep.subr.mxu0 0.0
      %889 = vmatpush1.msra.mxu0 0.0
      %890 = vmatprep.subr.mxu0 0.0
      %891 = vmatpush1.msra.mxu0 0.0
      %892 = vmatprep.subr.mxu0 0.0
      %893 = vmatpush1.msra.mxu0 %v851
      %894 = vmatprep.subr.mxu0 0.0
      %895 = vmatpush1.msra.mxu0 %v850
      %896 = vmatprep.subr.mxu0 0.0
      %897 = vmatpush2.msra.mxu0 0.0
      %898 = vmatprep.subr.mxu0 0.0
      %899 = vmatpush2.msra.mxu0 0.0
      %900 = vmatprep.subr.mxu0 0.0
      %901 = vmatpush2.msra.mxu0 0.0
      %902 = vmatprep.subr.mxu0 0.0
      %903 = vmatpush2.msra.mxu0 0.0
      %904 = vmatprep.subr.mxu0 0.0
      %905 = vmatpush2.msra.mxu0 0.0
      %906 = vmatprep.subr.mxu0 0.0
      %907 = vmatpush2.msra.mxu0 0.0
      %908 = vmatprep.subr.mxu0 0.0
      %909 = vmatpush2.msra.mxu0 0.0
      %910 = vmatprep.subr.mxu0 0.0
      %911 = vmatpush2.msra.mxu0 0.0
      %912 = vmatprep.subr.mxu0 0.0
      %913 = vmatpush2.msra.mxu0 0.0
      %914 = vmatprep.subr.mxu0 0.0
      %915 = vmatpush2.msra.mxu0 0.0
      %916 = vmatprep.subr.mxu0 0.0
      %917 = vmatpush2.msra.mxu0 0.0
      %918 = vmatprep.subr.mxu0 0.0
      %919 = vmatpush2.msra.mxu0 0.0
      %920 = vmatprep.subr.mxu0 0.0
      %921 = vmatpush2.msra.mxu0 0.0
      %922 = vmatprep.subr.mxu0 0.0
      %923 = vmatpush2.msra.mxu0 0.0
      %924 = vmatprep.subr.mxu0 0.0
      %925 = vmatpush2.msra.mxu0 0.0
      %926 = vmatprep.subr.mxu0 0.0
      %927 = vmatpush2.msra.mxu0 0.0
      %928 = vmatprep.mubr.f32.mxu0 0.0
      %929 = vmatmul.mubr.f32.gmra.mxu0 %v856
      %v930 = vpop.f32.mrf.mxu0
      %v931 = vadd.f32 0.0, %v930
      %v932 = vpop.f32.mrf.mxu0
      %933 = vmatprep.mubr.f32.mxu0 0.0
      %934 = vmatmul.mubr.f32.gmra.mxu0 %v859
      %v935 = vpop.f32.mrf.mxu0
      %v936 = vadd.f32 0.0, %v935
      %v937 = vpop.f32.mrf.mxu0
      %938 = vmatprep.mubr.f32.mxu0 0.0
      %939 = vmatmul.mubr.f32.gmra.mxu0 %v862
      %v940 = vpop.f32.mrf.mxu0
      %v941 = vadd.f32 0.0, %v940
      %v942 = vpop.f32.mrf.mxu0
      %943 = vdwg.mxu0
      %v944 = vadd.f32 %v852, %v931
      %v945 = vadd.f32 %v853, %v936
      %v946 = vadd.f32 %v854, %v941
      %947 = vst.msk [vmem:[#allocation3] sm:$0xff] %vm221, %v944
      %948 = vst.msk [vmem:[#allocation3 + $0x8] sm:$0xff] %vm221, %v945
      %949 = vst.msk [vmem:[#allocation3 + $0x10] sm:$0xf] %vm224, %v946
      %v950 = vld [vmem:[%s329 + $0x5] sm:$0xff]
      %v951 = vld [vmem:[%s329 + $0xd] sm:$0xff]
      %v952 = vld [vmem:[%s329 + $0x15] sm:$0xf]
      %v953 = vld [vmem:[%s1 + $0x70] sm:$0xff]
      %v954 = vld [vmem:[%s1 + $0x78] sm:$0xff]
      %v955 = vld [vmem:[#allocation3] sm:$0xff]
      %v956 = vld [vmem:[#allocation3 + $0x8] sm:$0xff]
      %v957 = vld [vmem:[#allocation3 + $0x10] sm:$0xf]
      %v959 = vsel %vm203, %v950, 0
      %v962 = vsel %vm203, %v951, 0
      %v965 = vsel %vm203, %v952, 0
      %967 = vmatprep.subr.mxu0 0.0
      %968 = vmatpush1.msra.mxu0 0.0
      %969 = vmatprep.subr.mxu0 0.0
      %970 = vmatpush1.msra.mxu0 0.0
      %971 = vmatprep.subr.mxu0 0.0
      %972 = vmatpush1.msra.mxu0 0.0
      %973 = vmatprep.subr.mxu0 0.0
      %974 = vmatpush1.msra.mxu0 0.0
      %975 = vmatprep.subr.mxu0 0.0
      %976 = vmatpush1.msra.mxu0 0.0
      %977 = vmatprep.subr.mxu0 0.0
      %978 = vmatpush1.msra.mxu0 0.0
      %979 = vmatprep.subr.mxu0 0.0
      %980 = vmatpush1.msra.mxu0 0.0
      %981 = vmatprep.subr.mxu0 0.0
      %982 = vmatpush1.msra.mxu0 0.0
      %983 = vmatprep.subr.mxu0 0.0
      %984 = vmatpush1.msra.mxu0 0.0
      %985 = vmatprep.subr.mxu0 0.0
      %986 = vmatpush1.msra.mxu0 0.0
      %987 = vmatprep.subr.mxu0 0.0
      %988 = vmatpush1.msra.mxu0 0.0
      %989 = vmatprep.subr.mxu0 0.0
      %990 = vmatpush1.msra.mxu0 0.0
      %991 = vmatprep.subr.mxu0 0.0
      %992 = vmatpush1.msra.mxu0 0.0
      %993 = vmatprep.subr.mxu0 0.0
      %994 = vmatpush1.msra.mxu0 0.0
      %995 = vmatprep.subr.mxu0 0.0
      %996 = vmatpush1.msra.mxu0 %v954
      %997 = vmatprep.subr.mxu0 0.0
      %998 = vmatpush1.msra.mxu0 %v953
      %999 = vmatprep.subr.mxu0 0.0
      %1000 = vmatpush2.msra.mxu0 0.0
      %1001 = vmatprep.subr.mxu0 0.0
      %1002 = vmatpush2.msra.mxu0 0.0
      %1003 = vmatprep.subr.mxu0 0.0
      %1004 = vmatpush2.msra.mxu0 0.0
      %1005 = vmatprep.subr.mxu0 0.0
      %1006 = vmatpush2.msra.mxu0 0.0
      %1007 = vmatprep.subr.mxu0 0.0
      %1008 = vmatpush2.msra.mxu0 0.0
      %1009 = vmatprep.subr.mxu0 0.0
      %1010 = vmatpush2.msra.mxu0 0.0
      %1011 = vmatprep.subr.mxu0 0.0
      %1012 = vmatpush2.msra.mxu0 0.0
      %1013 = vmatprep.subr.mxu0 0.0
      %1014 = vmatpush2.msra.mxu0 0.0
      %1015 = vmatprep.subr.mxu0 0.0
      %1016 = vmatpush2.msra.mxu0 0.0
      %1017 = vmatprep.subr.mxu0 0.0
      %1018 = vmatpush2.msra.mxu0 0.0
      %1019 = vmatprep.subr.mxu0 0.0
      %1020 = vmatpush2.msra.mxu0 0.0
      %1021 = vmatprep.subr.mxu0 0.0
      %1022 = vmatpush2.msra.mxu0 0.0
      %1023 = vmatprep.subr.mxu0 0.0
      %1024 = vmatpush2.msra.mxu0 0.0
      %1025 = vmatprep.subr.mxu0 0.0
      %1026 = vmatpush2.msra.mxu0 0.0
      %1027 = vmatprep.subr.mxu0 0.0
      %1028 = vmatpush2.msra.mxu0 0.0
      %1029 = vmatprep.subr.mxu0 0.0
      %1030 = vmatpush2.msra.mxu0 0.0
      %1031 = vmatprep.mubr.f32.mxu0 0.0
      %1032 = vmatmul.mubr.f32.gmra.mxu0 %v959
      %v1033 = vpop.f32.mrf.mxu0
      %v1034 = vadd.f32 0.0, %v1033
      %v1035 = vpop.f32.mrf.mxu0
      %1036 = vmatprep.mubr.f32.mxu0 0.0
      %1037 = vmatmul.mubr.f32.gmra.mxu0 %v962
      %v1038 = vpop.f32.mrf.mxu0
      %v1039 = vadd.f32 0.0, %v1038
      %v1040 = vpop.f32.mrf.mxu0
      %1041 = vmatprep.mubr.f32.mxu0 0.0
      %1042 = vmatmul.mubr.f32.gmra.mxu0 %v965
      %v1043 = vpop.f32.mrf.mxu0
      %v1044 = vadd.f32 0.0, %v1043
      %v1045 = vpop.f32.mrf.mxu0
      %1046 = vdwg.mxu0
      %v1047 = vadd.f32 %v955, %v1034
      %v1048 = vadd.f32 %v956, %v1039
      %v1049 = vadd.f32 %v957, %v1044
      %1050 = vst.msk [vmem:[#allocation3] sm:$0xff] %vm221, %v1047
      %1051 = vst.msk [vmem:[#allocation3 + $0x8] sm:$0xff] %vm221, %v1048
      %1052 = vst.msk [vmem:[#allocation3 + $0x10] sm:$0xf] %vm224, %v1049
      %v1053 = vld [vmem:[#allocation2 + $0x6] sm:$0xff]
      %v1054 = vld [vmem:[#allocation2 + $0xe] sm:$0xff]
      %v1055 = vld [vmem:[#allocation2 + $0x16] sm:$0xf]
      %v1056 = vld [vmem:[%s1 + $0x80] sm:$0xff]
      %v1057 = vld [vmem:[%s1 + $0x88] sm:$0xff]
      %v1058 = vld [vmem:[#allocation3] sm:$0xff]
      %v1059 = vld [vmem:[#allocation3 + $0x8] sm:$0xff]
      %v1060 = vld [vmem:[#allocation3 + $0x10] sm:$0xf]
      %v1062 = vsel %vm203, %v1053, 0
      %v1065 = vsel %vm203, %v1054, 0
      %v1068 = vsel %vm203, %v1055, 0
      %1070 = vmatprep.subr.mxu0 0.0
      %1071 = vmatpush1.msra.mxu0 0.0
      %1072 = vmatprep.subr.mxu0 0.0
      %1073 = vmatpush1.msra.mxu0 0.0
      %1074 = vmatprep.subr.mxu0 0.0
      %1075 = vmatpush1.msra.mxu0 0.0
      %1076 = vmatprep.subr.mxu0 0.0
      %1077 = vmatpush1.msra.mxu0 0.0
      %1078 = vmatprep.subr.mxu0 0.0
      %1079 = vmatpush1.msra.mxu0 0.0
      %1080 = vmatprep.subr.mxu0 0.0
      %1081 = vmatpush1.msra.mxu0 0.0
      %1082 = vmatprep.subr.mxu0 0.0
      %1083 = vmatpush1.msra.mxu0 0.0
      %1084 = vmatprep.subr.mxu0 0.0
      %1085 = vmatpush1.msra.mxu0 0.0
      %1086 = vmatprep.subr.mxu0 0.0
      %1087 = vmatpush1.msra.mxu0 0.0
      %1088 = vmatprep.subr.mxu0 0.0
      %1089 = vmatpush1.msra.mxu0 0.0
      %1090 = vmatprep.subr.mxu0 0.0
      %1091 = vmatpush1.msra.mxu0 0.0
      %1092 = vmatprep.subr.mxu0 0.0
      %1093 = vmatpush1.msra.mxu0 0.0
      %1094 = vmatprep.subr.mxu0 0.0
      %1095 = vmatpush1.msra.mxu0 0.0
      %1096 = vmatprep.subr.mxu0 0.0
      %1097 = vmatpush1.msra.mxu0 0.0
      %1098 = vmatprep.subr.mxu0 0.0
      %1099 = vmatpush1.msra.mxu0 %v1057
      %1100 = vmatprep.subr.mxu0 0.0
      %1101 = vmatpush1.msra.mxu0 %v1056
      %1102 = vmatprep.subr.mxu0 0.0
      %1103 = vmatpush2.msra.mxu0 0.0
      %1104 = vmatprep.subr.mxu0 0.0
      %1105 = vmatpush2.msra.mxu0 0.0
      %1106 = vmatprep.subr.mxu0 0.0
      %1107 = vmatpush2.msra.mxu0 0.0
      %1108 = vmatprep.subr.mxu0 0.0
      %1109 = vmatpush2.msra.mxu0 0.0
      %1110 = vmatprep.subr.mxu0 0.0
      %1111 = vmatpush2.msra.mxu0 0.0
      %1112 = vmatprep.subr.mxu0 0.0
      %1113 = vmatpush2.msra.mxu0 0.0
      %1114 = vmatprep.subr.mxu0 0.0
      %1115 = vmatpush2.msra.mxu0 0.0
      %1116 = vmatprep.subr.mxu0 0.0
      %1117 = vmatpush2.msra.mxu0 0.0
      %1118 = vmatprep.subr.mxu0 0.0
      %1119 = vmatpush2.msra.mxu0 0.0
      %1120 = vmatprep.subr.mxu0 0.0
      %1121 = vmatpush2.msra.mxu0 0.0
      %1122 = vmatprep.subr.mxu0 0.0
      %1123 = vmatpush2.msra.mxu0 0.0
      %1124 = vmatprep.subr.mxu0 0.0
      %1125 = vmatpush2.msra.mxu0 0.0
      %1126 = vmatprep.subr.mxu0 0.0
      %1127 = vmatpush2.msra.mxu0 0.0
      %1128 = vmatprep.subr.mxu0 0.0
      %1129 = vmatpush2.msra.mxu0 0.0
      %1130 = vmatprep.subr.mxu0 0.0
      %1131 = vmatpush2.msra.mxu0 0.0
      %1132 = vmatprep.subr.mxu0 0.0
      %1133 = vmatpush2.msra.mxu0 0.0
      %1134 = vmatprep.mubr.f32.mxu0 0.0
      %1135 = vmatmul.mubr.f32.gmra.mxu0 %v1062
      %v1136 = vpop.f32.mrf.mxu0
      %v1137 = vadd.f32 0.0, %v1136
      %v1138 = vpop.f32.mrf.mxu0
      %1139 = vmatprep.mubr.f32.mxu0 0.0
      %1140 = vmatmul.mubr.f32.gmra.mxu0 %v1065
      %v1141 = vpop.f32.mrf.mxu0
      %v1142 = vadd.f32 0.0, %v1141
      %v1143 = vpop.f32.mrf.mxu0
      %1144 = vmatprep.mubr.f32.mxu0 0.0
      %1145 = vmatmul.mubr.f32.gmra.mxu0 %v1068
      %v1146 = vpop.f32.mrf.mxu0
      %v1147 = vadd.f32 0.0, %v1146
      %v1148 = vpop.f32.mrf.mxu0
      %1149 = vdwg.mxu0
      %v1150 = vadd.f32 %v1058, %v1137
      %v1151 = vadd.f32 %v1059, %v1142
      %v1152 = vadd.f32 %v1060, %v1147
      %1153 = vst.msk [vmem:[#allocation3] sm:$0xff] %vm221, %v1150
      %1154 = vst.msk [vmem:[#allocation3 + $0x8] sm:$0xff] %vm221, %v1151
      %1155 = vst.msk [vmem:[#allocation3 + $0x10] sm:$0xf] %vm224, %v1152
      %v1156 = vld [vmem:[#allocation3] sm:$0xff]
      %v1157 = vld [vmem:[#allocation3 + $0x8] sm:$0xff]
      %v1158 = vld [vmem:[#allocation3 + $0x10] sm:$0xf]
      %v1159 = vld [vmem:[%s2] sm:$0xff]
      %v1160 = vld [vmem:[%s2 + $0x8] sm:$0xff]
      %v1161 = vld [vmem:[%s2 + $0x10] sm:$0xf]
      %1163 = vset.pattern.permute.xlu0 0
      %1164 = vperm.xlu0 %1163, %v1159
      %v1165 = vpop.permute.xlu0 %1164
      %1168 = vset.pattern.permute.xlu0 0
      %1169 = vperm.xlu0 %1168, %v1160
      %v1170 = vpop.permute.xlu0 %1169
      %1173 = vset.pattern.permute.xlu0 0
      %1174 = vperm.xlu0 %1173, %v1161
      %v1175 = vpop.permute.xlu0 %1174
      %v1177 = vmul.f32 %v1156, %v1165
      %v1178 = vmul.f32 %v1157, %v1170
      %v1179 = vmul.f32 %v1158, %v1175
      %v1180 = vsel %vm221, %v1177, 0.0
      %v1181 = vsel %vm221, %v1178, 0.0
      %v1182 = vadd.f32 %v1180, %v1181
      %v1183 = vsel %vm224, %v1179, 0.0
      %v1184 = vadd.f32 %v1182, %v1183
      %v1185 = vrot.slane %v1184, 4
      %v1186 = vadd.f32 %v1184, %v1185
      %v1187 = vrot.slane %v1186, 2
      %v1188 = vadd.f32 %v1186, %v1187
      %v1189 = vrot.slane %v1188, 1
      %v1190 = vadd.f32 %v1188, %v1189
      %v1191 = vmul.f32 %v1190, 0.0625
      %v1192 = vmul.f32 %v1177, %v1156
      %v1193 = vmul.f32 %v1178, %v1157
      %v1194 = vmul.f32 %v1179, %v1158
      %v1195 = vsel %vm221, %v1192, 0.0
      %v1196 = vsel %vm221, %v1193, 0.0
      %v1197 = vadd.f32 %v1195, %v1196
      %v1198 = vsel %vm224, %v1194, 0.0
      %v1199 = vadd.f32 %v1197, %v1198
      %v1200 = vrot.slane %v1199, 4
      %v1201 = vadd.f32 %v1199, %v1200
      %v1202 = vrot.slane %v1201, 2
      %v1203 = vadd.f32 %v1201, %v1202
      %v1204 = vrot.slane %v1203, 1
      %v1205 = vadd.f32 %v1203, %v1204
      %v1206 = vmul.f32 %v1205, 0.0625
      %v1207 = vmul.f32 %v1191, %v1191
      %v1208 = vsub.f32 %v1206, %v1207
      %v1209 = vmax.f32 %v1208, 0.0
      %v1210 = vsub.f32 %v1156, %v1191
      %v1211 = vsub.f32 %v1157, %v1191
      %v1212 = vsub.f32 %v1158, %v1191
      %v1213 = vadd.f32 %v1209, 1e-05
      %v1214 = vrsqrt.pop %v1213
      %v1215 = vmul.f32 %v1210, %v1214
      %v1216 = vmul.f32 %v1211, %v1214
      %v1217 = vmul.f32 %v1212, %v1214
      %vm1218 = vcmp.gt.f32.partialorder %v1215, 0.0
      %vm1219 = vcmp.gt.f32.partialorder %v1216, 0.0
      %vm1220 = vcmp.gt.f32.partialorder %v1217, 0.0
      %v1221 = vmul.f32 %v1215, 0.2
      %v1222 = vmul.f32 %v1216, 0.2
      %v1223 = vmul.f32 %v1217, 0.2
      %v1224 = vsel %vm1218, %v1215, %v1221
      %v1225 = vsel %vm1219, %v1216, %v1222
      %v1226 = vsel %vm1220, %v1217, %v1223
      %v1227 = vpack.c.bf16 %v1225, %v1224
      %v1228 = vpack.c.bf16 %v1226, %v1226
      %v1231 = vunpack.c.l.b16 %v1227
      %v1232 = vunpack.c.h.b16 %v1227
      %v1233 = vunpack.c.l.b16 %v1228
      %v1234 = vpack.c.b16 %v1231, %v1231
      %v1235 = vpack.c.b16 %v1232, %v1232
      %v1236 = vpack.c.b16 %v1233, %v1233
      %1240 = vst.msk [vmem:[%s170] sm:$0xf] %vm224, %v1234
      %1241 = vst.msk [vmem:[%s170 + $0x4] sm:$0xf] %vm224, %v1235
      %vm1242 = vcmask 254976
      %1243 = vst.msk [vmem:[%s170 + $0x8] sm:$0x3] %vm1242, %v1236
      %p1244 = scmp.lt.s32.totalorder %s14, 1
      %s1245 = scalar_select %p1244, %s14, 1
      %s1246 = smul.addr %s1245, 3
      %s1247 = smul.addr %s1246, 4
      %s1248 = scalar_lea.vmem %s3, %s1247
      // Predicated region
      $region33: #{discriminator_forward.6} parent=31 // pred_check
        %p1249 = pneg %p100
      $region34: #{discriminator_forward.6} parent=31 // pred_check_branch
        %1251 = sbr.rel (%p1249) target = $region36
      $region35: #{discriminator_forward.6} parent=31 // pred_region
        _
      $region36: #{discriminator_forward.6} parent=31 // pred_fallthru
        _
    $region32: #{discriminator_forward.6} parent=5 // pred_fallthru
      _
    %p1252 = scmp.le.s32.totalorder 2, %s9
    // Predicated region
    $region37: #{discriminator_forward.6} parent=5 // pred_check
      %p1253 = pneg %p1252
    $region38: #{discriminator_forward.6} parent=5 // pred_check_branch
      %1255 = sbr.rel (%p1253) target = $region40
    $region39: #{discriminator_forward.6} parent=5 // pred_region
      %s1256 = ssub.s32 %s9, 2
      // Predicated region
      $region41: #{discriminator_forward.6} parent=39 // pred_check
        %p1257 = pneg %p106
      $region42: #{discriminator_forward.6} parent=39 // pred_check_branch
        %1259 = sbr.rel (%p1257) target = $region44
      $region43: #{discriminator_forward.6} parent=39 // pred_region
        %p1260 = scmp.lt.s32.totalorder %s15, 1
        %s1261 = scalar_select %p1260, %s15, 1
        %s1262 = smul.addr %s1261, 3
        %s1263 = smul.addr %s1262, 4
        %s1264 = scalar_lea.vmem %s3, %s1263
      $region44: #{discriminator_forward.6} parent=39 // pred_fallthru
        _
    $region40: #{discriminator_forward.6} parent=5 // pred_fallthru
      _
  $region6: #{discriminator_forward.6} parent=0 // loop_footer
    %s13 = sadd.s32 1, %s9
  $region7: #{discriminator_forward.6} parent=0 // loop_footer_branch
    %8 = sbr.rel target = $region3
  $region8: #{discriminator_forward.6} parent=0 // loop_exit
    _

</llo_original>
